<compile_context>
chip_gen: v7x
topology: tpu7x:2x2x1
jax: 0.10.0
libtpu: 0.0.40
codegen_flags: <defaults>
</compile_context>

<pallas_src>
import functools

import jax
import jax.numpy as jnp
from jax.experimental import pallas as pl
from jax.experimental.pallas import tpu as pltpu


def _gru_cell(x, h, w_ih, w_hh, b_ih, b_hh, H):
    # PyTorch GRU cell semantics (gate order r, z, n).
    # Matmul inputs in bf16 (MXU / HBM-bandwidth win), gate math in f32.
    gi = jnp.dot(x.astype(jnp.bfloat16), w_ih,
                 preferred_element_type=jnp.float32) + b_ih
    gh = jnp.dot(h.astype(jnp.bfloat16), w_hh,
                 preferred_element_type=jnp.float32) + b_hh
    r = jax.nn.sigmoid(gi[:, 0:H] + gh[:, 0:H])
    z = jax.nn.sigmoid(gi[:, H:2 * H] + gh[:, H:2 * H])
    n = jnp.tanh(gi[:, 2 * H:3 * H] + r * gh[:, 2 * H:3 * H])
    return (1.0 - z) * n + z * h


# --------------------------------------------------------------------------- #
# Kernel 1: embeddings combine + bottom GRU + multi-head attention + L decoder
#           layers (GRU + LayerNorm + residual) + final combine.  Layer weight
#           stacks are streamed HBM->VMEM with double-buffered manual DMA.
# --------------------------------------------------------------------------- #
def rnmt_core_kernel(
    # ---- inputs ----
    emb_ref, wcat_ref, bcat_ref,
    h_ref,
    g0_wih_ref, g0_whh_ref, g0_bih_ref, g0_bhh_ref,
    wq_ref, wk_ref, wv_ref, bq_ref, bk_ref, bv_ref, wo_ref, bo_ref,
    enc_ref,
    acw_hbm, acb_ref,
    gih_hbm, ghh_hbm, gbih_ref, gbhh_ref,
    lng_ref, lnb_ref,
    wac2_ref, bac2_ref,
    # ---- outputs ----
    comb_ref, hout_ref, attnw_ref,
    # ---- scratch ----
    acw_buf, gih_buf, ghh_buf, dma_sem,
    *, num_heads, num_layers,
):
    H = wq_ref.shape[0]
    B = emb_ref.shape[0]
    S = enc_ref.shape[1]
    dh = H // num_heads
    scale = 1.0 / (dh ** 0.5)

    # ---- manual double-buffered stream of per-layer decoder weights ----
    def start_fetch(layer, slot):
        pltpu.make_async_copy(acw_hbm.at[layer], acw_buf.at[slot], dma_sem.at[slot, 0]).start()
        pltpu.make_async_copy(gih_hbm.at[layer], gih_buf.at[slot], dma_sem.at[slot, 1]).start()
        pltpu.make_async_copy(ghh_hbm.at[layer], ghh_buf.at[slot], dma_sem.at[slot, 2]).start()

    def wait_fetch(layer, slot):
        pltpu.make_async_copy(acw_hbm.at[layer], acw_buf.at[slot], dma_sem.at[slot, 0]).wait()
        pltpu.make_async_copy(gih_hbm.at[layer], gih_buf.at[slot], dma_sem.at[slot, 1]).wait()
        pltpu.make_async_copy(ghh_hbm.at[layer], ghh_buf.at[slot], dma_sem.at[slot, 2]).wait()

    # kick off layer 0's weight DMA so it overlaps the front-end compute
    start_fetch(0, 0)

    # ---- cat_embeddings linear (dropout == identity in eval) ----
    x0 = jnp.dot(emb_ref[...], wcat_ref[...],
                 preferred_element_type=jnp.float32) + bcat_ref[...]

    # ---- bottom GRU (seq_len == 1): output equals new hidden state ----
    new_h0 = _gru_cell(x0, h_ref[0], g0_wih_ref[...], g0_whh_ref[...],
                       g0_bih_ref[...], g0_bhh_ref[...], H)
    hout_ref[0] = new_h0
    rnn_out = new_h0                                                  # (B, H) f32

    # ---- multi-head attention, vectorized over batch (query length == 1) ----
    qp = (jnp.dot(rnn_out.astype(jnp.bfloat16), wq_ref[...],
                  preferred_element_type=jnp.float32) + bq_ref[...]) * scale
    # TODO(synk): for autoregressive decoding, precompute kp/vp once per sequence
    # outside the per-step kernel (they are constant across decode steps).
    enc2d = enc_ref[...].reshape(B * S, H)                            # bf16
    kp = (jnp.dot(enc2d, wk_ref[...], preferred_element_type=jnp.float32)
          + bk_ref[...]).reshape(B, S, H)
    vp = (jnp.dot(enc2d, wv_ref[...], preferred_element_type=jnp.float32)
          + bv_ref[...]).reshape(B, S, H)

    q3 = qp.reshape(B, 1, H)
    ctx_heads = []
    aw_acc = jnp.zeros((B, 1, S), jnp.float32)
    for hd in range(num_heads):
        lo = hd * dh
        qh = q3[:, :, lo:lo + dh]                                     # (B, 1, dh)
        kh = kp[:, :, lo:lo + dh]                                     # (B, S, dh)
        vh = vp[:, :, lo:lo + dh]                                     # (B, S, dh)
        scores = jnp.einsum('bqd,bkd->bqk', qh, kh,
                            preferred_element_type=jnp.float32)       # (B, 1, S)
        m = jnp.max(scores, axis=-1, keepdims=True)
        e = jnp.exp(scores - m)
        w = e * pl.reciprocal(jnp.sum(e, axis=-1, keepdims=True), approx=True)
        ctx_heads.append(jnp.einsum('bqk,bkd->bqd', w, vh,
                                    preferred_element_type=jnp.float32))
        aw_acc = aw_acc + w
    # heads are contiguous in H -> concat then one full (B,H)@(H,H) out-projection
    ctx = jnp.concatenate(ctx_heads, axis=-1).reshape(B, H)
    attn_out = jnp.dot(ctx.astype(jnp.bfloat16), wo_ref[...],
                       preferred_element_type=jnp.float32) + bo_ref[...]
    # lane-dense attention-weights output: (B, 1, S), S on the lane axis,
    # averaged over heads (matches PyTorch average_attn_weights=True)
    attnw_ref[...] = aw_acc * (1.0 / num_heads)

    # ---- stack of RNMT+ decoder layers (weights streamed + double-buffered) ----
    x = rnn_out
    for i in range(num_layers):
        slot = i % 2
        wait_fetch(i, slot)
        if i + 1 < num_layers:
            start_fetch(i + 1, 1 - slot)           # prefetch next layer's weights
        xa = jnp.concatenate([x, attn_out], axis=-1).astype(jnp.bfloat16)  # (B, 2H)
        emb_i = jnp.dot(xa, acw_buf[slot],
                        preferred_element_type=jnp.float32) + acb_ref[i]
        new_h = _gru_cell(emb_i, h_ref[i + 1], gih_buf[slot], ghh_buf[slot],
                          gbih_ref[i], gbhh_ref[i], H)
        hout_ref[i + 1] = new_h
        mu = jnp.mean(new_h, axis=-1, keepdims=True)
        var = jnp.mean((new_h - mu) ** 2, axis=-1, keepdims=True)
        ln = (new_h - mu) * jax.lax.rsqrt(var + 1e-5) * lng_ref[i] + lnb_ref[i]
        x = ln + x                                  # dropout == identity (eval)

    # ---- final combine: cat([x, attn]) @ w_ac2 + b ----
    xa = jnp.concatenate([x, attn_out], axis=-1).astype(jnp.bfloat16)
    comb_ref[...] = jnp.dot(xa, wac2_ref[...],
                            preferred_element_type=jnp.float32) + bac2_ref[...]


# --------------------------------------------------------------------------- #
# Kernel 2: vocab-tiled output projection with online max/LSE accumulation.
#           w_out is streamed one (H, TILE_V) block at a time (pipelined DMA).
# --------------------------------------------------------------------------- #
def vocab_proj_kernel(comb_ref, wout_ref, bout_ref, logits_ref, lse_ref,
                      m_sc, l_sc):
    j = pl.program_id(0)

    @pl.when(j == 0)
    def _():
        m_sc[...] = jnp.full(m_sc.shape, -jnp.inf, jnp.float32)
        l_sc[...] = jnp.zeros(l_sc.shape, jnp.float32)

    logits = jnp.dot(comb_ref[...].astype(jnp.bfloat16), wout_ref[...],
                     preferred_element_type=jnp.float32) + bout_ref[...]
    logits_ref[...] = logits

    m_prev = m_sc[...]
    m_new = jnp.maximum(m_prev, jnp.max(logits, axis=-1, keepdims=True))
    l_sc[...] = (l_sc[...] * jnp.exp(m_prev - m_new)
                 + jnp.sum(jnp.exp(logits - m_new), axis=-1, keepdims=True))
    m_sc[...] = m_new

    @pl.when(j == pl.num_programs(0) - 1)
    def _():
        lse_ref[...] = m_sc[...] + jnp.log(l_sc[...])


# --------------------------------------------------------------------------- #
# Kernel 3: normalize logits -> log-probs, vocab-tiled, "parallel" grid axis.
# --------------------------------------------------------------------------- #
def logsoftmax_finalize_kernel(logits_ref, lse_ref, logp_ref):
    logp_ref[...] = logits_ref[...] - lse_ref[...]


def rnmt_plus_decoder_forward(params, token_ids, hiddens, cells, encoder_outputs,
                              *, num_heads, num_layers, span_size):
    """JAX wrapper: embedding gather (glue) + three Pallas kernels."""
    # TODO(synk): span_size > 1 needs per-span log_softmax in the vocab kernels.
    assert span_size == 1
    B = token_ids.shape[0]
    H = params["embedding"].shape[1]
    S = encoder_outputs.shape[1]
    V_span = params["w_out"].shape[1]
    V = V_span // span_size
    L = num_layers
    p = params

    # ---- glue: embedding gather (data-dependent gather stays outside Pallas) ----
    emb = p["embedding"][token_ids].reshape(B, span_size * H)         # bf16
    enc_bf16 = encoder_outputs.astype(jnp.bfloat16)
    hiddens = hiddens.astype(jnp.float32)

    # ---- kernel 1: decoder core ----
    vmem = pl.BlockSpec(memory_space=pltpu.MemorySpace.VMEM)
    hbm = pl.BlockSpec(memory_space=pl.ANY)        # layer weight stacks stay in HBM
    args_and_specs = [
        (emb, vmem), (p["w_cat"], vmem), (p["b_cat"], vmem),
        (hiddens, vmem),
        (p["g0_wih"], vmem), (p["g0_whh"], vmem), (p["g0_bih"], vmem), (p["g0_bhh"], vmem),
        (p["wq"], vmem), (p["wk"], vmem), (p["wv"], vmem),
        (p["bq"], vmem), (p["bk"], vmem), (p["bv"], vmem),
        (p["wo"], vmem), (p["bo"], vmem),
        (enc_bf16, vmem),
        (p["ac_w"], hbm), (p["ac_b"], vmem),
        (p["gw_ih"], hbm), (p["gw_hh"], hbm),
        (p["gb_ih"], vmem), (p["gb_hh"], vmem),
        (p["ln_g"], vmem), (p["ln_b"], vmem),
        (p["w_ac2"], vmem), (p["b_ac2"], vmem),
    ]
    inputs = tuple(a for a, _ in args_and_specs)
    in_specs = [s for _, s in args_and_specs]

    def _nbytes(x):
        return int(x.size) * int(x.dtype.itemsize)

    resident_bytes = sum(_nbytes(a) for a, s in args_and_specs if s is vmem)
    resident_bytes += (L + 1) * B * H * 4 + B * H * 4 + B * S * 4          # outputs
    resident_bytes += 2 * (2 * H * H + 2 * H * 3 * H) * 2                  # dbl-buffered bf16 layer weights
    vmem_limit = int(max(32 << 20, min(1.25 * resident_bytes + (2 << 20), 64 << 20)))

    kernel1 = functools.partial(rnmt_core_kernel,
                                num_heads=num_heads, num_layers=num_layers)

    comb, hout, attnw = pl.pallas_call(
        kernel1,
        out_shape=(
            jax.ShapeDtypeStruct((B, H), jnp.float32),          # combined features
            jax.ShapeDtypeStruct((L + 1, B, H), jnp.float32),   # new hidden states
            jax.ShapeDtypeStruct((B, 1, S), jnp.float32),       # attn weights (lane-dense)
        ),
        in_specs=in_specs,
        out_specs=(vmem, vmem, vmem),
        scratch_shapes=[
            pltpu.VMEM((2, 2 * H, H), jnp.bfloat16),            # ac_w double buffer
            pltpu.VMEM((2, H, 3 * H), jnp.bfloat16),            # gw_ih double buffer
            pltpu.VMEM((2, H, 3 * H), jnp.bfloat16),            # gw_hh double buffer
            pltpu.SemaphoreType.DMA((2, 3)),
        ],
        compiler_params=pltpu.CompilerParams(vmem_limit_bytes=vmem_limit),
    )(*inputs)

    # ---- kernel 2: vocab-tiled projection + online LSE ----
    tile_v = V_span
    for cand in (512, 256, 128):
        if V_span % cand == 0:
            tile_v = cand
            break
    n_vt = V_span // tile_v

    logits, lse = pl.pallas_call(
        vocab_proj_kernel,
        out_shape=(jax.ShapeDtypeStruct((B, V_span), jnp.float32),
                   jax.ShapeDtypeStruct((B, 1), jnp.float32)),
        grid_spec=pltpu.PrefetchScalarGridSpec(
            num_scalar_prefetch=0, grid=(n_vt,),
            in_specs=[pl.BlockSpec((B, H), lambda j: (0, 0)),
                      pl.BlockSpec((H, tile_v), lambda j: (0, j)),
                      pl.BlockSpec((1, tile_v), lambda j: (0, j))],
            out_specs=[pl.BlockSpec((B, tile_v), lambda j: (0, j)),
                       pl.BlockSpec((B, 1), lambda j: (0, 0))],
            scratch_shapes=[pltpu.VMEM((B, 1), jnp.float32),
                            pltpu.VMEM((B, 1), jnp.float32)]),
        compiler_params=pltpu.CompilerParams(
            dimension_semantics=("arbitrary",)),
        cost_estimate=pl.CostEstimate(
            flops=int(2 * B * H * V_span),
            transcendentals=int(B * V_span),
            bytes_accessed=int(H * V_span * 2 + V_span * 4
                               + B * V_span * 4 + B * H * 4 + B * 4)),
    )(comb, p["w_out"], p["b_out"])

    # ---- kernel 3: log_softmax finalize (parallel over vocab tiles) ----
    logp2d = pl.pallas_call(
        logsoftmax_finalize_kernel,
        out_shape=jax.ShapeDtypeStruct((B, V_span), jnp.float32),
        grid_spec=pltpu.PrefetchScalarGridSpec(
            num_scalar_prefetch=0, grid=(n_vt,),
            in_specs=[pl.BlockSpec((B, tile_v), lambda j: (0, j)),
                      pl.BlockSpec((B, 1), lambda j: (0, 0))],
            out_specs=pl.BlockSpec((B, tile_v), lambda j: (0, j))),
        compiler_params=pltpu.CompilerParams(
            dimension_semantics=("parallel",)),
    )(logits, lse)

    log_probs = logp2d.reshape(B, span_size, V)
    return log_probs, hout, cells, attnw


def init_params(key, *, H, V, L, span, heads):
    bf = jnp.bfloat16

    def u(k, shape, dtype=jnp.float32):
        return jax.random.uniform(k, shape, jnp.float32, -0.1, 0.1).astype(dtype)

    ks = iter(jax.random.split(key, 64))
    p = {
        "embedding": u(next(ks), (V, H), bf),
        "w_cat": u(next(ks), (span * H, H), bf), "b_cat": u(next(ks), (1, H)),
        "g0_wih": u(next(ks), (H, 3 * H), bf), "g0_whh": u(next(ks), (H, 3 * H), bf),
        "g0_bih": u(next(ks), (1, 3 * H)), "g0_bhh": u(next(ks), (1, 3 * H)),
        "wq": u(next(ks), (H, H), bf), "wk": u(next(ks), (H, H), bf), "wv": u(next(ks), (H, H), bf),
        "bq": u(next(ks), (1, H)), "bk": u(next(ks), (1, H)), "bv": u(next(ks), (1, H)),
        "wo": u(next(ks), (H, H), bf), "bo": u(next(ks), (1, H)),
        "ac_w": u(next(ks), (L, 2 * H, H), bf), "ac_b": u(next(ks), (L, 1, H)),
        "gw_ih": u(next(ks), (L, H, 3 * H), bf), "gw_hh": u(next(ks), (L, H, 3 * H), bf),
        "gb_ih": u(next(ks), (L, 1, 3 * H)), "gb_hh": u(next(ks), (L, 1, 3 * H)),
        "ln_g": jnp.ones((L, 1, H), jnp.float32),
        "ln_b": jnp.zeros((L, 1, H), jnp.float32),
        "w_ac2": u(next(ks), (2 * H, H), bf), "b_ac2": u(next(ks), (1, H)),
        "w_out": u(next(ks), (H, V * span), bf), "b_out": u(next(ks), (1, V * span)),
    }
    return p


if __name__ == "__main__":
    # small but hardware-friendly demo shapes: B multiple of 8, H multiple of 128,
    # vocab chosen so the vocab-tiled kernels run a multi-tile grid (384 = 3*128).
    H, V, L, SPAN, HEADS = 128, 384, 4, 1, 4
    B, S = 8, 8

    key = jax.random.PRNGKey(0)
    kp, kt, kh, ke = jax.random.split(key, 4)

    params = init_params(kp, H=H, V=V, L=L, span=SPAN, heads=HEADS)
    token_ids = jax.random.randint(kt, (B, SPAN), 0, V)
    hiddens = 0.1 * jax.random.normal(kh, (L + 1, B, H), jnp.float32)
    cells = jnp.zeros((L + 1, B, H), jnp.float32)   # unused for GRU, passed through
    encoder_outputs = jax.random.normal(ke, (B, S, H), jnp.float32)

    log_probs, new_hiddens, new_cells, attn_w = rnmt_plus_decoder_forward(
        params, token_ids, hiddens, cells, encoder_outputs,
        num_heads=HEADS, num_layers=L, span_size=SPAN)

    jax.block_until_ready((log_probs, new_hiddens, new_cells, attn_w))
    assert log_probs.shape == (B, SPAN, V)
    assert new_hiddens.shape == (L + 1, B, H)
    assert attn_w.shape == (B, 1, S)
    print("KERNEL_OK")
</pallas_src>

<mosaic_0001>
module attributes {stable_mosaic.version = 11 : i64} {
  func.func @rnmt_core_kernel(%arg0: memref<8x128xbf16, #tpu.memory_space<vmem>>, %arg1: memref<128x128xbf16, #tpu.memory_space<vmem>>, %arg2: memref<1x128xf32, #tpu.memory_space<vmem>>, %arg3: memref<5x8x128xf32, #tpu.memory_space<vmem>>, %arg4: memref<128x384xbf16, #tpu.memory_space<vmem>>, %arg5: memref<128x384xbf16, #tpu.memory_space<vmem>>, %arg6: memref<1x384xf32, #tpu.memory_space<vmem>>, %arg7: memref<1x384xf32, #tpu.memory_space<vmem>>, %arg8: memref<128x128xbf16, #tpu.memory_space<vmem>>, %arg9: memref<128x128xbf16, #tpu.memory_space<vmem>>, %arg10: memref<128x128xbf16, #tpu.memory_space<vmem>>, %arg11: memref<1x128xf32, #tpu.memory_space<vmem>>, %arg12: memref<1x128xf32, #tpu.memory_space<vmem>>, %arg13: memref<1x128xf32, #tpu.memory_space<vmem>>, %arg14: memref<128x128xbf16, #tpu.memory_space<vmem>>, %arg15: memref<1x128xf32, #tpu.memory_space<vmem>>, %arg16: memref<8x8x128xbf16, #tpu.memory_space<vmem>>, %arg17: memref<4x256x128xbf16, #tpu.memory_space<any>>, %arg18: memref<4x1x128xf32, #tpu.memory_space<vmem>>, %arg19: memref<4x128x384xbf16, #tpu.memory_space<any>>, %arg20: memref<4x128x384xbf16, #tpu.memory_space<any>>, %arg21: memref<4x1x384xf32, #tpu.memory_space<vmem>>, %arg22: memref<4x1x384xf32, #tpu.memory_space<vmem>>, %arg23: memref<4x1x128xf32, #tpu.memory_space<vmem>>, %arg24: memref<4x1x128xf32, #tpu.memory_space<vmem>>, %arg25: memref<256x128xbf16, #tpu.memory_space<vmem>>, %arg26: memref<1x128xf32, #tpu.memory_space<vmem>>, %arg27: memref<8x128xf32, #tpu.memory_space<vmem>>, %arg28: memref<5x8x128xf32, #tpu.memory_space<vmem>>, %arg29: memref<8x1x8xf32, #tpu.memory_space<vmem>>, %arg30: memref<2x256x128xbf16, #tpu.memory_space<vmem>>, %arg31: memref<2x128x384xbf16, #tpu.memory_space<vmem>>, %arg32: memref<2x128x384xbf16, #tpu.memory_space<vmem>>, %arg33: memref<2x3x!tpu.dma_semaphore, #tpu.memory_space<semaphore_mem>>) attributes {dimension_semantics = [], scalar_prefetch = 0 : i64, scratch_operands = 4 : i64, tpu.core_type = #tpu.core_type<tc>} {
    %c0_i32 = arith.constant 0 : i32
    %c0_i32_0 = arith.constant 0 : i32
    %c0_i32_1 = arith.constant 0 : i32
    %c0_i32_2 = arith.constant 0 : i32
    %c0_i32_3 = arith.constant 0 : i32
    %c0_i32_4 = arith.constant 0 : i32
    %0 = tpu.memref_slice %arg17[%c0_i32, %c0_i32_3, %c0_i32_4] : memref<4x256x128xbf16, #tpu.memory_space<any>> -> memref<1x256x128xbf16, #tpu.memory_space<any>>
    %1 = tpu.memref_squeeze %0 : memref<1x256x128xbf16, #tpu.memory_space<any>> -> memref<256x128xbf16, #tpu.memory_space<any>>
    %c0_i32_5 = arith.constant 0 : i32
    %c0_i32_6 = arith.constant 0 : i32
    %2 = tpu.memref_slice %arg30[%c0_i32_0, %c0_i32_5, %c0_i32_6] : memref<2x256x128xbf16, #tpu.memory_space<vmem>> -> memref<1x256x128xbf16, #tpu.memory_space<vmem>>
    %3 = tpu.memref_squeeze %2 : memref<1x256x128xbf16, #tpu.memory_space<vmem>> -> memref<256x128xbf16, #tpu.memory_space<vmem>>
    %4 = tpu.memref_slice %arg33[%c0_i32_1, %c0_i32_2] : memref<2x3x!tpu.dma_semaphore, #tpu.memory_space<semaphore_mem>> -> memref<1x1x!tpu.dma_semaphore, #tpu.memory_space<semaphore_mem>>
    %5 = tpu.memref_squeeze %4 : memref<1x1x!tpu.dma_semaphore, #tpu.memory_space<semaphore_mem>> -> memref<!tpu.dma_semaphore, #tpu.memory_space<semaphore_mem>>
    tpu.enqueue_dma source(%1 : memref<256x128xbf16, #tpu.memory_space<any>>) target(%3 : memref<256x128xbf16, #tpu.memory_space<vmem>>) target_semaphore(%5 : memref<!tpu.dma_semaphore, #tpu.memory_space<semaphore_mem>>)
    %c0_i32_7 = arith.constant 0 : i32
    %c0_i32_8 = arith.constant 0 : i32
    %c0_i32_9 = arith.constant 0 : i32
    %c1_i32 = arith.constant 1 : i32
    %c0_i32_10 = arith.constant 0 : i32
    %c0_i32_11 = arith.constant 0 : i32
    %6 = tpu.memref_slice %arg19[%c0_i32_7, %c0_i32_10, %c0_i32_11] : memref<4x128x384xbf16, #tpu.memory_space<any>> -> memref<1x128x384xbf16, #tpu.memory_space<any>>
    %7 = tpu.memref_squeeze %6 : memref<1x128x384xbf16, #tpu.memory_space<any>> -> memref<128x384xbf16, #tpu.memory_space<any>>
    %c0_i32_12 = arith.constant 0 : i32
    %c0_i32_13 = arith.constant 0 : i32
    %8 = tpu.memref_slice %arg31[%c0_i32_8, %c0_i32_12, %c0_i32_13] : memref<2x128x384xbf16, #tpu.memory_space<vmem>> -> memref<1x128x384xbf16, #tpu.memory_space<vmem>>
    %9 = tpu.memref_squeeze %8 : memref<1x128x384xbf16, #tpu.memory_space<vmem>> -> memref<128x384xbf16, #tpu.memory_space<vmem>>
    %10 = tpu.memref_slice %arg33[%c0_i32_9, %c1_i32] : memref<2x3x!tpu.dma_semaphore, #tpu.memory_space<semaphore_mem>> -> memref<1x1x!tpu.dma_semaphore, #tpu.memory_space<semaphore_mem>>
    %11 = tpu.memref_squeeze %10 : memref<1x1x!tpu.dma_semaphore, #tpu.memory_space<semaphore_mem>> -> memref<!tpu.dma_semaphore, #tpu.memory_space<semaphore_mem>>
    tpu.enqueue_dma source(%7 : memref<128x384xbf16, #tpu.memory_space<any>>) target(%9 : memref<128x384xbf16, #tpu.memory_space<vmem>>) target_semaphore(%11 : memref<!tpu.dma_semaphore, #tpu.memory_space<semaphore_mem>>)
    %c0_i32_14 = arith.constant 0 : i32
    %c0_i32_15 = arith.constant 0 : i32
    %c0_i32_16 = arith.constant 0 : i32
    %c2_i32 = arith.constant 2 : i32
    %c0_i32_17 = arith.constant 0 : i32
    %c0_i32_18 = arith.constant 0 : i32
    %12 = tpu.memref_slice %arg20[%c0_i32_14, %c0_i32_17, %c0_i32_18] : memref<4x128x384xbf16, #tpu.memory_space<any>> -> memref<1x128x384xbf16, #tpu.memory_space<any>>
    %13 = tpu.memref_squeeze %12 : memref<1x128x384xbf16, #tpu.memory_space<any>> -> memref<128x384xbf16, #tpu.memory_space<any>>
    %c0_i32_19 = arith.constant 0 : i32
    %c0_i32_20 = arith.constant 0 : i32
    %14 = tpu.memref_slice %arg32[%c0_i32_15, %c0_i32_19, %c0_i32_20] : memref<2x128x384xbf16, #tpu.memory_space<vmem>> -> memref<1x128x384xbf16, #tpu.memory_space<vmem>>
    %15 = tpu.memref_squeeze %14 : memref<1x128x384xbf16, #tpu.memory_space<vmem>> -> memref<128x384xbf16, #tpu.memory_space<vmem>>
    %16 = tpu.memref_slice %arg33[%c0_i32_16, %c2_i32] : memref<2x3x!tpu.dma_semaphore, #tpu.memory_space<semaphore_mem>> -> memref<1x1x!tpu.dma_semaphore, #tpu.memory_space<semaphore_mem>>
    %17 = tpu.memref_squeeze %16 : memref<1x1x!tpu.dma_semaphore, #tpu.memory_space<semaphore_mem>> -> memref<!tpu.dma_semaphore, #tpu.memory_space<semaphore_mem>>
    tpu.enqueue_dma source(%13 : memref<128x384xbf16, #tpu.memory_space<any>>) target(%15 : memref<128x384xbf16, #tpu.memory_space<vmem>>) target_semaphore(%17 : memref<!tpu.dma_semaphore, #tpu.memory_space<semaphore_mem>>)
    %c0 = arith.constant 0 : index
    %c0_21 = arith.constant 0 : index
    %18 = vector.load %arg0[%c0, %c0_21] : memref<8x128xbf16, #tpu.memory_space<vmem>>, vector<8x128xbf16>
    %c0_22 = arith.constant 0 : index
    %c0_23 = arith.constant 0 : index
    %19 = vector.load %arg1[%c0_22, %c0_23] : memref<128x128xbf16, #tpu.memory_space<vmem>>, vector<128x128xbf16>
    %cst = arith.constant dense<0.000000e+00> : vector<8x128xf32>
    %20 = tpu.matmul %18, %19, %cst {dimension_numbers = #tpu.dot_dimension_numbers<[1], [0], [0], [1], [0, 0, 1, 1], [], []>} : vector<8x128xbf16>, vector<128x128xbf16>, vector<8x128xf32> -> vector<8x128xf32>
    %c0_24 = arith.constant 0 : index
    %c0_25 = arith.constant 0 : index
    %21 = vector.load %arg2[%c0_24, %c0_25] : memref<1x128xf32, #tpu.memory_space<vmem>>, vector<1x128xf32>
    %22 = vector.broadcast %21 : vector<1x128xf32> to vector<8x128xf32>
    %23 = arith.addf %20, %22 : vector<8x128xf32>
    %c0_26 = arith.constant 0 : index
    %c0_27 = arith.constant 0 : index
    %c0_28 = arith.constant 0 : index
    %24 = vector.load %arg3[%c0_26, %c0_27, %c0_28] : memref<5x8x128xf32, #tpu.memory_space<vmem>>, vector<1x8x128xf32>
    %25 = vector.shape_cast %24 : vector<1x8x128xf32> to vector<8x128xf32>
    %c0_29 = arith.constant 0 : index
    %c0_30 = arith.constant 0 : index
    %26 = vector.load %arg4[%c0_29, %c0_30] : memref<128x384xbf16, #tpu.memory_space<vmem>>, vector<128x384xbf16>
    %c0_31 = arith.constant 0 : index
    %c0_32 = arith.constant 0 : index
    %27 = vector.load %arg5[%c0_31, %c0_32] : memref<128x384xbf16, #tpu.memory_space<vmem>>, vector<128x384xbf16>
    %c0_33 = arith.constant 0 : index
    %c0_34 = arith.constant 0 : index
    %28 = vector.load %arg6[%c0_33, %c0_34] : memref<1x384xf32, #tpu.memory_space<vmem>>, vector<1x384xf32>
    %c0_35 = arith.constant 0 : index
    %c0_36 = arith.constant 0 : index
    %29 = vector.load %arg7[%c0_35, %c0_36] : memref<1x384xf32, #tpu.memory_space<vmem>>, vector<1x384xf32>
    %30 = arith.truncf %23 : vector<8x128xf32> to vector<8x128xbf16>
    %cst_37 = arith.constant dense<0.000000e+00> : vector<8x384xf32>
    %31 = tpu.matmul %30, %26, %cst_37 {dimension_numbers = #tpu.dot_dimension_numbers<[1], [0], [0], [1], [0, 0, 1, 1], [], []>} : vector<8x128xbf16>, vector<128x384xbf16>, vector<8x384xf32> -> vector<8x384xf32>
    %32 = vector.broadcast %28 : vector<1x384xf32> to vector<8x384xf32>
    %33 = arith.addf %31, %32 : vector<8x384xf32>
    %34 = arith.truncf %25 : vector<8x128xf32> to vector<8x128xbf16>
    %cst_38 = arith.constant dense<0.000000e+00> : vector<8x384xf32>
    %35 = tpu.matmul %34, %27, %cst_38 {dimension_numbers = #tpu.dot_dimension_numbers<[1], [0], [0], [1], [0, 0, 1, 1], [], []>} : vector<8x128xbf16>, vector<128x384xbf16>, vector<8x384xf32> -> vector<8x384xf32>
    %36 = vector.broadcast %29 : vector<1x384xf32> to vector<8x384xf32>
    %37 = arith.addf %35, %36 : vector<8x384xf32>
    %38 = vector.extract_strided_slice %33 {offsets = [0, 0], sizes = [8, 128], strides = [1, 1]} : vector<8x384xf32> to vector<8x128xf32>
    %39 = vector.extract_strided_slice %37 {offsets = [0, 0], sizes = [8, 128], strides = [1, 1]} : vector<8x384xf32> to vector<8x128xf32>
    %40 = arith.addf %38, %39 : vector<8x128xf32>
    %41 = arith.negf %40 : vector<8x128xf32>
    %42 = math.exp %41 : vector<8x128xf32>
    %cst_39 = arith.constant 1.000000e+00 : f32
    %43 = vector.broadcast %cst_39 : f32 to vector<8x128xf32>
    %44 = arith.addf %43, %42 : vector<8x128xf32>
    %45 = arith.divf %43, %44 : vector<8x128xf32>
    %46 = vector.extract_strided_slice %33 {offsets = [0, 128], sizes = [8, 128], strides = [1, 1]} : vector<8x384xf32> to vector<8x128xf32>
    %47 = vector.extract_strided_slice %37 {offsets = [0, 128], sizes = [8, 128], strides = [1, 1]} : vector<8x384xf32> to vector<8x128xf32>
    %48 = arith.addf %46, %47 : vector<8x128xf32>
    %49 = arith.negf %48 : vector<8x128xf32>
    %50 = math.exp %49 : vector<8x128xf32>
    %cst_40 = arith.constant 1.000000e+00 : f32
    %51 = vector.broadcast %cst_40 : f32 to vector<8x128xf32>
    %52 = arith.addf %51, %50 : vector<8x128xf32>
    %53 = arith.divf %51, %52 : vector<8x128xf32>
    %54 = vector.extract_strided_slice %33 {offsets = [0, 256], sizes = [8, 128], strides = [1, 1]} : vector<8x384xf32> to vector<8x128xf32>
    %55 = vector.extract_strided_slice %37 {offsets = [0, 256], sizes = [8, 128], strides = [1, 1]} : vector<8x384xf32> to vector<8x128xf32>
    %56 = arith.mulf %45, %55 : vector<8x128xf32>
    %57 = arith.addf %54, %56 : vector<8x128xf32>
    %58 = math.tanh %57 : vector<8x128xf32>
    %cst_41 = arith.constant 1.000000e+00 : f32
    %59 = vector.broadcast %cst_41 : f32 to vector<8x128xf32>
    %60 = arith.subf %59, %53 : vector<8x128xf32>
    %61 = arith.mulf %60, %58 : vector<8x128xf32>
    %62 = arith.mulf %53, %25 : vector<8x128xf32>
    %63 = arith.addf %61, %62 : vector<8x128xf32>
    %c0_42 = arith.constant 0 : index
    %c0_43 = arith.constant 0 : index
    %c0_44 = arith.constant 0 : index
    %64 = vector.load %arg28[%c0_42, %c0_43, %c0_44] : memref<5x8x128xf32, #tpu.memory_space<vmem>>, vector<1x8x128xf32>
    %65 = vector.shape_cast %64 : vector<1x8x128xf32> to vector<8x128xf32>
    %66 = vector.shape_cast %63 : vector<8x128xf32> to vector<1x8x128xf32>
    tpu.vector_store %arg28[%c0_42, %c0_43, %c0_44], %66 {strides = array<i32>} : memref<5x8x128xf32, #tpu.memory_space<vmem>>, vector<1x8x128xf32>,
    %67 = arith.truncf %63 : vector<8x128xf32> to vector<8x128xbf16>
    %c0_45 = arith.constant 0 : index
    %c0_46 = arith.constant 0 : index
    %68 = vector.load %arg8[%c0_45, %c0_46] : memref<128x128xbf16, #tpu.memory_space<vmem>>, vector<128x128xbf16>
    %cst_47 = arith.constant dense<0.000000e+00> : vector<8x128xf32>
    %69 = tpu.matmul %67, %68, %cst_47 {dimension_numbers = #tpu.dot_dimension_numbers<[1], [0], [0], [1], [0, 0, 1, 1], [], []>} : vector<8x128xbf16>, vector<128x128xbf16>, vector<8x128xf32> -> vector<8x128xf32>
    %c0_48 = arith.constant 0 : index
    %c0_49 = arith.constant 0 : index
    %70 = vector.load %arg11[%c0_48, %c0_49] : memref<1x128xf32, #tpu.memory_space<vmem>>, vector<1x128xf32>
    %71 = vector.broadcast %70 : vector<1x128xf32> to vector<8x128xf32>
    %72 = arith.addf %69, %71 : vector<8x128xf32>
    %cst_50 = arith.constant 0.176776692 : f32
    %73 = vector.broadcast %cst_50 : f32 to vector<8x128xf32>
    %74 = arith.mulf %72, %73 : vector<8x128xf32>
    %c0_51 = arith.constant 0 : index
    %c0_52 = arith.constant 0 : index
    %c0_53 = arith.constant 0 : index
    %75 = vector.load %arg16[%c0_51, %c0_52, %c0_53] : memref<8x8x128xbf16, #tpu.memory_space<vmem>>, vector<8x8x128xbf16>
    %76 = vector.shape_cast %75 : vector<8x8x128xbf16> to vector<64x128xbf16>
    %c0_54 = arith.constant 0 : index
    %c0_55 = arith.constant 0 : index
    %77 = vector.load %arg9[%c0_54, %c0_55] : memref<128x128xbf16, #tpu.memory_space<vmem>>, vector<128x128xbf16>
    %cst_56 = arith.constant dense<0.000000e+00> : vector<64x128xf32>
    %78 = tpu.matmul %76, %77, %cst_56 {dimension_numbers = #tpu.dot_dimension_numbers<[1], [0], [0], [1], [0, 0, 1, 1], [], []>} : vector<64x128xbf16>, vector<128x128xbf16>, vector<64x128xf32> -> vector<64x128xf32>
    %c0_57 = arith.constant 0 : index
    %c0_58 = arith.constant 0 : index
    %79 = vector.load %arg12[%c0_57, %c0_58] : memref<1x128xf32, #tpu.memory_space<vmem>>, vector<1x128xf32>
    %80 = vector.broadcast %79 : vector<1x128xf32> to vector<64x128xf32>
    %81 = arith.addf %78, %80 : vector<64x128xf32>
    %82 = vector.shape_cast %81 : vector<64x128xf32> to vector<8x8x128xf32>
    %c0_59 = arith.constant 0 : index
    %c0_60 = arith.constant 0 : index
    %83 = vector.load %arg10[%c0_59, %c0_60] : memref<128x128xbf16, #tpu.memory_space<vmem>>, vector<128x128xbf16>
    %cst_61 = arith.constant dense<0.000000e+00> : vector<64x128xf32>
    %84 = tpu.matmul %76, %83, %cst_61 {dimension_numbers = #tpu.dot_dimension_numbers<[1], [0], [0], [1], [0, 0, 1, 1], [], []>} : vector<64x128xbf16>, vector<128x128xbf16>, vector<64x128xf32> -> vector<64x128xf32>
    %c0_62 = arith.constant 0 : index
    %c0_63 = arith.constant 0 : index
    %85 = vector.load %arg13[%c0_62, %c0_63] : memref<1x128xf32, #tpu.memory_space<vmem>>, vector<1x128xf32>
    %86 = vector.broadcast %85 : vector<1x128xf32> to vector<64x128xf32>
    %87 = arith.addf %84, %86 : vector<64x128xf32>
    %88 = vector.shape_cast %87 : vector<64x128xf32> to vector<8x8x128xf32>
    %89 = vector.shape_cast %74 : vector<8x128xf32> to vector<8x1x128xf32>
    %cst_64 = arith.constant 0.000000e+00 : f32
    %90 = vector.broadcast %cst_64 : f32 to vector<8x1x8xf32>
    %91 = vector.extract_strided_slice %89 {offsets = [0, 0, 0], sizes = [8, 1, 32], strides = [1, 1, 1]} : vector<8x1x128xf32> to vector<8x1x32xf32>
    %92 = vector.extract_strided_slice %82 {offsets = [0, 0, 0], sizes = [8, 8, 32], strides = [1, 1, 1]} : vector<8x8x128xf32> to vector<8x8x32xf32>
    %93 = vector.extract_strided_slice %88 {offsets = [0, 0, 0], sizes = [8, 8, 32], strides = [1, 1, 1]} : vector<8x8x128xf32> to vector<8x8x32xf32>
    "tpu.trace_start"() <{level = 10 : i32, message = "bqd,bkd->bqk"}> : () -> ()
    %cst_65 = arith.constant dense<0.000000e+00> : vector<8x1x8xf32>
    %94 = tpu.matmul %91, %92, %cst_65 {dimension_numbers = #tpu.dot_dimension_numbers<[2], [2], [1], [1], [0, 0, 0, 1, 1, 1], [0], [0]>} : vector<8x1x32xf32>, vector<8x8x32xf32>, vector<8x1x8xf32> -> vector<8x1x8xf32>
    "tpu.trace_stop"() : () -> ()
    %cst_66 = arith.constant dense<0xFF800000> : vector<8x1xf32>
    %95 = vector.multi_reduction <maximumf>, %94, %cst_66 [2] : vector<8x1x8xf32> to vector<8x1xf32>
    %96 = vector.shape_cast %95 : vector<8x1xf32> to vector<8x1x1xf32>
    %97 = vector.broadcast %96 : vector<8x1x1xf32> to vector<8x1x8xf32>
    %98 = arith.subf %94, %97 : vector<8x1x8xf32>
    %99 = math.exp %98 : vector<8x1x8xf32>
    %cst_67 = arith.constant dense<0.000000e+00> : vector<8x1xf32>
    %100 = vector.multi_reduction <add>, %99, %cst_67 [2] : vector<8x1x8xf32> to vector<8x1xf32>
    %101 = vector.shape_cast %100 : vector<8x1xf32> to vector<8x1x1xf32>
    %102 = tpu.reciprocal %101 {approx = true} : vector<8x1x1xf32> -> vector<8x1x1xf32>
    %103 = vector.broadcast %102 : vector<8x1x1xf32> to vector<8x1x8xf32>
    %104 = arith.mulf %99, %103 : vector<8x1x8xf32>
    "tpu.trace_start"() <{level = 10 : i32, message = "bqk,bkd->bqd"}> : () -> ()
    %cst_68 = arith.constant dense<0.000000e+00> : vector<8x1x32xf32>
    %105 = tpu.matmul %104, %93, %cst_68 {dimension_numbers = #tpu.dot_dimension_numbers<[2], [1], [1], [2], [0, 0, 0, 1, 1, 2], [0], [0]>} : vector<8x1x8xf32>, vector<8x8x32xf32>, vector<8x1x32xf32> -> vector<8x1x32xf32>
    "tpu.trace_stop"() : () -> ()
    %106 = arith.addf %90, %104 : vector<8x1x8xf32>
    %107 = vector.extract_strided_slice %89 {offsets = [0, 0, 32], sizes = [8, 1, 32], strides = [1, 1, 1]} : vector<8x1x128xf32> to vector<8x1x32xf32>
    %108 = vector.extract_strided_slice %82 {offsets = [0, 0, 32], sizes = [8, 8, 32], strides = [1, 1, 1]} : vector<8x8x128xf32> to vector<8x8x32xf32>
    %109 = vector.extract_strided_slice %88 {offsets = [0, 0, 32], sizes = [8, 8, 32], strides = [1, 1, 1]} : vector<8x8x128xf32> to vector<8x8x32xf32>
    "tpu.trace_start"() <{level = 10 : i32, message = "bqd,bkd->bqk"}> : () -> ()
    %cst_69 = arith.constant dense<0.000000e+00> : vector<8x1x8xf32>
    %110 = tpu.matmul %107, %108, %cst_69 {dimension_numbers = #tpu.dot_dimension_numbers<[2], [2], [1], [1], [0, 0, 0, 1, 1, 1], [0], [0]>} : vector<8x1x32xf32>, vector<8x8x32xf32>, vector<8x1x8xf32> -> vector<8x1x8xf32>
    "tpu.trace_stop"() : () -> ()
    %cst_70 = arith.constant dense<0xFF800000> : vector<8x1xf32>
    %111 = vector.multi_reduction <maximumf>, %110, %cst_70 [2] : vector<8x1x8xf32> to vector<8x1xf32>
    %112 = vector.shape_cast %111 : vector<8x1xf32> to vector<8x1x1xf32>
    %113 = vector.broadcast %112 : vector<8x1x1xf32> to vector<8x1x8xf32>
    %114 = arith.subf %110, %113 : vector<8x1x8xf32>
    %115 = math.exp %114 : vector<8x1x8xf32>
    %cst_71 = arith.constant dense<0.000000e+00> : vector<8x1xf32>
    %116 = vector.multi_reduction <add>, %115, %cst_71 [2] : vector<8x1x8xf32> to vector<8x1xf32>
    %117 = vector.shape_cast %116 : vector<8x1xf32> to vector<8x1x1xf32>
    %118 = tpu.reciprocal %117 {approx = true} : vector<8x1x1xf32> -> vector<8x1x1xf32>
    %119 = vector.broadcast %118 : vector<8x1x1xf32> to vector<8x1x8xf32>
    %120 = arith.mulf %115, %119 : vector<8x1x8xf32>
    "tpu.trace_start"() <{level = 10 : i32, message = "bqk,bkd->bqd"}> : () -> ()
    %cst_72 = arith.constant dense<0.000000e+00> : vector<8x1x32xf32>
    %121 = tpu.matmul %120, %109, %cst_72 {dimension_numbers = #tpu.dot_dimension_numbers<[2], [1], [1], [2], [0, 0, 0, 1, 1, 2], [0], [0]>} : vector<8x1x8xf32>, vector<8x8x32xf32>, vector<8x1x32xf32> -> vector<8x1x32xf32>
    "tpu.trace_stop"() : () -> ()
    %122 = arith.addf %106, %120 : vector<8x1x8xf32>
    %123 = vector.extract_strided_slice %89 {offsets = [0, 0, 64], sizes = [8, 1, 32], strides = [1, 1, 1]} : vector<8x1x128xf32> to vector<8x1x32xf32>
    %124 = vector.extract_strided_slice %82 {offsets = [0, 0, 64], sizes = [8, 8, 32], strides = [1, 1, 1]} : vector<8x8x128xf32> to vector<8x8x32xf32>
    %125 = vector.extract_strided_slice %88 {offsets = [0, 0, 64], sizes = [8, 8, 32], strides = [1, 1, 1]} : vector<8x8x128xf32> to vector<8x8x32xf32>
    "tpu.trace_start"() <{level = 10 : i32, message = "bqd,bkd->bqk"}> : () -> ()
    %cst_73 = arith.constant dense<0.000000e+00> : vector<8x1x8xf32>
    %126 = tpu.matmul %123, %124, %cst_73 {dimension_numbers = #tpu.dot_dimension_numbers<[2], [2], [1], [1], [0, 0, 0, 1, 1, 1], [0], [0]>} : vector<8x1x32xf32>, vector<8x8x32xf32>, vector<8x1x8xf32> -> vector<8x1x8xf32>
    "tpu.trace_stop"() : () -> ()
    %cst_74 = arith.constant dense<0xFF800000> : vector<8x1xf32>
    %127 = vector.multi_reduction <maximumf>, %126, %cst_74 [2] : vector<8x1x8xf32> to vector<8x1xf32>
    %128 = vector.shape_cast %127 : vector<8x1xf32> to vector<8x1x1xf32>
    %129 = vector.broadcast %128 : vector<8x1x1xf32> to vector<8x1x8xf32>
    %130 = arith.subf %126, %129 : vector<8x1x8xf32>
    %131 = math.exp %130 : vector<8x1x8xf32>
    %cst_75 = arith.constant dense<0.000000e+00> : vector<8x1xf32>
    %132 = vector.multi_reduction <add>, %131, %cst_75 [2] : vector<8x1x8xf32> to vector<8x1xf32>
    %133 = vector.shape_cast %132 : vector<8x1xf32> to vector<8x1x1xf32>
    %134 = tpu.reciprocal %133 {approx = true} : vector<8x1x1xf32> -> vector<8x1x1xf32>
    %135 = vector.broadcast %134 : vector<8x1x1xf32> to vector<8x1x8xf32>
    %136 = arith.mulf %131, %135 : vector<8x1x8xf32>
    "tpu.trace_start"() <{level = 10 : i32, message = "bqk,bkd->bqd"}> : () -> ()
    %cst_76 = arith.constant dense<0.000000e+00> : vector<8x1x32xf32>
    %137 = tpu.matmul %136, %125, %cst_76 {dimension_numbers = #tpu.dot_dimension_numbers<[2], [1], [1], [2], [0, 0, 0, 1, 1, 2], [0], [0]>} : vector<8x1x8xf32>, vector<8x8x32xf32>, vector<8x1x32xf32> -> vector<8x1x32xf32>
    "tpu.trace_stop"() : () -> ()
    %138 = arith.addf %122, %136 : vector<8x1x8xf32>
    %139 = vector.extract_strided_slice %89 {offsets = [0, 0, 96], sizes = [8, 1, 32], strides = [1, 1, 1]} : vector<8x1x128xf32> to vector<8x1x32xf32>
    %140 = vector.extract_strided_slice %82 {offsets = [0, 0, 96], sizes = [8, 8, 32], strides = [1, 1, 1]} : vector<8x8x128xf32> to vector<8x8x32xf32>
    %141 = vector.extract_strided_slice %88 {offsets = [0, 0, 96], sizes = [8, 8, 32], strides = [1, 1, 1]} : vector<8x8x128xf32> to vector<8x8x32xf32>
    "tpu.trace_start"() <{level = 10 : i32, message = "bqd,bkd->bqk"}> : () -> ()
    %cst_77 = arith.constant dense<0.000000e+00> : vector<8x1x8xf32>
    %142 = tpu.matmul %139, %140, %cst_77 {dimension_numbers = #tpu.dot_dimension_numbers<[2], [2], [1], [1], [0, 0, 0, 1, 1, 1], [0], [0]>} : vector<8x1x32xf32>, vector<8x8x32xf32>, vector<8x1x8xf32> -> vector<8x1x8xf32>
    "tpu.trace_stop"() : () -> ()
    %cst_78 = arith.constant dense<0xFF800000> : vector<8x1xf32>
    %143 = vector.multi_reduction <maximumf>, %142, %cst_78 [2] : vector<8x1x8xf32> to vector<8x1xf32>
    %144 = vector.shape_cast %143 : vector<8x1xf32> to vector<8x1x1xf32>
    %145 = vector.broadcast %144 : vector<8x1x1xf32> to vector<8x1x8xf32>
    %146 = arith.subf %142, %145 : vector<8x1x8xf32>
    %147 = math.exp %146 : vector<8x1x8xf32>
    %cst_79 = arith.constant dense<0.000000e+00> : vector<8x1xf32>
    %148 = vector.multi_reduction <add>, %147, %cst_79 [2] : vector<8x1x8xf32> to vector<8x1xf32>
    %149 = vector.shape_cast %148 : vector<8x1xf32> to vector<8x1x1xf32>
    %150 = tpu.reciprocal %149 {approx = true} : vector<8x1x1xf32> -> vector<8x1x1xf32>
    %151 = vector.broadcast %150 : vector<8x1x1xf32> to vector<8x1x8xf32>
    %152 = arith.mulf %147, %151 : vector<8x1x8xf32>
    "tpu.trace_start"() <{level = 10 : i32, message = "bqk,bkd->bqd"}> : () -> ()
    %cst_80 = arith.constant dense<0.000000e+00> : vector<8x1x32xf32>
    %153 = tpu.matmul %152, %141, %cst_80 {dimension_numbers = #tpu.dot_dimension_numbers<[2], [1], [1], [2], [0, 0, 0, 1, 1, 2], [0], [0]>} : vector<8x1x8xf32>, vector<8x8x32xf32>, vector<8x1x32xf32> -> vector<8x1x32xf32>
    "tpu.trace_stop"() : () -> ()
    %154 = arith.addf %138, %152 : vector<8x1x8xf32>
    %155 = tpu.concatenate %105, %121, %137, %153 in 2 : vector<8x1x32xf32>, vector<8x1x32xf32>, vector<8x1x32xf32>, vector<8x1x32xf32> -> vector<8x1x128xf32>
    %156 = vector.shape_cast %155 : vector<8x1x128xf32> to vector<8x128xf32>
    %157 = arith.truncf %156 : vector<8x128xf32> to vector<8x128xbf16>
    %c0_81 = arith.constant 0 : index
    %c0_82 = arith.constant 0 : index
    %158 = vector.load %arg14[%c0_81, %c0_82] : memref<128x128xbf16, #tpu.memory_space<vmem>>, vector<128x128xbf16>
    %cst_83 = arith.constant dense<0.000000e+00> : vector<8x128xf32>
    %159 = tpu.matmul %157, %158, %cst_83 {dimension_numbers = #tpu.dot_dimension_numbers<[1], [0], [0], [1], [0, 0, 1, 1], [], []>} : vector<8x128xbf16>, vector<128x128xbf16>, vector<8x128xf32> -> vector<8x128xf32>
    %c0_84 = arith.constant 0 : index
    %c0_85 = arith.constant 0 : index
    %160 = vector.load %arg15[%c0_84, %c0_85] : memref<1x128xf32, #tpu.memory_space<vmem>>, vector<1x128xf32>
    %161 = vector.broadcast %160 : vector<1x128xf32> to vector<8x128xf32>
    %162 = arith.addf %159, %161 : vector<8x128xf32>
    %cst_86 = arith.constant 2.500000e-01 : f32
    %163 = vector.broadcast %cst_86 : f32 to vector<8x1x8xf32>
    %164 = arith.mulf %154, %163 : vector<8x1x8xf32>
    %c0_87 = arith.constant 0 : index
    %c0_88 = arith.constant 0 : index
    %c0_89 = arith.constant 0 : index
    %165 = vector.load %arg29[%c0_87, %c0_88, %c0_89] : memref<8x1x8xf32, #tpu.memory_space<vmem>>, vector<8x1x8xf32>
    tpu.vector_store %arg29[%c0_87, %c0_88, %c0_89], %164 {strides = array<i32>} : memref<8x1x8xf32, #tpu.memory_space<vmem>>, vector<8x1x8xf32>,
    %c0_i32_90 = arith.constant 0 : i32
    %c0_i32_91 = arith.constant 0 : i32
    %c0_i32_92 = arith.constant 0 : i32
    %c0_i32_93 = arith.constant 0 : i32
    %c0_i32_94 = arith.constant 0 : i32
    %c0_i32_95 = arith.constant 0 : i32
    %166 = tpu.memref_slice %arg17[%c0_i32_90, %c0_i32_94, %c0_i32_95] : memref<4x256x128xbf16, #tpu.memory_space<any>> -> memref<1x256x128xbf16, #tpu.memory_space<any>>
    %167 = tpu.memref_squeeze %166 : memref<1x256x128xbf16, #tpu.memory_space<any>> -> memref<256x128xbf16, #tpu.memory_space<any>>
    %c0_i32_96 = arith.constant 0 : i32
    %c0_i32_97 = arith.constant 0 : i32
    %168 = tpu.memref_slice %arg30[%c0_i32_91, %c0_i32_96, %c0_i32_97] : memref<2x256x128xbf16, #tpu.memory_space<vmem>> -> memref<1x256x128xbf16, #tpu.memory_space<vmem>>
    %169 = tpu.memref_squeeze %168 : memref<1x256x128xbf16, #tpu.memory_space<vmem>> -> memref<256x128xbf16, #tpu.memory_space<vmem>>
    %170 = tpu.memref_slice %arg33[%c0_i32_92, %c0_i32_93] : memref<2x3x!tpu.dma_semaphore, #tpu.memory_space<semaphore_mem>> -> memref<1x1x!tpu.dma_semaphore, #tpu.memory_space<semaphore_mem>>
    %171 = tpu.memref_squeeze %170 : memref<1x1x!tpu.dma_semaphore, #tpu.memory_space<semaphore_mem>> -> memref<!tpu.dma_semaphore, #tpu.memory_space<semaphore_mem>>
    tpu.wait_dma2 semaphore(%171 : memref<!tpu.dma_semaphore, #tpu.memory_space<semaphore_mem>>) src(%167 : memref<256x128xbf16, #tpu.memory_space<any>>) dst(%169 : memref<256x128xbf16, #tpu.memory_space<vmem>>)
    %c0_i32_98 = arith.constant 0 : i32
    %c0_i32_99 = arith.constant 0 : i32
    %c0_i32_100 = arith.constant 0 : i32
    %c1_i32_101 = arith.constant 1 : i32
    %c0_i32_102 = arith.constant 0 : i32
    %c0_i32_103 = arith.constant 0 : i32
    %172 = tpu.memref_slice %arg19[%c0_i32_98, %c0_i32_102, %c0_i32_103] : memref<4x128x384xbf16, #tpu.memory_space<any>> -> memref<1x128x384xbf16, #tpu.memory_space<any>>
    %173 = tpu.memref_squeeze %172 : memref<1x128x384xbf16, #tpu.memory_space<any>> -> memref<128x384xbf16, #tpu.memory_space<any>>
    %c0_i32_104 = arith.constant 0 : i32
    %c0_i32_105 = arith.constant 0 : i32
    %174 = tpu.memref_slice %arg31[%c0_i32_99, %c0_i32_104, %c0_i32_105] : memref<2x128x384xbf16, #tpu.memory_space<vmem>> -> memref<1x128x384xbf16, #tpu.memory_space<vmem>>
    %175 = tpu.memref_squeeze %174 : memref<1x128x384xbf16, #tpu.memory_space<vmem>> -> memref<128x384xbf16, #tpu.memory_space<vmem>>
    %176 = tpu.memref_slice %arg33[%c0_i32_100, %c1_i32_101] : memref<2x3x!tpu.dma_semaphore, #tpu.memory_space<semaphore_mem>> -> memref<1x1x!tpu.dma_semaphore, #tpu.memory_space<semaphore_mem>>
    %177 = tpu.memref_squeeze %176 : memref<1x1x!tpu.dma_semaphore, #tpu.memory_space<semaphore_mem>> -> memref<!tpu.dma_semaphore, #tpu.memory_space<semaphore_mem>>
    tpu.wait_dma2 semaphore(%177 : memref<!tpu.dma_semaphore, #tpu.memory_space<semaphore_mem>>) src(%173 : memref<128x384xbf16, #tpu.memory_space<any>>) dst(%175 : memref<128x384xbf16, #tpu.memory_space<vmem>>)
    %c0_i32_106 = arith.constant 0 : i32
    %c0_i32_107 = arith.constant 0 : i32
    %c0_i32_108 = arith.constant 0 : i32
    %c2_i32_109 = arith.constant 2 : i32
    %c0_i32_110 = arith.constant 0 : i32
    %c0_i32_111 = arith.constant 0 : i32
    %178 = tpu.memref_slice %arg20[%c0_i32_106, %c0_i32_110, %c0_i32_111] : memref<4x128x384xbf16, #tpu.memory_space<any>> -> memref<1x128x384xbf16, #tpu.memory_space<any>>
    %179 = tpu.memref_squeeze %178 : memref<1x128x384xbf16, #tpu.memory_space<any>> -> memref<128x384xbf16, #tpu.memory_space<any>>
    %c0_i32_112 = arith.constant 0 : i32
    %c0_i32_113 = arith.constant 0 : i32
    %180 = tpu.memref_slice %arg32[%c0_i32_107, %c0_i32_112, %c0_i32_113] : memref<2x128x384xbf16, #tpu.memory_space<vmem>> -> memref<1x128x384xbf16, #tpu.memory_space<vmem>>
    %181 = tpu.memref_squeeze %180 : memref<1x128x384xbf16, #tpu.memory_space<vmem>> -> memref<128x384xbf16, #tpu.memory_space<vmem>>
    %182 = tpu.memref_slice %arg33[%c0_i32_108, %c2_i32_109] : memref<2x3x!tpu.dma_semaphore, #tpu.memory_space<semaphore_mem>> -> memref<1x1x!tpu.dma_semaphore, #tpu.memory_space<semaphore_mem>>
    %183 = tpu.memref_squeeze %182 : memref<1x1x!tpu.dma_semaphore, #tpu.memory_space<semaphore_mem>> -> memref<!tpu.dma_semaphore, #tpu.memory_space<semaphore_mem>>
    tpu.wait_dma2 semaphore(%183 : memref<!tpu.dma_semaphore, #tpu.memory_space<semaphore_mem>>) src(%179 : memref<128x384xbf16, #tpu.memory_space<any>>) dst(%181 : memref<128x384xbf16, #tpu.memory_space<vmem>>)
    %c1_i32_114 = arith.constant 1 : i32
    %c1_i32_115 = arith.constant 1 : i32
    %c1_i32_116 = arith.constant 1 : i32
    %c0_i32_117 = arith.constant 0 : i32
    %c0_i32_118 = arith.constant 0 : i32
    %c0_i32_119 = arith.constant 0 : i32
    %184 = tpu.memref_slice %arg17[%c1_i32_114, %c0_i32_118, %c0_i32_119] : memref<4x256x128xbf16, #tpu.memory_space<any>> -> memref<1x256x128xbf16, #tpu.memory_space<any>>
    %185 = tpu.memref_squeeze %184 : memref<1x256x128xbf16, #tpu.memory_space<any>> -> memref<256x128xbf16, #tpu.memory_space<any>>
    %c0_i32_120 = arith.constant 0 : i32
    %c0_i32_121 = arith.constant 0 : i32
    %186 = tpu.memref_slice %arg30[%c1_i32_115, %c0_i32_120, %c0_i32_121] : memref<2x256x128xbf16, #tpu.memory_space<vmem>> -> memref<1x256x128xbf16, #tpu.memory_space<vmem>>
    %187 = tpu.memref_squeeze %186 : memref<1x256x128xbf16, #tpu.memory_space<vmem>> -> memref<256x128xbf16, #tpu.memory_space<vmem>>
    %188 = tpu.memref_slice %arg33[%c1_i32_116, %c0_i32_117] : memref<2x3x!tpu.dma_semaphore, #tpu.memory_space<semaphore_mem>> -> memref<1x1x!tpu.dma_semaphore, #tpu.memory_space<semaphore_mem>>
    %189 = tpu.memref_squeeze %188 : memref<1x1x!tpu.dma_semaphore, #tpu.memory_space<semaphore_mem>> -> memref<!tpu.dma_semaphore, #tpu.memory_space<semaphore_mem>>
    tpu.enqueue_dma source(%185 : memref<256x128xbf16, #tpu.memory_space<any>>) target(%187 : memref<256x128xbf16, #tpu.memory_space<vmem>>) target_semaphore(%189 : memref<!tpu.dma_semaphore, #tpu.memory_space<semaphore_mem>>)
    %c1_i32_122 = arith.constant 1 : i32
    %c1_i32_123 = arith.constant 1 : i32
    %c1_i32_124 = arith.constant 1 : i32
    %c1_i32_125 = arith.constant 1 : i32
    %c0_i32_126 = arith.constant 0 : i32
    %c0_i32_127 = arith.constant 0 : i32
    %190 = tpu.memref_slice %arg19[%c1_i32_122, %c0_i32_126, %c0_i32_127] : memref<4x128x384xbf16, #tpu.memory_space<any>> -> memref<1x128x384xbf16, #tpu.memory_space<any>>
    %191 = tpu.memref_squeeze %190 : memref<1x128x384xbf16, #tpu.memory_space<any>> -> memref<128x384xbf16, #tpu.memory_space<any>>
    %c0_i32_128 = arith.constant 0 : i32
    %c0_i32_129 = arith.constant 0 : i32
    %192 = tpu.memref_slice %arg31[%c1_i32_123, %c0_i32_128, %c0_i32_129] : memref<2x128x384xbf16, #tpu.memory_space<vmem>> -> memref<1x128x384xbf16, #tpu.memory_space<vmem>>
    %193 = tpu.memref_squeeze %192 : memref<1x128x384xbf16, #tpu.memory_space<vmem>> -> memref<128x384xbf16, #tpu.memory_space<vmem>>
    %194 = tpu.memref_slice %arg33[%c1_i32_124, %c1_i32_125] : memref<2x3x!tpu.dma_semaphore, #tpu.memory_space<semaphore_mem>> -> memref<1x1x!tpu.dma_semaphore, #tpu.memory_space<semaphore_mem>>
    %195 = tpu.memref_squeeze %194 : memref<1x1x!tpu.dma_semaphore, #tpu.memory_space<semaphore_mem>> -> memref<!tpu.dma_semaphore, #tpu.memory_space<semaphore_mem>>
    tpu.enqueue_dma source(%191 : memref<128x384xbf16, #tpu.memory_space<any>>) target(%193 : memref<128x384xbf16, #tpu.memory_space<vmem>>) target_semaphore(%195 : memref<!tpu.dma_semaphore, #tpu.memory_space<semaphore_mem>>)
    %c1_i32_130 = arith.constant 1 : i32
    %c1_i32_131 = arith.constant 1 : i32
    %c1_i32_132 = arith.constant 1 : i32
    %c2_i32_133 = arith.constant 2 : i32
    %c0_i32_134 = arith.constant 0 : i32
    %c0_i32_135 = arith.constant 0 : i32
    %196 = tpu.memref_slice %arg20[%c1_i32_130, %c0_i32_134, %c0_i32_135] : memref<4x128x384xbf16, #tpu.memory_space<any>> -> memref<1x128x384xbf16, #tpu.memory_space<any>>
    %197 = tpu.memref_squeeze %196 : memref<1x128x384xbf16, #tpu.memory_space<any>> -> memref<128x384xbf16, #tpu.memory_space<any>>
    %c0_i32_136 = arith.constant 0 : i32
    %c0_i32_137 = arith.constant 0 : i32
    %198 = tpu.memref_slice %arg32[%c1_i32_131, %c0_i32_136, %c0_i32_137] : memref<2x128x384xbf16, #tpu.memory_space<vmem>> -> memref<1x128x384xbf16, #tpu.memory_space<vmem>>
    %199 = tpu.memref_squeeze %198 : memref<1x128x384xbf16, #tpu.memory_space<vmem>> -> memref<128x384xbf16, #tpu.memory_space<vmem>>
    %200 = tpu.memref_slice %arg33[%c1_i32_132, %c2_i32_133] : memref<2x3x!tpu.dma_semaphore, #tpu.memory_space<semaphore_mem>> -> memref<1x1x!tpu.dma_semaphore, #tpu.memory_space<semaphore_mem>>
    %201 = tpu.memref_squeeze %200 : memref<1x1x!tpu.dma_semaphore, #tpu.memory_space<semaphore_mem>> -> memref<!tpu.dma_semaphore, #tpu.memory_space<semaphore_mem>>
    tpu.enqueue_dma source(%197 : memref<128x384xbf16, #tpu.memory_space<any>>) target(%199 : memref<128x384xbf16, #tpu.memory_space<vmem>>) target_semaphore(%201 : memref<!tpu.dma_semaphore, #tpu.memory_space<semaphore_mem>>)
    %202 = tpu.concatenate %63, %162 in 1 : vector<8x128xf32>, vector<8x128xf32> -> vector<8x256xf32>
    %203 = arith.truncf %202 : vector<8x256xf32> to vector<8x256xbf16>
    %c0_138 = arith.constant 0 : index
    %c0_139 = arith.constant 0 : index
    %c0_140 = arith.constant 0 : index
    %204 = vector.load %arg30[%c0_138, %c0_139, %c0_140] : memref<2x256x128xbf16, #tpu.memory_space<vmem>>, vector<1x256x128xbf16>
    %205 = vector.shape_cast %204 : vector<1x256x128xbf16> to vector<256x128xbf16>
    %cst_141 = arith.constant dense<0.000000e+00> : vector<8x128xf32>
    %206 = tpu.matmul %203, %205, %cst_141 {dimension_numbers = #tpu.dot_dimension_numbers<[1], [0], [0], [1], [0, 0, 1, 1], [], []>} : vector<8x256xbf16>, vector<256x128xbf16>, vector<8x128xf32> -> vector<8x128xf32>
    %c0_142 = arith.constant 0 : index
    %c0_143 = arith.constant 0 : index
    %c0_144 = arith.constant 0 : index
    %207 = vector.load %arg18[%c0_142, %c0_143, %c0_144] : memref<4x1x128xf32, #tpu.memory_space<vmem>>, vector<1x1x128xf32>
    %208 = vector.shape_cast %207 : vector<1x1x128xf32> to vector<1x128xf32>
    %209 = vector.broadcast %208 : vector<1x128xf32> to vector<8x128xf32>
    %210 = arith.addf %206, %209 : vector<8x128xf32>
    %c1 = arith.constant 1 : index
    %c0_145 = arith.constant 0 : index
    %c0_146 = arith.constant 0 : index
    %211 = vector.load %arg3[%c1, %c0_145, %c0_146] : memref<5x8x128xf32, #tpu.memory_space<vmem>>, vector<1x8x128xf32>
    %212 = vector.shape_cast %211 : vector<1x8x128xf32> to vector<8x128xf32>
    %c0_147 = arith.constant 0 : index
    %c0_148 = arith.constant 0 : index
    %c0_149 = arith.constant 0 : index
    %213 = vector.load %arg31[%c0_147, %c0_148, %c0_149] : memref<2x128x384xbf16, #tpu.memory_space<vmem>>, vector<1x128x384xbf16>
    %214 = vector.shape_cast %213 : vector<1x128x384xbf16> to vector<128x384xbf16>
    %c0_150 = arith.constant 0 : index
    %c0_151 = arith.constant 0 : index
    %c0_152 = arith.constant 0 : index
    %215 = vector.load %arg32[%c0_150, %c0_151, %c0_152] : memref<2x128x384xbf16, #tpu.memory_space<vmem>>, vector<1x128x384xbf16>
    %216 = vector.shape_cast %215 : vector<1x128x384xbf16> to vector<128x384xbf16>
    %c0_153 = arith.constant 0 : index
    %c0_154 = arith.constant 0 : index
    %c0_155 = arith.constant 0 : index
    %217 = vector.load %arg21[%c0_153, %c0_154, %c0_155] : memref<4x1x384xf32, #tpu.memory_space<vmem>>, vector<1x1x384xf32>
    %218 = vector.shape_cast %217 : vector<1x1x384xf32> to vector<1x384xf32>
    %c0_156 = arith.constant 0 : index
    %c0_157 = arith.constant 0 : index
    %c0_158 = arith.constant 0 : index
    %219 = vector.load %arg22[%c0_156, %c0_157, %c0_158] : memref<4x1x384xf32, #tpu.memory_space<vmem>>, vector<1x1x384xf32>
    %220 = vector.shape_cast %219 : vector<1x1x384xf32> to vector<1x384xf32>
    %221 = arith.truncf %210 : vector<8x128xf32> to vector<8x128xbf16>
    %cst_159 = arith.constant dense<0.000000e+00> : vector<8x384xf32>
    %222 = tpu.matmul %221, %214, %cst_159 {dimension_numbers = #tpu.dot_dimension_numbers<[1], [0], [0], [1], [0, 0, 1, 1], [], []>} : vector<8x128xbf16>, vector<128x384xbf16>, vector<8x384xf32> -> vector<8x384xf32>
    %223 = vector.broadcast %218 : vector<1x384xf32> to vector<8x384xf32>
    %224 = arith.addf %222, %223 : vector<8x384xf32>
    %225 = arith.truncf %212 : vector<8x128xf32> to vector<8x128xbf16>
    %cst_160 = arith.constant dense<0.000000e+00> : vector<8x384xf32>
    %226 = tpu.matmul %225, %216, %cst_160 {dimension_numbers = #tpu.dot_dimension_numbers<[1], [0], [0], [1], [0, 0, 1, 1], [], []>} : vector<8x128xbf16>, vector<128x384xbf16>, vector<8x384xf32> -> vector<8x384xf32>
    %227 = vector.broadcast %220 : vector<1x384xf32> to vector<8x384xf32>
    %228 = arith.addf %226, %227 : vector<8x384xf32>
    %229 = vector.extract_strided_slice %224 {offsets = [0, 0], sizes = [8, 128], strides = [1, 1]} : vector<8x384xf32> to vector<8x128xf32>
    %230 = vector.extract_strided_slice %228 {offsets = [0, 0], sizes = [8, 128], strides = [1, 1]} : vector<8x384xf32> to vector<8x128xf32>
    %231 = arith.addf %229, %230 : vector<8x128xf32>
    %232 = arith.negf %231 : vector<8x128xf32>
    %233 = math.exp %232 : vector<8x128xf32>
    %cst_161 = arith.constant 1.000000e+00 : f32
    %234 = vector.broadcast %cst_161 : f32 to vector<8x128xf32>
    %235 = arith.addf %234, %233 : vector<8x128xf32>
    %236 = arith.divf %234, %235 : vector<8x128xf32>
    %237 = vector.extract_strided_slice %224 {offsets = [0, 128], sizes = [8, 128], strides = [1, 1]} : vector<8x384xf32> to vector<8x128xf32>
    %238 = vector.extract_strided_slice %228 {offsets = [0, 128], sizes = [8, 128], strides = [1, 1]} : vector<8x384xf32> to vector<8x128xf32>
    %239 = arith.addf %237, %238 : vector<8x128xf32>
    %240 = arith.negf %239 : vector<8x128xf32>
    %241 = math.exp %240 : vector<8x128xf32>
    %cst_162 = arith.constant 1.000000e+00 : f32
    %242 = vector.broadcast %cst_162 : f32 to vector<8x128xf32>
    %243 = arith.addf %242, %241 : vector<8x128xf32>
    %244 = arith.divf %242, %243 : vector<8x128xf32>
    %245 = vector.extract_strided_slice %224 {offsets = [0, 256], sizes = [8, 128], strides = [1, 1]} : vector<8x384xf32> to vector<8x128xf32>
    %246 = vector.extract_strided_slice %228 {offsets = [0, 256], sizes = [8, 128], strides = [1, 1]} : vector<8x384xf32> to vector<8x128xf32>
    %247 = arith.mulf %236, %246 : vector<8x128xf32>
    %248 = arith.addf %245, %247 : vector<8x128xf32>
    %249 = math.tanh %248 : vector<8x128xf32>
    %cst_163 = arith.constant 1.000000e+00 : f32
    %250 = vector.broadcast %cst_163 : f32 to vector<8x128xf32>
    %251 = arith.subf %250, %244 : vector<8x128xf32>
    %252 = arith.mulf %251, %249 : vector<8x128xf32>
    %253 = arith.mulf %244, %212 : vector<8x128xf32>
    %254 = arith.addf %252, %253 : vector<8x128xf32>
    %c1_164 = arith.constant 1 : index
    %c0_165 = arith.constant 0 : index
    %c0_166 = arith.constant 0 : index
    %255 = vector.load %arg28[%c1_164, %c0_165, %c0_166] : memref<5x8x128xf32, #tpu.memory_space<vmem>>, vector<1x8x128xf32>
    %256 = vector.shape_cast %255 : vector<1x8x128xf32> to vector<8x128xf32>
    %257 = vector.shape_cast %254 : vector<8x128xf32> to vector<1x8x128xf32>
    tpu.vector_store %arg28[%c1_164, %c0_165, %c0_166], %257 {strides = array<i32>} : memref<5x8x128xf32, #tpu.memory_space<vmem>>, vector<1x8x128xf32>,
    %cst_167 = arith.constant dense<0.000000e+00> : vector<8xf32>
    %258 = vector.multi_reduction <add>, %254, %cst_167 [1] : vector<8x128xf32> to vector<8xf32>
    %259 = vector.shape_cast %258 : vector<8xf32> to vector<8x1xf32>
    %cst_168 = arith.constant 1.280000e+02 : f32
    %260 = vector.broadcast %cst_168 : f32 to vector<8x1xf32>
    %261 = arith.divf %259, %260 : vector<8x1xf32>
    %262 = vector.broadcast %261 : vector<8x1xf32> to vector<8x128xf32>
    %263 = arith.subf %254, %262 : vector<8x128xf32>
    %264 = arith.mulf %263, %263 : vector<8x128xf32>
    %cst_169 = arith.constant dense<0.000000e+00> : vector<8xf32>
    %265 = vector.multi_reduction <add>, %264, %cst_169 [1] : vector<8x128xf32> to vector<8xf32>
    %266 = vector.shape_cast %265 : vector<8xf32> to vector<8x1xf32>
    %cst_170 = arith.constant 1.280000e+02 : f32
    %267 = vector.broadcast %cst_170 : f32 to vector<8x1xf32>
    %268 = arith.divf %266, %267 : vector<8x1xf32>
    %269 = vector.broadcast %261 : vector<8x1xf32> to vector<8x128xf32>
    %270 = arith.subf %254, %269 : vector<8x128xf32>
    %cst_171 = arith.constant 9.99999974E-6 : f32
    %271 = vector.broadcast %cst_171 : f32 to vector<8x1xf32>
    %272 = arith.addf %268, %271 : vector<8x1xf32>
    %273 = math.rsqrt %272 : vector<8x1xf32>
    %274 = vector.broadcast %273 : vector<8x1xf32> to vector<8x128xf32>
    %275 = arith.mulf %270, %274 : vector<8x128xf32>
    %c0_172 = arith.constant 0 : index
    %c0_173 = arith.constant 0 : index
    %c0_174 = arith.constant 0 : index
    %276 = vector.load %arg23[%c0_172, %c0_173, %c0_174] : memref<4x1x128xf32, #tpu.memory_space<vmem>>, vector<1x1x128xf32>
    %277 = vector.shape_cast %276 : vector<1x1x128xf32> to vector<1x128xf32>
    %278 = vector.broadcast %277 : vector<1x128xf32> to vector<8x128xf32>
    %279 = arith.mulf %275, %278 : vector<8x128xf32>
    %c0_175 = arith.constant 0 : index
    %c0_176 = arith.constant 0 : index
    %c0_177 = arith.constant 0 : index
    %280 = vector.load %arg24[%c0_175, %c0_176, %c0_177] : memref<4x1x128xf32, #tpu.memory_space<vmem>>, vector<1x1x128xf32>
    %281 = vector.shape_cast %280 : vector<1x1x128xf32> to vector<1x128xf32>
    %282 = vector.broadcast %281 : vector<1x128xf32> to vector<8x128xf32>
    %283 = arith.addf %279, %282 : vector<8x128xf32>
    %284 = arith.addf %283, %63 : vector<8x128xf32>
    %c1_i32_178 = arith.constant 1 : i32
    %c1_i32_179 = arith.constant 1 : i32
    %c1_i32_180 = arith.constant 1 : i32
    %c0_i32_181 = arith.constant 0 : i32
    %c0_i32_182 = arith.constant 0 : i32
    %c0_i32_183 = arith.constant 0 : i32
    %285 = tpu.memref_slice %arg17[%c1_i32_178, %c0_i32_182, %c0_i32_183] : memref<4x256x128xbf16, #tpu.memory_space<any>> -> memref<1x256x128xbf16, #tpu.memory_space<any>>
    %286 = tpu.memref_squeeze %285 : memref<1x256x128xbf16, #tpu.memory_space<any>> -> memref<256x128xbf16, #tpu.memory_space<any>>
    %c0_i32_184 = arith.constant 0 : i32
    %c0_i32_185 = arith.constant 0 : i32
    %287 = tpu.memref_slice %arg30[%c1_i32_179, %c0_i32_184, %c0_i32_185] : memref<2x256x128xbf16, #tpu.memory_space<vmem>> -> memref<1x256x128xbf16, #tpu.memory_space<vmem>>
    %288 = tpu.memref_squeeze %287 : memref<1x256x128xbf16, #tpu.memory_space<vmem>> -> memref<256x128xbf16, #tpu.memory_space<vmem>>
    %289 = tpu.memref_slice %arg33[%c1_i32_180, %c0_i32_181] : memref<2x3x!tpu.dma_semaphore, #tpu.memory_space<semaphore_mem>> -> memref<1x1x!tpu.dma_semaphore, #tpu.memory_space<semaphore_mem>>
    %290 = tpu.memref_squeeze %289 : memref<1x1x!tpu.dma_semaphore, #tpu.memory_space<semaphore_mem>> -> memref<!tpu.dma_semaphore, #tpu.memory_space<semaphore_mem>>
    tpu.wait_dma2 semaphore(%290 : memref<!tpu.dma_semaphore, #tpu.memory_space<semaphore_mem>>) src(%286 : memref<256x128xbf16, #tpu.memory_space<any>>) dst(%288 : memref<256x128xbf16, #tpu.memory_space<vmem>>)
    %c1_i32_186 = arith.constant 1 : i32
    %c1_i32_187 = arith.constant 1 : i32
    %c1_i32_188 = arith.constant 1 : i32
    %c1_i32_189 = arith.constant 1 : i32
    %c0_i32_190 = arith.constant 0 : i32
    %c0_i32_191 = arith.constant 0 : i32
    %291 = tpu.memref_slice %arg19[%c1_i32_186, %c0_i32_190, %c0_i32_191] : memref<4x128x384xbf16, #tpu.memory_space<any>> -> memref<1x128x384xbf16, #tpu.memory_space<any>>
    %292 = tpu.memref_squeeze %291 : memref<1x128x384xbf16, #tpu.memory_space<any>> -> memref<128x384xbf16, #tpu.memory_space<any>>
    %c0_i32_192 = arith.constant 0 : i32
    %c0_i32_193 = arith.constant 0 : i32
    %293 = tpu.memref_slice %arg31[%c1_i32_187, %c0_i32_192, %c0_i32_193] : memref<2x128x384xbf16, #tpu.memory_space<vmem>> -> memref<1x128x384xbf16, #tpu.memory_space<vmem>>
    %294 = tpu.memref_squeeze %293 : memref<1x128x384xbf16, #tpu.memory_space<vmem>> -> memref<128x384xbf16, #tpu.memory_space<vmem>>
    %295 = tpu.memref_slice %arg33[%c1_i32_188, %c1_i32_189] : memref<2x3x!tpu.dma_semaphore, #tpu.memory_space<semaphore_mem>> -> memref<1x1x!tpu.dma_semaphore, #tpu.memory_space<semaphore_mem>>
    %296 = tpu.memref_squeeze %295 : memref<1x1x!tpu.dma_semaphore, #tpu.memory_space<semaphore_mem>> -> memref<!tpu.dma_semaphore, #tpu.memory_space<semaphore_mem>>
    tpu.wait_dma2 semaphore(%296 : memref<!tpu.dma_semaphore, #tpu.memory_space<semaphore_mem>>) src(%292 : memref<128x384xbf16, #tpu.memory_space<any>>) dst(%294 : memref<128x384xbf16, #tpu.memory_space<vmem>>)
    %c1_i32_194 = arith.constant 1 : i32
    %c1_i32_195 = arith.constant 1 : i32
    %c1_i32_196 = arith.constant 1 : i32
    %c2_i32_197 = arith.constant 2 : i32
    %c0_i32_198 = arith.constant 0 : i32
    %c0_i32_199 = arith.constant 0 : i32
    %297 = tpu.memref_slice %arg20[%c1_i32_194, %c0_i32_198, %c0_i32_199] : memref<4x128x384xbf16, #tpu.memory_space<any>> -> memref<1x128x384xbf16, #tpu.memory_space<any>>
    %298 = tpu.memref_squeeze %297 : memref<1x128x384xbf16, #tpu.memory_space<any>> -> memref<128x384xbf16, #tpu.memory_space<any>>
    %c0_i32_200 = arith.constant 0 : i32
    %c0_i32_201 = arith.constant 0 : i32
    %299 = tpu.memref_slice %arg32[%c1_i32_195, %c0_i32_200, %c0_i32_201] : memref<2x128x384xbf16, #tpu.memory_space<vmem>> -> memref<1x128x384xbf16, #tpu.memory_space<vmem>>
    %300 = tpu.memref_squeeze %299 : memref<1x128x384xbf16, #tpu.memory_space<vmem>> -> memref<128x384xbf16, #tpu.memory_space<vmem>>
    %301 = tpu.memref_slice %arg33[%c1_i32_196, %c2_i32_197] : memref<2x3x!tpu.dma_semaphore, #tpu.memory_space<semaphore_mem>> -> memref<1x1x!tpu.dma_semaphore, #tpu.memory_space<semaphore_mem>>
    %302 = tpu.memref_squeeze %301 : memref<1x1x!tpu.dma_semaphore, #tpu.memory_space<semaphore_mem>> -> memref<!tpu.dma_semaphore, #tpu.memory_space<semaphore_mem>>
    tpu.wait_dma2 semaphore(%302 : memref<!tpu.dma_semaphore, #tpu.memory_space<semaphore_mem>>) src(%298 : memref<128x384xbf16, #tpu.memory_space<any>>) dst(%300 : memref<128x384xbf16, #tpu.memory_space<vmem>>)
    %c2_i32_202 = arith.constant 2 : i32
    %c0_i32_203 = arith.constant 0 : i32
    %c0_i32_204 = arith.constant 0 : i32
    %c0_i32_205 = arith.constant 0 : i32
    %c0_i32_206 = arith.constant 0 : i32
    %c0_i32_207 = arith.constant 0 : i32
    %303 = tpu.memref_slice %arg17[%c2_i32_202, %c0_i32_206, %c0_i32_207] : memref<4x256x128xbf16, #tpu.memory_space<any>> -> memref<1x256x128xbf16, #tpu.memory_space<any>>
    %304 = tpu.memref_squeeze %303 : memref<1x256x128xbf16, #tpu.memory_space<any>> -> memref<256x128xbf16, #tpu.memory_space<any>>
    %c0_i32_208 = arith.constant 0 : i32
    %c0_i32_209 = arith.constant 0 : i32
    %305 = tpu.memref_slice %arg30[%c0_i32_203, %c0_i32_208, %c0_i32_209] : memref<2x256x128xbf16, #tpu.memory_space<vmem>> -> memref<1x256x128xbf16, #tpu.memory_space<vmem>>
    %306 = tpu.memref_squeeze %305 : memref<1x256x128xbf16, #tpu.memory_space<vmem>> -> memref<256x128xbf16, #tpu.memory_space<vmem>>
    %307 = tpu.memref_slice %arg33[%c0_i32_204, %c0_i32_205] : memref<2x3x!tpu.dma_semaphore, #tpu.memory_space<semaphore_mem>> -> memref<1x1x!tpu.dma_semaphore, #tpu.memory_space<semaphore_mem>>
    %308 = tpu.memref_squeeze %307 : memref<1x1x!tpu.dma_semaphore, #tpu.memory_space<semaphore_mem>> -> memref<!tpu.dma_semaphore, #tpu.memory_space<semaphore_mem>>
    tpu.enqueue_dma source(%304 : memref<256x128xbf16, #tpu.memory_space<any>>) target(%306 : memref<256x128xbf16, #tpu.memory_space<vmem>>) target_semaphore(%308 : memref<!tpu.dma_semaphore, #tpu.memory_space<semaphore_mem>>)
    %c2_i32_210 = arith.constant 2 : i32
    %c0_i32_211 = arith.constant 0 : i32
    %c0_i32_212 = arith.constant 0 : i32
    %c1_i32_213 = arith.constant 1 : i32
    %c0_i32_214 = arith.constant 0 : i32
    %c0_i32_215 = arith.constant 0 : i32
    %309 = tpu.memref_slice %arg19[%c2_i32_210, %c0_i32_214, %c0_i32_215] : memref<4x128x384xbf16, #tpu.memory_space<any>> -> memref<1x128x384xbf16, #tpu.memory_space<any>>
    %310 = tpu.memref_squeeze %309 : memref<1x128x384xbf16, #tpu.memory_space<any>> -> memref<128x384xbf16, #tpu.memory_space<any>>
    %c0_i32_216 = arith.constant 0 : i32
    %c0_i32_217 = arith.constant 0 : i32
    %311 = tpu.memref_slice %arg31[%c0_i32_211, %c0_i32_216, %c0_i32_217] : memref<2x128x384xbf16, #tpu.memory_space<vmem>> -> memref<1x128x384xbf16, #tpu.memory_space<vmem>>
    %312 = tpu.memref_squeeze %311 : memref<1x128x384xbf16, #tpu.memory_space<vmem>> -> memref<128x384xbf16, #tpu.memory_space<vmem>>
    %313 = tpu.memref_slice %arg33[%c0_i32_212, %c1_i32_213] : memref<2x3x!tpu.dma_semaphore, #tpu.memory_space<semaphore_mem>> -> memref<1x1x!tpu.dma_semaphore, #tpu.memory_space<semaphore_mem>>
    %314 = tpu.memref_squeeze %313 : memref<1x1x!tpu.dma_semaphore, #tpu.memory_space<semaphore_mem>> -> memref<!tpu.dma_semaphore, #tpu.memory_space<semaphore_mem>>
    tpu.enqueue_dma source(%310 : memref<128x384xbf16, #tpu.memory_space<any>>) target(%312 : memref<128x384xbf16, #tpu.memory_space<vmem>>) target_semaphore(%314 : memref<!tpu.dma_semaphore, #tpu.memory_space<semaphore_mem>>)
    %c2_i32_218 = arith.constant 2 : i32
    %c0_i32_219 = arith.constant 0 : i32
    %c0_i32_220 = arith.constant 0 : i32
    %c2_i32_221 = arith.constant 2 : i32
    %c0_i32_222 = arith.constant 0 : i32
    %c0_i32_223 = arith.constant 0 : i32
    %315 = tpu.memref_slice %arg20[%c2_i32_218, %c0_i32_222, %c0_i32_223] : memref<4x128x384xbf16, #tpu.memory_space<any>> -> memref<1x128x384xbf16, #tpu.memory_space<any>>
    %316 = tpu.memref_squeeze %315 : memref<1x128x384xbf16, #tpu.memory_space<any>> -> memref<128x384xbf16, #tpu.memory_space<any>>
    %c0_i32_224 = arith.constant 0 : i32
    %c0_i32_225 = arith.constant 0 : i32
    %317 = tpu.memref_slice %arg32[%c0_i32_219, %c0_i32_224, %c0_i32_225] : memref<2x128x384xbf16, #tpu.memory_space<vmem>> -> memref<1x128x384xbf16, #tpu.memory_space<vmem>>
    %318 = tpu.memref_squeeze %317 : memref<1x128x384xbf16, #tpu.memory_space<vmem>> -> memref<128x384xbf16, #tpu.memory_space<vmem>>
    %319 = tpu.memref_slice %arg33[%c0_i32_220, %c2_i32_221] : memref<2x3x!tpu.dma_semaphore, #tpu.memory_space<semaphore_mem>> -> memref<1x1x!tpu.dma_semaphore, #tpu.memory_space<semaphore_mem>>
    %320 = tpu.memref_squeeze %319 : memref<1x1x!tpu.dma_semaphore, #tpu.memory_space<semaphore_mem>> -> memref<!tpu.dma_semaphore, #tpu.memory_space<semaphore_mem>>
    tpu.enqueue_dma source(%316 : memref<128x384xbf16, #tpu.memory_space<any>>) target(%318 : memref<128x384xbf16, #tpu.memory_space<vmem>>) target_semaphore(%320 : memref<!tpu.dma_semaphore, #tpu.memory_space<semaphore_mem>>)
    %321 = tpu.concatenate %284, %162 in 1 : vector<8x128xf32>, vector<8x128xf32> -> vector<8x256xf32>
    %322 = arith.truncf %321 : vector<8x256xf32> to vector<8x256xbf16>
    %c1_226 = arith.constant 1 : index
    %c0_227 = arith.constant 0 : index
    %c0_228 = arith.constant 0 : index
    %323 = vector.load %arg30[%c1_226, %c0_227, %c0_228] : memref<2x256x128xbf16, #tpu.memory_space<vmem>>, vector<1x256x128xbf16>
    %324 = vector.shape_cast %323 : vector<1x256x128xbf16> to vector<256x128xbf16>
    %cst_229 = arith.constant dense<0.000000e+00> : vector<8x128xf32>
    %325 = tpu.matmul %322, %324, %cst_229 {dimension_numbers = #tpu.dot_dimension_numbers<[1], [0], [0], [1], [0, 0, 1, 1], [], []>} : vector<8x256xbf16>, vector<256x128xbf16>, vector<8x128xf32> -> vector<8x128xf32>
    %c1_230 = arith.constant 1 : index
    %c0_231 = arith.constant 0 : index
    %c0_232 = arith.constant 0 : index
    %326 = vector.load %arg18[%c1_230, %c0_231, %c0_232] : memref<4x1x128xf32, #tpu.memory_space<vmem>>, vector<1x1x128xf32>
    %327 = vector.shape_cast %326 : vector<1x1x128xf32> to vector<1x128xf32>
    %328 = vector.broadcast %327 : vector<1x128xf32> to vector<8x128xf32>
    %329 = arith.addf %325, %328 : vector<8x128xf32>
    %c2 = arith.constant 2 : index
    %c0_233 = arith.constant 0 : index
    %c0_234 = arith.constant 0 : index
    %330 = vector.load %arg3[%c2, %c0_233, %c0_234] : memref<5x8x128xf32, #tpu.memory_space<vmem>>, vector<1x8x128xf32>
    %331 = vector.shape_cast %330 : vector<1x8x128xf32> to vector<8x128xf32>
    %c1_235 = arith.constant 1 : index
    %c0_236 = arith.constant 0 : index
    %c0_237 = arith.constant 0 : index
    %332 = vector.load %arg31[%c1_235, %c0_236, %c0_237] : memref<2x128x384xbf16, #tpu.memory_space<vmem>>, vector<1x128x384xbf16>
    %333 = vector.shape_cast %332 : vector<1x128x384xbf16> to vector<128x384xbf16>
    %c1_238 = arith.constant 1 : index
    %c0_239 = arith.constant 0 : index
    %c0_240 = arith.constant 0 : index
    %334 = vector.load %arg32[%c1_238, %c0_239, %c0_240] : memref<2x128x384xbf16, #tpu.memory_space<vmem>>, vector<1x128x384xbf16>
    %335 = vector.shape_cast %334 : vector<1x128x384xbf16> to vector<128x384xbf16>
    %c1_241 = arith.constant 1 : index
    %c0_242 = arith.constant 0 : index
    %c0_243 = arith.constant 0 : index
    %336 = vector.load %arg21[%c1_241, %c0_242, %c0_243] : memref<4x1x384xf32, #tpu.memory_space<vmem>>, vector<1x1x384xf32>
    %337 = vector.shape_cast %336 : vector<1x1x384xf32> to vector<1x384xf32>
    %c1_244 = arith.constant 1 : index
    %c0_245 = arith.constant 0 : index
    %c0_246 = arith.constant 0 : index
    %338 = vector.load %arg22[%c1_244, %c0_245, %c0_246] : memref<4x1x384xf32, #tpu.memory_space<vmem>>, vector<1x1x384xf32>
    %339 = vector.shape_cast %338 : vector<1x1x384xf32> to vector<1x384xf32>
    %340 = arith.truncf %329 : vector<8x128xf32> to vector<8x128xbf16>
    %cst_247 = arith.constant dense<0.000000e+00> : vector<8x384xf32>
    %341 = tpu.matmul %340, %333, %cst_247 {dimension_numbers = #tpu.dot_dimension_numbers<[1], [0], [0], [1], [0, 0, 1, 1], [], []>} : vector<8x128xbf16>, vector<128x384xbf16>, vector<8x384xf32> -> vector<8x384xf32>
    %342 = vector.broadcast %337 : vector<1x384xf32> to vector<8x384xf32>
    %343 = arith.addf %341, %342 : vector<8x384xf32>
    %344 = arith.truncf %331 : vector<8x128xf32> to vector<8x128xbf16>
    %cst_248 = arith.constant dense<0.000000e+00> : vector<8x384xf32>
    %345 = tpu.matmul %344, %335, %cst_248 {dimension_numbers = #tpu.dot_dimension_numbers<[1], [0], [0], [1], [0, 0, 1, 1], [], []>} : vector<8x128xbf16>, vector<128x384xbf16>, vector<8x384xf32> -> vector<8x384xf32>
    %346 = vector.broadcast %339 : vector<1x384xf32> to vector<8x384xf32>
    %347 = arith.addf %345, %346 : vector<8x384xf32>
    %348 = vector.extract_strided_slice %343 {offsets = [0, 0], sizes = [8, 128], strides = [1, 1]} : vector<8x384xf32> to vector<8x128xf32>
    %349 = vector.extract_strided_slice %347 {offsets = [0, 0], sizes = [8, 128], strides = [1, 1]} : vector<8x384xf32> to vector<8x128xf32>
    %350 = arith.addf %348, %349 : vector<8x128xf32>
    %351 = arith.negf %350 : vector<8x128xf32>
    %352 = math.exp %351 : vector<8x128xf32>
    %cst_249 = arith.constant 1.000000e+00 : f32
    %353 = vector.broadcast %cst_249 : f32 to vector<8x128xf32>
    %354 = arith.addf %353, %352 : vector<8x128xf32>
    %355 = arith.divf %353, %354 : vector<8x128xf32>
    %356 = vector.extract_strided_slice %343 {offsets = [0, 128], sizes = [8, 128], strides = [1, 1]} : vector<8x384xf32> to vector<8x128xf32>
    %357 = vector.extract_strided_slice %347 {offsets = [0, 128], sizes = [8, 128], strides = [1, 1]} : vector<8x384xf32> to vector<8x128xf32>
    %358 = arith.addf %356, %357 : vector<8x128xf32>
    %359 = arith.negf %358 : vector<8x128xf32>
    %360 = math.exp %359 : vector<8x128xf32>
    %cst_250 = arith.constant 1.000000e+00 : f32
    %361 = vector.broadcast %cst_250 : f32 to vector<8x128xf32>
    %362 = arith.addf %361, %360 : vector<8x128xf32>
    %363 = arith.divf %361, %362 : vector<8x128xf32>
    %364 = vector.extract_strided_slice %343 {offsets = [0, 256], sizes = [8, 128], strides = [1, 1]} : vector<8x384xf32> to vector<8x128xf32>
    %365 = vector.extract_strided_slice %347 {offsets = [0, 256], sizes = [8, 128], strides = [1, 1]} : vector<8x384xf32> to vector<8x128xf32>
    %366 = arith.mulf %355, %365 : vector<8x128xf32>
    %367 = arith.addf %364, %366 : vector<8x128xf32>
    %368 = math.tanh %367 : vector<8x128xf32>
    %cst_251 = arith.constant 1.000000e+00 : f32
    %369 = vector.broadcast %cst_251 : f32 to vector<8x128xf32>
    %370 = arith.subf %369, %363 : vector<8x128xf32>
    %371 = arith.mulf %370, %368 : vector<8x128xf32>
    %372 = arith.mulf %363, %331 : vector<8x128xf32>
    %373 = arith.addf %371, %372 : vector<8x128xf32>
    %c2_252 = arith.constant 2 : index
    %c0_253 = arith.constant 0 : index
    %c0_254 = arith.constant 0 : index
    %374 = vector.load %arg28[%c2_252, %c0_253, %c0_254] : memref<5x8x128xf32, #tpu.memory_space<vmem>>, vector<1x8x128xf32>
    %375 = vector.shape_cast %374 : vector<1x8x128xf32> to vector<8x128xf32>
    %376 = vector.shape_cast %373 : vector<8x128xf32> to vector<1x8x128xf32>
    tpu.vector_store %arg28[%c2_252, %c0_253, %c0_254], %376 {strides = array<i32>} : memref<5x8x128xf32, #tpu.memory_space<vmem>>, vector<1x8x128xf32>,
    %cst_255 = arith.constant dense<0.000000e+00> : vector<8xf32>
    %377 = vector.multi_reduction <add>, %373, %cst_255 [1] : vector<8x128xf32> to vector<8xf32>
    %378 = vector.shape_cast %377 : vector<8xf32> to vector<8x1xf32>
    %cst_256 = arith.constant 1.280000e+02 : f32
    %379 = vector.broadcast %cst_256 : f32 to vector<8x1xf32>
    %380 = arith.divf %378, %379 : vector<8x1xf32>
    %381 = vector.broadcast %380 : vector<8x1xf32> to vector<8x128xf32>
    %382 = arith.subf %373, %381 : vector<8x128xf32>
    %383 = arith.mulf %382, %382 : vector<8x128xf32>
    %cst_257 = arith.constant dense<0.000000e+00> : vector<8xf32>
    %384 = vector.multi_reduction <add>, %383, %cst_257 [1] : vector<8x128xf32> to vector<8xf32>
    %385 = vector.shape_cast %384 : vector<8xf32> to vector<8x1xf32>
    %cst_258 = arith.constant 1.280000e+02 : f32
    %386 = vector.broadcast %cst_258 : f32 to vector<8x1xf32>
    %387 = arith.divf %385, %386 : vector<8x1xf32>
    %388 = vector.broadcast %380 : vector<8x1xf32> to vector<8x128xf32>
    %389 = arith.subf %373, %388 : vector<8x128xf32>
    %cst_259 = arith.constant 9.99999974E-6 : f32
    %390 = vector.broadcast %cst_259 : f32 to vector<8x1xf32>
    %391 = arith.addf %387, %390 : vector<8x1xf32>
    %392 = math.rsqrt %391 : vector<8x1xf32>
    %393 = vector.broadcast %392 : vector<8x1xf32> to vector<8x128xf32>
    %394 = arith.mulf %389, %393 : vector<8x128xf32>
    %c1_260 = arith.constant 1 : index
    %c0_261 = arith.constant 0 : index
    %c0_262 = arith.constant 0 : index
    %395 = vector.load %arg23[%c1_260, %c0_261, %c0_262] : memref<4x1x128xf32, #tpu.memory_space<vmem>>, vector<1x1x128xf32>
    %396 = vector.shape_cast %395 : vector<1x1x128xf32> to vector<1x128xf32>
    %397 = vector.broadcast %396 : vector<1x128xf32> to vector<8x128xf32>
    %398 = arith.mulf %394, %397 : vector<8x128xf32>
    %c1_263 = arith.constant 1 : index
    %c0_264 = arith.constant 0 : index
    %c0_265 = arith.constant 0 : index
    %399 = vector.load %arg24[%c1_263, %c0_264, %c0_265] : memref<4x1x128xf32, #tpu.memory_space<vmem>>, vector<1x1x128xf32>
    %400 = vector.shape_cast %399 : vector<1x1x128xf32> to vector<1x128xf32>
    %401 = vector.broadcast %400 : vector<1x128xf32> to vector<8x128xf32>
    %402 = arith.addf %398, %401 : vector<8x128xf32>
    %403 = arith.addf %402, %284 : vector<8x128xf32>
    %c2_i32_266 = arith.constant 2 : i32
    %c0_i32_267 = arith.constant 0 : i32
    %c0_i32_268 = arith.constant 0 : i32
    %c0_i32_269 = arith.constant 0 : i32
    %c0_i32_270 = arith.constant 0 : i32
    %c0_i32_271 = arith.constant 0 : i32
    %404 = tpu.memref_slice %arg17[%c2_i32_266, %c0_i32_270, %c0_i32_271] : memref<4x256x128xbf16, #tpu.memory_space<any>> -> memref<1x256x128xbf16, #tpu.memory_space<any>>
    %405 = tpu.memref_squeeze %404 : memref<1x256x128xbf16, #tpu.memory_space<any>> -> memref<256x128xbf16, #tpu.memory_space<any>>
    %c0_i32_272 = arith.constant 0 : i32
    %c0_i32_273 = arith.constant 0 : i32
    %406 = tpu.memref_slice %arg30[%c0_i32_267, %c0_i32_272, %c0_i32_273] : memref<2x256x128xbf16, #tpu.memory_space<vmem>> -> memref<1x256x128xbf16, #tpu.memory_space<vmem>>
    %407 = tpu.memref_squeeze %406 : memref<1x256x128xbf16, #tpu.memory_space<vmem>> -> memref<256x128xbf16, #tpu.memory_space<vmem>>
    %408 = tpu.memref_slice %arg33[%c0_i32_268, %c0_i32_269] : memref<2x3x!tpu.dma_semaphore, #tpu.memory_space<semaphore_mem>> -> memref<1x1x!tpu.dma_semaphore, #tpu.memory_space<semaphore_mem>>
    %409 = tpu.memref_squeeze %408 : memref<1x1x!tpu.dma_semaphore, #tpu.memory_space<semaphore_mem>> -> memref<!tpu.dma_semaphore, #tpu.memory_space<semaphore_mem>>
    tpu.wait_dma2 semaphore(%409 : memref<!tpu.dma_semaphore, #tpu.memory_space<semaphore_mem>>) src(%405 : memref<256x128xbf16, #tpu.memory_space<any>>) dst(%407 : memref<256x128xbf16, #tpu.memory_space<vmem>>)
    %c2_i32_274 = arith.constant 2 : i32
    %c0_i32_275 = arith.constant 0 : i32
    %c0_i32_276 = arith.constant 0 : i32
    %c1_i32_277 = arith.constant 1 : i32
    %c0_i32_278 = arith.constant 0 : i32
    %c0_i32_279 = arith.constant 0 : i32
    %410 = tpu.memref_slice %arg19[%c2_i32_274, %c0_i32_278, %c0_i32_279] : memref<4x128x384xbf16, #tpu.memory_space<any>> -> memref<1x128x384xbf16, #tpu.memory_space<any>>
    %411 = tpu.memref_squeeze %410 : memref<1x128x384xbf16, #tpu.memory_space<any>> -> memref<128x384xbf16, #tpu.memory_space<any>>
    %c0_i32_280 = arith.constant 0 : i32
    %c0_i32_281 = arith.constant 0 : i32
    %412 = tpu.memref_slice %arg31[%c0_i32_275, %c0_i32_280, %c0_i32_281] : memref<2x128x384xbf16, #tpu.memory_space<vmem>> -> memref<1x128x384xbf16, #tpu.memory_space<vmem>>
    %413 = tpu.memref_squeeze %412 : memref<1x128x384xbf16, #tpu.memory_space<vmem>> -> memref<128x384xbf16, #tpu.memory_space<vmem>>
    %414 = tpu.memref_slice %arg33[%c0_i32_276, %c1_i32_277] : memref<2x3x!tpu.dma_semaphore, #tpu.memory_space<semaphore_mem>> -> memref<1x1x!tpu.dma_semaphore, #tpu.memory_space<semaphore_mem>>
    %415 = tpu.memref_squeeze %414 : memref<1x1x!tpu.dma_semaphore, #tpu.memory_space<semaphore_mem>> -> memref<!tpu.dma_semaphore, #tpu.memory_space<semaphore_mem>>
    tpu.wait_dma2 semaphore(%415 : memref<!tpu.dma_semaphore, #tpu.memory_space<semaphore_mem>>) src(%411 : memref<128x384xbf16, #tpu.memory_space<any>>) dst(%413 : memref<128x384xbf16, #tpu.memory_space<vmem>>)
    %c2_i32_282 = arith.constant 2 : i32
    %c0_i32_283 = arith.constant 0 : i32
    %c0_i32_284 = arith.constant 0 : i32
    %c2_i32_285 = arith.constant 2 : i32
    %c0_i32_286 = arith.constant 0 : i32
    %c0_i32_287 = arith.constant 0 : i32
    %416 = tpu.memref_slice %arg20[%c2_i32_282, %c0_i32_286, %c0_i32_287] : memref<4x128x384xbf16, #tpu.memory_space<any>> -> memref<1x128x384xbf16, #tpu.memory_space<any>>
    %417 = tpu.memref_squeeze %416 : memref<1x128x384xbf16, #tpu.memory_space<any>> -> memref<128x384xbf16, #tpu.memory_space<any>>
    %c0_i32_288 = arith.constant 0 : i32
    %c0_i32_289 = arith.constant 0 : i32
    %418 = tpu.memref_slice %arg32[%c0_i32_283, %c0_i32_288, %c0_i32_289] : memref<2x128x384xbf16, #tpu.memory_space<vmem>> -> memref<1x128x384xbf16, #tpu.memory_space<vmem>>
    %419 = tpu.memref_squeeze %418 : memref<1x128x384xbf16, #tpu.memory_space<vmem>> -> memref<128x384xbf16, #tpu.memory_space<vmem>>
    %420 = tpu.memref_slice %arg33[%c0_i32_284, %c2_i32_285] : memref<2x3x!tpu.dma_semaphore, #tpu.memory_space<semaphore_mem>> -> memref<1x1x!tpu.dma_semaphore, #tpu.memory_space<semaphore_mem>>
    %421 = tpu.memref_squeeze %420 : memref<1x1x!tpu.dma_semaphore, #tpu.memory_space<semaphore_mem>> -> memref<!tpu.dma_semaphore, #tpu.memory_space<semaphore_mem>>
    tpu.wait_dma2 semaphore(%421 : memref<!tpu.dma_semaphore, #tpu.memory_space<semaphore_mem>>) src(%417 : memref<128x384xbf16, #tpu.memory_space<any>>) dst(%419 : memref<128x384xbf16, #tpu.memory_space<vmem>>)
    %c3_i32 = arith.constant 3 : i32
    %c1_i32_290 = arith.constant 1 : i32
    %c1_i32_291 = arith.constant 1 : i32
    %c0_i32_292 = arith.constant 0 : i32
    %c0_i32_293 = arith.constant 0 : i32
    %c0_i32_294 = arith.constant 0 : i32
    %422 = tpu.memref_slice %arg17[%c3_i32, %c0_i32_293, %c0_i32_294] : memref<4x256x128xbf16, #tpu.memory_space<any>> -> memref<1x256x128xbf16, #tpu.memory_space<any>>
    %423 = tpu.memref_squeeze %422 : memref<1x256x128xbf16, #tpu.memory_space<any>> -> memref<256x128xbf16, #tpu.memory_space<any>>
    %c0_i32_295 = arith.constant 0 : i32
    %c0_i32_296 = arith.constant 0 : i32
    %424 = tpu.memref_slice %arg30[%c1_i32_290, %c0_i32_295, %c0_i32_296] : memref<2x256x128xbf16, #tpu.memory_space<vmem>> -> memref<1x256x128xbf16, #tpu.memory_space<vmem>>
    %425 = tpu.memref_squeeze %424 : memref<1x256x128xbf16, #tpu.memory_space<vmem>> -> memref<256x128xbf16, #tpu.memory_space<vmem>>
    %426 = tpu.memref_slice %arg33[%c1_i32_291, %c0_i32_292] : memref<2x3x!tpu.dma_semaphore, #tpu.memory_space<semaphore_mem>> -> memref<1x1x!tpu.dma_semaphore, #tpu.memory_space<semaphore_mem>>
    %427 = tpu.memref_squeeze %426 : memref<1x1x!tpu.dma_semaphore, #tpu.memory_space<semaphore_mem>> -> memref<!tpu.dma_semaphore, #tpu.memory_space<semaphore_mem>>
    tpu.enqueue_dma source(%423 : memref<256x128xbf16, #tpu.memory_space<any>>) target(%425 : memref<256x128xbf16, #tpu.memory_space<vmem>>) target_semaphore(%427 : memref<!tpu.dma_semaphore, #tpu.memory_space<semaphore_mem>>)
    %c3_i32_297 = arith.constant 3 : i32
    %c1_i32_298 = arith.constant 1 : i32
    %c1_i32_299 = arith.constant 1 : i32
    %c1_i32_300 = arith.constant 1 : i32
    %c0_i32_301 = arith.constant 0 : i32
    %c0_i32_302 = arith.constant 0 : i32
    %428 = tpu.memref_slice %arg19[%c3_i32_297, %c0_i32_301, %c0_i32_302] : memref<4x128x384xbf16, #tpu.memory_space<any>> -> memref<1x128x384xbf16, #tpu.memory_space<any>>
    %429 = tpu.memref_squeeze %428 : memref<1x128x384xbf16, #tpu.memory_space<any>> -> memref<128x384xbf16, #tpu.memory_space<any>>
    %c0_i32_303 = arith.constant 0 : i32
    %c0_i32_304 = arith.constant 0 : i32
    %430 = tpu.memref_slice %arg31[%c1_i32_298, %c0_i32_303, %c0_i32_304] : memref<2x128x384xbf16, #tpu.memory_space<vmem>> -> memref<1x128x384xbf16, #tpu.memory_space<vmem>>
    %431 = tpu.memref_squeeze %430 : memref<1x128x384xbf16, #tpu.memory_space<vmem>> -> memref<128x384xbf16, #tpu.memory_space<vmem>>
    %432 = tpu.memref_slice %arg33[%c1_i32_299, %c1_i32_300] : memref<2x3x!tpu.dma_semaphore, #tpu.memory_space<semaphore_mem>> -> memref<1x1x!tpu.dma_semaphore, #tpu.memory_space<semaphore_mem>>
    %433 = tpu.memref_squeeze %432 : memref<1x1x!tpu.dma_semaphore, #tpu.memory_space<semaphore_mem>> -> memref<!tpu.dma_semaphore, #tpu.memory_space<semaphore_mem>>
    tpu.enqueue_dma source(%429 : memref<128x384xbf16, #tpu.memory_space<any>>) target(%431 : memref<128x384xbf16, #tpu.memory_space<vmem>>) target_semaphore(%433 : memref<!tpu.dma_semaphore, #tpu.memory_space<semaphore_mem>>)
    %c3_i32_305 = arith.constant 3 : i32
    %c1_i32_306 = arith.constant 1 : i32
    %c1_i32_307 = arith.constant 1 : i32
    %c2_i32_308 = arith.constant 2 : i32
    %c0_i32_309 = arith.constant 0 : i32
    %c0_i32_310 = arith.constant 0 : i32
    %434 = tpu.memref_slice %arg20[%c3_i32_305, %c0_i32_309, %c0_i32_310] : memref<4x128x384xbf16, #tpu.memory_space<any>> -> memref<1x128x384xbf16, #tpu.memory_space<any>>
    %435 = tpu.memref_squeeze %434 : memref<1x128x384xbf16, #tpu.memory_space<any>> -> memref<128x384xbf16, #tpu.memory_space<any>>
    %c0_i32_311 = arith.constant 0 : i32
    %c0_i32_312 = arith.constant 0 : i32
    %436 = tpu.memref_slice %arg32[%c1_i32_306, %c0_i32_311, %c0_i32_312] : memref<2x128x384xbf16, #tpu.memory_space<vmem>> -> memref<1x128x384xbf16, #tpu.memory_space<vmem>>
    %437 = tpu.memref_squeeze %436 : memref<1x128x384xbf16, #tpu.memory_space<vmem>> -> memref<128x384xbf16, #tpu.memory_space<vmem>>
    %438 = tpu.memref_slice %arg33[%c1_i32_307, %c2_i32_308] : memref<2x3x!tpu.dma_semaphore, #tpu.memory_space<semaphore_mem>> -> memref<1x1x!tpu.dma_semaphore, #tpu.memory_space<semaphore_mem>>
    %439 = tpu.memref_squeeze %438 : memref<1x1x!tpu.dma_semaphore, #tpu.memory_space<semaphore_mem>> -> memref<!tpu.dma_semaphore, #tpu.memory_space<semaphore_mem>>
    tpu.enqueue_dma source(%435 : memref<128x384xbf16, #tpu.memory_space<any>>) target(%437 : memref<128x384xbf16, #tpu.memory_space<vmem>>) target_semaphore(%439 : memref<!tpu.dma_semaphore, #tpu.memory_space<semaphore_mem>>)
    %440 = tpu.concatenate %403, %162 in 1 : vector<8x128xf32>, vector<8x128xf32> -> vector<8x256xf32>
    %441 = arith.truncf %440 : vector<8x256xf32> to vector<8x256xbf16>
    %c0_313 = arith.constant 0 : index
    %c0_314 = arith.constant 0 : index
    %c0_315 = arith.constant 0 : index
    %442 = vector.load %arg30[%c0_313, %c0_314, %c0_315] : memref<2x256x128xbf16, #tpu.memory_space<vmem>>, vector<1x256x128xbf16>
    %443 = vector.shape_cast %442 : vector<1x256x128xbf16> to vector<256x128xbf16>
    %cst_316 = arith.constant dense<0.000000e+00> : vector<8x128xf32>
    %444 = tpu.matmul %441, %443, %cst_316 {dimension_numbers = #tpu.dot_dimension_numbers<[1], [0], [0], [1], [0, 0, 1, 1], [], []>} : vector<8x256xbf16>, vector<256x128xbf16>, vector<8x128xf32> -> vector<8x128xf32>
    %c2_317 = arith.constant 2 : index
    %c0_318 = arith.constant 0 : index
    %c0_319 = arith.constant 0 : index
    %445 = vector.load %arg18[%c2_317, %c0_318, %c0_319] : memref<4x1x128xf32, #tpu.memory_space<vmem>>, vector<1x1x128xf32>
    %446 = vector.shape_cast %445 : vector<1x1x128xf32> to vector<1x128xf32>
    %447 = vector.broadcast %446 : vector<1x128xf32> to vector<8x128xf32>
    %448 = arith.addf %444, %447 : vector<8x128xf32>
    %c3 = arith.constant 3 : index
    %c0_320 = arith.constant 0 : index
    %c0_321 = arith.constant 0 : index
    %449 = vector.load %arg3[%c3, %c0_320, %c0_321] : memref<5x8x128xf32, #tpu.memory_space<vmem>>, vector<1x8x128xf32>
    %450 = vector.shape_cast %449 : vector<1x8x128xf32> to vector<8x128xf32>
    %c0_322 = arith.constant 0 : index
    %c0_323 = arith.constant 0 : index
    %c0_324 = arith.constant 0 : index
    %451 = vector.load %arg31[%c0_322, %c0_323, %c0_324] : memref<2x128x384xbf16, #tpu.memory_space<vmem>>, vector<1x128x384xbf16>
    %452 = vector.shape_cast %451 : vector<1x128x384xbf16> to vector<128x384xbf16>
    %c0_325 = arith.constant 0 : index
    %c0_326 = arith.constant 0 : index
    %c0_327 = arith.constant 0 : index
    %453 = vector.load %arg32[%c0_325, %c0_326, %c0_327] : memref<2x128x384xbf16, #tpu.memory_space<vmem>>, vector<1x128x384xbf16>
    %454 = vector.shape_cast %453 : vector<1x128x384xbf16> to vector<128x384xbf16>
    %c2_328 = arith.constant 2 : index
    %c0_329 = arith.constant 0 : index
    %c0_330 = arith.constant 0 : index
    %455 = vector.load %arg21[%c2_328, %c0_329, %c0_330] : memref<4x1x384xf32, #tpu.memory_space<vmem>>, vector<1x1x384xf32>
    %456 = vector.shape_cast %455 : vector<1x1x384xf32> to vector<1x384xf32>
    %c2_331 = arith.constant 2 : index
    %c0_332 = arith.constant 0 : index
    %c0_333 = arith.constant 0 : index
    %457 = vector.load %arg22[%c2_331, %c0_332, %c0_333] : memref<4x1x384xf32, #tpu.memory_space<vmem>>, vector<1x1x384xf32>
    %458 = vector.shape_cast %457 : vector<1x1x384xf32> to vector<1x384xf32>
    %459 = arith.truncf %448 : vector<8x128xf32> to vector<8x128xbf16>
    %cst_334 = arith.constant dense<0.000000e+00> : vector<8x384xf32>
    %460 = tpu.matmul %459, %452, %cst_334 {dimension_numbers = #tpu.dot_dimension_numbers<[1], [0], [0], [1], [0, 0, 1, 1], [], []>} : vector<8x128xbf16>, vector<128x384xbf16>, vector<8x384xf32> -> vector<8x384xf32>
    %461 = vector.broadcast %456 : vector<1x384xf32> to vector<8x384xf32>
    %462 = arith.addf %460, %461 : vector<8x384xf32>
    %463 = arith.truncf %450 : vector<8x128xf32> to vector<8x128xbf16>
    %cst_335 = arith.constant dense<0.000000e+00> : vector<8x384xf32>
    %464 = tpu.matmul %463, %454, %cst_335 {dimension_numbers = #tpu.dot_dimension_numbers<[1], [0], [0], [1], [0, 0, 1, 1], [], []>} : vector<8x128xbf16>, vector<128x384xbf16>, vector<8x384xf32> -> vector<8x384xf32>
    %465 = vector.broadcast %458 : vector<1x384xf32> to vector<8x384xf32>
    %466 = arith.addf %464, %465 : vector<8x384xf32>
    %467 = vector.extract_strided_slice %462 {offsets = [0, 0], sizes = [8, 128], strides = [1, 1]} : vector<8x384xf32> to vector<8x128xf32>
    %468 = vector.extract_strided_slice %466 {offsets = [0, 0], sizes = [8, 128], strides = [1, 1]} : vector<8x384xf32> to vector<8x128xf32>
    %469 = arith.addf %467, %468 : vector<8x128xf32>
    %470 = arith.negf %469 : vector<8x128xf32>
    %471 = math.exp %470 : vector<8x128xf32>
    %cst_336 = arith.constant 1.000000e+00 : f32
    %472 = vector.broadcast %cst_336 : f32 to vector<8x128xf32>
    %473 = arith.addf %472, %471 : vector<8x128xf32>
    %474 = arith.divf %472, %473 : vector<8x128xf32>
    %475 = vector.extract_strided_slice %462 {offsets = [0, 128], sizes = [8, 128], strides = [1, 1]} : vector<8x384xf32> to vector<8x128xf32>
    %476 = vector.extract_strided_slice %466 {offsets = [0, 128], sizes = [8, 128], strides = [1, 1]} : vector<8x384xf32> to vector<8x128xf32>
    %477 = arith.addf %475, %476 : vector<8x128xf32>
    %478 = arith.negf %477 : vector<8x128xf32>
    %479 = math.exp %478 : vector<8x128xf32>
    %cst_337 = arith.constant 1.000000e+00 : f32
    %480 = vector.broadcast %cst_337 : f32 to vector<8x128xf32>
    %481 = arith.addf %480, %479 : vector<8x128xf32>
    %482 = arith.divf %480, %481 : vector<8x128xf32>
    %483 = vector.extract_strided_slice %462 {offsets = [0, 256], sizes = [8, 128], strides = [1, 1]} : vector<8x384xf32> to vector<8x128xf32>
    %484 = vector.extract_strided_slice %466 {offsets = [0, 256], sizes = [8, 128], strides = [1, 1]} : vector<8x384xf32> to vector<8x128xf32>
    %485 = arith.mulf %474, %484 : vector<8x128xf32>
    %486 = arith.addf %483, %485 : vector<8x128xf32>
    %487 = math.tanh %486 : vector<8x128xf32>
    %cst_338 = arith.constant 1.000000e+00 : f32
    %488 = vector.broadcast %cst_338 : f32 to vector<8x128xf32>
    %489 = arith.subf %488, %482 : vector<8x128xf32>
    %490 = arith.mulf %489, %487 : vector<8x128xf32>
    %491 = arith.mulf %482, %450 : vector<8x128xf32>
    %492 = arith.addf %490, %491 : vector<8x128xf32>
    %c3_339 = arith.constant 3 : index
    %c0_340 = arith.constant 0 : index
    %c0_341 = arith.constant 0 : index
    %493 = vector.load %arg28[%c3_339, %c0_340, %c0_341] : memref<5x8x128xf32, #tpu.memory_space<vmem>>, vector<1x8x128xf32>
    %494 = vector.shape_cast %493 : vector<1x8x128xf32> to vector<8x128xf32>
    %495 = vector.shape_cast %492 : vector<8x128xf32> to vector<1x8x128xf32>
    tpu.vector_store %arg28[%c3_339, %c0_340, %c0_341], %495 {strides = array<i32>} : memref<5x8x128xf32, #tpu.memory_space<vmem>>, vector<1x8x128xf32>,
    %cst_342 = arith.constant dense<0.000000e+00> : vector<8xf32>
    %496 = vector.multi_reduction <add>, %492, %cst_342 [1] : vector<8x128xf32> to vector<8xf32>
    %497 = vector.shape_cast %496 : vector<8xf32> to vector<8x1xf32>
    %cst_343 = arith.constant 1.280000e+02 : f32
    %498 = vector.broadcast %cst_343 : f32 to vector<8x1xf32>
    %499 = arith.divf %497, %498 : vector<8x1xf32>
    %500 = vector.broadcast %499 : vector<8x1xf32> to vector<8x128xf32>
    %501 = arith.subf %492, %500 : vector<8x128xf32>
    %502 = arith.mulf %501, %501 : vector<8x128xf32>
    %cst_344 = arith.constant dense<0.000000e+00> : vector<8xf32>
    %503 = vector.multi_reduction <add>, %502, %cst_344 [1] : vector<8x128xf32> to vector<8xf32>
    %504 = vector.shape_cast %503 : vector<8xf32> to vector<8x1xf32>
    %cst_345 = arith.constant 1.280000e+02 : f32
    %505 = vector.broadcast %cst_345 : f32 to vector<8x1xf32>
    %506 = arith.divf %504, %505 : vector<8x1xf32>
    %507 = vector.broadcast %499 : vector<8x1xf32> to vector<8x128xf32>
    %508 = arith.subf %492, %507 : vector<8x128xf32>
    %cst_346 = arith.constant 9.99999974E-6 : f32
    %509 = vector.broadcast %cst_346 : f32 to vector<8x1xf32>
    %510 = arith.addf %506, %509 : vector<8x1xf32>
    %511 = math.rsqrt %510 : vector<8x1xf32>
    %512 = vector.broadcast %511 : vector<8x1xf32> to vector<8x128xf32>
    %513 = arith.mulf %508, %512 : vector<8x128xf32>
    %c2_347 = arith.constant 2 : index
    %c0_348 = arith.constant 0 : index
    %c0_349 = arith.constant 0 : index
    %514 = vector.load %arg23[%c2_347, %c0_348, %c0_349] : memref<4x1x128xf32, #tpu.memory_space<vmem>>, vector<1x1x128xf32>
    %515 = vector.shape_cast %514 : vector<1x1x128xf32> to vector<1x128xf32>
    %516 = vector.broadcast %515 : vector<1x128xf32> to vector<8x128xf32>
    %517 = arith.mulf %513, %516 : vector<8x128xf32>
    %c2_350 = arith.constant 2 : index
    %c0_351 = arith.constant 0 : index
    %c0_352 = arith.constant 0 : index
    %518 = vector.load %arg24[%c2_350, %c0_351, %c0_352] : memref<4x1x128xf32, #tpu.memory_space<vmem>>, vector<1x1x128xf32>
    %519 = vector.shape_cast %518 : vector<1x1x128xf32> to vector<1x128xf32>
    %520 = vector.broadcast %519 : vector<1x128xf32> to vector<8x128xf32>
    %521 = arith.addf %517, %520 : vector<8x128xf32>
    %522 = arith.addf %521, %403 : vector<8x128xf32>
    %c3_i32_353 = arith.constant 3 : i32
    %c1_i32_354 = arith.constant 1 : i32
    %c1_i32_355 = arith.constant 1 : i32
    %c0_i32_356 = arith.constant 0 : i32
    %c0_i32_357 = arith.constant 0 : i32
    %c0_i32_358 = arith.constant 0 : i32
    %523 = tpu.memref_slice %arg17[%c3_i32_353, %c0_i32_357, %c0_i32_358] : memref<4x256x128xbf16, #tpu.memory_space<any>> -> memref<1x256x128xbf16, #tpu.memory_space<any>>
    %524 = tpu.memref_squeeze %523 : memref<1x256x128xbf16, #tpu.memory_space<any>> -> memref<256x128xbf16, #tpu.memory_space<any>>
    %c0_i32_359 = arith.constant 0 : i32
    %c0_i32_360 = arith.constant 0 : i32
    %525 = tpu.memref_slice %arg30[%c1_i32_354, %c0_i32_359, %c0_i32_360] : memref<2x256x128xbf16, #tpu.memory_space<vmem>> -> memref<1x256x128xbf16, #tpu.memory_space<vmem>>
    %526 = tpu.memref_squeeze %525 : memref<1x256x128xbf16, #tpu.memory_space<vmem>> -> memref<256x128xbf16, #tpu.memory_space<vmem>>
    %527 = tpu.memref_slice %arg33[%c1_i32_355, %c0_i32_356] : memref<2x3x!tpu.dma_semaphore, #tpu.memory_space<semaphore_mem>> -> memref<1x1x!tpu.dma_semaphore, #tpu.memory_space<semaphore_mem>>
    %528 = tpu.memref_squeeze %527 : memref<1x1x!tpu.dma_semaphore, #tpu.memory_space<semaphore_mem>> -> memref<!tpu.dma_semaphore, #tpu.memory_space<semaphore_mem>>
    tpu.wait_dma2 semaphore(%528 : memref<!tpu.dma_semaphore, #tpu.memory_space<semaphore_mem>>) src(%524 : memref<256x128xbf16, #tpu.memory_space<any>>) dst(%526 : memref<256x128xbf16, #tpu.memory_space<vmem>>)
    %c3_i32_361 = arith.constant 3 : i32
    %c1_i32_362 = arith.constant 1 : i32
    %c1_i32_363 = arith.constant 1 : i32
    %c1_i32_364 = arith.constant 1 : i32
    %c0_i32_365 = arith.constant 0 : i32
    %c0_i32_366 = arith.constant 0 : i32
    %529 = tpu.memref_slice %arg19[%c3_i32_361, %c0_i32_365, %c0_i32_366] : memref<4x128x384xbf16, #tpu.memory_space<any>> -> memref<1x128x384xbf16, #tpu.memory_space<any>>
    %530 = tpu.memref_squeeze %529 : memref<1x128x384xbf16, #tpu.memory_space<any>> -> memref<128x384xbf16, #tpu.memory_space<any>>
    %c0_i32_367 = arith.constant 0 : i32
    %c0_i32_368 = arith.constant 0 : i32
    %531 = tpu.memref_slice %arg31[%c1_i32_362, %c0_i32_367, %c0_i32_368] : memref<2x128x384xbf16, #tpu.memory_space<vmem>> -> memref<1x128x384xbf16, #tpu.memory_space<vmem>>
    %532 = tpu.memref_squeeze %531 : memref<1x128x384xbf16, #tpu.memory_space<vmem>> -> memref<128x384xbf16, #tpu.memory_space<vmem>>
    %533 = tpu.memref_slice %arg33[%c1_i32_363, %c1_i32_364] : memref<2x3x!tpu.dma_semaphore, #tpu.memory_space<semaphore_mem>> -> memref<1x1x!tpu.dma_semaphore, #tpu.memory_space<semaphore_mem>>
    %534 = tpu.memref_squeeze %533 : memref<1x1x!tpu.dma_semaphore, #tpu.memory_space<semaphore_mem>> -> memref<!tpu.dma_semaphore, #tpu.memory_space<semaphore_mem>>
    tpu.wait_dma2 semaphore(%534 : memref<!tpu.dma_semaphore, #tpu.memory_space<semaphore_mem>>) src(%530 : memref<128x384xbf16, #tpu.memory_space<any>>) dst(%532 : memref<128x384xbf16, #tpu.memory_space<vmem>>)
    %c3_i32_369 = arith.constant 3 : i32
    %c1_i32_370 = arith.constant 1 : i32
    %c1_i32_371 = arith.constant 1 : i32
    %c2_i32_372 = arith.constant 2 : i32
    %c0_i32_373 = arith.constant 0 : i32
    %c0_i32_374 = arith.constant 0 : i32
    %535 = tpu.memref_slice %arg20[%c3_i32_369, %c0_i32_373, %c0_i32_374] : memref<4x128x384xbf16, #tpu.memory_space<any>> -> memref<1x128x384xbf16, #tpu.memory_space<any>>
    %536 = tpu.memref_squeeze %535 : memref<1x128x384xbf16, #tpu.memory_space<any>> -> memref<128x384xbf16, #tpu.memory_space<any>>
    %c0_i32_375 = arith.constant 0 : i32
    %c0_i32_376 = arith.constant 0 : i32
    %537 = tpu.memref_slice %arg32[%c1_i32_370, %c0_i32_375, %c0_i32_376] : memref<2x128x384xbf16, #tpu.memory_space<vmem>> -> memref<1x128x384xbf16, #tpu.memory_space<vmem>>
    %538 = tpu.memref_squeeze %537 : memref<1x128x384xbf16, #tpu.memory_space<vmem>> -> memref<128x384xbf16, #tpu.memory_space<vmem>>
    %539 = tpu.memref_slice %arg33[%c1_i32_371, %c2_i32_372] : memref<2x3x!tpu.dma_semaphore, #tpu.memory_space<semaphore_mem>> -> memref<1x1x!tpu.dma_semaphore, #tpu.memory_space<semaphore_mem>>
    %540 = tpu.memref_squeeze %539 : memref<1x1x!tpu.dma_semaphore, #tpu.memory_space<semaphore_mem>> -> memref<!tpu.dma_semaphore, #tpu.memory_space<semaphore_mem>>
    tpu.wait_dma2 semaphore(%540 : memref<!tpu.dma_semaphore, #tpu.memory_space<semaphore_mem>>) src(%536 : memref<128x384xbf16, #tpu.memory_space<any>>) dst(%538 : memref<128x384xbf16, #tpu.memory_space<vmem>>)
    %541 = tpu.concatenate %522, %162 in 1 : vector<8x128xf32>, vector<8x128xf32> -> vector<8x256xf32>
    %542 = arith.truncf %541 : vector<8x256xf32> to vector<8x256xbf16>
    %c1_377 = arith.constant 1 : index
    %c0_378 = arith.constant 0 : index
    %c0_379 = arith.constant 0 : index
    %543 = vector.load %arg30[%c1_377, %c0_378, %c0_379] : memref<2x256x128xbf16, #tpu.memory_space<vmem>>, vector<1x256x128xbf16>
    %544 = vector.shape_cast %543 : vector<1x256x128xbf16> to vector<256x128xbf16>
    %cst_380 = arith.constant dense<0.000000e+00> : vector<8x128xf32>
    %545 = tpu.matmul %542, %544, %cst_380 {dimension_numbers = #tpu.dot_dimension_numbers<[1], [0], [0], [1], [0, 0, 1, 1], [], []>} : vector<8x256xbf16>, vector<256x128xbf16>, vector<8x128xf32> -> vector<8x128xf32>
    %c3_381 = arith.constant 3 : index
    %c0_382 = arith.constant 0 : index
    %c0_383 = arith.constant 0 : index
    %546 = vector.load %arg18[%c3_381, %c0_382, %c0_383] : memref<4x1x128xf32, #tpu.memory_space<vmem>>, vector<1x1x128xf32>
    %547 = vector.shape_cast %546 : vector<1x1x128xf32> to vector<1x128xf32>
    %548 = vector.broadcast %547 : vector<1x128xf32> to vector<8x128xf32>
    %549 = arith.addf %545, %548 : vector<8x128xf32>
    %c4 = arith.constant 4 : index
    %c0_384 = arith.constant 0 : index
    %c0_385 = arith.constant 0 : index
    %550 = vector.load %arg3[%c4, %c0_384, %c0_385] : memref<5x8x128xf32, #tpu.memory_space<vmem>>, vector<1x8x128xf32>
    %551 = vector.shape_cast %550 : vector<1x8x128xf32> to vector<8x128xf32>
    %c1_386 = arith.constant 1 : index
    %c0_387 = arith.constant 0 : index
    %c0_388 = arith.constant 0 : index
    %552 = vector.load %arg31[%c1_386, %c0_387, %c0_388] : memref<2x128x384xbf16, #tpu.memory_space<vmem>>, vector<1x128x384xbf16>
    %553 = vector.shape_cast %552 : vector<1x128x384xbf16> to vector<128x384xbf16>
    %c1_389 = arith.constant 1 : index
    %c0_390 = arith.constant 0 : index
    %c0_391 = arith.constant 0 : index
    %554 = vector.load %arg32[%c1_389, %c0_390, %c0_391] : memref<2x128x384xbf16, #tpu.memory_space<vmem>>, vector<1x128x384xbf16>
    %555 = vector.shape_cast %554 : vector<1x128x384xbf16> to vector<128x384xbf16>
    %c3_392 = arith.constant 3 : index
    %c0_393 = arith.constant 0 : index
    %c0_394 = arith.constant 0 : index
    %556 = vector.load %arg21[%c3_392, %c0_393, %c0_394] : memref<4x1x384xf32, #tpu.memory_space<vmem>>, vector<1x1x384xf32>
    %557 = vector.shape_cast %556 : vector<1x1x384xf32> to vector<1x384xf32>
    %c3_395 = arith.constant 3 : index
    %c0_396 = arith.constant 0 : index
    %c0_397 = arith.constant 0 : index
    %558 = vector.load %arg22[%c3_395, %c0_396, %c0_397] : memref<4x1x384xf32, #tpu.memory_space<vmem>>, vector<1x1x384xf32>
    %559 = vector.shape_cast %558 : vector<1x1x384xf32> to vector<1x384xf32>
    %560 = arith.truncf %549 : vector<8x128xf32> to vector<8x128xbf16>
    %cst_398 = arith.constant dense<0.000000e+00> : vector<8x384xf32>
    %561 = tpu.matmul %560, %553, %cst_398 {dimension_numbers = #tpu.dot_dimension_numbers<[1], [0], [0], [1], [0, 0, 1, 1], [], []>} : vector<8x128xbf16>, vector<128x384xbf16>, vector<8x384xf32> -> vector<8x384xf32>
    %562 = vector.broadcast %557 : vector<1x384xf32> to vector<8x384xf32>
    %563 = arith.addf %561, %562 : vector<8x384xf32>
    %564 = arith.truncf %551 : vector<8x128xf32> to vector<8x128xbf16>
    %cst_399 = arith.constant dense<0.000000e+00> : vector<8x384xf32>
    %565 = tpu.matmul %564, %555, %cst_399 {dimension_numbers = #tpu.dot_dimension_numbers<[1], [0], [0], [1], [0, 0, 1, 1], [], []>} : vector<8x128xbf16>, vector<128x384xbf16>, vector<8x384xf32> -> vector<8x384xf32>
    %566 = vector.broadcast %559 : vector<1x384xf32> to vector<8x384xf32>
    %567 = arith.addf %565, %566 : vector<8x384xf32>
    %568 = vector.extract_strided_slice %563 {offsets = [0, 0], sizes = [8, 128], strides = [1, 1]} : vector<8x384xf32> to vector<8x128xf32>
    %569 = vector.extract_strided_slice %567 {offsets = [0, 0], sizes = [8, 128], strides = [1, 1]} : vector<8x384xf32> to vector<8x128xf32>
    %570 = arith.addf %568, %569 : vector<8x128xf32>
    %571 = arith.negf %570 : vector<8x128xf32>
    %572 = math.exp %571 : vector<8x128xf32>
    %cst_400 = arith.constant 1.000000e+00 : f32
    %573 = vector.broadcast %cst_400 : f32 to vector<8x128xf32>
    %574 = arith.addf %573, %572 : vector<8x128xf32>
    %575 = arith.divf %573, %574 : vector<8x128xf32>
    %576 = vector.extract_strided_slice %563 {offsets = [0, 128], sizes = [8, 128], strides = [1, 1]} : vector<8x384xf32> to vector<8x128xf32>
    %577 = vector.extract_strided_slice %567 {offsets = [0, 128], sizes = [8, 128], strides = [1, 1]} : vector<8x384xf32> to vector<8x128xf32>
    %578 = arith.addf %576, %577 : vector<8x128xf32>
    %579 = arith.negf %578 : vector<8x128xf32>
    %580 = math.exp %579 : vector<8x128xf32>
    %cst_401 = arith.constant 1.000000e+00 : f32
    %581 = vector.broadcast %cst_401 : f32 to vector<8x128xf32>
    %582 = arith.addf %581, %580 : vector<8x128xf32>
    %583 = arith.divf %581, %582 : vector<8x128xf32>
    %584 = vector.extract_strided_slice %563 {offsets = [0, 256], sizes = [8, 128], strides = [1, 1]} : vector<8x384xf32> to vector<8x128xf32>
    %585 = vector.extract_strided_slice %567 {offsets = [0, 256], sizes = [8, 128], strides = [1, 1]} : vector<8x384xf32> to vector<8x128xf32>
    %586 = arith.mulf %575, %585 : vector<8x128xf32>
    %587 = arith.addf %584, %586 : vector<8x128xf32>
    %588 = math.tanh %587 : vector<8x128xf32>
    %cst_402 = arith.constant 1.000000e+00 : f32
    %589 = vector.broadcast %cst_402 : f32 to vector<8x128xf32>
    %590 = arith.subf %589, %583 : vector<8x128xf32>
    %591 = arith.mulf %590, %588 : vector<8x128xf32>
    %592 = arith.mulf %583, %551 : vector<8x128xf32>
    %593 = arith.addf %591, %592 : vector<8x128xf32>
    %c4_403 = arith.constant 4 : index
    %c0_404 = arith.constant 0 : index
    %c0_405 = arith.constant 0 : index
    %594 = vector.load %arg28[%c4_403, %c0_404, %c0_405] : memref<5x8x128xf32, #tpu.memory_space<vmem>>, vector<1x8x128xf32>
    %595 = vector.shape_cast %594 : vector<1x8x128xf32> to vector<8x128xf32>
    %596 = vector.shape_cast %593 : vector<8x128xf32> to vector<1x8x128xf32>
    tpu.vector_store %arg28[%c4_403, %c0_404, %c0_405], %596 {strides = array<i32>} : memref<5x8x128xf32, #tpu.memory_space<vmem>>, vector<1x8x128xf32>,
    %cst_406 = arith.constant dense<0.000000e+00> : vector<8xf32>
    %597 = vector.multi_reduction <add>, %593, %cst_406 [1] : vector<8x128xf32> to vector<8xf32>
    %598 = vector.shape_cast %597 : vector<8xf32> to vector<8x1xf32>
    %cst_407 = arith.constant 1.280000e+02 : f32
    %599 = vector.broadcast %cst_407 : f32 to vector<8x1xf32>
    %600 = arith.divf %598, %599 : vector<8x1xf32>
    %601 = vector.broadcast %600 : vector<8x1xf32> to vector<8x128xf32>
    %602 = arith.subf %593, %601 : vector<8x128xf32>
    %603 = arith.mulf %602, %602 : vector<8x128xf32>
    %cst_408 = arith.constant dense<0.000000e+00> : vector<8xf32>
    %604 = vector.multi_reduction <add>, %603, %cst_408 [1] : vector<8x128xf32> to vector<8xf32>
    %605 = vector.shape_cast %604 : vector<8xf32> to vector<8x1xf32>
    %cst_409 = arith.constant 1.280000e+02 : f32
    %606 = vector.broadcast %cst_409 : f32 to vector<8x1xf32>
    %607 = arith.divf %605, %606 : vector<8x1xf32>
    %608 = vector.broadcast %600 : vector<8x1xf32> to vector<8x128xf32>
    %609 = arith.subf %593, %608 : vector<8x128xf32>
    %cst_410 = arith.constant 9.99999974E-6 : f32
    %610 = vector.broadcast %cst_410 : f32 to vector<8x1xf32>
    %611 = arith.addf %607, %610 : vector<8x1xf32>
    %612 = math.rsqrt %611 : vector<8x1xf32>
    %613 = vector.broadcast %612 : vector<8x1xf32> to vector<8x128xf32>
    %614 = arith.mulf %609, %613 : vector<8x128xf32>
    %c3_411 = arith.constant 3 : index
    %c0_412 = arith.constant 0 : index
    %c0_413 = arith.constant 0 : index
    %615 = vector.load %arg23[%c3_411, %c0_412, %c0_413] : memref<4x1x128xf32, #tpu.memory_space<vmem>>, vector<1x1x128xf32>
    %616 = vector.shape_cast %615 : vector<1x1x128xf32> to vector<1x128xf32>
    %617 = vector.broadcast %616 : vector<1x128xf32> to vector<8x128xf32>
    %618 = arith.mulf %614, %617 : vector<8x128xf32>
    %c3_414 = arith.constant 3 : index
    %c0_415 = arith.constant 0 : index
    %c0_416 = arith.constant 0 : index
    %619 = vector.load %arg24[%c3_414, %c0_415, %c0_416] : memref<4x1x128xf32, #tpu.memory_space<vmem>>, vector<1x1x128xf32>
    %620 = vector.shape_cast %619 : vector<1x1x128xf32> to vector<1x128xf32>
    %621 = vector.broadcast %620 : vector<1x128xf32> to vector<8x128xf32>
    %622 = arith.addf %618, %621 : vector<8x128xf32>
    %623 = arith.addf %622, %522 : vector<8x128xf32>
    %624 = tpu.concatenate %623, %162 in 1 : vector<8x128xf32>, vector<8x128xf32> -> vector<8x256xf32>
    %625 = arith.truncf %624 : vector<8x256xf32> to vector<8x256xbf16>
    %c0_417 = arith.constant 0 : index
    %c0_418 = arith.constant 0 : index
    %626 = vector.load %arg25[%c0_417, %c0_418] : memref<256x128xbf16, #tpu.memory_space<vmem>>, vector<256x128xbf16>
    %cst_419 = arith.constant dense<0.000000e+00> : vector<8x128xf32>
    %627 = tpu.matmul %625, %626, %cst_419 {dimension_numbers = #tpu.dot_dimension_numbers<[1], [0], [0], [1], [0, 0, 1, 1], [], []>} : vector<8x256xbf16>, vector<256x128xbf16>, vector<8x128xf32> -> vector<8x128xf32>
    %c0_420 = arith.constant 0 : index
    %c0_421 = arith.constant 0 : index
    %628 = vector.load %arg26[%c0_420, %c0_421] : memref<1x128xf32, #tpu.memory_space<vmem>>, vector<1x128xf32>
    %629 = vector.broadcast %628 : vector<1x128xf32> to vector<8x128xf32>
    %630 = arith.addf %627, %629 : vector<8x128xf32>
    %c0_422 = arith.constant 0 : index
    %c0_423 = arith.constant 0 : index
    %631 = vector.load %arg27[%c0_422, %c0_423] : memref<8x128xf32, #tpu.memory_space<vmem>>, vector<8x128xf32>
    tpu.vector_store %arg27[%c0_422, %c0_423], %630 {strides = array<i32>} : memref<8x128xf32, #tpu.memory_space<vmem>>, vector<8x128xf32>,
    return
  }
}

</mosaic_0001>

<llo_original>
// kernel: tpu_custom_call.1
$region0: #{tpu_custom_call.1}
  #allocation0 [shape = 'u32[]', space=smem, size = 0x4, offset = 0x4, fixed_abs, tag = 'smem constant byte address 0x4 - core index']
  #allocation1 [shape = 'u32[144,128]{1,0:T(1,128)}', space=vmem, size = 0x12000, scoped, tag = 'internal scratch']
  #allocation2 [shape = 'bf16[2,256,128]{2,1,0:T(16,128)(2,1)}', space=vmem, size = 0x20000, scoped, tag = 'scratch operand']
  #allocation3 [shape = 'bf16[2,128,384]{2,1,0:T(16,128)(2,1)}', space=vmem, size = 0x30000, scoped, tag = 'scratch operand']
  #allocation4 [shape = 'bf16[2,128,384]{2,1,0:T(16,128)(2,1)}', space=vmem, size = 0x30000, scoped, tag = 'scratch operand']
  #allocation5 [shape = 's32[6]{0}', space=sflag, size = 0x18, scoped, tag = 'scratch operand']
  #allocation37 [shape = 's32[]', space=sflag, size = 0x4, offset = 0, fixed_abs, tag = 'sflag constant byte address 0x0 - dummy sync flag']
  #allocation38 [shape = 's32[]', space=sflag, size = 0x4, offset = 0, fixed_abs, tag = 'sflag constant byte address 0x0 - dummy sync flag']
  #allocation39 [shape = 'u32[]', space=smem, size = 0x4, offset = 0x44, fixed_abs, tag = 'smem constant byte address 0x44 - assertion arg 0']
  #allocation40 [shape = 'u32[]', space=smem, size = 0x4, offset = 0x48, fixed_abs, tag = 'smem constant byte address 0x48 - assertion arg 1']
  #allocation41 [shape = 's32[]', space=sflag, size = 0x4, offset = 0, fixed_abs, tag = 'sflag constant byte address 0x0 - dummy sync flag']
  #allocation43 [shape = 's32[]', space=sflag, size = 0x4, offset = 0, fixed_abs, tag = 'sflag constant byte address 0x0 - dummy sync flag']
  #allocation45 [shape = 's32[]', space=sflag, size = 0x4, offset = 0, fixed_abs, tag = 'sflag constant byte address 0x0 - dummy sync flag']
  #allocation46 [shape = 's32[]', space=sflag, size = 0x4, offset = 0, fixed_abs, tag = 'sflag constant byte address 0x0 - dummy sync flag']
  #allocation47 [shape = 's32[]', space=sflag, size = 0x4, offset = 0, fixed_abs, tag = 'sflag constant byte address 0x0 - dummy sync flag']
  #allocation49 [shape = 's32[]', space=sflag, size = 0x4, offset = 0, fixed_abs, tag = 'sflag constant byte address 0x0 - dummy sync flag']
  #allocation51 [shape = 's32[]', space=sflag, size = 0x4, offset = 0, fixed_abs, tag = 'sflag constant byte address 0x0 - dummy sync flag']
  #allocation52 [shape = 's32[]', space=sflag, size = 0x4, offset = 0, fixed_abs, tag = 'sflag constant byte address 0x0 - dummy sync flag']
  #allocation53 [shape = 's32[]', space=sflag, size = 0x4, offset = 0, fixed_abs, tag = 'sflag constant byte address 0x0 - dummy sync flag']
  #allocation55 [shape = 's32[]', space=sflag, size = 0x4, offset = 0, fixed_abs, tag = 'sflag constant byte address 0x0 - dummy sync flag']
  #allocation57 [shape = 's32[]', space=sflag, size = 0x4, offset = 0, fixed_abs, tag = 'sflag constant byte address 0x0 - dummy sync flag']
  #allocation58 [shape = 's32[]', space=sflag, size = 0x4, offset = 0, fixed_abs, tag = 'sflag constant byte address 0x0 - dummy sync flag']
  #allocation59 [shape = 's32[]', space=sflag, size = 0x4, offset = 0, fixed_abs, tag = 'sflag constant byte address 0x0 - dummy sync flag']
  #allocation61 [shape = 's32[]', space=sflag, size = 0x4, offset = 0, fixed_abs, tag = 'sflag constant byte address 0x0 - dummy sync flag']
  %s0 = inlined_call_operand.smem [shape: u32[30], index: -1, kind: input, shape index: {}]
  %s1 = sld [smem:[%s0]]
  %s2 = scalar_lea.smem %s0, 1
  %s3 = sld [smem:[%s2]]
  %s4 = scalar_lea.smem %s0, 2
  %s5 = sld [smem:[%s4]]
  %s6 = scalar_lea.smem %s0, 3
  %s7 = sld [smem:[%s6]]
  %s8 = scalar_lea.smem %s0, 4
  %s9 = sld [smem:[%s8]]
  %s10 = scalar_lea.smem %s0, 5
  %s11 = sld [smem:[%s10]]
  %s12 = scalar_lea.smem %s0, 6
  %s13 = sld [smem:[%s12]]
  %s14 = scalar_lea.smem %s0, 7
  %s15 = sld [smem:[%s14]]
  %s16 = scalar_lea.smem %s0, 8
  %s17 = sld [smem:[%s16]]
  %s18 = scalar_lea.smem %s0, 9
  %s19 = sld [smem:[%s18]]
  %s20 = scalar_lea.smem %s0, 10
  %s21 = sld [smem:[%s20]]
  %s22 = scalar_lea.smem %s0, 11
  %s23 = sld [smem:[%s22]]
  %s24 = scalar_lea.smem %s0, 12
  %s25 = sld [smem:[%s24]]
  %s26 = scalar_lea.smem %s0, 13
  %s27 = sld [smem:[%s26]]
  %s28 = scalar_lea.smem %s0, 14
  %s29 = sld [smem:[%s28]]
  %s30 = scalar_lea.smem %s0, 15
  %s31 = sld [smem:[%s30]]
  %s32 = scalar_lea.smem %s0, 16
  %s33 = sld [smem:[%s32]]
  %s34 = scalar_lea.smem %s0, 17
  %s35 = sld [smem:[%s34]]
  %s36 = scalar_lea.smem %s0, 18
  %s37 = sld [smem:[%s36]]
  %s38 = scalar_lea.smem %s0, 19
  %s39 = sld [smem:[%s38]]
  %s40 = scalar_lea.smem %s0, 20
  %s41 = sld [smem:[%s40]]
  %s42 = scalar_lea.smem %s0, 21
  %s43 = sld [smem:[%s42]]
  %s44 = scalar_lea.smem %s0, 22
  %s45 = sld [smem:[%s44]]
  %s46 = scalar_lea.smem %s0, 23
  %s47 = sld [smem:[%s46]]
  %s48 = scalar_lea.smem %s0, 24
  %s49 = sld [smem:[%s48]]
  %s50 = scalar_lea.smem %s0, 25
  %s51 = sld [smem:[%s50]]
  %s52 = scalar_lea.smem %s0, 26
  %s53 = sld [smem:[%s52]]
  %s54 = scalar_lea.smem %s0, 27
  %s55 = sld [smem:[%s54]]
  %s56 = scalar_lea.smem %s0, 28
  %s57 = sld [smem:[%s56]]
  %s58 = scalar_lea.smem %s0, 29
  %s59 = sld [smem:[%s58]]
  %60 = xla_tuple %s55, %s57, %s59
  %s61 = sld [smem:[#allocation0]]
  $region206: #{tpu_custom_call.1} parent=0
    _
  %s63 = ssub.s32 1, %s61
  %s64 = scalar_select 0, %s63, %s61
  $region1: #{tpu_custom_call.1} parent=0
    #allocation6 [shape = 'u8[2048]{0}', space=vmem, size = 0x800, scoped, tag = 'input window, operand 0, single buffered']
    #allocation7 [shape = 's32[1]{0}', space=sflag, size = 0x4, scoped, tag = 'scoped memory for tpu_custom_call.1']
    #allocation8 [shape = 's32[1]{0}', space=sflag, size = 0x4, scoped, tag = 'scoped memory for tpu_custom_call.1']
    #allocation9 [shape = 'u8[32768]{0}', space=vmem, size = 0x8000, scoped, tag = 'input window, operand 1, single buffered']
    #allocation10 [shape = 's32[1]{0}', space=sflag, size = 0x4, scoped, tag = 'scoped memory for tpu_custom_call.1']
    #allocation11 [shape = 'u8[512]{0}', space=vmem, size = 0x400, scoped, tag = 'input window, operand 2, single buffered']
    #allocation12 [shape = 'u8[20480]{0}', space=vmem, size = 0x5000, scoped, tag = 'input window, operand 3, single buffered']
    #allocation13 [shape = 's32[1]{0}', space=sflag, size = 0x4, scoped, tag = 'scoped memory for tpu_custom_call.1']
    #allocation14 [shape = 'u8[98304]{0}', space=vmem, size = 0x18000, scoped, tag = 'input window, operand 4, single buffered']
    #allocation15 [shape = 'u8[98304]{0}', space=vmem, size = 0x18000, scoped, tag = 'input window, operand 5, single buffered']
    #allocation16 [shape = 's32[1]{0}', space=sflag, size = 0x4, scoped, tag = 'scoped memory for tpu_custom_call.1']
    #allocation17 [shape = 'u8[1536]{0}', space=vmem, size = 0x800, scoped, tag = 'input window, operand 6, single buffered']
    #allocation18 [shape = 'u8[1536]{0}', space=vmem, size = 0x800, scoped, tag = 'input window, operand 7, single buffered']
    #allocation19 [shape = 's32[1]{0}', space=sflag, size = 0x4, scoped, tag = 'scoped memory for tpu_custom_call.1']
    #allocation20 [shape = 'u8[32768]{0}', space=vmem, size = 0x8000, scoped, tag = 'input window, operand 8, single buffered']
    #allocation21 [shape = 'u8[32768]{0}', space=vmem, size = 0x8000, scoped, tag = 'input window, operand 9, single buffered']
    #allocation22 [shape = 's32[1]{0}', space=sflag, size = 0x4, scoped, tag = 'scoped memory for tpu_custom_call.1']
    #allocation23 [shape = 'u8[32768]{0}', space=vmem, size = 0x8000, scoped, tag = 'input window, operand 10, single buffered']
    #allocation24 [shape = 'u8[512]{0}', space=vmem, size = 0x400, scoped, tag = 'input window, operand 11, single buffered']
    #allocation25 [shape = 's32[1]{0}', space=sflag, size = 0x4, scoped, tag = 'scoped memory for tpu_custom_call.1']
    #allocation26 [shape = 'u8[512]{0}', space=vmem, size = 0x400, scoped, tag = 'input window, operand 12, single buffered']
    #allocation27 [shape = 'u8[512]{0}', space=vmem, size = 0x400, scoped, tag = 'input window, operand 13, single buffered']
    #allocation28 [shape = 's32[1]{0}', space=sflag, size = 0x4, scoped, tag = 'scoped memory for tpu_custom_call.1']
    #allocation29 [shape = 'u8[32768]{0}', space=vmem, size = 0x8000, scoped, tag = 'input window, operand 14, single buffered']
    #allocation30 [shape = 'u8[512]{0}', space=vmem, size = 0x400, scoped, tag = 'input window, operand 15, single buffered']
    #allocation31 [shape = 's32[1]{0}', space=sflag, size = 0x4, scoped, tag = 'scoped memory for tpu_custom_call.1']
    #allocation32 [shape = 'u8[65536]{0}', space=vmem, size = 0x10000, scoped, tag = 'input window, operand 25, single buffered']
    #allocation33 [shape = 'u8[4096]{0}', space=vmem, size = 0x1000, scoped, tag = 'output window, operand 0, single buffered']
    #allocation34 [shape = 'u8[20480]{0}', space=vmem, size = 0x5000, scoped, tag = 'output window, operand 1, single buffered']
    #allocation35 [shape = 's32[1]{0}', space=sflag, size = 0x4, scoped, tag = 'scoped memory for tpu_custom_call.1']
    #allocation36 [shape = 'u8[4096]{0}', space=vmem, size = 0x1000, scoped, tag = 'output window, operand 2, single buffered']
    #allocation42 [shape = 'u32[9]{0}', space=smem, size = 0x24, scoped, tag = 'DMA stride descriptor']
    #allocation44 [shape = 'u32[9]{0}', space=smem, size = 0x24, scoped, tag = 'DMA stride descriptor']
    #allocation48 [shape = 'u32[9]{0}', space=smem, size = 0x24, scoped, tag = 'DMA stride descriptor']
    #allocation50 [shape = 'u32[9]{0}', space=smem, size = 0x24, scoped, tag = 'DMA stride descriptor']
    #allocation54 [shape = 'u32[9]{0}', space=smem, size = 0x24, scoped, tag = 'DMA stride descriptor']
    #allocation56 [shape = 'u32[9]{0}', space=smem, size = 0x24, scoped, tag = 'DMA stride descriptor']
    #allocation60 [shape = 'u32[9]{0}', space=smem, size = 0x24, scoped, tag = 'DMA stride descriptor']
    #allocation62 [shape = 'u32[9]{0}', space=smem, size = 0x24, scoped, tag = 'DMA stride descriptor']
    %65 = vsyncpa [#allocation7], 0
    %66 = vsyncpa [#allocation10], 0
    %67 = vsyncpa [#allocation13], 0
    %68 = vsyncpa [#allocation16], 0
    %69 = vsyncpa [#allocation19], 0
    %70 = vsyncpa [#allocation22], 0
    %71 = vsyncpa [#allocation25], 0
    %72 = vsyncpa [#allocation28], 0
    %73 = vsyncpa [#allocation31], 0
    %74 = vsyncpa [#allocation8], 0
    %75 = vsyncpa [#allocation35], 0
    // Predicated region
    $region2: #{tpu_custom_call.1} parent=1 // pred_check
      _
    $region3: #{tpu_custom_call.1} parent=1 // pred_check_branch
      %77 = sbr.rel (0) target = $region5
    $region4: #{tpu_custom_call.1} parent=1 // pred_region
      %s79 = ssub.s32 64, 64
      %80 = vsyncadd [#allocation7], %s79
      %s82 = sshll.u32 [#allocation6], 4
      %s83 = int_to_ptr.vmem [resolvable:$true] %s82
      %85 = dma.hbm_to_vmem [thread:$0]  %s1, 64, %s83, [#allocation7]
    $region5: #{tpu_custom_call.1} parent=1 // pred_fallthru
      _
    // Predicated region
    $region6: #{tpu_custom_call.1} parent=1 // pred_check
      _
    $region7: #{tpu_custom_call.1} parent=1 // pred_check_branch
      %87 = sbr.rel (0) target = $region9
    $region8: #{tpu_custom_call.1} parent=1 // pred_region
      %s89 = ssub.s32 1024, 1024
      %90 = vsyncadd [#allocation10], %s89
      %s91 = sshll.u32 [#allocation9], 4
      %s92 = int_to_ptr.vmem [resolvable:$true] %s91
      %97 = dma.hbm_to_vmem [thread:$0]  %s3, 1024, %s92, [#allocation10], 64, 64, 4
    $region9: #{tpu_custom_call.1} parent=1 // pred_fallthru
      _
    // Predicated region
    $region10: #{tpu_custom_call.1} parent=1 // pred_check
      _
    $region11: #{tpu_custom_call.1} parent=1 // pred_check_branch
      %99 = sbr.rel (0) target = $region13
    $region12: #{tpu_custom_call.1} parent=1 // pred_region
      %s101 = ssub.s32 16, 16
      %102 = vsyncadd [#allocation10], %s101
      %s104 = sshll.u32 [#allocation11], 4
      %s105 = int_to_ptr.vmem [resolvable:$true] %s104
      %107 = dma.hbm_to_vmem [thread:$0]  %s5, 16, %s105, [#allocation10]
    $region13: #{tpu_custom_call.1} parent=1 // pred_fallthru
      _
    // Predicated region
    $region14: #{tpu_custom_call.1} parent=1 // pred_check
      _
    $region15: #{tpu_custom_call.1} parent=1 // pred_check_branch
      %109 = sbr.rel (0) target = $region17
    $region16: #{tpu_custom_call.1} parent=1 // pred_region
      %s111 = ssub.s32 640, 640
      %112 = vsyncadd [#allocation13], %s111
      %s113 = sshll.u32 [#allocation12], 4
      %s114 = int_to_ptr.vmem [resolvable:$true] %s113
      %119 = dma.hbm_to_vmem [thread:$0]  %s7, 640, %s114, [#allocation13], 128, 128, 8
    $region17: #{tpu_custom_call.1} parent=1 // pred_fallthru
      _
    // Predicated region
    $region18: #{tpu_custom_call.1} parent=1 // pred_check
      _
    $region19: #{tpu_custom_call.1} parent=1 // pred_check_branch
      %121 = sbr.rel (0) target = $region21
    $region20: #{tpu_custom_call.1} parent=1 // pred_region
      %s123 = ssub.s32 3072, 3072
      %124 = vsyncadd [#allocation13], %s123
      %s125 = sshll.u32 [#allocation14], 4
      %s126 = int_to_ptr.vmem [resolvable:$true] %s125
      %131 = dma.hbm_to_vmem [thread:$0]  %s9, 3072, %s126, [#allocation13], 192, 192, 12
    $region21: #{tpu_custom_call.1} parent=1 // pred_fallthru
      _
    // Predicated region
    $region22: #{tpu_custom_call.1} parent=1 // pred_check
      _
    $region23: #{tpu_custom_call.1} parent=1 // pred_check_branch
      %133 = sbr.rel (0) target = $region25
    $region24: #{tpu_custom_call.1} parent=1 // pred_region
      %s135 = ssub.s32 3072, 3072
      %136 = vsyncadd [#allocation16], %s135
      %s137 = sshll.u32 [#allocation15], 4
      %s138 = int_to_ptr.vmem [resolvable:$true] %s137
      %143 = dma.hbm_to_vmem [thread:$0]  %s11, 3072, %s138, [#allocation16], 192, 192, 12
    $region25: #{tpu_custom_call.1} parent=1 // pred_fallthru
      _
    // Predicated region
    $region26: #{tpu_custom_call.1} parent=1 // pred_check
      _
    $region27: #{tpu_custom_call.1} parent=1 // pred_check_branch
      %145 = sbr.rel (0) target = $region29
    $region28: #{tpu_custom_call.1} parent=1 // pred_region
      %s147 = ssub.s32 48, 48
      %148 = vsyncadd [#allocation16], %s147
      %s150 = sshll.u32 [#allocation17], 4
      %s151 = int_to_ptr.vmem [resolvable:$true] %s150
      %153 = dma.hbm_to_vmem [thread:$0]  %s13, 48, %s151, [#allocation16]
    $region29: #{tpu_custom_call.1} parent=1 // pred_fallthru
      _
    // Predicated region
    $region30: #{tpu_custom_call.1} parent=1 // pred_check
      _
    $region31: #{tpu_custom_call.1} parent=1 // pred_check_branch
      %155 = sbr.rel (0) target = $region33
    $region32: #{tpu_custom_call.1} parent=1 // pred_region
      %s157 = ssub.s32 48, 48
      %158 = vsyncadd [#allocation19], %s157
      %s160 = sshll.u32 [#allocation18], 4
      %s161 = int_to_ptr.vmem [resolvable:$true] %s160
      %163 = dma.hbm_to_vmem [thread:$0]  %s15, 48, %s161, [#allocation19]
    $region33: #{tpu_custom_call.1} parent=1 // pred_fallthru
      _
    // Predicated region
    $region34: #{tpu_custom_call.1} parent=1 // pred_check
      _
    $region35: #{tpu_custom_call.1} parent=1 // pred_check_branch
      %165 = sbr.rel (0) target = $region37
    $region36: #{tpu_custom_call.1} parent=1 // pred_region
      %s167 = ssub.s32 1024, 1024
      %168 = vsyncadd [#allocation19], %s167
      %s169 = sshll.u32 [#allocation20], 4
      %s170 = int_to_ptr.vmem [resolvable:$true] %s169
      %175 = dma.hbm_to_vmem [thread:$0]  %s17, 1024, %s170, [#allocation19], 64, 64, 4
    $region37: #{tpu_custom_call.1} parent=1 // pred_fallthru
      _
    // Predicated region
    $region38: #{tpu_custom_call.1} parent=1 // pred_check
      _
    $region39: #{tpu_custom_call.1} parent=1 // pred_check_branch
      %177 = sbr.rel (0) target = $region41
    $region40: #{tpu_custom_call.1} parent=1 // pred_region
      %s179 = ssub.s32 1024, 1024
      %180 = vsyncadd [#allocation22], %s179
      %s181 = sshll.u32 [#allocation21], 4
      %s182 = int_to_ptr.vmem [resolvable:$true] %s181
      %187 = dma.hbm_to_vmem [thread:$0]  %s19, 1024, %s182, [#allocation22], 64, 64, 4
    $region41: #{tpu_custom_call.1} parent=1 // pred_fallthru
      _
    // Predicated region
    $region42: #{tpu_custom_call.1} parent=1 // pred_check
      _
    $region43: #{tpu_custom_call.1} parent=1 // pred_check_branch
      %189 = sbr.rel (0) target = $region45
    $region44: #{tpu_custom_call.1} parent=1 // pred_region
      %s191 = ssub.s32 1024, 1024
      %192 = vsyncadd [#allocation22], %s191
      %s193 = sshll.u32 [#allocation23], 4
      %s194 = int_to_ptr.vmem [resolvable:$true] %s193
      %199 = dma.hbm_to_vmem [thread:$0]  %s21, 1024, %s194, [#allocation22], 64, 64, 4
    $region45: #{tpu_custom_call.1} parent=1 // pred_fallthru
      _
    // Predicated region
    $region46: #{tpu_custom_call.1} parent=1 // pred_check
      _
    $region47: #{tpu_custom_call.1} parent=1 // pred_check_branch
      %201 = sbr.rel (0) target = $region49
    $region48: #{tpu_custom_call.1} parent=1 // pred_region
      %s203 = ssub.s32 16, 16
      %204 = vsyncadd [#allocation25], %s203
      %s206 = sshll.u32 [#allocation24], 4
      %s207 = int_to_ptr.vmem [resolvable:$true] %s206
      %209 = dma.hbm_to_vmem [thread:$0]  %s23, 16, %s207, [#allocation25]
    $region49: #{tpu_custom_call.1} parent=1 // pred_fallthru
      _
    // Predicated region
    $region50: #{tpu_custom_call.1} parent=1 // pred_check
      _
    $region51: #{tpu_custom_call.1} parent=1 // pred_check_branch
      %211 = sbr.rel (0) target = $region53
    $region52: #{tpu_custom_call.1} parent=1 // pred_region
      %s213 = ssub.s32 16, 16
      %214 = vsyncadd [#allocation25], %s213
      %s216 = sshll.u32 [#allocation26], 4
      %s217 = int_to_ptr.vmem [resolvable:$true] %s216
      %219 = dma.hbm_to_vmem [thread:$0]  %s25, 16, %s217, [#allocation25]
    $region53: #{tpu_custom_call.1} parent=1 // pred_fallthru
      _
    // Predicated region
    $region54: #{tpu_custom_call.1} parent=1 // pred_check
      _
    $region55: #{tpu_custom_call.1} parent=1 // pred_check_branch
      %221 = sbr.rel (0) target = $region57
    $region56: #{tpu_custom_call.1} parent=1 // pred_region
      %s223 = ssub.s32 16, 16
      %224 = vsyncadd [#allocation28], %s223
      %s226 = sshll.u32 [#allocation27], 4
      %s227 = int_to_ptr.vmem [resolvable:$true] %s226
      %229 = dma.hbm_to_vmem [thread:$0]  %s27, 16, %s227, [#allocation28]
    $region57: #{tpu_custom_call.1} parent=1 // pred_fallthru
      _
    // Predicated region
    $region58: #{tpu_custom_call.1} parent=1 // pred_check
      _
    $region59: #{tpu_custom_call.1} parent=1 // pred_check_branch
      %231 = sbr.rel (0) target = $region61
    $region60: #{tpu_custom_call.1} parent=1 // pred_region
      %s233 = ssub.s32 1024, 1024
      %234 = vsyncadd [#allocation28], %s233
      %s235 = sshll.u32 [#allocation29], 4
      %s236 = int_to_ptr.vmem [resolvable:$true] %s235
      %241 = dma.hbm_to_vmem [thread:$0]  %s29, 1024, %s236, [#allocation28], 64, 64, 4
    $region61: #{tpu_custom_call.1} parent=1 // pred_fallthru
      _
    // Predicated region
    $region62: #{tpu_custom_call.1} parent=1 // pred_check
      _
    $region63: #{tpu_custom_call.1} parent=1 // pred_check_branch
      %243 = sbr.rel (0) target = $region65
    $region64: #{tpu_custom_call.1} parent=1 // pred_region
      %s245 = ssub.s32 16, 16
      %246 = vsyncadd [#allocation31], %s245
      %s248 = sshll.u32 [#allocation30], 4
      %s249 = int_to_ptr.vmem [resolvable:$true] %s248
      %251 = dma.hbm_to_vmem [thread:$0]  %s31, 16, %s249, [#allocation31]
    $region65: #{tpu_custom_call.1} parent=1 // pred_fallthru
      _
    // Predicated region
    $region66: #{tpu_custom_call.1} parent=1 // pred_check
      _
    $region67: #{tpu_custom_call.1} parent=1 // pred_check_branch
      %253 = sbr.rel (0) target = $region69
    $region68: #{tpu_custom_call.1} parent=1 // pred_region
      _
    $region69: #{tpu_custom_call.1} parent=1 // pred_fallthru
      _
    // Predicated region
    $region70: #{tpu_custom_call.1} parent=1 // pred_check
      _
    $region71: #{tpu_custom_call.1} parent=1 // pred_check_branch
      %255 = sbr.rel (0) target = $region73
    $region72: #{tpu_custom_call.1} parent=1 // pred_region
      _
    $region73: #{tpu_custom_call.1} parent=1 // pred_fallthru
      _
    // Predicated region
    $region74: #{tpu_custom_call.1} parent=1 // pred_check
      _
    $region75: #{tpu_custom_call.1} parent=1 // pred_check_branch
      %257 = sbr.rel (0) target = $region77
    $region76: #{tpu_custom_call.1} parent=1 // pred_region
      _
    $region77: #{tpu_custom_call.1} parent=1 // pred_fallthru
      _
    // Predicated region
    $region78: #{tpu_custom_call.1} parent=1 // pred_check
      _
    $region79: #{tpu_custom_call.1} parent=1 // pred_check_branch
      %259 = sbr.rel (0) target = $region81
    $region80: #{tpu_custom_call.1} parent=1 // pred_region
      _
    $region81: #{tpu_custom_call.1} parent=1 // pred_fallthru
      _
    // Predicated region
    $region82: #{tpu_custom_call.1} parent=1 // pred_check
      _
    $region83: #{tpu_custom_call.1} parent=1 // pred_check_branch
      %261 = sbr.rel (0) target = $region85
    $region84: #{tpu_custom_call.1} parent=1 // pred_region
      _
    $region85: #{tpu_custom_call.1} parent=1 // pred_fallthru
      _
    // Predicated region
    $region86: #{tpu_custom_call.1} parent=1 // pred_check
      _
    $region87: #{tpu_custom_call.1} parent=1 // pred_check_branch
      %263 = sbr.rel (0) target = $region89
    $region88: #{tpu_custom_call.1} parent=1 // pred_region
      _
    $region89: #{tpu_custom_call.1} parent=1 // pred_fallthru
      _
    // Predicated region
    $region90: #{tpu_custom_call.1} parent=1 // pred_check
      _
    $region91: #{tpu_custom_call.1} parent=1 // pred_check_branch
      %265 = sbr.rel (0) target = $region93
    $region92: #{tpu_custom_call.1} parent=1 // pred_region
      %s267 = ssub.s32 2048, 2048
      %268 = vsyncadd [#allocation31], %s267
      %s269 = sshll.u32 [#allocation32], 4
      %s270 = int_to_ptr.vmem [resolvable:$true] %s269
      %275 = dma.hbm_to_vmem [thread:$0]  %s51, 2048, %s270, [#allocation31], 64, 64, 4
    $region93: #{tpu_custom_call.1} parent=1 // pred_fallthru
      _
    // Predicated region
    $region94: #{tpu_custom_call.1} parent=1 // pred_check
      _
    $region95: #{tpu_custom_call.1} parent=1 // pred_check_branch
      %277 = sbr.rel (0) target = $region97
    $region96: #{tpu_custom_call.1} parent=1 // pred_region
      _
    $region97: #{tpu_custom_call.1} parent=1 // pred_fallthru
      _
    // Predicated region
    $region98: #{tpu_custom_call.1} parent=1 // pred_check
      _
    $region99: #{tpu_custom_call.1} parent=1 // pred_check_branch
      %279 = sbr.rel (0) target = $region101
    $region100: #{tpu_custom_call.1} parent=1 // pred_region
      %280 = dma.done [#allocation7], 64
    $region101: #{tpu_custom_call.1} parent=1 // pred_fallthru
      _
    // Predicated region
    $region102: #{tpu_custom_call.1} parent=1 // pred_check
      _
    $region103: #{tpu_custom_call.1} parent=1 // pred_check_branch
      %282 = sbr.rel (0) target = $region105
    $region104: #{tpu_custom_call.1} parent=1 // pred_region
      %283 = dma.done [#allocation10], 1024
    $region105: #{tpu_custom_call.1} parent=1 // pred_fallthru
      _
    // Predicated region
    $region106: #{tpu_custom_call.1} parent=1 // pred_check
      _
    $region107: #{tpu_custom_call.1} parent=1 // pred_check_branch
      %285 = sbr.rel (0) target = $region109
    $region108: #{tpu_custom_call.1} parent=1 // pred_region
      %286 = dma.done [#allocation10], 16
    $region109: #{tpu_custom_call.1} parent=1 // pred_fallthru
      _
    // Predicated region
    $region110: #{tpu_custom_call.1} parent=1 // pred_check
      _
    $region111: #{tpu_custom_call.1} parent=1 // pred_check_branch
      %288 = sbr.rel (0) target = $region113
    $region112: #{tpu_custom_call.1} parent=1 // pred_region
      %289 = dma.done [#allocation13], 640
    $region113: #{tpu_custom_call.1} parent=1 // pred_fallthru
      _
    // Predicated region
    $region114: #{tpu_custom_call.1} parent=1 // pred_check
      _
    $region115: #{tpu_custom_call.1} parent=1 // pred_check_branch
      %291 = sbr.rel (0) target = $region117
    $region116: #{tpu_custom_call.1} parent=1 // pred_region
      %292 = dma.done [#allocation13], 3072
    $region117: #{tpu_custom_call.1} parent=1 // pred_fallthru
      _
    // Predicated region
    $region118: #{tpu_custom_call.1} parent=1 // pred_check
      _
    $region119: #{tpu_custom_call.1} parent=1 // pred_check_branch
      %294 = sbr.rel (0) target = $region121
    $region120: #{tpu_custom_call.1} parent=1 // pred_region
      %295 = dma.done [#allocation16], 3072
    $region121: #{tpu_custom_call.1} parent=1 // pred_fallthru
      _
    // Predicated region
    $region122: #{tpu_custom_call.1} parent=1 // pred_check
      _
    $region123: #{tpu_custom_call.1} parent=1 // pred_check_branch
      %297 = sbr.rel (0) target = $region125
    $region124: #{tpu_custom_call.1} parent=1 // pred_region
      %298 = dma.done [#allocation16], 48
    $region125: #{tpu_custom_call.1} parent=1 // pred_fallthru
      _
    // Predicated region
    $region126: #{tpu_custom_call.1} parent=1 // pred_check
      _
    $region127: #{tpu_custom_call.1} parent=1 // pred_check_branch
      %300 = sbr.rel (0) target = $region129
    $region128: #{tpu_custom_call.1} parent=1 // pred_region
      %301 = dma.done [#allocation19], 48
    $region129: #{tpu_custom_call.1} parent=1 // pred_fallthru
      _
    // Predicated region
    $region130: #{tpu_custom_call.1} parent=1 // pred_check
      _
    $region131: #{tpu_custom_call.1} parent=1 // pred_check_branch
      %303 = sbr.rel (0) target = $region133
    $region132: #{tpu_custom_call.1} parent=1 // pred_region
      %304 = dma.done [#allocation19], 1024
    $region133: #{tpu_custom_call.1} parent=1 // pred_fallthru
      _
    // Predicated region
    $region134: #{tpu_custom_call.1} parent=1 // pred_check
      _
    $region135: #{tpu_custom_call.1} parent=1 // pred_check_branch
      %306 = sbr.rel (0) target = $region137
    $region136: #{tpu_custom_call.1} parent=1 // pred_region
      %307 = dma.done [#allocation22], 1024
    $region137: #{tpu_custom_call.1} parent=1 // pred_fallthru
      _
    // Predicated region
    $region138: #{tpu_custom_call.1} parent=1 // pred_check
      _
    $region139: #{tpu_custom_call.1} parent=1 // pred_check_branch
      %309 = sbr.rel (0) target = $region141
    $region140: #{tpu_custom_call.1} parent=1 // pred_region
      %310 = dma.done [#allocation22], 1024
    $region141: #{tpu_custom_call.1} parent=1 // pred_fallthru
      _
    // Predicated region
    $region142: #{tpu_custom_call.1} parent=1 // pred_check
      _
    $region143: #{tpu_custom_call.1} parent=1 // pred_check_branch
      %312 = sbr.rel (0) target = $region145
    $region144: #{tpu_custom_call.1} parent=1 // pred_region
      %313 = dma.done [#allocation25], 16
    $region145: #{tpu_custom_call.1} parent=1 // pred_fallthru
      _
    // Predicated region
    $region146: #{tpu_custom_call.1} parent=1 // pred_check
      _
    $region147: #{tpu_custom_call.1} parent=1 // pred_check_branch
      %315 = sbr.rel (0) target = $region149
    $region148: #{tpu_custom_call.1} parent=1 // pred_region
      %316 = dma.done [#allocation25], 16
    $region149: #{tpu_custom_call.1} parent=1 // pred_fallthru
      _
    // Predicated region
    $region150: #{tpu_custom_call.1} parent=1 // pred_check
      _
    $region151: #{tpu_custom_call.1} parent=1 // pred_check_branch
      %318 = sbr.rel (0) target = $region153
    $region152: #{tpu_custom_call.1} parent=1 // pred_region
      %319 = dma.done [#allocation28], 16
    $region153: #{tpu_custom_call.1} parent=1 // pred_fallthru
      _
    // Predicated region
    $region154: #{tpu_custom_call.1} parent=1 // pred_check
      _
    $region155: #{tpu_custom_call.1} parent=1 // pred_check_branch
      %321 = sbr.rel (0) target = $region157
    $region156: #{tpu_custom_call.1} parent=1 // pred_region
      %322 = dma.done [#allocation28], 1024
    $region157: #{tpu_custom_call.1} parent=1 // pred_fallthru
      _
    // Predicated region
    $region158: #{tpu_custom_call.1} parent=1 // pred_check
      _
    $region159: #{tpu_custom_call.1} parent=1 // pred_check_branch
      %324 = sbr.rel (0) target = $region161
    $region160: #{tpu_custom_call.1} parent=1 // pred_region
      %325 = dma.done [#allocation31], 16
    $region161: #{tpu_custom_call.1} parent=1 // pred_fallthru
      _
    // Predicated region
    $region162: #{tpu_custom_call.1} parent=1 // pred_check
      _
    $region163: #{tpu_custom_call.1} parent=1 // pred_check_branch
      %327 = sbr.rel (0) target = $region165
    $region164: #{tpu_custom_call.1} parent=1 // pred_region
      %328 = dma.done [#allocation31], 2048
    $region165: #{tpu_custom_call.1} parent=1 // pred_fallthru
      _
    // Predicated region
    $region166: #{tpu_custom_call.1} parent=1 // pred_check
      _
    $region167: #{tpu_custom_call.1} parent=1 // pred_check_branch
      %331 = sbr.rel target = $region169
    $region168: #{tpu_custom_call.1} parent=1 // pred_region
      %332 = sst [smem:[#allocation39]] [#allocation38]
      %333 = sst [smem:[#allocation40]] [#allocation37]
    $region169: #{tpu_custom_call.1} parent=1 // pred_fallthru
      _
    %335 = shalt.err (0)
    %s337 = sshll.u32 [#allocation2], 4
    %s338 = int_to_ptr.vmem [resolvable:$true] %s337
    %340 = dma.hbm_to_vmem [thread:$0]  %s35, 2048, %s338, [#allocation5]
    %s341 = scalar_lea.sflag [#allocation5], 1
    %s343 = sshll.u32 1, 14
    %s344 = sxor.u32 4294967295, %s343
    %s346 = sld [smem:[#allocation0]]
    %s347 = sadd.s32 2, %s346
    %s349 = sshll.u32 7, 26
    %s350 = sxor.u32 4294967295, %s349
    %s351 = sand.u32 0, %s350
    %s352 = sshll.u32 %s347, 26
    %s353 = sor.u32 %s351, %s352
    %s354 = sshll.u32 [#allocation3], 4
    %s355 = int_to_ptr.vmem [resolvable:$true] %s354
    %358 = sst [smem:[#allocation42]] 384
    %s359 = scalar_lea.smem [#allocation42], 1
    %360 = sst [smem:[%s359]] 384
    %s361 = scalar_lea.smem [#allocation42], 2
    %362 = sst [smem:[%s361]] 3
    %s363 = scalar_lea.smem [#allocation42], 3
    %364 = sst [smem:[%s363]] 64
    %s365 = scalar_lea.smem [#allocation42], 4
    %366 = sst [smem:[%s365]] 128
    %s367 = scalar_lea.smem [#allocation42], 5
    %368 = sst [smem:[%s367]] 2
    %s369 = scalar_lea.smem [#allocation42], 6
    %370 = sst [smem:[%s369]] 192
    %s371 = scalar_lea.smem [#allocation42], 7
    %372 = sst [smem:[%s371]] 64
    %s373 = scalar_lea.smem [#allocation42], 8
    %374 = sst [smem:[%s373]] 4
    %376 = dma.general %s39, 3072, %s355, %s341, [#allocation41], [#allocation42], %s353, 0
    %s377 = scalar_lea.sflag [#allocation5], 2
    %s379 = sshll.u32 1, 14
    %s380 = sxor.u32 4294967295, %s379
    %s382 = sadd.s32 2, %s346
    %s384 = sshll.u32 7, 26
    %s385 = sxor.u32 4294967295, %s384
    %s386 = sand.u32 0, %s385
    %s387 = sshll.u32 %s382, 26
    %s388 = sor.u32 %s386, %s387
    %s389 = sshll.u32 [#allocation4], 4
    %s390 = int_to_ptr.vmem [resolvable:$true] %s389
    %393 = sst [smem:[#allocation44]] 384
    %s394 = scalar_lea.smem [#allocation44], 1
    %395 = sst [smem:[%s394]] 384
    %s396 = scalar_lea.smem [#allocation44], 2
    %397 = sst [smem:[%s396]] 3
    %s398 = scalar_lea.smem [#allocation44], 3
    %399 = sst [smem:[%s398]] 64
    %s400 = scalar_lea.smem [#allocation44], 4
    %401 = sst [smem:[%s400]] 128
    %s402 = scalar_lea.smem [#allocation44], 5
    %403 = sst [smem:[%s402]] 2
    %s404 = scalar_lea.smem [#allocation44], 6
    %405 = sst [smem:[%s404]] 192
    %s406 = scalar_lea.smem [#allocation44], 7
    %407 = sst [smem:[%s406]] 64
    %s408 = scalar_lea.smem [#allocation44], 8
    %409 = sst [smem:[%s408]] 4
    %411 = dma.general %s41, 3072, %s390, %s377, [#allocation43], [#allocation44], %s388, 0
    %v412 = vld [vmem:[#allocation6] sm:$0xf]
    %v413 = vld [vmem:[#allocation9] sm:$0xf]
    %v414 = vld [vmem:[#allocation9 + $0x4] sm:$0xf]
    %v415 = vld [vmem:[#allocation9 + $0x8] sm:$0xf]
    %v416 = vld [vmem:[#allocation9 + $0xc] sm:$0xf]
    %v417 = vld [vmem:[#allocation9 + $0x10] sm:$0xf]
    %v418 = vld [vmem:[#allocation9 + $0x14] sm:$0xf]
    %v419 = vld [vmem:[#allocation9 + $0x18] sm:$0xf]
    %v420 = vld [vmem:[#allocation9 + $0x1c] sm:$0xf]
    %v421 = vld [vmem:[#allocation9 + $0x20] sm:$0xf]
    %v422 = vld [vmem:[#allocation9 + $0x24] sm:$0xf]
    %v423 = vld [vmem:[#allocation9 + $0x28] sm:$0xf]
    %v424 = vld [vmem:[#allocation9 + $0x2c] sm:$0xf]
    %v425 = vld [vmem:[#allocation9 + $0x30] sm:$0xf]
    %v426 = vld [vmem:[#allocation9 + $0x34] sm:$0xf]
    %v427 = vld [vmem:[#allocation9 + $0x38] sm:$0xf]
    %v428 = vld [vmem:[#allocation9 + $0x3c] sm:$0xf]
    %v429 = vld [vmem:[#allocation11] sm:$0x1]
    %v431 = vlaneseq
    %v432 = vshrl.u32 %v431, 7
    %v433 = vsub.s32 0, %v432
    %v434 = vrot.slane %v429, %v433
    %v452 = vunpack.c.l.b16 %v413
    %v453 = vunpack.c.l.b16 %v414
    %v454 = vunpack.c.l.b16 %v415
    %v455 = vunpack.c.l.b16 %v416
    %v456 = vunpack.c.l.b16 %v417
    %v457 = vunpack.c.l.b16 %v418
    %v458 = vunpack.c.l.b16 %v419
    %v459 = vunpack.c.l.b16 %v420
    %v460 = vunpack.c.l.b16 %v421
    %v461 = vunpack.c.l.b16 %v422
    %v462 = vunpack.c.l.b16 %v423
    %v463 = vunpack.c.l.b16 %v424
    %v464 = vunpack.c.l.b16 %v425
    %v465 = vunpack.c.l.b16 %v426
    %v466 = vunpack.c.l.b16 %v427
    %v467 = vunpack.c.l.b16 %v428
    %v468 = vpack.c.b16 %v453, %v452
    %v469 = vpack.c.b16 %v455, %v454
    %v470 = vpack.c.b16 %v457, %v456
    %v471 = vpack.c.b16 %v459, %v458
    %v472 = vpack.c.b16 %v461, %v460
    %v473 = vpack.c.b16 %v463, %v462
    %v474 = vpack.c.b16 %v465, %v464
    %v475 = vpack.c.b16 %v467, %v466
    %484 = vmatprep.subr.bf16.mxu0 0
    %485 = vmatpush1.bf16.msra.mxu0 %v468
    %486 = vmatprep.subr.bf16.mxu0 0
    %487 = vmatpush1.bf16.msra.mxu0 %v469
    %488 = vmatprep.subr.bf16.mxu0 0
    %489 = vmatpush1.bf16.msra.mxu0 %v470
    %490 = vmatprep.subr.bf16.mxu0 0
    %491 = vmatpush1.bf16.msra.mxu0 %v471
    %492 = vmatprep.subr.bf16.mxu0 0
    %493 = vmatpush1.bf16.msra.mxu0 %v472
    %494 = vmatprep.subr.bf16.mxu0 0
    %495 = vmatpush1.bf16.msra.mxu0 %v473
    %496 = vmatprep.subr.bf16.mxu0 0
    %497 = vmatpush1.bf16.msra.mxu0 %v474
    %498 = vmatprep.subr.bf16.mxu0 0
    %499 = vmatpush1.bf16.msra.mxu0 %v475
    %500 = vmatprep.subr.bf16.mxu0 0
    %501 = vmatpush1.bf16.msra.mxu0 0
    %502 = vmatprep.subr.bf16.mxu0 0
    %503 = vmatpush1.bf16.msra.mxu0 0
    %504 = vmatprep.subr.bf16.mxu0 0
    %505 = vmatpush1.bf16.msra.mxu0 0
    %506 = vmatprep.subr.bf16.mxu0 0
    %507 = vmatpush1.bf16.msra.mxu0 0
    %508 = vmatprep.subr.bf16.mxu0 0
    %509 = vmatpush1.bf16.msra.mxu0 0
    %510 = vmatprep.subr.bf16.mxu0 0
    %511 = vmatpush1.bf16.msra.mxu0 0
    %512 = vmatprep.subr.bf16.mxu0 0
    %513 = vmatpush1.bf16.msra.mxu0 0
    %514 = vmatprep.subr.bf16.mxu0 0
    %515 = vmatpush1.bf16.msra.mxu0 0
    %516 = vmatprep.mubr.bf16.mxu0 0
    %517 = vmatmul.mubr.bf16.gmra.mrb[0].mxu0 %v412
    %v518 = vpop.f32.mrb[0].mxu0
    %v519 = vadd.f32 %v434, %v518
    %v520 = vpop.f32.mrb[0].mxu0
    %v521 = vpop.f32.mrb[0].mxu0
    %v522 = vpop.f32.mrb[0].mxu0
    %523 = vdwg.mxu0
    %v524 = vld [vmem:[#allocation12] sm:$0xff]
    %v525 = vld [vmem:[#allocation14] sm:$0xff]
    %v526 = vld [vmem:[#allocation14 + $0x8] sm:$0xf]
    %v527 = vld [vmem:[#allocation14 + $0xc] sm:$0xff]
    %v528 = vld [vmem:[#allocation14 + $0x14] sm:$0xf]
    %v529 = vld [vmem:[#allocation14 + $0x18] sm:$0xff]
    %v530 = vld [vmem:[#allocation14 + $0x20] sm:$0xf]
    %v531 = vld [vmem:[#allocation14 + $0x24] sm:$0xff]
    %v532 = vld [vmem:[#allocation14 + $0x2c] sm:$0xf]
    %v533 = vld [vmem:[#allocation14 + $0x30] sm:$0xff]
    %v534 = vld [vmem:[#allocation14 + $0x38] sm:$0xf]
    %v535 = vld [vmem:[#allocation14 + $0x3c] sm:$0xff]
    %v536 = vld [vmem:[#allocation14 + $0x44] sm:$0xf]
    %v537 = vld [vmem:[#allocation14 + $0x48] sm:$0xff]
    %v538 = vld [vmem:[#allocation14 + $0x50] sm:$0xf]
    %v539 = vld [vmem:[#allocation14 + $0x54] sm:$0xff]
    %v540 = vld [vmem:[#allocation14 + $0x5c] sm:$0xf]
    %v541 = vld [vmem:[#allocation14 + $0x60] sm:$0xff]
    %v542 = vld [vmem:[#allocation14 + $0x68] sm:$0xf]
    %v543 = vld [vmem:[#allocation14 + $0x6c] sm:$0xff]
    %v544 = vld [vmem:[#allocation14 + $0x74] sm:$0xf]
    %v545 = vld [vmem:[#allocation14 + $0x78] sm:$0xff]
    %v546 = vld [vmem:[#allocation14 + $0x80] sm:$0xf]
    %v547 = vld [vmem:[#allocation14 + $0x84] sm:$0xff]
    %v548 = vld [vmem:[#allocation14 + $0x8c] sm:$0xf]
    %v549 = vld [vmem:[#allocation14 + $0x90] sm:$0xff]
    %v550 = vld [vmem:[#allocation14 + $0x98] sm:$0xf]
    %v551 = vld [vmem:[#allocation14 + $0x9c] sm:$0xff]
    %v552 = vld [vmem:[#allocation14 + $0xa4] sm:$0xf]
    %v553 = vld [vmem:[#allocation14 + $0xa8] sm:$0xff]
    %v554 = vld [vmem:[#allocation14 + $0xb0] sm:$0xf]
    %v555 = vld [vmem:[#allocation14 + $0xb4] sm:$0xff]
    %v556 = vld [vmem:[#allocation14 + $0xbc] sm:$0xf]
    %v557 = vld [vmem:[#allocation15] sm:$0xff]
    %v558 = vld [vmem:[#allocation15 + $0x8] sm:$0xf]
    %v559 = vld [vmem:[#allocation15 + $0xc] sm:$0xff]
    %v560 = vld [vmem:[#allocation15 + $0x14] sm:$0xf]
    %v561 = vld [vmem:[#allocation15 + $0x18] sm:$0xff]
    %v562 = vld [vmem:[#allocation15 + $0x20] sm:$0xf]
    %v563 = vld [vmem:[#allocation15 + $0x24] sm:$0xff]
    %v564 = vld [vmem:[#allocation15 + $0x2c] sm:$0xf]
    %v565 = vld [vmem:[#allocation15 + $0x30] sm:$0xff]
    %v566 = vld [vmem:[#allocation15 + $0x38] sm:$0xf]
    %v567 = vld [vmem:[#allocation15 + $0x3c] sm:$0xff]
    %v568 = vld [vmem:[#allocation15 + $0x44] sm:$0xf]
    %v569 = vld [vmem:[#allocation15 + $0x48] sm:$0xff]
    %v570 = vld [vmem:[#allocation15 + $0x50] sm:$0xf]
    %v571 = vld [vmem:[#allocation15 + $0x54] sm:$0xff]
    %v572 = vld [vmem:[#allocation15 + $0x5c] sm:$0xf]
    %v573 = vld [vmem:[#allocation15 + $0x60] sm:$0xff]
    %v574 = vld [vmem:[#allocation15 + $0x68] sm:$0xf]
    %v575 = vld [vmem:[#allocation15 + $0x6c] sm:$0xff]
    %v576 = vld [vmem:[#allocation15 + $0x74] sm:$0xf]
    %v577 = vld [vmem:[#allocation15 + $0x78] sm:$0xff]
    %v578 = vld [vmem:[#allocation15 + $0x80] sm:$0xf]
    %v579 = vld [vmem:[#allocation15 + $0x84] sm:$0xff]
    %v580 = vld [vmem:[#allocation15 + $0x8c] sm:$0xf]
    %v581 = vld [vmem:[#allocation15 + $0x90] sm:$0xff]
    %v582 = vld [vmem:[#allocation15 + $0x98] sm:$0xf]
    %v583 = vld [vmem:[#allocation15 + $0x9c] sm:$0xff]
    %v584 = vld [vmem:[#allocation15 + $0xa4] sm:$0xf]
    %v585 = vld [vmem:[#allocation15 + $0xa8] sm:$0xff]
    %v586 = vld [vmem:[#allocation15 + $0xb0] sm:$0xf]
    %v587 = vld [vmem:[#allocation15 + $0xb4] sm:$0xff]
    %v588 = vld [vmem:[#allocation15 + $0xbc] sm:$0xf]
    %v589 = vld [vmem:[#allocation17] sm:$0x7]
    %v590 = vld [vmem:[#allocation18] sm:$0x7]
    %v591 = vpack.c.bf16 %v519, %v519
    %v593 = vlaneseq
    %v594 = vshrl.u32 %v593, 7
    %v595 = vsub.s32 0, %v594
    %v596 = vrot.slane %v589, %v595
    %v597 = vlaneseq
    %v598 = vshrl.u32 %v597, 7
    %v599 = vsub.s32 1, %v598
    %v600 = vrot.slane %v589, %v599
    %v601 = vlaneseq
    %v602 = vshrl.u32 %v601, 7
    %v603 = vsub.s32 2, %v602
    %v604 = vrot.slane %v589, %v603
    %v640 = vunpack.c.l.b16 %v525
    %v641 = vunpack.c.h.b16 %v525
    %v642 = vunpack.c.l.b16 %v526
    %v643 = vunpack.c.l.b16 %v527
    %v644 = vunpack.c.h.b16 %v527
    %v645 = vunpack.c.l.b16 %v528
    %v646 = vunpack.c.l.b16 %v529
    %v647 = vunpack.c.h.b16 %v529
    %v648 = vunpack.c.l.b16 %v530
    %v649 = vunpack.c.l.b16 %v531
    %v650 = vunpack.c.h.b16 %v531
    %v651 = vunpack.c.l.b16 %v532
    %v652 = vunpack.c.l.b16 %v533
    %v653 = vunpack.c.h.b16 %v533
    %v654 = vunpack.c.l.b16 %v534
    %v655 = vunpack.c.l.b16 %v535
    %v656 = vunpack.c.h.b16 %v535
    %v657 = vunpack.c.l.b16 %v536
    %v658 = vunpack.c.l.b16 %v537
    %v659 = vunpack.c.h.b16 %v537
    %v660 = vunpack.c.l.b16 %v538
    %v661 = vunpack.c.l.b16 %v539
    %v662 = vunpack.c.h.b16 %v539
    %v663 = vunpack.c.l.b16 %v540
    %v664 = vunpack.c.l.b16 %v541
    %v665 = vunpack.c.h.b16 %v541
    %v666 = vunpack.c.l.b16 %v542
    %v667 = vunpack.c.l.b16 %v543
    %v668 = vunpack.c.h.b16 %v543
    %v669 = vunpack.c.l.b16 %v544
    %v670 = vunpack.c.l.b16 %v545
    %v671 = vunpack.c.h.b16 %v545
    %v672 = vunpack.c.l.b16 %v546
    %v673 = vunpack.c.l.b16 %v547
    %v674 = vunpack.c.h.b16 %v547
    %v675 = vunpack.c.l.b16 %v548
    %v676 = vunpack.c.l.b16 %v549
    %v677 = vunpack.c.h.b16 %v549
    %v678 = vunpack.c.l.b16 %v550
    %v679 = vunpack.c.l.b16 %v551
    %v680 = vunpack.c.h.b16 %v551
    %v681 = vunpack.c.l.b16 %v552
    %v682 = vunpack.c.l.b16 %v553
    %v683 = vunpack.c.h.b16 %v553
    %v684 = vunpack.c.l.b16 %v554
    %v685 = vunpack.c.l.b16 %v555
    %v686 = vunpack.c.h.b16 %v555
    %v687 = vunpack.c.l.b16 %v556
    %v688 = vpack.c.b16 %v643, %v640
    %v689 = vpack.c.b16 %v644, %v641
    %v690 = vpack.c.b16 %v645, %v642
    %v691 = vpack.c.b16 %v649, %v646
    %v692 = vpack.c.b16 %v650, %v647
    %v693 = vpack.c.b16 %v651, %v648
    %v694 = vpack.c.b16 %v655, %v652
    %v695 = vpack.c.b16 %v656, %v653
    %v696 = vpack.c.b16 %v657, %v654
    %v697 = vpack.c.b16 %v661, %v658
    %v698 = vpack.c.b16 %v662, %v659
    %v699 = vpack.c.b16 %v663, %v660
    %v700 = vpack.c.b16 %v667, %v664
    %v701 = vpack.c.b16 %v668, %v665
    %v702 = vpack.c.b16 %v669, %v666
    %v703 = vpack.c.b16 %v673, %v670
    %v704 = vpack.c.b16 %v674, %v671
    %v705 = vpack.c.b16 %v675, %v672
    %v706 = vpack.c.b16 %v679, %v676
    %v707 = vpack.c.b16 %v680, %v677
    %v708 = vpack.c.b16 %v681, %v678
    %v709 = vpack.c.b16 %v685, %v682
    %v710 = vpack.c.b16 %v686, %v683
    %v711 = vpack.c.b16 %v687, %v684
    %736 = vmatprep.subr.bf16.mxu0 %v689
    %737 = vmatpush1.bf16.msra.mxu0 %v688
    %738 = vmatprep.subr.bf16.mxu0 %v692
    %739 = vmatpush1.bf16.msra.mxu0 %v691
    %740 = vmatprep.subr.bf16.mxu0 %v695
    %741 = vmatpush1.bf16.msra.mxu0 %v694
    %742 = vmatprep.subr.bf16.mxu0 %v698
    %743 = vmatpush1.bf16.msra.mxu0 %v697
    %744 = vmatprep.subr.bf16.mxu0 %v701
    %745 = vmatpush1.bf16.msra.mxu0 %v700
    %746 = vmatprep.subr.bf16.mxu0 %v704
    %747 = vmatpush1.bf16.msra.mxu0 %v703
    %748 = vmatprep.subr.bf16.mxu0 %v707
    %749 = vmatpush1.bf16.msra.mxu0 %v706
    %750 = vmatprep.subr.bf16.mxu0 %v710
    %751 = vmatpush1.bf16.msra.mxu0 %v709
    %752 = vmatprep.subr.bf16.mxu0 0
    %753 = vmatpush1.bf16.msra.mxu0 0
    %754 = vmatprep.subr.bf16.mxu0 0
    %755 = vmatpush1.bf16.msra.mxu0 0
    %756 = vmatprep.subr.bf16.mxu0 0
    %757 = vmatpush1.bf16.msra.mxu0 0
    %758 = vmatprep.subr.bf16.mxu0 0
    %759 = vmatpush1.bf16.msra.mxu0 0
    %760 = vmatprep.subr.bf16.mxu0 0
    %761 = vmatpush1.bf16.msra.mxu0 0
    %762 = vmatprep.subr.bf16.mxu0 0
    %763 = vmatpush1.bf16.msra.mxu0 0
    %764 = vmatprep.subr.bf16.mxu0 0
    %765 = vmatpush1.bf16.msra.mxu0 0
    %766 = vmatprep.subr.bf16.mxu0 0
    %767 = vmatpush1.bf16.msra.mxu0 0
    %768 = vmatprep.mubr.bf16.mxu0 0
    %769 = vmatmul.mubr.bf16.gmra.mrb[0].mxu0 %v591
    %v770 = vpop.f32.mrb[0].mxu0
    %v771 = vadd.f32 %v596, %v770
    %v772 = vpop.f32.mrb[0].mxu0
    %v773 = vadd.f32 %v600, %v772
    %v774 = vpop.f32.mrb[0].mxu0
    %v775 = vpop.f32.mrb[0].mxu0
    %776 = vdwg.mxu0
    %777 = vmatprep.subr.bf16.mxu0 0
    %778 = vmatpush1.bf16.msra.mxu0 %v690
    %779 = vmatprep.subr.bf16.mxu0 0
    %780 = vmatpush1.bf16.msra.mxu0 %v693
    %781 = vmatprep.subr.bf16.mxu0 0
    %782 = vmatpush1.bf16.msra.mxu0 %v696
    %783 = vmatprep.subr.bf16.mxu0 0
    %784 = vmatpush1.bf16.msra.mxu0 %v699
    %785 = vmatprep.subr.bf16.mxu0 0
    %786 = vmatpush1.bf16.msra.mxu0 %v702
    %787 = vmatprep.subr.bf16.mxu0 0
    %788 = vmatpush1.bf16.msra.mxu0 %v705
    %789 = vmatprep.subr.bf16.mxu0 0
    %790 = vmatpush1.bf16.msra.mxu0 %v708
    %791 = vmatprep.subr.bf16.mxu0 0
    %792 = vmatpush1.bf16.msra.mxu0 %v711
    %793 = vmatprep.subr.bf16.mxu0 0
    %794 = vmatpush1.bf16.msra.mxu0 0
    %795 = vmatprep.subr.bf16.mxu0 0
    %796 = vmatpush1.bf16.msra.mxu0 0
    %797 = vmatprep.subr.bf16.mxu0 0
    %798 = vmatpush1.bf16.msra.mxu0 0
    %799 = vmatprep.subr.bf16.mxu0 0
    %800 = vmatpush1.bf16.msra.mxu0 0
    %801 = vmatprep.subr.bf16.mxu0 0
    %802 = vmatpush1.bf16.msra.mxu0 0
    %803 = vmatprep.subr.bf16.mxu0 0
    %804 = vmatpush1.bf16.msra.mxu0 0
    %805 = vmatprep.subr.bf16.mxu0 0
    %806 = vmatpush1.bf16.msra.mxu0 0
    %807 = vmatprep.subr.bf16.mxu0 0
    %808 = vmatpush1.bf16.msra.mxu0 0
    %809 = vmatprep.mubr.bf16.mxu0 0
    %810 = vmatmul.mubr.bf16.gmra.mrb[0].mxu0 %v591
    %v811 = vpop.f32.mrb[0].mxu0
    %v812 = vadd.f32 %v604, %v811
    %v813 = vpop.f32.mrb[0].mxu0
    %v814 = vpop.f32.mrb[0].mxu0
    %v815 = vpop.f32.mrb[0].mxu0
    %816 = vdwg.mxu0
    %v817 = vpack.c.bf16 %v524, %v524
    %v819 = vlaneseq
    %v820 = vshrl.u32 %v819, 7
    %v821 = vsub.s32 0, %v820
    %v822 = vrot.slane %v590, %v821
    %v823 = vlaneseq
    %v824 = vshrl.u32 %v823, 7
    %v825 = vsub.s32 1, %v824
    %v826 = vrot.slane %v590, %v825
    %v827 = vlaneseq
    %v828 = vshrl.u32 %v827, 7
    %v829 = vsub.s32 2, %v828
    %v830 = vrot.slane %v590, %v829
    %v866 = vunpack.c.l.b16 %v557
    %v867 = vunpack.c.h.b16 %v557
    %v868 = vunpack.c.l.b16 %v558
    %v869 = vunpack.c.l.b16 %v559
    %v870 = vunpack.c.h.b16 %v559
    %v871 = vunpack.c.l.b16 %v560
    %v872 = vunpack.c.l.b16 %v561
    %v873 = vunpack.c.h.b16 %v561
    %v874 = vunpack.c.l.b16 %v562
    %v875 = vunpack.c.l.b16 %v563
    %v876 = vunpack.c.h.b16 %v563
    %v877 = vunpack.c.l.b16 %v564
    %v878 = vunpack.c.l.b16 %v565
    %v879 = vunpack.c.h.b16 %v565
    %v880 = vunpack.c.l.b16 %v566
    %v881 = vunpack.c.l.b16 %v567
    %v882 = vunpack.c.h.b16 %v567
    %v883 = vunpack.c.l.b16 %v568
    %v884 = vunpack.c.l.b16 %v569
    %v885 = vunpack.c.h.b16 %v569
    %v886 = vunpack.c.l.b16 %v570
    %v887 = vunpack.c.l.b16 %v571
    %v888 = vunpack.c.h.b16 %v571
    %v889 = vunpack.c.l.b16 %v572
    %v890 = vunpack.c.l.b16 %v573
    %v891 = vunpack.c.h.b16 %v573
    %v892 = vunpack.c.l.b16 %v574
    %v893 = vunpack.c.l.b16 %v575
    %v894 = vunpack.c.h.b16 %v575
    %v895 = vunpack.c.l.b16 %v576
    %v896 = vunpack.c.l.b16 %v577
    %v897 = vunpack.c.h.b16 %v577
    %v898 = vunpack.c.l.b16 %v578
    %v899 = vunpack.c.l.b16 %v579
    %v900 = vunpack.c.h.b16 %v579
    %v901 = vunpack.c.l.b16 %v580
    %v902 = vunpack.c.l.b16 %v581
    %v903 = vunpack.c.h.b16 %v581
    %v904 = vunpack.c.l.b16 %v582
    %v905 = vunpack.c.l.b16 %v583
    %v906 = vunpack.c.h.b16 %v583
    %v907 = vunpack.c.l.b16 %v584
    %v908 = vunpack.c.l.b16 %v585
    %v909 = vunpack.c.h.b16 %v585
    %v910 = vunpack.c.l.b16 %v586
    %v911 = vunpack.c.l.b16 %v587
    %v912 = vunpack.c.h.b16 %v587
    %v913 = vunpack.c.l.b16 %v588
    %v914 = vpack.c.b16 %v869, %v866
    %v915 = vpack.c.b16 %v870, %v867
    %v916 = vpack.c.b16 %v871, %v868
    %v917 = vpack.c.b16 %v875, %v872
    %v918 = vpack.c.b16 %v876, %v873
    %v919 = vpack.c.b16 %v877, %v874
    %v920 = vpack.c.b16 %v881, %v878
    %v921 = vpack.c.b16 %v882, %v879
    %v922 = vpack.c.b16 %v883, %v880
    %v923 = vpack.c.b16 %v887, %v884
    %v924 = vpack.c.b16 %v888, %v885
    %v925 = vpack.c.b16 %v889, %v886
    %v926 = vpack.c.b16 %v893, %v890
    %v927 = vpack.c.b16 %v894, %v891
    %v928 = vpack.c.b16 %v895, %v892
    %v929 = vpack.c.b16 %v899, %v896
    %v930 = vpack.c.b16 %v900, %v897
    %v931 = vpack.c.b16 %v901, %v898
    %v932 = vpack.c.b16 %v905, %v902
    %v933 = vpack.c.b16 %v906, %v903
    %v934 = vpack.c.b16 %v907, %v904
    %v935 = vpack.c.b16 %v911, %v908
    %v936 = vpack.c.b16 %v912, %v909
    %v937 = vpack.c.b16 %v913, %v910
    %962 = vmatprep.subr.bf16.mxu0 %v915
    %963 = vmatpush1.bf16.msra.mxu0 %v914
    %964 = vmatprep.subr.bf16.mxu0 %v918
    %965 = vmatpush1.bf16.msra.mxu0 %v917
    %966 = vmatprep.subr.bf16.mxu0 %v921
    %967 = vmatpush1.bf16.msra.mxu0 %v920
    %968 = vmatprep.subr.bf16.mxu0 %v924
    %969 = vmatpush1.bf16.msra.mxu0 %v923
    %970 = vmatprep.subr.bf16.mxu0 %v927
    %971 = vmatpush1.bf16.msra.mxu0 %v926
    %972 = vmatprep.subr.bf16.mxu0 %v930
    %973 = vmatpush1.bf16.msra.mxu0 %v929
    %974 = vmatprep.subr.bf16.mxu0 %v933
    %975 = vmatpush1.bf16.msra.mxu0 %v932
    %976 = vmatprep.subr.bf16.mxu0 %v936
    %977 = vmatpush1.bf16.msra.mxu0 %v935
    %978 = vmatprep.subr.bf16.mxu0 0
    %979 = vmatpush1.bf16.msra.mxu0 0
    %980 = vmatprep.subr.bf16.mxu0 0
    %981 = vmatpush1.bf16.msra.mxu0 0
    %982 = vmatprep.subr.bf16.mxu0 0
    %983 = vmatpush1.bf16.msra.mxu0 0
    %984 = vmatprep.subr.bf16.mxu0 0
    %985 = vmatpush1.bf16.msra.mxu0 0
    %986 = vmatprep.subr.bf16.mxu0 0
    %987 = vmatpush1.bf16.msra.mxu0 0
    %988 = vmatprep.subr.bf16.mxu0 0
    %989 = vmatpush1.bf16.msra.mxu0 0
    %990 = vmatprep.subr.bf16.mxu0 0
    %991 = vmatpush1.bf16.msra.mxu0 0
    %992 = vmatprep.subr.bf16.mxu0 0
    %993 = vmatpush1.bf16.msra.mxu0 0
    %994 = vmatprep.mubr.bf16.mxu0 0
    %995 = vmatmul.mubr.bf16.gmra.mrb[0].mxu0 %v817
    %v996 = vpop.f32.mrb[0].mxu0
    %v997 = vadd.f32 %v822, %v996
    %v998 = vpop.f32.mrb[0].mxu0
    %v999 = vadd.f32 %v826, %v998
    %v1000 = vpop.f32.mrb[0].mxu0
    %v1001 = vpop.f32.mrb[0].mxu0
    %1002 = vdwg.mxu0
    %1003 = vmatprep.subr.bf16.mxu0 0
    %1004 = vmatpush1.bf16.msra.mxu0 %v916
    %1005 = vmatprep.subr.bf16.mxu0 0
    %1006 = vmatpush1.bf16.msra.mxu0 %v919
    %1007 = vmatprep.subr.bf16.mxu0 0
    %1008 = vmatpush1.bf16.msra.mxu0 %v922
    %1009 = vmatprep.subr.bf16.mxu0 0
    %1010 = vmatpush1.bf16.msra.mxu0 %v925
    %1011 = vmatprep.subr.bf16.mxu0 0
    %1012 = vmatpush1.bf16.msra.mxu0 %v928
    %1013 = vmatprep.subr.bf16.mxu0 0
    %1014 = vmatpush1.bf16.msra.mxu0 %v931
    %1015 = vmatprep.subr.bf16.mxu0 0
    %1016 = vmatpush1.bf16.msra.mxu0 %v934
    %1017 = vmatprep.subr.bf16.mxu0 0
    %1018 = vmatpush1.bf16.msra.mxu0 %v937
    %1019 = vmatprep.subr.bf16.mxu0 0
    %1020 = vmatpush1.bf16.msra.mxu0 0
    %1021 = vmatprep.subr.bf16.mxu0 0
    %1022 = vmatpush1.bf16.msra.mxu0 0
    %1023 = vmatprep.subr.bf16.mxu0 0
    %1024 = vmatpush1.bf16.msra.mxu0 0
    %1025 = vmatprep.subr.bf16.mxu0 0
    %1026 = vmatpush1.bf16.msra.mxu0 0
    %1027 = vmatprep.subr.bf16.mxu0 0
    %1028 = vmatpush1.bf16.msra.mxu0 0
    %1029 = vmatprep.subr.bf16.mxu0 0
    %1030 = vmatpush1.bf16.msra.mxu0 0
    %1031 = vmatprep.subr.bf16.mxu0 0
    %1032 = vmatpush1.bf16.msra.mxu0 0
    %1033 = vmatprep.subr.bf16.mxu0 0
    %1034 = vmatpush1.bf16.msra.mxu0 0
    %1035 = vmatprep.mubr.bf16.mxu0 0
    %1036 = vmatmul.mubr.bf16.gmra.mrb[0].mxu0 %v817
    %v1037 = vpop.f32.mrb[0].mxu0
    %v1038 = vadd.f32 %v830, %v1037
    %v1039 = vpop.f32.mrb[0].mxu0
    %v1040 = vpop.f32.mrb[0].mxu0
    %v1041 = vpop.f32.mrb[0].mxu0
    %1042 = vdwg.mxu0
    %v1043 = vadd.f32 %v771, %v997
    %v1044 = vxor.u32 %v1043, 2147483648
    %v1045 = vmul.f32 %v1044, 1.442695
    %v1046 = vpow.pop %v1045
    %v1047 = vadd.f32 %v1046, 1.0
    %v1048 = vrcp.pop %v1047
    %v1049 = vmul.f32 1.0, %v1048
    %v1050 = vadd.f32 %v773, %v999
    %v1051 = vxor.u32 %v1050, 2147483648
    %v1052 = vmul.f32 %v1051, 1.442695
    %v1053 = vpow.pop %v1052
    %v1054 = vadd.f32 %v1053, 1.0
    %v1055 = vrcp.pop %v1054
    %v1056 = vmul.f32 1.0, %v1055
    %v1057 = vmul.f32 %v1049, %v1038
    %v1058 = vadd.f32 %v812, %v1057
    %v1059 = vtanh.pop %v1058
    %v1060 = vsub.f32 1.0, %v1056
    %v1061 = vmul.f32 %v1060, %v1059
    %v1062 = vmul.f32 %v1056, %v524
    %v1063 = vadd.f32 %v1061, %v1062
    %1064 = vst [vmem:[#allocation34] sm:$0xff] %v1063
    %v1065 = vpack.c.bf16 %v1063, %v1063
    %v1066 = vld [vmem:[#allocation20] sm:$0xf]
    %v1067 = vld [vmem:[#allocation20 + $0x4] sm:$0xf]
    %v1068 = vld [vmem:[#allocation20 + $0x8] sm:$0xf]
    %v1069 = vld [vmem:[#allocation20 + $0xc] sm:$0xf]
    %v1070 = vld [vmem:[#allocation20 + $0x10] sm:$0xf]
    %v1071 = vld [vmem:[#allocation20 + $0x14] sm:$0xf]
    %v1072 = vld [vmem:[#allocation20 + $0x18] sm:$0xf]
    %v1073 = vld [vmem:[#allocation20 + $0x1c] sm:$0xf]
    %v1074 = vld [vmem:[#allocation20 + $0x20] sm:$0xf]
    %v1075 = vld [vmem:[#allocation20 + $0x24] sm:$0xf]
    %v1076 = vld [vmem:[#allocation20 + $0x28] sm:$0xf]
    %v1077 = vld [vmem:[#allocation20 + $0x2c] sm:$0xf]
    %v1078 = vld [vmem:[#allocation20 + $0x30] sm:$0xf]
    %v1079 = vld [vmem:[#allocation20 + $0x34] sm:$0xf]
    %v1080 = vld [vmem:[#allocation20 + $0x38] sm:$0xf]
    %v1081 = vld [vmem:[#allocation20 + $0x3c] sm:$0xf]
    %v1082 = vld [vmem:[#allocation24] sm:$0x1]
    %v1084 = vlaneseq
    %v1085 = vshrl.u32 %v1084, 7
    %v1086 = vsub.s32 0, %v1085
    %v1087 = vrot.slane %v1082, %v1086
    %v1105 = vunpack.c.l.b16 %v1066
    %v1106 = vunpack.c.l.b16 %v1067
    %v1107 = vunpack.c.l.b16 %v1068
    %v1108 = vunpack.c.l.b16 %v1069
    %v1109 = vunpack.c.l.b16 %v1070
    %v1110 = vunpack.c.l.b16 %v1071
    %v1111 = vunpack.c.l.b16 %v1072
    %v1112 = vunpack.c.l.b16 %v1073
    %v1113 = vunpack.c.l.b16 %v1074
    %v1114 = vunpack.c.l.b16 %v1075
    %v1115 = vunpack.c.l.b16 %v1076
    %v1116 = vunpack.c.l.b16 %v1077
    %v1117 = vunpack.c.l.b16 %v1078
    %v1118 = vunpack.c.l.b16 %v1079
    %v1119 = vunpack.c.l.b16 %v1080
    %v1120 = vunpack.c.l.b16 %v1081
    %v1121 = vpack.c.b16 %v1106, %v1105
    %v1122 = vpack.c.b16 %v1108, %v1107
    %v1123 = vpack.c.b16 %v1110, %v1109
    %v1124 = vpack.c.b16 %v1112, %v1111
    %v1125 = vpack.c.b16 %v1114, %v1113
    %v1126 = vpack.c.b16 %v1116, %v1115
    %v1127 = vpack.c.b16 %v1118, %v1117
    %v1128 = vpack.c.b16 %v1120, %v1119
    %1137 = vmatprep.subr.bf16.mxu0 0
    %1138 = vmatpush1.bf16.msra.mxu0 %v1121
    %1139 = vmatprep.subr.bf16.mxu0 0
    %1140 = vmatpush1.bf16.msra.mxu0 %v1122
    %1141 = vmatprep.subr.bf16.mxu0 0
    %1142 = vmatpush1.bf16.msra.mxu0 %v1123
    %1143 = vmatprep.subr.bf16.mxu0 0
    %1144 = vmatpush1.bf16.msra.mxu0 %v1124
    %1145 = vmatprep.subr.bf16.mxu0 0
    %1146 = vmatpush1.bf16.msra.mxu0 %v1125
    %1147 = vmatprep.subr.bf16.mxu0 0
    %1148 = vmatpush1.bf16.msra.mxu0 %v1126
    %1149 = vmatprep.subr.bf16.mxu0 0
    %1150 = vmatpush1.bf16.msra.mxu0 %v1127
    %1151 = vmatprep.subr.bf16.mxu0 0
    %1152 = vmatpush1.bf16.msra.mxu0 %v1128
    %1153 = vmatprep.subr.bf16.mxu0 0
    %1154 = vmatpush1.bf16.msra.mxu0 0
    %1155 = vmatprep.subr.bf16.mxu0 0
    %1156 = vmatpush1.bf16.msra.mxu0 0
    %1157 = vmatprep.subr.bf16.mxu0 0
    %1158 = vmatpush1.bf16.msra.mxu0 0
    %1159 = vmatprep.subr.bf16.mxu0 0
    %1160 = vmatpush1.bf16.msra.mxu0 0
    %1161 = vmatprep.subr.bf16.mxu0 0
    %1162 = vmatpush1.bf16.msra.mxu0 0
    %1163 = vmatprep.subr.bf16.mxu0 0
    %1164 = vmatpush1.bf16.msra.mxu0 0
    %1165 = vmatprep.subr.bf16.mxu0 0
    %1166 = vmatpush1.bf16.msra.mxu0 0
    %1167 = vmatprep.subr.bf16.mxu0 0
    %1168 = vmatpush1.bf16.msra.mxu0 0
    %1169 = vmatprep.mubr.bf16.mxu0 0
    %1170 = vmatmul.mubr.bf16.gmra.mrb[0].mxu0 %v1065
    %v1171 = vpop.f32.mrb[0].mxu0
    %v1172 = vadd.f32 %v1087, %v1171
    %v1173 = vpop.f32.mrb[0].mxu0
    %v1174 = vpop.f32.mrb[0].mxu0
    %v1175 = vpop.f32.mrb[0].mxu0
    %1176 = vdwg.mxu0
    %v1177 = vmul.f32 %v1172, 0.17677669
    %v1178 = vld [vmem:[%s33] sm:$0xf]
    %v1179 = vld [vmem:[%s33 + $0x4] sm:$0xf]
    %v1180 = vld [vmem:[%s33 + $0x8] sm:$0xf]
    %v1181 = vld [vmem:[%s33 + $0xc] sm:$0xf]
    %v1182 = vld [vmem:[%s33 + $0x10] sm:$0xf]
    %v1183 = vld [vmem:[%s33 + $0x14] sm:$0xf]
    %v1184 = vld [vmem:[%s33 + $0x18] sm:$0xf]
    %v1185 = vld [vmem:[%s33 + $0x1c] sm:$0xf]
    %v1186 = vld [vmem:[#allocation21] sm:$0xf]
    %v1187 = vld [vmem:[#allocation21 + $0x4] sm:$0xf]
    %v1188 = vld [vmem:[#allocation21 + $0x8] sm:$0xf]
    %v1189 = vld [vmem:[#allocation21 + $0xc] sm:$0xf]
    %v1190 = vld [vmem:[#allocation21 + $0x10] sm:$0xf]
    %v1191 = vld [vmem:[#allocation21 + $0x14] sm:$0xf]
    %v1192 = vld [vmem:[#allocation21 + $0x18] sm:$0xf]
    %v1193 = vld [vmem:[#allocation21 + $0x1c] sm:$0xf]
    %v1194 = vld [vmem:[#allocation21 + $0x20] sm:$0xf]
    %v1195 = vld [vmem:[#allocation21 + $0x24] sm:$0xf]
    %v1196 = vld [vmem:[#allocation21 + $0x28] sm:$0xf]
    %v1197 = vld [vmem:[#allocation21 + $0x2c] sm:$0xf]
    %v1198 = vld [vmem:[#allocation21 + $0x30] sm:$0xf]
    %v1199 = vld [vmem:[#allocation21 + $0x34] sm:$0xf]
    %v1200 = vld [vmem:[#allocation21 + $0x38] sm:$0xf]
    %v1201 = vld [vmem:[#allocation21 + $0x3c] sm:$0xf]
    %v1202 = vld [vmem:[#allocation26] sm:$0x1]
    %v1204 = vlaneseq
    %v1205 = vshrl.u32 %v1204, 7
    %v1206 = vsub.s32 0, %v1205
    %v1207 = vrot.slane %v1202, %v1206
    %v1217 = vunpack.c.l.b16 %v1178
    %v1218 = vunpack.c.l.b16 %v1179
    %v1219 = vunpack.c.l.b16 %v1180
    %v1220 = vunpack.c.l.b16 %v1181
    %v1221 = vunpack.c.l.b16 %v1182
    %v1222 = vunpack.c.l.b16 %v1183
    %v1223 = vunpack.c.l.b16 %v1184
    %v1224 = vunpack.c.l.b16 %v1185
    %v1225 = vpack.c.b16 %v1218, %v1217
    %v1226 = vpack.c.b16 %v1220, %v1219
    %v1227 = vpack.c.b16 %v1222, %v1221
    %v1228 = vpack.c.b16 %v1224, %v1223
    %v1249 = vunpack.c.l.b16 %v1186
    %v1250 = vunpack.c.l.b16 %v1187
    %v1251 = vunpack.c.l.b16 %v1188
    %v1252 = vunpack.c.l.b16 %v1189
    %v1253 = vunpack.c.l.b16 %v1190
    %v1254 = vunpack.c.l.b16 %v1191
    %v1255 = vunpack.c.l.b16 %v1192
    %v1256 = vunpack.c.l.b16 %v1193
    %v1257 = vunpack.c.l.b16 %v1194
    %v1258 = vunpack.c.l.b16 %v1195
    %v1259 = vunpack.c.l.b16 %v1196
    %v1260 = vunpack.c.l.b16 %v1197
    %v1261 = vunpack.c.l.b16 %v1198
    %v1262 = vunpack.c.l.b16 %v1199
    %v1263 = vunpack.c.l.b16 %v1200
    %v1264 = vunpack.c.l.b16 %v1201
    %v1265 = vpack.c.b16 %v1250, %v1249
    %v1266 = vpack.c.b16 %v1252, %v1251
    %v1267 = vpack.c.b16 %v1254, %v1253
    %v1268 = vpack.c.b16 %v1256, %v1255
    %v1269 = vpack.c.b16 %v1258, %v1257
    %v1270 = vpack.c.b16 %v1260, %v1259
    %v1271 = vpack.c.b16 %v1262, %v1261
    %v1272 = vpack.c.b16 %v1264, %v1263
    %1281 = vmatprep.subr.bf16.mxu0 0
    %1282 = vmatpush1.bf16.msra.mxu0 %v1265
    %1283 = vmatprep.subr.bf16.mxu0 0
    %1284 = vmatpush1.bf16.msra.mxu0 %v1266
    %1285 = vmatprep.subr.bf16.mxu0 0
    %1286 = vmatpush1.bf16.msra.mxu0 %v1267
    %1287 = vmatprep.subr.bf16.mxu0 0
    %1288 = vmatpush1.bf16.msra.mxu0 %v1268
    %1289 = vmatprep.subr.bf16.mxu0 0
    %1290 = vmatpush1.bf16.msra.mxu0 %v1269
    %1291 = vmatprep.subr.bf16.mxu0 0
    %1292 = vmatpush1.bf16.msra.mxu0 %v1270
    %1293 = vmatprep.subr.bf16.mxu0 0
    %1294 = vmatpush1.bf16.msra.mxu0 %v1271
    %1295 = vmatprep.subr.bf16.mxu0 0
    %1296 = vmatpush1.bf16.msra.mxu0 %v1272
    %1297 = vmatprep.subr.bf16.mxu0 0
    %1298 = vmatpush1.bf16.msra.mxu0 0
    %1299 = vmatprep.subr.bf16.mxu0 0
    %1300 = vmatpush1.bf16.msra.mxu0 0
    %1301 = vmatprep.subr.bf16.mxu0 0
    %1302 = vmatpush1.bf16.msra.mxu0 0
    %1303 = vmatprep.subr.bf16.mxu0 0
    %1304 = vmatpush1.bf16.msra.mxu0 0
    %1305 = vmatprep.subr.bf16.mxu0 0
    %1306 = vmatpush1.bf16.msra.mxu0 0
    %1307 = vmatprep.subr.bf16.mxu0 0
    %1308 = vmatpush1.bf16.msra.mxu0 0
    %1309 = vmatprep.subr.bf16.mxu0 0
    %1310 = vmatpush1.bf16.msra.mxu0 0
    %1311 = vmatprep.subr.bf16.mxu0 0
    %1312 = vmatpush1.bf16.msra.mxu0 0
    %1313 = vmatprep.mubr.bf16.mxu0 0
    %1314 = vmatmul.mubr.bf16.gmra.mrb[0].mxu0 %v1225
    %v1315 = vpop.f32.mrb[0].mxu0
    %v1316 = vadd.f32 %v1207, %v1315
    %v1317 = vpop.f32.mrb[0].mxu0
    %v1318 = vpop.f32.mrb[0].mxu0
    %v1319 = vadd.f32 %v1207, %v1318
    %v1320 = vpop.f32.mrb[0].mxu0
    %1321 = vmatprep.mubr.bf16.mxu0 0
    %1322 = vmatmul.mubr.bf16.gmra.mrb[0].mxu0 %v1226
    %v1323 = vpop.f32.mrb[0].mxu0
    %v1324 = vadd.f32 %v1207, %v1323
    %v1325 = vpop.f32.mrb[0].mxu0
    %v1326 = vpop.f32.mrb[0].mxu0
    %v1327 = vadd.f32 %v1207, %v1326
    %v1328 = vpop.f32.mrb[0].mxu0
    %1329 = vmatprep.mubr.bf16.mxu0 0
    %1330 = vmatmul.mubr.bf16.gmra.mrb[0].mxu0 %v1227
    %v1331 = vpop.f32.mrb[0].mxu0
    %v1332 = vadd.f32 %v1207, %v1331
    %v1333 = vpop.f32.mrb[0].mxu0
    %v1334 = vpop.f32.mrb[0].mxu0
    %v1335 = vadd.f32 %v1207, %v1334
    %v1336 = vpop.f32.mrb[0].mxu0
    %1337 = vmatprep.mubr.bf16.mxu0 0
    %1338 = vmatmul.mubr.bf16.gmra.mrb[0].mxu0 %v1228
    %v1339 = vpop.f32.mrb[0].mxu0
    %v1340 = vadd.f32 %v1207, %v1339
    %v1341 = vpop.f32.mrb[0].mxu0
    %v1342 = vpop.f32.mrb[0].mxu0
    %v1343 = vadd.f32 %v1207, %v1342
    %v1344 = vpop.f32.mrb[0].mxu0
    %1345 = vdwg.mxu0
    %v1346 = vld [vmem:[#allocation23] sm:$0xf]
    %v1347 = vld [vmem:[#allocation23 + $0x4] sm:$0xf]
    %v1348 = vld [vmem:[#allocation23 + $0x8] sm:$0xf]
    %v1349 = vld [vmem:[#allocation23 + $0xc] sm:$0xf]
    %v1350 = vld [vmem:[#allocation23 + $0x10] sm:$0xf]
    %v1351 = vld [vmem:[#allocation23 + $0x14] sm:$0xf]
    %v1352 = vld [vmem:[#allocation23 + $0x18] sm:$0xf]
    %v1353 = vld [vmem:[#allocation23 + $0x1c] sm:$0xf]
    %v1354 = vld [vmem:[#allocation23 + $0x20] sm:$0xf]
    %v1355 = vld [vmem:[#allocation23 + $0x24] sm:$0xf]
    %v1356 = vld [vmem:[#allocation23 + $0x28] sm:$0xf]
    %v1357 = vld [vmem:[#allocation23 + $0x2c] sm:$0xf]
    %v1358 = vld [vmem:[#allocation23 + $0x30] sm:$0xf]
    %v1359 = vld [vmem:[#allocation23 + $0x34] sm:$0xf]
    %v1360 = vld [vmem:[#allocation23 + $0x38] sm:$0xf]
    %v1361 = vld [vmem:[#allocation23 + $0x3c] sm:$0xf]
    %v1362 = vld [vmem:[#allocation27] sm:$0x1]
    %v1364 = vlaneseq
    %v1365 = vshrl.u32 %v1364, 7
    %v1366 = vsub.s32 0, %v1365
    %v1367 = vrot.slane %v1362, %v1366
    %v1385 = vunpack.c.l.b16 %v1346
    %v1386 = vunpack.c.l.b16 %v1347
    %v1387 = vunpack.c.l.b16 %v1348
    %v1388 = vunpack.c.l.b16 %v1349
    %v1389 = vunpack.c.l.b16 %v1350
    %v1390 = vunpack.c.l.b16 %v1351
    %v1391 = vunpack.c.l.b16 %v1352
    %v1392 = vunpack.c.l.b16 %v1353
    %v1393 = vunpack.c.l.b16 %v1354
    %v1394 = vunpack.c.l.b16 %v1355
    %v1395 = vunpack.c.l.b16 %v1356
    %v1396 = vunpack.c.l.b16 %v1357
    %v1397 = vunpack.c.l.b16 %v1358
    %v1398 = vunpack.c.l.b16 %v1359
    %v1399 = vunpack.c.l.b16 %v1360
    %v1400 = vunpack.c.l.b16 %v1361
    %v1401 = vpack.c.b16 %v1386, %v1385
    %v1402 = vpack.c.b16 %v1388, %v1387
    %v1403 = vpack.c.b16 %v1390, %v1389
    %v1404 = vpack.c.b16 %v1392, %v1391
    %v1405 = vpack.c.b16 %v1394, %v1393
    %v1406 = vpack.c.b16 %v1396, %v1395
    %v1407 = vpack.c.b16 %v1398, %v1397
    %v1408 = vpack.c.b16 %v1400, %v1399
    %1417 = vmatprep.subr.bf16.mxu0 0
    %1418 = vmatpush1.bf16.msra.mxu0 %v1401
    %1419 = vmatprep.subr.bf16.mxu0 0
    %1420 = vmatpush1.bf16.msra.mxu0 %v1402
    %1421 = vmatprep.subr.bf16.mxu0 0
    %1422 = vmatpush1.bf16.msra.mxu0 %v1403
    %1423 = vmatprep.subr.bf16.mxu0 0
    %1424 = vmatpush1.bf16.msra.mxu0 %v1404
    %1425 = vmatprep.subr.bf16.mxu0 0
    %1426 = vmatpush1.bf16.msra.mxu0 %v1405
    %1427 = vmatprep.subr.bf16.mxu0 0
    %1428 = vmatpush1.bf16.msra.mxu0 %v1406
    %1429 = vmatprep.subr.bf16.mxu0 0
    %1430 = vmatpush1.bf16.msra.mxu0 %v1407
    %1431 = vmatprep.subr.bf16.mxu0 0
    %1432 = vmatpush1.bf16.msra.mxu0 %v1408
    %1433 = vmatprep.subr.bf16.mxu0 0
    %1434 = vmatpush1.bf16.msra.mxu0 0
    %1435 = vmatprep.subr.bf16.mxu0 0
    %1436 = vmatpush1.bf16.msra.mxu0 0
    %1437 = vmatprep.subr.bf16.mxu0 0
    %1438 = vmatpush1.bf16.msra.mxu0 0
    %1439 = vmatprep.subr.bf16.mxu0 0
    %1440 = vmatpush1.bf16.msra.mxu0 0
    %1441 = vmatprep.subr.bf16.mxu0 0
    %1442 = vmatpush1.bf16.msra.mxu0 0
    %1443 = vmatprep.subr.bf16.mxu0 0
    %1444 = vmatpush1.bf16.msra.mxu0 0
    %1445 = vmatprep.subr.bf16.mxu0 0
    %1446 = vmatpush1.bf16.msra.mxu0 0
    %1447 = vmatprep.subr.bf16.mxu0 0
    %1448 = vmatpush1.bf16.msra.mxu0 0
    %1449 = vmatprep.mubr.bf16.mxu0 0
    %1450 = vmatmul.mubr.bf16.gmra.mrb[0].mxu0 %v1225
    %v1451 = vpop.f32.mrb[0].mxu0
    %v1452 = vadd.f32 %v1367, %v1451
    %v1453 = vpop.f32.mrb[0].mxu0
    %v1454 = vpop.f32.mrb[0].mxu0
    %v1455 = vadd.f32 %v1367, %v1454
    %v1456 = vpop.f32.mrb[0].mxu0
    %1457 = vmatprep.mubr.bf16.mxu0 0
    %1458 = vmatmul.mubr.bf16.gmra.mrb[0].mxu0 %v1226
    %v1459 = vpop.f32.mrb[0].mxu0
    %v1460 = vadd.f32 %v1367, %v1459
    %v1461 = vpop.f32.mrb[0].mxu0
    %v1462 = vpop.f32.mrb[0].mxu0
    %v1463 = vadd.f32 %v1367, %v1462
    %v1464 = vpop.f32.mrb[0].mxu0
    %1465 = vmatprep.mubr.bf16.mxu0 0
    %1466 = vmatmul.mubr.bf16.gmra.mrb[0].mxu0 %v1227
    %v1467 = vpop.f32.mrb[0].mxu0
    %v1468 = vadd.f32 %v1367, %v1467
    %v1469 = vpop.f32.mrb[0].mxu0
    %v1470 = vpop.f32.mrb[0].mxu0
    %v1471 = vadd.f32 %v1367, %v1470
    %v1472 = vpop.f32.mrb[0].mxu0
    %1473 = vmatprep.mubr.bf16.mxu0 0
    %1474 = vmatmul.mubr.bf16.gmra.mrb[0].mxu0 %v1228
    %v1475 = vpop.f32.mrb[0].mxu0
    %v1476 = vadd.f32 %v1367, %v1475
    %v1477 = vpop.f32.mrb[0].mxu0
    %v1478 = vpop.f32.mrb[0].mxu0
    %v1479 = vadd.f32 %v1367, %v1478
    %v1480 = vpop.f32.mrb[0].mxu0
    %1481 = vdwg.mxu0
    %v1483 = vcombine.high %v1177, %v1177
    %v1485 = vunpack.c.l.s4 1966171168
    %v1486 = vunpack.c.0.s8 %v1485
    %v1487 = vlaneseq
    %v1488 = vshrl.u32 %v1487, 7
    %v1489 = vsub.s32 %v1486, %v1488
    %v1490 = vrot.slane %v1177, %v1489
    %v1492 = vunpack.c.l.s4 1966171168
    %v1493 = vunpack.c.0.s8 %v1492
    %v1494 = vlaneseq
    %v1495 = vshrl.u32 %v1494, 7
    %v1496 = vsub.s32 %v1493, %v1495
    %v1497 = vrot.slane %v1483, %v1496
    %v1498 = vcombine.high %v1490, %v1490
    %v1499 = vcombine.high %v1497, %v1497
    %v1501 = vunpack.c.l.s4 1966171168
    %v1502 = vunpack.c.0.s8 %v1501
    %v1503 = vlaneseq
    %v1504 = vshrl.u32 %v1503, 7
    %v1505 = vsub.s32 %v1502, %v1504
    %v1506 = vrot.slane %v1490, %v1505
    %v1508 = vunpack.c.l.s4 1966171168
    %v1509 = vunpack.c.0.s8 %v1508
    %v1510 = vlaneseq
    %v1511 = vshrl.u32 %v1510, 7
    %v1512 = vsub.s32 %v1509, %v1511
    %v1513 = vrot.slane %v1497, %v1512
    %v1515 = vunpack.c.l.s4 1966171168
    %v1516 = vunpack.c.0.s8 %v1515
    %v1517 = vlaneseq
    %v1518 = vshrl.u32 %v1517, 7
    %v1519 = vsub.s32 %v1516, %v1518
    %v1520 = vrot.slane %v1498, %v1519
    %v1522 = vunpack.c.l.s4 1966171168
    %v1523 = vunpack.c.0.s8 %v1522
    %v1524 = vlaneseq
    %v1525 = vshrl.u32 %v1524, 7
    %v1526 = vsub.s32 %v1523, %v1525
    %v1527 = vrot.slane %v1499, %v1526
    %v1528 = vcombine.high %v1506, %v1506
    %v1529 = vcombine.high %v1513, %v1513
    %v1530 = vcombine.high %v1520, %v1520
    %v1531 = vcombine.high %v1527, %v1527
    %vm1532 = vcmask 261120
    %v1533 = vsel %vm1532, %v1506, 0
    %v1536 = vsel %vm1532, %v1316, 0
    %1538 = vmatprep.subr.mxu0 0.0
    %1539 = vmatpush1.xpose.msra.mxu0 %v1536
    %1540 = vmatprep.subr.mxu0 0.0
    %1541 = vmatpush1.xpose.msra.mxu0 0.0
    %1542 = vmatprep.subr.mxu0 0.0
    %1543 = vmatpush1.xpose.msra.mxu0 0.0
    %1544 = vmatprep.subr.mxu0 0.0
    %1545 = vmatpush1.xpose.msra.mxu0 0.0
    %1546 = vmatprep.subr.mxu0 0.0
    %1547 = vmatpush1.xpose.msra.mxu0 0.0
    %1548 = vmatprep.subr.mxu0 0.0
    %1549 = vmatpush1.xpose.msra.mxu0 0.0
    %1550 = vmatprep.subr.mxu0 0.0
    %1551 = vmatpush1.xpose.msra.mxu0 0.0
    %1552 = vmatprep.subr.mxu0 0.0
    %1553 = vmatpush1.xpose.msra.mxu0 0.0
    %1554 = vmatprep.subr.mxu0 0.0
    %1555 = vmatpush1.xpose.msra.mxu0 0.0
    %1556 = vmatprep.subr.mxu0 0.0
    %1557 = vmatpush1.xpose.msra.mxu0 0.0
    %1558 = vmatprep.subr.mxu0 0.0
    %1559 = vmatpush1.xpose.msra.mxu0 0.0
    %1560 = vmatprep.subr.mxu0 0.0
    %1561 = vmatpush1.xpose.msra.mxu0 0.0
    %1562 = vmatprep.subr.mxu0 0.0
    %1563 = vmatpush1.xpose.msra.mxu0 0.0
    %1564 = vmatprep.subr.mxu0 0.0
    %1565 = vmatpush1.xpose.msra.mxu0 0.0
    %1566 = vmatprep.subr.mxu0 0.0
    %1567 = vmatpush1.xpose.msra.mxu0 0.0
    %1568 = vmatprep.subr.mxu0 0.0
    %1569 = vmatpush1.xpose.msra.mxu0 0.0
    %1570 = vmatprep.subr.mxu0 0.0
    %1571 = vmatpush1.xpose.msra.mxu0 0.0
    %1572 = vmatprep.subr.mxu0 0.0
    %1573 = vmatpush1.xpose.msra.mxu0 0.0
    %1574 = vmatprep.subr.mxu0 0.0
    %1575 = vmatpush1.xpose.msra.mxu0 0.0
    %1576 = vmatprep.subr.mxu0 0.0
    %1577 = vmatpush1.xpose.msra.mxu0 0.0
    %1578 = vmatprep.subr.mxu0 0.0
    %1579 = vmatpush1.xpose.msra.mxu0 0.0
    %1580 = vmatprep.subr.mxu0 0.0
    %1581 = vmatpush1.xpose.msra.mxu0 0.0
    %1582 = vmatprep.subr.mxu0 0.0
    %1583 = vmatpush1.xpose.msra.mxu0 0.0
    %1584 = vmatprep.subr.mxu0 0.0
    %1585 = vmatpush1.xpose.msra.mxu0 0.0
    %1586 = vmatprep.subr.mxu0 0.0
    %1587 = vmatpush1.xpose.msra.mxu0 0.0
    %1588 = vmatprep.subr.mxu0 0.0
    %1589 = vmatpush1.xpose.msra.mxu0 0.0
    %1590 = vmatprep.subr.mxu0 0.0
    %1591 = vmatpush1.xpose.msra.mxu0 0.0
    %1592 = vmatprep.subr.mxu0 0.0
    %1593 = vmatpush1.xpose.msra.mxu0 0.0
    %1594 = vmatprep.subr.mxu0 0.0
    %1595 = vmatpush1.xpose.msra.mxu0 0.0
    %1596 = vmatprep.subr.mxu0 0.0
    %1597 = vmatpush1.xpose.msra.mxu0 0.0
    %1598 = vmatprep.subr.mxu0 0.0
    %1599 = vmatpush1.xpose.msra.mxu0 0.0
    %1600 = vmatprep.subr.mxu0 0.0
    %1601 = vmatpush1.xpose.msra.mxu0 0.0
    %1602 = vmatprep.mubr.f32.mxu0 0.0
    %1603 = vmatmul.mubr.f32.gmra.mrb[0].mxu0 %v1533
    %v1604 = vpop.f32.mrb[0].mxu0
    %v1605 = vadd.f32 0.0, %v1604
    %v1606 = vpop.f32.mrb[0].mxu0
    %1607 = vdwg.mxu0
    %v1608 = vsel %vm1532, %v1520, 0
    %v1611 = vsel %vm1532, %v1319, 0
    %1613 = vmatprep.subr.mxu0 0.0
    %1614 = vmatpush1.xpose.msra.mxu0 %v1611
    %1615 = vmatprep.subr.mxu0 0.0
    %1616 = vmatpush1.xpose.msra.mxu0 0.0
    %1617 = vmatprep.subr.mxu0 0.0
    %1618 = vmatpush1.xpose.msra.mxu0 0.0
    %1619 = vmatprep.subr.mxu0 0.0
    %1620 = vmatpush1.xpose.msra.mxu0 0.0
    %1621 = vmatprep.subr.mxu0 0.0
    %1622 = vmatpush1.xpose.msra.mxu0 0.0
    %1623 = vmatprep.subr.mxu0 0.0
    %1624 = vmatpush1.xpose.msra.mxu0 0.0
    %1625 = vmatprep.subr.mxu0 0.0
    %1626 = vmatpush1.xpose.msra.mxu0 0.0
    %1627 = vmatprep.subr.mxu0 0.0
    %1628 = vmatpush1.xpose.msra.mxu0 0.0
    %1629 = vmatprep.subr.mxu0 0.0
    %1630 = vmatpush1.xpose.msra.mxu0 0.0
    %1631 = vmatprep.subr.mxu0 0.0
    %1632 = vmatpush1.xpose.msra.mxu0 0.0
    %1633 = vmatprep.subr.mxu0 0.0
    %1634 = vmatpush1.xpose.msra.mxu0 0.0
    %1635 = vmatprep.subr.mxu0 0.0
    %1636 = vmatpush1.xpose.msra.mxu0 0.0
    %1637 = vmatprep.subr.mxu0 0.0
    %1638 = vmatpush1.xpose.msra.mxu0 0.0
    %1639 = vmatprep.subr.mxu0 0.0
    %1640 = vmatpush1.xpose.msra.mxu0 0.0
    %1641 = vmatprep.subr.mxu0 0.0
    %1642 = vmatpush1.xpose.msra.mxu0 0.0
    %1643 = vmatprep.subr.mxu0 0.0
    %1644 = vmatpush1.xpose.msra.mxu0 0.0
    %1645 = vmatprep.subr.mxu0 0.0
    %1646 = vmatpush1.xpose.msra.mxu0 0.0
    %1647 = vmatprep.subr.mxu0 0.0
    %1648 = vmatpush1.xpose.msra.mxu0 0.0
    %1649 = vmatprep.subr.mxu0 0.0
    %1650 = vmatpush1.xpose.msra.mxu0 0.0
    %1651 = vmatprep.subr.mxu0 0.0
    %1652 = vmatpush1.xpose.msra.mxu0 0.0
    %1653 = vmatprep.subr.mxu0 0.0
    %1654 = vmatpush1.xpose.msra.mxu0 0.0
    %1655 = vmatprep.subr.mxu0 0.0
    %1656 = vmatpush1.xpose.msra.mxu0 0.0
    %1657 = vmatprep.subr.mxu0 0.0
    %1658 = vmatpush1.xpose.msra.mxu0 0.0
    %1659 = vmatprep.subr.mxu0 0.0
    %1660 = vmatpush1.xpose.msra.mxu0 0.0
    %1661 = vmatprep.subr.mxu0 0.0
    %1662 = vmatpush1.xpose.msra.mxu0 0.0
    %1663 = vmatprep.subr.mxu0 0.0
    %1664 = vmatpush1.xpose.msra.mxu0 0.0
    %1665 = vmatprep.subr.mxu0 0.0
    %1666 = vmatpush1.xpose.msra.mxu0 0.0
    %1667 = vmatprep.subr.mxu0 0.0
    %1668 = vmatpush1.xpose.msra.mxu0 0.0
    %1669 = vmatprep.subr.mxu0 0.0
    %1670 = vmatpush1.xpose.msra.mxu0 0.0
    %1671 = vmatprep.subr.mxu0 0.0
    %1672 = vmatpush1.xpose.msra.mxu0 0.0
    %1673 = vmatprep.subr.mxu0 0.0
    %1674 = vmatpush1.xpose.msra.mxu0 0.0
    %1675 = vmatprep.subr.mxu0 0.0
    %1676 = vmatpush1.xpose.msra.mxu0 0.0
    %1677 = vmatprep.mubr.f32.mxu0 0.0
    %1678 = vmatmul.mubr.f32.gmra.mrb[0].mxu0 %v1608
    %v1679 = vpop.f32.mrb[0].mxu0
    %v1680 = vadd.f32 0.0, %v1679
    %v1681 = vpop.f32.mrb[0].mxu0
    %1682 = vdwg.mxu0
    %v1683 = vsel %vm1532, %v1528, 0
    %v1686 = vsel %vm1532, %v1324, 0
    %1688 = vmatprep.subr.mxu0 0.0
    %1689 = vmatpush1.xpose.msra.mxu0 %v1686
    %1690 = vmatprep.subr.mxu0 0.0
    %1691 = vmatpush1.xpose.msra.mxu0 0.0
    %1692 = vmatprep.subr.mxu0 0.0
    %1693 = vmatpush1.xpose.msra.mxu0 0.0
    %1694 = vmatprep.subr.mxu0 0.0
    %1695 = vmatpush1.xpose.msra.mxu0 0.0
    %1696 = vmatprep.subr.mxu0 0.0
    %1697 = vmatpush1.xpose.msra.mxu0 0.0
    %1698 = vmatprep.subr.mxu0 0.0
    %1699 = vmatpush1.xpose.msra.mxu0 0.0
    %1700 = vmatprep.subr.mxu0 0.0
    %1701 = vmatpush1.xpose.msra.mxu0 0.0
    %1702 = vmatprep.subr.mxu0 0.0
    %1703 = vmatpush1.xpose.msra.mxu0 0.0
    %1704 = vmatprep.subr.mxu0 0.0
    %1705 = vmatpush1.xpose.msra.mxu0 0.0
    %1706 = vmatprep.subr.mxu0 0.0
    %1707 = vmatpush1.xpose.msra.mxu0 0.0
    %1708 = vmatprep.subr.mxu0 0.0
    %1709 = vmatpush1.xpose.msra.mxu0 0.0
    %1710 = vmatprep.subr.mxu0 0.0
    %1711 = vmatpush1.xpose.msra.mxu0 0.0
    %1712 = vmatprep.subr.mxu0 0.0
    %1713 = vmatpush1.xpose.msra.mxu0 0.0
    %1714 = vmatprep.subr.mxu0 0.0
    %1715 = vmatpush1.xpose.msra.mxu0 0.0
    %1716 = vmatprep.subr.mxu0 0.0
    %1717 = vmatpush1.xpose.msra.mxu0 0.0
    %1718 = vmatprep.subr.mxu0 0.0
    %1719 = vmatpush1.xpose.msra.mxu0 0.0
    %1720 = vmatprep.subr.mxu0 0.0
    %1721 = vmatpush1.xpose.msra.mxu0 0.0
    %1722 = vmatprep.subr.mxu0 0.0
    %1723 = vmatpush1.xpose.msra.mxu0 0.0
    %1724 = vmatprep.subr.mxu0 0.0
    %1725 = vmatpush1.xpose.msra.mxu0 0.0
    %1726 = vmatprep.subr.mxu0 0.0
    %1727 = vmatpush1.xpose.msra.mxu0 0.0
    %1728 = vmatprep.subr.mxu0 0.0
    %1729 = vmatpush1.xpose.msra.mxu0 0.0
    %1730 = vmatprep.subr.mxu0 0.0
    %1731 = vmatpush1.xpose.msra.mxu0 0.0
    %1732 = vmatprep.subr.mxu0 0.0
    %1733 = vmatpush1.xpose.msra.mxu0 0.0
    %1734 = vmatprep.subr.mxu0 0.0
    %1735 = vmatpush1.xpose.msra.mxu0 0.0
    %1736 = vmatprep.subr.mxu0 0.0
    %1737 = vmatpush1.xpose.msra.mxu0 0.0
    %1738 = vmatprep.subr.mxu0 0.0
    %1739 = vmatpush1.xpose.msra.mxu0 0.0
    %1740 = vmatprep.subr.mxu0 0.0
    %1741 = vmatpush1.xpose.msra.mxu0 0.0
    %1742 = vmatprep.subr.mxu0 0.0
    %1743 = vmatpush1.xpose.msra.mxu0 0.0
    %1744 = vmatprep.subr.mxu0 0.0
    %1745 = vmatpush1.xpose.msra.mxu0 0.0
    %1746 = vmatprep.subr.mxu0 0.0
    %1747 = vmatpush1.xpose.msra.mxu0 0.0
    %1748 = vmatprep.subr.mxu0 0.0
    %1749 = vmatpush1.xpose.msra.mxu0 0.0
    %1750 = vmatprep.subr.mxu0 0.0
    %1751 = vmatpush1.xpose.msra.mxu0 0.0
    %1752 = vmatprep.mubr.f32.mxu0 0.0
    %1753 = vmatmul.mubr.f32.gmra.mrb[0].mxu0 %v1683
    %v1754 = vpop.f32.mrb[0].mxu0
    %v1755 = vadd.f32 0.0, %v1754
    %v1756 = vpop.f32.mrb[0].mxu0
    %1757 = vdwg.mxu0
    %v1758 = vsel %vm1532, %v1530, 0
    %v1761 = vsel %vm1532, %v1327, 0
    %1763 = vmatprep.subr.mxu0 0.0
    %1764 = vmatpush1.xpose.msra.mxu0 %v1761
    %1765 = vmatprep.subr.mxu0 0.0
    %1766 = vmatpush1.xpose.msra.mxu0 0.0
    %1767 = vmatprep.subr.mxu0 0.0
    %1768 = vmatpush1.xpose.msra.mxu0 0.0
    %1769 = vmatprep.subr.mxu0 0.0
    %1770 = vmatpush1.xpose.msra.mxu0 0.0
    %1771 = vmatprep.subr.mxu0 0.0
    %1772 = vmatpush1.xpose.msra.mxu0 0.0
    %1773 = vmatprep.subr.mxu0 0.0
    %1774 = vmatpush1.xpose.msra.mxu0 0.0
    %1775 = vmatprep.subr.mxu0 0.0
    %1776 = vmatpush1.xpose.msra.mxu0 0.0
    %1777 = vmatprep.subr.mxu0 0.0
    %1778 = vmatpush1.xpose.msra.mxu0 0.0
    %1779 = vmatprep.subr.mxu0 0.0
    %1780 = vmatpush1.xpose.msra.mxu0 0.0
    %1781 = vmatprep.subr.mxu0 0.0
    %1782 = vmatpush1.xpose.msra.mxu0 0.0
    %1783 = vmatprep.subr.mxu0 0.0
    %1784 = vmatpush1.xpose.msra.mxu0 0.0
    %1785 = vmatprep.subr.mxu0 0.0
    %1786 = vmatpush1.xpose.msra.mxu0 0.0
    %1787 = vmatprep.subr.mxu0 0.0
    %1788 = vmatpush1.xpose.msra.mxu0 0.0
    %1789 = vmatprep.subr.mxu0 0.0
    %1790 = vmatpush1.xpose.msra.mxu0 0.0
    %1791 = vmatprep.subr.mxu0 0.0
    %1792 = vmatpush1.xpose.msra.mxu0 0.0
    %1793 = vmatprep.subr.mxu0 0.0
    %1794 = vmatpush1.xpose.msra.mxu0 0.0
    %1795 = vmatprep.subr.mxu0 0.0
    %1796 = vmatpush1.xpose.msra.mxu0 0.0
    %1797 = vmatprep.subr.mxu0 0.0
    %1798 = vmatpush1.xpose.msra.mxu0 0.0
    %1799 = vmatprep.subr.mxu0 0.0
    %1800 = vmatpush1.xpose.msra.mxu0 0.0
    %1801 = vmatprep.subr.mxu0 0.0
    %1802 = vmatpush1.xpose.msra.mxu0 0.0
    %1803 = vmatprep.subr.mxu0 0.0
    %1804 = vmatpush1.xpose.msra.mxu0 0.0
    %1805 = vmatprep.subr.mxu0 0.0
    %1806 = vmatpush1.xpose.msra.mxu0 0.0
    %1807 = vmatprep.subr.mxu0 0.0
    %1808 = vmatpush1.xpose.msra.mxu0 0.0
    %1809 = vmatprep.subr.mxu0 0.0
    %1810 = vmatpush1.xpose.msra.mxu0 0.0
    %1811 = vmatprep.subr.mxu0 0.0
    %1812 = vmatpush1.xpose.msra.mxu0 0.0
    %1813 = vmatprep.subr.mxu0 0.0
    %1814 = vmatpush1.xpose.msra.mxu0 0.0
    %1815 = vmatprep.subr.mxu0 0.0
    %1816 = vmatpush1.xpose.msra.mxu0 0.0
    %1817 = vmatprep.subr.mxu0 0.0
    %1818 = vmatpush1.xpose.msra.mxu0 0.0
    %1819 = vmatprep.subr.mxu0 0.0
    %1820 = vmatpush1.xpose.msra.mxu0 0.0
    %1821 = vmatprep.subr.mxu0 0.0
    %1822 = vmatpush1.xpose.msra.mxu0 0.0
    %1823 = vmatprep.subr.mxu0 0.0
    %1824 = vmatpush1.xpose.msra.mxu0 0.0
    %1825 = vmatprep.subr.mxu0 0.0
    %1826 = vmatpush1.xpose.msra.mxu0 0.0
    %1827 = vmatprep.mubr.f32.mxu0 0.0
    %1828 = vmatmul.mubr.f32.gmra.mrb[0].mxu0 %v1758
    %v1829 = vpop.f32.mrb[0].mxu0
    %v1830 = vadd.f32 0.0, %v1829
    %v1831 = vpop.f32.mrb[0].mxu0
    %1832 = vdwg.mxu0
    %v1833 = vsel %vm1532, %v1513, 0
    %v1836 = vsel %vm1532, %v1332, 0
    %1838 = vmatprep.subr.mxu0 0.0
    %1839 = vmatpush1.xpose.msra.mxu0 %v1836
    %1840 = vmatprep.subr.mxu0 0.0
    %1841 = vmatpush1.xpose.msra.mxu0 0.0
    %1842 = vmatprep.subr.mxu0 0.0
    %1843 = vmatpush1.xpose.msra.mxu0 0.0
    %1844 = vmatprep.subr.mxu0 0.0
    %1845 = vmatpush1.xpose.msra.mxu0 0.0
    %1846 = vmatprep.subr.mxu0 0.0
    %1847 = vmatpush1.xpose.msra.mxu0 0.0
    %1848 = vmatprep.subr.mxu0 0.0
    %1849 = vmatpush1.xpose.msra.mxu0 0.0
    %1850 = vmatprep.subr.mxu0 0.0
    %1851 = vmatpush1.xpose.msra.mxu0 0.0
    %1852 = vmatprep.subr.mxu0 0.0
    %1853 = vmatpush1.xpose.msra.mxu0 0.0
    %1854 = vmatprep.subr.mxu0 0.0
    %1855 = vmatpush1.xpose.msra.mxu0 0.0
    %1856 = vmatprep.subr.mxu0 0.0
    %1857 = vmatpush1.xpose.msra.mxu0 0.0
    %1858 = vmatprep.subr.mxu0 0.0
    %1859 = vmatpush1.xpose.msra.mxu0 0.0
    %1860 = vmatprep.subr.mxu0 0.0
    %1861 = vmatpush1.xpose.msra.mxu0 0.0
    %1862 = vmatprep.subr.mxu0 0.0
    %1863 = vmatpush1.xpose.msra.mxu0 0.0
    %1864 = vmatprep.subr.mxu0 0.0
    %1865 = vmatpush1.xpose.msra.mxu0 0.0
    %1866 = vmatprep.subr.mxu0 0.0
    %1867 = vmatpush1.xpose.msra.mxu0 0.0
    %1868 = vmatprep.subr.mxu0 0.0
    %1869 = vmatpush1.xpose.msra.mxu0 0.0
    %1870 = vmatprep.subr.mxu0 0.0
    %1871 = vmatpush1.xpose.msra.mxu0 0.0
    %1872 = vmatprep.subr.mxu0 0.0
    %1873 = vmatpush1.xpose.msra.mxu0 0.0
    %1874 = vmatprep.subr.mxu0 0.0
    %1875 = vmatpush1.xpose.msra.mxu0 0.0
    %1876 = vmatprep.subr.mxu0 0.0
    %1877 = vmatpush1.xpose.msra.mxu0 0.0
    %1878 = vmatprep.subr.mxu0 0.0
    %1879 = vmatpush1.xpose.msra.mxu0 0.0
    %1880 = vmatprep.subr.mxu0 0.0
    %1881 = vmatpush1.xpose.msra.mxu0 0.0
    %1882 = vmatprep.subr.mxu0 0.0
    %1883 = vmatpush1.xpose.msra.mxu0 0.0
    %1884 = vmatprep.subr.mxu0 0.0
    %1885 = vmatpush1.xpose.msra.mxu0 0.0
    %1886 = vmatprep.subr.mxu0 0.0
    %1887 = vmatpush1.xpose.msra.mxu0 0.0
    %1888 = vmatprep.subr.mxu0 0.0
    %1889 = vmatpush1.xpose.msra.mxu0 0.0
    %1890 = vmatprep.subr.mxu0 0.0
    %1891 = vmatpush1.xpose.msra.mxu0 0.0
    %1892 = vmatprep.subr.mxu0 0.0
    %1893 = vmatpush1.xpose.msra.mxu0 0.0
    %1894 = vmatprep.subr.mxu0 0.0
    %1895 = vmatpush1.xpose.msra.mxu0 0.0
    %1896 = vmatprep.subr.mxu0 0.0
    %1897 = vmatpush1.xpose.msra.mxu0 0.0
    %1898 = vmatprep.subr.mxu0 0.0
    %1899 = vmatpush1.xpose.msra.mxu0 0.0
    %1900 = vmatprep.subr.mxu0 0.0
    %1901 = vmatpush1.xpose.msra.mxu0 0.0
    %1902 = vmatprep.mubr.f32.mxu0 0.0
    %1903 = vmatmul.mubr.f32.gmra.mrb[0].mxu0 %v1833
    %v1904 = vpop.f32.mrb[0].mxu0
    %v1905 = vadd.f32 0.0, %v1904
    %v1906 = vpop.f32.mrb[0].mxu0
    %1907 = vdwg.mxu0
    %v1908 = vsel %vm1532, %v1527, 0
    %v1911 = vsel %vm1532, %v1335, 0
    %1913 = vmatprep.subr.mxu0 0.0
    %1914 = vmatpush1.xpose.msra.mxu0 %v1911
    %1915 = vmatprep.subr.mxu0 0.0
    %1916 = vmatpush1.xpose.msra.mxu0 0.0
    %1917 = vmatprep.subr.mxu0 0.0
    %1918 = vmatpush1.xpose.msra.mxu0 0.0
    %1919 = vmatprep.subr.mxu0 0.0
    %1920 = vmatpush1.xpose.msra.mxu0 0.0
    %1921 = vmatprep.subr.mxu0 0.0
    %1922 = vmatpush1.xpose.msra.mxu0 0.0
    %1923 = vmatprep.subr.mxu0 0.0
    %1924 = vmatpush1.xpose.msra.mxu0 0.0
    %1925 = vmatprep.subr.mxu0 0.0
    %1926 = vmatpush1.xpose.msra.mxu0 0.0
    %1927 = vmatprep.subr.mxu0 0.0
    %1928 = vmatpush1.xpose.msra.mxu0 0.0
    %1929 = vmatprep.subr.mxu0 0.0
    %1930 = vmatpush1.xpose.msra.mxu0 0.0
    %1931 = vmatprep.subr.mxu0 0.0
    %1932 = vmatpush1.xpose.msra.mxu0 0.0
    %1933 = vmatprep.subr.mxu0 0.0
    %1934 = vmatpush1.xpose.msra.mxu0 0.0
    %1935 = vmatprep.subr.mxu0 0.0
    %1936 = vmatpush1.xpose.msra.mxu0 0.0
    %1937 = vmatprep.subr.mxu0 0.0
    %1938 = vmatpush1.xpose.msra.mxu0 0.0
    %1939 = vmatprep.subr.mxu0 0.0
    %1940 = vmatpush1.xpose.msra.mxu0 0.0
    %1941 = vmatprep.subr.mxu0 0.0
    %1942 = vmatpush1.xpose.msra.mxu0 0.0
    %1943 = vmatprep.subr.mxu0 0.0
    %1944 = vmatpush1.xpose.msra.mxu0 0.0
    %1945 = vmatprep.subr.mxu0 0.0
    %1946 = vmatpush1.xpose.msra.mxu0 0.0
    %1947 = vmatprep.subr.mxu0 0.0
    %1948 = vmatpush1.xpose.msra.mxu0 0.0
    %1949 = vmatprep.subr.mxu0 0.0
    %1950 = vmatpush1.xpose.msra.mxu0 0.0
    %1951 = vmatprep.subr.mxu0 0.0
    %1952 = vmatpush1.xpose.msra.mxu0 0.0
    %1953 = vmatprep.subr.mxu0 0.0
    %1954 = vmatpush1.xpose.msra.mxu0 0.0
    %1955 = vmatprep.subr.mxu0 0.0
    %1956 = vmatpush1.xpose.msra.mxu0 0.0
    %1957 = vmatprep.subr.mxu0 0.0
    %1958 = vmatpush1.xpose.msra.mxu0 0.0
    %1959 = vmatprep.subr.mxu0 0.0
    %1960 = vmatpush1.xpose.msra.mxu0 0.0
    %1961 = vmatprep.subr.mxu0 0.0
    %1962 = vmatpush1.xpose.msra.mxu0 0.0
    %1963 = vmatprep.subr.mxu0 0.0
    %1964 = vmatpush1.xpose.msra.mxu0 0.0
    %1965 = vmatprep.subr.mxu0 0.0
    %1966 = vmatpush1.xpose.msra.mxu0 0.0
    %1967 = vmatprep.subr.mxu0 0.0
    %1968 = vmatpush1.xpose.msra.mxu0 0.0
    %1969 = vmatprep.subr.mxu0 0.0
    %1970 = vmatpush1.xpose.msra.mxu0 0.0
    %1971 = vmatprep.subr.mxu0 0.0
    %1972 = vmatpush1.xpose.msra.mxu0 0.0
    %1973 = vmatprep.subr.mxu0 0.0
    %1974 = vmatpush1.xpose.msra.mxu0 0.0
    %1975 = vmatprep.subr.mxu0 0.0
    %1976 = vmatpush1.xpose.msra.mxu0 0.0
    %1977 = vmatprep.mubr.f32.mxu0 0.0
    %1978 = vmatmul.mubr.f32.gmra.mrb[0].mxu0 %v1908
    %v1979 = vpop.f32.mrb[0].mxu0
    %v1980 = vadd.f32 0.0, %v1979
    %v1981 = vpop.f32.mrb[0].mxu0
    %1982 = vdwg.mxu0
    %v1983 = vsel %vm1532, %v1529, 0
    %v1986 = vsel %vm1532, %v1340, 0
    %1988 = vmatprep.subr.mxu0 0.0
    %1989 = vmatpush1.xpose.msra.mxu0 %v1986
    %1990 = vmatprep.subr.mxu0 0.0
    %1991 = vmatpush1.xpose.msra.mxu0 0.0
    %1992 = vmatprep.subr.mxu0 0.0
    %1993 = vmatpush1.xpose.msra.mxu0 0.0
    %1994 = vmatprep.subr.mxu0 0.0
    %1995 = vmatpush1.xpose.msra.mxu0 0.0
    %1996 = vmatprep.subr.mxu0 0.0
    %1997 = vmatpush1.xpose.msra.mxu0 0.0
    %1998 = vmatprep.subr.mxu0 0.0
    %1999 = vmatpush1.xpose.msra.mxu0 0.0
    %2000 = vmatprep.subr.mxu0 0.0
    %2001 = vmatpush1.xpose.msra.mxu0 0.0
    %2002 = vmatprep.subr.mxu0 0.0
    %2003 = vmatpush1.xpose.msra.mxu0 0.0
    %2004 = vmatprep.subr.mxu0 0.0
    %2005 = vmatpush1.xpose.msra.mxu0 0.0
    %2006 = vmatprep.subr.mxu0 0.0
    %2007 = vmatpush1.xpose.msra.mxu0 0.0
    %2008 = vmatprep.subr.mxu0 0.0
    %2009 = vmatpush1.xpose.msra.mxu0 0.0
    %2010 = vmatprep.subr.mxu0 0.0
    %2011 = vmatpush1.xpose.msra.mxu0 0.0
    %2012 = vmatprep.subr.mxu0 0.0
    %2013 = vmatpush1.xpose.msra.mxu0 0.0
    %2014 = vmatprep.subr.mxu0 0.0
    %2015 = vmatpush1.xpose.msra.mxu0 0.0
    %2016 = vmatprep.subr.mxu0 0.0
    %2017 = vmatpush1.xpose.msra.mxu0 0.0
    %2018 = vmatprep.subr.mxu0 0.0
    %2019 = vmatpush1.xpose.msra.mxu0 0.0
    %2020 = vmatprep.subr.mxu0 0.0
    %2021 = vmatpush1.xpose.msra.mxu0 0.0
    %2022 = vmatprep.subr.mxu0 0.0
    %2023 = vmatpush1.xpose.msra.mxu0 0.0
    %2024 = vmatprep.subr.mxu0 0.0
    %2025 = vmatpush1.xpose.msra.mxu0 0.0
    %2026 = vmatprep.subr.mxu0 0.0
    %2027 = vmatpush1.xpose.msra.mxu0 0.0
    %2028 = vmatprep.subr.mxu0 0.0
    %2029 = vmatpush1.xpose.msra.mxu0 0.0
    %2030 = vmatprep.subr.mxu0 0.0
    %2031 = vmatpush1.xpose.msra.mxu0 0.0
    %2032 = vmatprep.subr.mxu0 0.0
    %2033 = vmatpush1.xpose.msra.mxu0 0.0
    %2034 = vmatprep.subr.mxu0 0.0
    %2035 = vmatpush1.xpose.msra.mxu0 0.0
    %2036 = vmatprep.subr.mxu0 0.0
    %2037 = vmatpush1.xpose.msra.mxu0 0.0
    %2038 = vmatprep.subr.mxu0 0.0
    %2039 = vmatpush1.xpose.msra.mxu0 0.0
    %2040 = vmatprep.subr.mxu0 0.0
    %2041 = vmatpush1.xpose.msra.mxu0 0.0
    %2042 = vmatprep.subr.mxu0 0.0
    %2043 = vmatpush1.xpose.msra.mxu0 0.0
    %2044 = vmatprep.subr.mxu0 0.0
    %2045 = vmatpush1.xpose.msra.mxu0 0.0
    %2046 = vmatprep.subr.mxu0 0.0
    %2047 = vmatpush1.xpose.msra.mxu0 0.0
    %2048 = vmatprep.subr.mxu0 0.0
    %2049 = vmatpush1.xpose.msra.mxu0 0.0
    %2050 = vmatprep.subr.mxu0 0.0
    %2051 = vmatpush1.xpose.msra.mxu0 0.0
    %2052 = vmatprep.mubr.f32.mxu0 0.0
    %2053 = vmatmul.mubr.f32.gmra.mrb[0].mxu0 %v1983
    %v2054 = vpop.f32.mrb[0].mxu0
    %v2055 = vadd.f32 0.0, %v2054
    %v2056 = vpop.f32.mrb[0].mxu0
    %2057 = vdwg.mxu0
    %v2058 = vsel %vm1532, %v1531, 0
    %v2061 = vsel %vm1532, %v1343, 0
    %2063 = vmatprep.subr.mxu0 0.0
    %2064 = vmatpush1.xpose.msra.mxu0 %v2061
    %2065 = vmatprep.subr.mxu0 0.0
    %2066 = vmatpush1.xpose.msra.mxu0 0.0
    %2067 = vmatprep.subr.mxu0 0.0
    %2068 = vmatpush1.xpose.msra.mxu0 0.0
    %2069 = vmatprep.subr.mxu0 0.0
    %2070 = vmatpush1.xpose.msra.mxu0 0.0
    %2071 = vmatprep.subr.mxu0 0.0
    %2072 = vmatpush1.xpose.msra.mxu0 0.0
    %2073 = vmatprep.subr.mxu0 0.0
    %2074 = vmatpush1.xpose.msra.mxu0 0.0
    %2075 = vmatprep.subr.mxu0 0.0
    %2076 = vmatpush1.xpose.msra.mxu0 0.0
    %2077 = vmatprep.subr.mxu0 0.0
    %2078 = vmatpush1.xpose.msra.mxu0 0.0
    %2079 = vmatprep.subr.mxu0 0.0
    %2080 = vmatpush1.xpose.msra.mxu0 0.0
    %2081 = vmatprep.subr.mxu0 0.0
    %2082 = vmatpush1.xpose.msra.mxu0 0.0
    %2083 = vmatprep.subr.mxu0 0.0
    %2084 = vmatpush1.xpose.msra.mxu0 0.0
    %2085 = vmatprep.subr.mxu0 0.0
    %2086 = vmatpush1.xpose.msra.mxu0 0.0
    %2087 = vmatprep.subr.mxu0 0.0
    %2088 = vmatpush1.xpose.msra.mxu0 0.0
    %2089 = vmatprep.subr.mxu0 0.0
    %2090 = vmatpush1.xpose.msra.mxu0 0.0
    %2091 = vmatprep.subr.mxu0 0.0
    %2092 = vmatpush1.xpose.msra.mxu0 0.0
    %2093 = vmatprep.subr.mxu0 0.0
    %2094 = vmatpush1.xpose.msra.mxu0 0.0
    %2095 = vmatprep.subr.mxu0 0.0
    %2096 = vmatpush1.xpose.msra.mxu0 0.0
    %2097 = vmatprep.subr.mxu0 0.0
    %2098 = vmatpush1.xpose.msra.mxu0 0.0
    %2099 = vmatprep.subr.mxu0 0.0
    %2100 = vmatpush1.xpose.msra.mxu0 0.0
    %2101 = vmatprep.subr.mxu0 0.0
    %2102 = vmatpush1.xpose.msra.mxu0 0.0
    %2103 = vmatprep.subr.mxu0 0.0
    %2104 = vmatpush1.xpose.msra.mxu0 0.0
    %2105 = vmatprep.subr.mxu0 0.0
    %2106 = vmatpush1.xpose.msra.mxu0 0.0
    %2107 = vmatprep.subr.mxu0 0.0
    %2108 = vmatpush1.xpose.msra.mxu0 0.0
    %2109 = vmatprep.subr.mxu0 0.0
    %2110 = vmatpush1.xpose.msra.mxu0 0.0
    %2111 = vmatprep.subr.mxu0 0.0
    %2112 = vmatpush1.xpose.msra.mxu0 0.0
    %2113 = vmatprep.subr.mxu0 0.0
    %2114 = vmatpush1.xpose.msra.mxu0 0.0
    %2115 = vmatprep.subr.mxu0 0.0
    %2116 = vmatpush1.xpose.msra.mxu0 0.0
    %2117 = vmatprep.subr.mxu0 0.0
    %2118 = vmatpush1.xpose.msra.mxu0 0.0
    %2119 = vmatprep.subr.mxu0 0.0
    %2120 = vmatpush1.xpose.msra.mxu0 0.0
    %2121 = vmatprep.subr.mxu0 0.0
    %2122 = vmatpush1.xpose.msra.mxu0 0.0
    %2123 = vmatprep.subr.mxu0 0.0
    %2124 = vmatpush1.xpose.msra.mxu0 0.0
    %2125 = vmatprep.subr.mxu0 0.0
    %2126 = vmatpush1.xpose.msra.mxu0 0.0
    %2127 = vmatprep.mubr.f32.mxu0 0.0
    %2128 = vmatmul.mubr.f32.gmra.mrb[0].mxu0 %v2058
    %v2129 = vpop.f32.mrb[0].mxu0
    %v2130 = vadd.f32 0.0, %v2129
    %v2131 = vpop.f32.mrb[0].mxu0
    %2132 = vdwg.mxu0
    %vm2133 = vcmask 57344
    %v2134 = vsel %vm2133, %v1605, -inf
    %2135 = vmax.xlane.f32.xlu0 %v2134
    %v2136 = vpop.xlane.xlu0 %2135
    %v2137 = vsel %vm2133, %v1680, -inf
    %2138 = vmax.xlane.f32.xlu0 %v2137
    %v2139 = vpop.xlane.xlu0 %2138
    %v2140 = vsel %vm2133, %v1755, -inf
    %2141 = vmax.xlane.f32.xlu0 %v2140
    %v2142 = vpop.xlane.xlu0 %2141
    %v2143 = vsel %vm2133, %v1830, -inf
    %2144 = vmax.xlane.f32.xlu0 %v2143
    %v2145 = vpop.xlane.xlu0 %2144
    %v2146 = vsel %vm2133, %v1905, -inf
    %2147 = vmax.xlane.f32.xlu0 %v2146
    %v2148 = vpop.xlane.xlu0 %2147
    %v2149 = vsel %vm2133, %v1980, -inf
    %2150 = vmax.xlane.f32.xlu0 %v2149
    %v2151 = vpop.xlane.xlu0 %2150
    %v2152 = vsel %vm2133, %v2055, -inf
    %2153 = vmax.xlane.f32.xlu0 %v2152
    %v2154 = vpop.xlane.xlu0 %2153
    %v2155 = vsel %vm2133, %v2130, -inf
    %2156 = vmax.xlane.f32.xlu0 %v2155
    %v2157 = vpop.xlane.xlu0 %2156
    %v2158 = vsub.f32 %v1605, %v2136
    %v2159 = vsub.f32 %v1680, %v2139
    %v2160 = vsub.f32 %v1755, %v2142
    %v2161 = vsub.f32 %v1830, %v2145
    %v2162 = vsub.f32 %v1905, %v2148
    %v2163 = vsub.f32 %v1980, %v2151
    %v2164 = vsub.f32 %v2055, %v2154
    %v2165 = vsub.f32 %v2130, %v2157
    %v2166 = vmul.f32 %v2158, 1.442695
    %v2167 = vpow.pop %v2166
    %v2168 = vmul.f32 %v2159, 1.442695
    %v2169 = vpow.pop %v2168
    %v2170 = vmul.f32 %v2160, 1.442695
    %v2171 = vpow.pop %v2170
    %v2172 = vmul.f32 %v2161, 1.442695
    %v2173 = vpow.pop %v2172
    %v2174 = vmul.f32 %v2162, 1.442695
    %v2175 = vpow.pop %v2174
    %v2176 = vmul.f32 %v2163, 1.442695
    %v2177 = vpow.pop %v2176
    %v2178 = vmul.f32 %v2164, 1.442695
    %v2179 = vpow.pop %v2178
    %v2180 = vmul.f32 %v2165, 1.442695
    %v2181 = vpow.pop %v2180
    %v2182 = vsel %vm2133, %v2167, 0.0
    %2183 = vadd.xlane.f32.xlu0 %v2182
    %v2184 = vpop.xlane.xlu0 %2183
    %v2185 = vsel %vm2133, %v2169, 0.0
    %2186 = vadd.xlane.f32.xlu0 %v2185
    %v2187 = vpop.xlane.xlu0 %2186
    %v2188 = vsel %vm2133, %v2171, 0.0
    %2189 = vadd.xlane.f32.xlu0 %v2188
    %v2190 = vpop.xlane.xlu0 %2189
    %v2191 = vsel %vm2133, %v2173, 0.0
    %2192 = vadd.xlane.f32.xlu0 %v2191
    %v2193 = vpop.xlane.xlu0 %2192
    %v2194 = vsel %vm2133, %v2175, 0.0
    %2195 = vadd.xlane.f32.xlu0 %v2194
    %v2196 = vpop.xlane.xlu0 %2195
    %v2197 = vsel %vm2133, %v2177, 0.0
    %2198 = vadd.xlane.f32.xlu0 %v2197
    %v2199 = vpop.xlane.xlu0 %2198
    %v2200 = vsel %vm2133, %v2179, 0.0
    %2201 = vadd.xlane.f32.xlu0 %v2200
    %v2202 = vpop.xlane.xlu0 %2201
    %v2203 = vsel %vm2133, %v2181, 0.0
    %2204 = vadd.xlane.f32.xlu0 %v2203
    %v2205 = vpop.xlane.xlu0 %2204
    %v2206 = vrcp.pop %v2184
    %v2207 = vrcp.pop %v2187
    %v2208 = vrcp.pop %v2190
    %v2209 = vrcp.pop %v2193
    %v2210 = vrcp.pop %v2196
    %v2211 = vrcp.pop %v2199
    %v2212 = vrcp.pop %v2202
    %v2213 = vrcp.pop %v2205
    %v2214 = vmul.f32 %v2167, %v2206
    %v2215 = vmul.f32 %v2169, %v2207
    %v2216 = vmul.f32 %v2171, %v2208
    %v2217 = vmul.f32 %v2173, %v2209
    %v2218 = vmul.f32 %v2175, %v2210
    %v2219 = vmul.f32 %v2177, %v2211
    %v2220 = vmul.f32 %v2179, %v2212
    %v2221 = vmul.f32 %v2181, %v2213
    %vm2222 = vcmask 64512
    %v2224 = vsel %vm2222, %v2214, 0
    %2226 = vmatprep.subr.mxu0 0.0
    %2227 = vmatpush1.msra.mxu0 %v1452
    %2228 = vmatprep.subr.mxu0 0.0
    %2229 = vmatpush1.msra.mxu0 0.0
    %2230 = vmatprep.subr.mxu0 0.0
    %2231 = vmatpush1.msra.mxu0 0.0
    %2232 = vmatprep.subr.mxu0 0.0
    %2233 = vmatpush1.msra.mxu0 0.0
    %2234 = vmatprep.subr.mxu0 0.0
    %2235 = vmatpush1.msra.mxu0 0.0
    %2236 = vmatprep.subr.mxu0 0.0
    %2237 = vmatpush1.msra.mxu0 0.0
    %2238 = vmatprep.subr.mxu0 0.0
    %2239 = vmatpush1.msra.mxu0 0.0
    %2240 = vmatprep.subr.mxu0 0.0
    %2241 = vmatpush1.msra.mxu0 0.0
    %2242 = vmatprep.subr.mxu0 0.0
    %2243 = vmatpush1.msra.mxu0 0.0
    %2244 = vmatprep.subr.mxu0 0.0
    %2245 = vmatpush1.msra.mxu0 0.0
    %2246 = vmatprep.subr.mxu0 0.0
    %2247 = vmatpush1.msra.mxu0 0.0
    %2248 = vmatprep.subr.mxu0 0.0
    %2249 = vmatpush1.msra.mxu0 0.0
    %2250 = vmatprep.subr.mxu0 0.0
    %2251 = vmatpush1.msra.mxu0 0.0
    %2252 = vmatprep.subr.mxu0 0.0
    %2253 = vmatpush1.msra.mxu0 0.0
    %2254 = vmatprep.subr.mxu0 0.0
    %2255 = vmatpush1.msra.mxu0 0.0
    %2256 = vmatprep.subr.mxu0 0.0
    %2257 = vmatpush1.msra.mxu0 0.0
    %2258 = vmatprep.subr.mxu0 0.0
    %2259 = vmatpush1.msra.mxu0 0.0
    %2260 = vmatprep.subr.mxu0 0.0
    %2261 = vmatpush1.msra.mxu0 0.0
    %2262 = vmatprep.subr.mxu0 0.0
    %2263 = vmatpush1.msra.mxu0 0.0
    %2264 = vmatprep.subr.mxu0 0.0
    %2265 = vmatpush1.msra.mxu0 0.0
    %2266 = vmatprep.subr.mxu0 0.0
    %2267 = vmatpush1.msra.mxu0 0.0
    %2268 = vmatprep.subr.mxu0 0.0
    %2269 = vmatpush1.msra.mxu0 0.0
    %2270 = vmatprep.subr.mxu0 0.0
    %2271 = vmatpush1.msra.mxu0 0.0
    %2272 = vmatprep.subr.mxu0 0.0
    %2273 = vmatpush1.msra.mxu0 0.0
    %2274 = vmatprep.subr.mxu0 0.0
    %2275 = vmatpush1.msra.mxu0 0.0
    %2276 = vmatprep.subr.mxu0 0.0
    %2277 = vmatpush1.msra.mxu0 0.0
    %2278 = vmatprep.subr.mxu0 0.0
    %2279 = vmatpush1.msra.mxu0 0.0
    %2280 = vmatprep.subr.mxu0 0.0
    %2281 = vmatpush1.msra.mxu0 0.0
    %2282 = vmatprep.subr.mxu0 0.0
    %2283 = vmatpush1.msra.mxu0 0.0
    %2284 = vmatprep.subr.mxu0 0.0
    %2285 = vmatpush1.msra.mxu0 0.0
    %2286 = vmatprep.subr.mxu0 0.0
    %2287 = vmatpush1.msra.mxu0 0.0
    %2288 = vmatprep.subr.mxu0 0.0
    %2289 = vmatpush1.msra.mxu0 0.0
    %2290 = vmatprep.mubr.f32.mxu0 0.0
    %2291 = vmatmul.mubr.f32.gmra.mrb[0].mxu0 %v2224
    %v2292 = vpop.f32.mrb[0].mxu0
    %v2293 = vadd.f32 0.0, %v2292
    %v2294 = vpop.f32.mrb[0].mxu0
    %2295 = vdwg.mxu0
    %v2297 = vsel %vm2222, %v2215, 0
    %2299 = vmatprep.subr.mxu0 0.0
    %2300 = vmatpush1.msra.mxu0 %v1455
    %2301 = vmatprep.subr.mxu0 0.0
    %2302 = vmatpush1.msra.mxu0 0.0
    %2303 = vmatprep.subr.mxu0 0.0
    %2304 = vmatpush1.msra.mxu0 0.0
    %2305 = vmatprep.subr.mxu0 0.0
    %2306 = vmatpush1.msra.mxu0 0.0
    %2307 = vmatprep.subr.mxu0 0.0
    %2308 = vmatpush1.msra.mxu0 0.0
    %2309 = vmatprep.subr.mxu0 0.0
    %2310 = vmatpush1.msra.mxu0 0.0
    %2311 = vmatprep.subr.mxu0 0.0
    %2312 = vmatpush1.msra.mxu0 0.0
    %2313 = vmatprep.subr.mxu0 0.0
    %2314 = vmatpush1.msra.mxu0 0.0
    %2315 = vmatprep.subr.mxu0 0.0
    %2316 = vmatpush1.msra.mxu0 0.0
    %2317 = vmatprep.subr.mxu0 0.0
    %2318 = vmatpush1.msra.mxu0 0.0
    %2319 = vmatprep.subr.mxu0 0.0
    %2320 = vmatpush1.msra.mxu0 0.0
    %2321 = vmatprep.subr.mxu0 0.0
    %2322 = vmatpush1.msra.mxu0 0.0
    %2323 = vmatprep.subr.mxu0 0.0
    %2324 = vmatpush1.msra.mxu0 0.0
    %2325 = vmatprep.subr.mxu0 0.0
    %2326 = vmatpush1.msra.mxu0 0.0
    %2327 = vmatprep.subr.mxu0 0.0
    %2328 = vmatpush1.msra.mxu0 0.0
    %2329 = vmatprep.subr.mxu0 0.0
    %2330 = vmatpush1.msra.mxu0 0.0
    %2331 = vmatprep.subr.mxu0 0.0
    %2332 = vmatpush1.msra.mxu0 0.0
    %2333 = vmatprep.subr.mxu0 0.0
    %2334 = vmatpush1.msra.mxu0 0.0
    %2335 = vmatprep.subr.mxu0 0.0
    %2336 = vmatpush1.msra.mxu0 0.0
    %2337 = vmatprep.subr.mxu0 0.0
    %2338 = vmatpush1.msra.mxu0 0.0
    %2339 = vmatprep.subr.mxu0 0.0
    %2340 = vmatpush1.msra.mxu0 0.0
    %2341 = vmatprep.subr.mxu0 0.0
    %2342 = vmatpush1.msra.mxu0 0.0
    %2343 = vmatprep.subr.mxu0 0.0
    %2344 = vmatpush1.msra.mxu0 0.0
    %2345 = vmatprep.subr.mxu0 0.0
    %2346 = vmatpush1.msra.mxu0 0.0
    %2347 = vmatprep.subr.mxu0 0.0
    %2348 = vmatpush1.msra.mxu0 0.0
    %2349 = vmatprep.subr.mxu0 0.0
    %2350 = vmatpush1.msra.mxu0 0.0
    %2351 = vmatprep.subr.mxu0 0.0
    %2352 = vmatpush1.msra.mxu0 0.0
    %2353 = vmatprep.subr.mxu0 0.0
    %2354 = vmatpush1.msra.mxu0 0.0
    %2355 = vmatprep.subr.mxu0 0.0
    %2356 = vmatpush1.msra.mxu0 0.0
    %2357 = vmatprep.subr.mxu0 0.0
    %2358 = vmatpush1.msra.mxu0 0.0
    %2359 = vmatprep.subr.mxu0 0.0
    %2360 = vmatpush1.msra.mxu0 0.0
    %2361 = vmatprep.subr.mxu0 0.0
    %2362 = vmatpush1.msra.mxu0 0.0
    %2363 = vmatprep.mubr.f32.mxu0 0.0
    %2364 = vmatmul.mubr.f32.gmra.mrb[0].mxu0 %v2297
    %v2365 = vpop.f32.mrb[0].mxu0
    %v2366 = vadd.f32 0.0, %v2365
    %v2367 = vpop.f32.mrb[0].mxu0
    %2368 = vdwg.mxu0
    %v2370 = vsel %vm2222, %v2216, 0
    %2372 = vmatprep.subr.mxu0 0.0
    %2373 = vmatpush1.msra.mxu0 %v1460
    %2374 = vmatprep.subr.mxu0 0.0
    %2375 = vmatpush1.msra.mxu0 0.0
    %2376 = vmatprep.subr.mxu0 0.0
    %2377 = vmatpush1.msra.mxu0 0.0
    %2378 = vmatprep.subr.mxu0 0.0
    %2379 = vmatpush1.msra.mxu0 0.0
    %2380 = vmatprep.subr.mxu0 0.0
    %2381 = vmatpush1.msra.mxu0 0.0
    %2382 = vmatprep.subr.mxu0 0.0
    %2383 = vmatpush1.msra.mxu0 0.0
    %2384 = vmatprep.subr.mxu0 0.0
    %2385 = vmatpush1.msra.mxu0 0.0
    %2386 = vmatprep.subr.mxu0 0.0
    %2387 = vmatpush1.msra.mxu0 0.0
    %2388 = vmatprep.subr.mxu0 0.0
    %2389 = vmatpush1.msra.mxu0 0.0
    %2390 = vmatprep.subr.mxu0 0.0
    %2391 = vmatpush1.msra.mxu0 0.0
    %2392 = vmatprep.subr.mxu0 0.0
    %2393 = vmatpush1.msra.mxu0 0.0
    %2394 = vmatprep.subr.mxu0 0.0
    %2395 = vmatpush1.msra.mxu0 0.0
    %2396 = vmatprep.subr.mxu0 0.0
    %2397 = vmatpush1.msra.mxu0 0.0
    %2398 = vmatprep.subr.mxu0 0.0
    %2399 = vmatpush1.msra.mxu0 0.0
    %2400 = vmatprep.subr.mxu0 0.0
    %2401 = vmatpush1.msra.mxu0 0.0
    %2402 = vmatprep.subr.mxu0 0.0
    %2403 = vmatpush1.msra.mxu0 0.0
    %2404 = vmatprep.subr.mxu0 0.0
    %2405 = vmatpush1.msra.mxu0 0.0
    %2406 = vmatprep.subr.mxu0 0.0
    %2407 = vmatpush1.msra.mxu0 0.0
    %2408 = vmatprep.subr.mxu0 0.0
    %2409 = vmatpush1.msra.mxu0 0.0
    %2410 = vmatprep.subr.mxu0 0.0
    %2411 = vmatpush1.msra.mxu0 0.0
    %2412 = vmatprep.subr.mxu0 0.0
    %2413 = vmatpush1.msra.mxu0 0.0
    %2414 = vmatprep.subr.mxu0 0.0
    %2415 = vmatpush1.msra.mxu0 0.0
    %2416 = vmatprep.subr.mxu0 0.0
    %2417 = vmatpush1.msra.mxu0 0.0
    %2418 = vmatprep.subr.mxu0 0.0
    %2419 = vmatpush1.msra.mxu0 0.0
    %2420 = vmatprep.subr.mxu0 0.0
    %2421 = vmatpush1.msra.mxu0 0.0
    %2422 = vmatprep.subr.mxu0 0.0
    %2423 = vmatpush1.msra.mxu0 0.0
    %2424 = vmatprep.subr.mxu0 0.0
    %2425 = vmatpush1.msra.mxu0 0.0
    %2426 = vmatprep.subr.mxu0 0.0
    %2427 = vmatpush1.msra.mxu0 0.0
    %2428 = vmatprep.subr.mxu0 0.0
    %2429 = vmatpush1.msra.mxu0 0.0
    %2430 = vmatprep.subr.mxu0 0.0
    %2431 = vmatpush1.msra.mxu0 0.0
    %2432 = vmatprep.subr.mxu0 0.0
    %2433 = vmatpush1.msra.mxu0 0.0
    %2434 = vmatprep.subr.mxu0 0.0
    %2435 = vmatpush1.msra.mxu0 0.0
    %2436 = vmatprep.mubr.f32.mxu0 0.0
    %2437 = vmatmul.mubr.f32.gmra.mrb[0].mxu0 %v2370
    %v2438 = vpop.f32.mrb[0].mxu0
    %v2439 = vadd.f32 0.0, %v2438
    %v2440 = vpop.f32.mrb[0].mxu0
    %2441 = vdwg.mxu0
    %v2443 = vsel %vm2222, %v2217, 0
    %2445 = vmatprep.subr.mxu0 0.0
    %2446 = vmatpush1.msra.mxu0 %v1463
    %2447 = vmatprep.subr.mxu0 0.0
    %2448 = vmatpush1.msra.mxu0 0.0
    %2449 = vmatprep.subr.mxu0 0.0
    %2450 = vmatpush1.msra.mxu0 0.0
    %2451 = vmatprep.subr.mxu0 0.0
    %2452 = vmatpush1.msra.mxu0 0.0
    %2453 = vmatprep.subr.mxu0 0.0
    %2454 = vmatpush1.msra.mxu0 0.0
    %2455 = vmatprep.subr.mxu0 0.0
    %2456 = vmatpush1.msra.mxu0 0.0
    %2457 = vmatprep.subr.mxu0 0.0
    %2458 = vmatpush1.msra.mxu0 0.0
    %2459 = vmatprep.subr.mxu0 0.0
    %2460 = vmatpush1.msra.mxu0 0.0
    %2461 = vmatprep.subr.mxu0 0.0
    %2462 = vmatpush1.msra.mxu0 0.0
    %2463 = vmatprep.subr.mxu0 0.0
    %2464 = vmatpush1.msra.mxu0 0.0
    %2465 = vmatprep.subr.mxu0 0.0
    %2466 = vmatpush1.msra.mxu0 0.0
    %2467 = vmatprep.subr.mxu0 0.0
    %2468 = vmatpush1.msra.mxu0 0.0
    %2469 = vmatprep.subr.mxu0 0.0
    %2470 = vmatpush1.msra.mxu0 0.0
    %2471 = vmatprep.subr.mxu0 0.0
    %2472 = vmatpush1.msra.mxu0 0.0
    %2473 = vmatprep.subr.mxu0 0.0
    %2474 = vmatpush1.msra.mxu0 0.0
    %2475 = vmatprep.subr.mxu0 0.0
    %2476 = vmatpush1.msra.mxu0 0.0
    %2477 = vmatprep.subr.mxu0 0.0
    %2478 = vmatpush1.msra.mxu0 0.0
    %2479 = vmatprep.subr.mxu0 0.0
    %2480 = vmatpush1.msra.mxu0 0.0
    %2481 = vmatprep.subr.mxu0 0.0
    %2482 = vmatpush1.msra.mxu0 0.0
    %2483 = vmatprep.subr.mxu0 0.0
    %2484 = vmatpush1.msra.mxu0 0.0
    %2485 = vmatprep.subr.mxu0 0.0
    %2486 = vmatpush1.msra.mxu0 0.0
    %2487 = vmatprep.subr.mxu0 0.0
    %2488 = vmatpush1.msra.mxu0 0.0
    %2489 = vmatprep.subr.mxu0 0.0
    %2490 = vmatpush1.msra.mxu0 0.0
    %2491 = vmatprep.subr.mxu0 0.0
    %2492 = vmatpush1.msra.mxu0 0.0
    %2493 = vmatprep.subr.mxu0 0.0
    %2494 = vmatpush1.msra.mxu0 0.0
    %2495 = vmatprep.subr.mxu0 0.0
    %2496 = vmatpush1.msra.mxu0 0.0
    %2497 = vmatprep.subr.mxu0 0.0
    %2498 = vmatpush1.msra.mxu0 0.0
    %2499 = vmatprep.subr.mxu0 0.0
    %2500 = vmatpush1.msra.mxu0 0.0
    %2501 = vmatprep.subr.mxu0 0.0
    %2502 = vmatpush1.msra.mxu0 0.0
    %2503 = vmatprep.subr.mxu0 0.0
    %2504 = vmatpush1.msra.mxu0 0.0
    %2505 = vmatprep.subr.mxu0 0.0
    %2506 = vmatpush1.msra.mxu0 0.0
    %2507 = vmatprep.subr.mxu0 0.0
    %2508 = vmatpush1.msra.mxu0 0.0
    %2509 = vmatprep.mubr.f32.mxu0 0.0
    %2510 = vmatmul.mubr.f32.gmra.mrb[0].mxu0 %v2443
    %v2511 = vpop.f32.mrb[0].mxu0
    %v2512 = vadd.f32 0.0, %v2511
    %v2513 = vpop.f32.mrb[0].mxu0
    %2514 = vdwg.mxu0
    %v2516 = vsel %vm2222, %v2218, 0
    %2518 = vmatprep.subr.mxu0 0.0
    %2519 = vmatpush1.msra.mxu0 %v1468
    %2520 = vmatprep.subr.mxu0 0.0
    %2521 = vmatpush1.msra.mxu0 0.0
    %2522 = vmatprep.subr.mxu0 0.0
    %2523 = vmatpush1.msra.mxu0 0.0
    %2524 = vmatprep.subr.mxu0 0.0
    %2525 = vmatpush1.msra.mxu0 0.0
    %2526 = vmatprep.subr.mxu0 0.0
    %2527 = vmatpush1.msra.mxu0 0.0
    %2528 = vmatprep.subr.mxu0 0.0
    %2529 = vmatpush1.msra.mxu0 0.0
    %2530 = vmatprep.subr.mxu0 0.0
    %2531 = vmatpush1.msra.mxu0 0.0
    %2532 = vmatprep.subr.mxu0 0.0
    %2533 = vmatpush1.msra.mxu0 0.0
    %2534 = vmatprep.subr.mxu0 0.0
    %2535 = vmatpush1.msra.mxu0 0.0
    %2536 = vmatprep.subr.mxu0 0.0
    %2537 = vmatpush1.msra.mxu0 0.0
    %2538 = vmatprep.subr.mxu0 0.0
    %2539 = vmatpush1.msra.mxu0 0.0
    %2540 = vmatprep.subr.mxu0 0.0
    %2541 = vmatpush1.msra.mxu0 0.0
    %2542 = vmatprep.subr.mxu0 0.0
    %2543 = vmatpush1.msra.mxu0 0.0
    %2544 = vmatprep.subr.mxu0 0.0
    %2545 = vmatpush1.msra.mxu0 0.0
    %2546 = vmatprep.subr.mxu0 0.0
    %2547 = vmatpush1.msra.mxu0 0.0
    %2548 = vmatprep.subr.mxu0 0.0
    %2549 = vmatpush1.msra.mxu0 0.0
    %2550 = vmatprep.subr.mxu0 0.0
    %2551 = vmatpush1.msra.mxu0 0.0
    %2552 = vmatprep.subr.mxu0 0.0
    %2553 = vmatpush1.msra.mxu0 0.0
    %2554 = vmatprep.subr.mxu0 0.0
    %2555 = vmatpush1.msra.mxu0 0.0
    %2556 = vmatprep.subr.mxu0 0.0
    %2557 = vmatpush1.msra.mxu0 0.0
    %2558 = vmatprep.subr.mxu0 0.0
    %2559 = vmatpush1.msra.mxu0 0.0
    %2560 = vmatprep.subr.mxu0 0.0
    %2561 = vmatpush1.msra.mxu0 0.0
    %2562 = vmatprep.subr.mxu0 0.0
    %2563 = vmatpush1.msra.mxu0 0.0
    %2564 = vmatprep.subr.mxu0 0.0
    %2565 = vmatpush1.msra.mxu0 0.0
    %2566 = vmatprep.subr.mxu0 0.0
    %2567 = vmatpush1.msra.mxu0 0.0
    %2568 = vmatprep.subr.mxu0 0.0
    %2569 = vmatpush1.msra.mxu0 0.0
    %2570 = vmatprep.subr.mxu0 0.0
    %2571 = vmatpush1.msra.mxu0 0.0
    %2572 = vmatprep.subr.mxu0 0.0
    %2573 = vmatpush1.msra.mxu0 0.0
    %2574 = vmatprep.subr.mxu0 0.0
    %2575 = vmatpush1.msra.mxu0 0.0
    %2576 = vmatprep.subr.mxu0 0.0
    %2577 = vmatpush1.msra.mxu0 0.0
    %2578 = vmatprep.subr.mxu0 0.0
    %2579 = vmatpush1.msra.mxu0 0.0
    %2580 = vmatprep.subr.mxu0 0.0
    %2581 = vmatpush1.msra.mxu0 0.0
    %2582 = vmatprep.mubr.f32.mxu0 0.0
    %2583 = vmatmul.mubr.f32.gmra.mrb[0].mxu0 %v2516
    %v2584 = vpop.f32.mrb[0].mxu0
    %v2585 = vadd.f32 0.0, %v2584
    %v2586 = vpop.f32.mrb[0].mxu0
    %2587 = vdwg.mxu0
    %v2589 = vsel %vm2222, %v2219, 0
    %2591 = vmatprep.subr.mxu0 0.0
    %2592 = vmatpush1.msra.mxu0 %v1471
    %2593 = vmatprep.subr.mxu0 0.0
    %2594 = vmatpush1.msra.mxu0 0.0
    %2595 = vmatprep.subr.mxu0 0.0
    %2596 = vmatpush1.msra.mxu0 0.0
    %2597 = vmatprep.subr.mxu0 0.0
    %2598 = vmatpush1.msra.mxu0 0.0
    %2599 = vmatprep.subr.mxu0 0.0
    %2600 = vmatpush1.msra.mxu0 0.0
    %2601 = vmatprep.subr.mxu0 0.0
    %2602 = vmatpush1.msra.mxu0 0.0
    %2603 = vmatprep.subr.mxu0 0.0
    %2604 = vmatpush1.msra.mxu0 0.0
    %2605 = vmatprep.subr.mxu0 0.0
    %2606 = vmatpush1.msra.mxu0 0.0
    %2607 = vmatprep.subr.mxu0 0.0
    %2608 = vmatpush1.msra.mxu0 0.0
    %2609 = vmatprep.subr.mxu0 0.0
    %2610 = vmatpush1.msra.mxu0 0.0
    %2611 = vmatprep.subr.mxu0 0.0
    %2612 = vmatpush1.msra.mxu0 0.0
    %2613 = vmatprep.subr.mxu0 0.0
    %2614 = vmatpush1.msra.mxu0 0.0
    %2615 = vmatprep.subr.mxu0 0.0
    %2616 = vmatpush1.msra.mxu0 0.0
    %2617 = vmatprep.subr.mxu0 0.0
    %2618 = vmatpush1.msra.mxu0 0.0
    %2619 = vmatprep.subr.mxu0 0.0
    %2620 = vmatpush1.msra.mxu0 0.0
    %2621 = vmatprep.subr.mxu0 0.0
    %2622 = vmatpush1.msra.mxu0 0.0
    %2623 = vmatprep.subr.mxu0 0.0
    %2624 = vmatpush1.msra.mxu0 0.0
    %2625 = vmatprep.subr.mxu0 0.0
    %2626 = vmatpush1.msra.mxu0 0.0
    %2627 = vmatprep.subr.mxu0 0.0
    %2628 = vmatpush1.msra.mxu0 0.0
    %2629 = vmatprep.subr.mxu0 0.0
    %2630 = vmatpush1.msra.mxu0 0.0
    %2631 = vmatprep.subr.mxu0 0.0
    %2632 = vmatpush1.msra.mxu0 0.0
    %2633 = vmatprep.subr.mxu0 0.0
    %2634 = vmatpush1.msra.mxu0 0.0
    %2635 = vmatprep.subr.mxu0 0.0
    %2636 = vmatpush1.msra.mxu0 0.0
    %2637 = vmatprep.subr.mxu0 0.0
    %2638 = vmatpush1.msra.mxu0 0.0
    %2639 = vmatprep.subr.mxu0 0.0
    %2640 = vmatpush1.msra.mxu0 0.0
    %2641 = vmatprep.subr.mxu0 0.0
    %2642 = vmatpush1.msra.mxu0 0.0
    %2643 = vmatprep.subr.mxu0 0.0
    %2644 = vmatpush1.msra.mxu0 0.0
    %2645 = vmatprep.subr.mxu0 0.0
    %2646 = vmatpush1.msra.mxu0 0.0
    %2647 = vmatprep.subr.mxu0 0.0
    %2648 = vmatpush1.msra.mxu0 0.0
    %2649 = vmatprep.subr.mxu0 0.0
    %2650 = vmatpush1.msra.mxu0 0.0
    %2651 = vmatprep.subr.mxu0 0.0
    %2652 = vmatpush1.msra.mxu0 0.0
    %2653 = vmatprep.subr.mxu0 0.0
    %2654 = vmatpush1.msra.mxu0 0.0
    %2655 = vmatprep.mubr.f32.mxu0 0.0
    %2656 = vmatmul.mubr.f32.gmra.mrb[0].mxu0 %v2589
    %v2657 = vpop.f32.mrb[0].mxu0
    %v2658 = vadd.f32 0.0, %v2657
    %v2659 = vpop.f32.mrb[0].mxu0
    %2660 = vdwg.mxu0
    %v2662 = vsel %vm2222, %v2220, 0
    %2664 = vmatprep.subr.mxu0 0.0
    %2665 = vmatpush1.msra.mxu0 %v1476
    %2666 = vmatprep.subr.mxu0 0.0
    %2667 = vmatpush1.msra.mxu0 0.0
    %2668 = vmatprep.subr.mxu0 0.0
    %2669 = vmatpush1.msra.mxu0 0.0
    %2670 = vmatprep.subr.mxu0 0.0
    %2671 = vmatpush1.msra.mxu0 0.0
    %2672 = vmatprep.subr.mxu0 0.0
    %2673 = vmatpush1.msra.mxu0 0.0
    %2674 = vmatprep.subr.mxu0 0.0
    %2675 = vmatpush1.msra.mxu0 0.0
    %2676 = vmatprep.subr.mxu0 0.0
    %2677 = vmatpush1.msra.mxu0 0.0
    %2678 = vmatprep.subr.mxu0 0.0
    %2679 = vmatpush1.msra.mxu0 0.0
    %2680 = vmatprep.subr.mxu0 0.0
    %2681 = vmatpush1.msra.mxu0 0.0
    %2682 = vmatprep.subr.mxu0 0.0
    %2683 = vmatpush1.msra.mxu0 0.0
    %2684 = vmatprep.subr.mxu0 0.0
    %2685 = vmatpush1.msra.mxu0 0.0
    %2686 = vmatprep.subr.mxu0 0.0
    %2687 = vmatpush1.msra.mxu0 0.0
    %2688 = vmatprep.subr.mxu0 0.0
    %2689 = vmatpush1.msra.mxu0 0.0
    %2690 = vmatprep.subr.mxu0 0.0
    %2691 = vmatpush1.msra.mxu0 0.0
    %2692 = vmatprep.subr.mxu0 0.0
    %2693 = vmatpush1.msra.mxu0 0.0
    %2694 = vmatprep.subr.mxu0 0.0
    %2695 = vmatpush1.msra.mxu0 0.0
    %2696 = vmatprep.subr.mxu0 0.0
    %2697 = vmatpush1.msra.mxu0 0.0
    %2698 = vmatprep.subr.mxu0 0.0
    %2699 = vmatpush1.msra.mxu0 0.0
    %2700 = vmatprep.subr.mxu0 0.0
    %2701 = vmatpush1.msra.mxu0 0.0
    %2702 = vmatprep.subr.mxu0 0.0
    %2703 = vmatpush1.msra.mxu0 0.0
    %2704 = vmatprep.subr.mxu0 0.0
    %2705 = vmatpush1.msra.mxu0 0.0
    %2706 = vmatprep.subr.mxu0 0.0
    %2707 = vmatpush1.msra.mxu0 0.0
    %2708 = vmatprep.subr.mxu0 0.0
    %2709 = vmatpush1.msra.mxu0 0.0
    %2710 = vmatprep.subr.mxu0 0.0
    %2711 = vmatpush1.msra.mxu0 0.0
    %2712 = vmatprep.subr.mxu0 0.0
    %2713 = vmatpush1.msra.mxu0 0.0
    %2714 = vmatprep.subr.mxu0 0.0
    %2715 = vmatpush1.msra.mxu0 0.0
    %2716 = vmatprep.subr.mxu0 0.0
    %2717 = vmatpush1.msra.mxu0 0.0
    %2718 = vmatprep.subr.mxu0 0.0
    %2719 = vmatpush1.msra.mxu0 0.0
    %2720 = vmatprep.subr.mxu0 0.0
    %2721 = vmatpush1.msra.mxu0 0.0
    %2722 = vmatprep.subr.mxu0 0.0
    %2723 = vmatpush1.msra.mxu0 0.0
    %2724 = vmatprep.subr.mxu0 0.0
    %2725 = vmatpush1.msra.mxu0 0.0
    %2726 = vmatprep.subr.mxu0 0.0
    %2727 = vmatpush1.msra.mxu0 0.0
    %2728 = vmatprep.mubr.f32.mxu0 0.0
    %2729 = vmatmul.mubr.f32.gmra.mrb[0].mxu0 %v2662
    %v2730 = vpop.f32.mrb[0].mxu0
    %v2731 = vadd.f32 0.0, %v2730
    %v2732 = vpop.f32.mrb[0].mxu0
    %2733 = vdwg.mxu0
    %v2735 = vsel %vm2222, %v2221, 0
    %2737 = vmatprep.subr.mxu0 0.0
    %2738 = vmatpush1.msra.mxu0 %v1479
    %2739 = vmatprep.subr.mxu0 0.0
    %2740 = vmatpush1.msra.mxu0 0.0
    %2741 = vmatprep.subr.mxu0 0.0
    %2742 = vmatpush1.msra.mxu0 0.0
    %2743 = vmatprep.subr.mxu0 0.0
    %2744 = vmatpush1.msra.mxu0 0.0
    %2745 = vmatprep.subr.mxu0 0.0
    %2746 = vmatpush1.msra.mxu0 0.0
    %2747 = vmatprep.subr.mxu0 0.0
    %2748 = vmatpush1.msra.mxu0 0.0
    %2749 = vmatprep.subr.mxu0 0.0
    %2750 = vmatpush1.msra.mxu0 0.0
    %2751 = vmatprep.subr.mxu0 0.0
    %2752 = vmatpush1.msra.mxu0 0.0
    %2753 = vmatprep.subr.mxu0 0.0
    %2754 = vmatpush1.msra.mxu0 0.0
    %2755 = vmatprep.subr.mxu0 0.0
    %2756 = vmatpush1.msra.mxu0 0.0
    %2757 = vmatprep.subr.mxu0 0.0
    %2758 = vmatpush1.msra.mxu0 0.0
    %2759 = vmatprep.subr.mxu0 0.0
    %2760 = vmatpush1.msra.mxu0 0.0
    %2761 = vmatprep.subr.mxu0 0.0
    %2762 = vmatpush1.msra.mxu0 0.0
    %2763 = vmatprep.subr.mxu0 0.0
    %2764 = vmatpush1.msra.mxu0 0.0
    %2765 = vmatprep.subr.mxu0 0.0
    %2766 = vmatpush1.msra.mxu0 0.0
    %2767 = vmatprep.subr.mxu0 0.0
    %2768 = vmatpush1.msra.mxu0 0.0
    %2769 = vmatprep.subr.mxu0 0.0
    %2770 = vmatpush1.msra.mxu0 0.0
    %2771 = vmatprep.subr.mxu0 0.0
    %2772 = vmatpush1.msra.mxu0 0.0
    %2773 = vmatprep.subr.mxu0 0.0
    %2774 = vmatpush1.msra.mxu0 0.0
    %2775 = vmatprep.subr.mxu0 0.0
    %2776 = vmatpush1.msra.mxu0 0.0
    %2777 = vmatprep.subr.mxu0 0.0
    %2778 = vmatpush1.msra.mxu0 0.0
    %2779 = vmatprep.subr.mxu0 0.0
    %2780 = vmatpush1.msra.mxu0 0.0
    %2781 = vmatprep.subr.mxu0 0.0
    %2782 = vmatpush1.msra.mxu0 0.0
    %2783 = vmatprep.subr.mxu0 0.0
    %2784 = vmatpush1.msra.mxu0 0.0
    %2785 = vmatprep.subr.mxu0 0.0
    %2786 = vmatpush1.msra.mxu0 0.0
    %2787 = vmatprep.subr.mxu0 0.0
    %2788 = vmatpush1.msra.mxu0 0.0
    %2789 = vmatprep.subr.mxu0 0.0
    %2790 = vmatpush1.msra.mxu0 0.0
    %2791 = vmatprep.subr.mxu0 0.0
    %2792 = vmatpush1.msra.mxu0 0.0
    %2793 = vmatprep.subr.mxu0 0.0
    %2794 = vmatpush1.msra.mxu0 0.0
    %2795 = vmatprep.subr.mxu0 0.0
    %2796 = vmatpush1.msra.mxu0 0.0
    %2797 = vmatprep.subr.mxu0 0.0
    %2798 = vmatpush1.msra.mxu0 0.0
    %2799 = vmatprep.subr.mxu0 0.0
    %2800 = vmatpush1.msra.mxu0 0.0
    %2801 = vmatprep.mubr.f32.mxu0 0.0
    %2802 = vmatmul.mubr.f32.gmra.mrb[0].mxu0 %v2735
    %v2803 = vpop.f32.mrb[0].mxu0
    %v2804 = vadd.f32 0.0, %v2803
    %v2805 = vpop.f32.mrb[0].mxu0
    %2806 = vdwg.mxu0
    %v2807 = vadd.f32 %v2214, 0.0
    %v2808 = vadd.f32 %v2215, 0.0
    %v2809 = vadd.f32 %v2216, 0.0
    %v2810 = vadd.f32 %v2217, 0.0
    %v2811 = vadd.f32 %v2218, 0.0
    %v2812 = vadd.f32 %v2219, 0.0
    %v2813 = vadd.f32 %v2220, 0.0
    %v2814 = vadd.f32 %v2221, 0.0
    %v2815 = vlaneseq
    %v2816 = vshrl.u32 %v2815, 7
    %v2817 = vsub.s32 0, %v2816
    %v2818 = vrot.slane %v1506, %v2817
    %2819 = vrot.lane.b32.xlu0 %v2818, 96
    %v2820 = vpop.permute.xlu0 %2819
    %2821 = vrot.lane.b32.xlu0 %v1316, 96
    %v2822 = vpop.permute.xlu0 %2821
    %v2823 = vsel %vm1532, %v2820, 0
    %v2825 = vsel %vm1532, %v2822, 0
    %2827 = vmatprep.subr.mxu0 0.0
    %2828 = vmatpush1.xpose.msra.mxu0 %v2825
    %2829 = vmatprep.subr.mxu0 0.0
    %2830 = vmatpush1.xpose.msra.mxu0 0.0
    %2831 = vmatprep.subr.mxu0 0.0
    %2832 = vmatpush1.xpose.msra.mxu0 0.0
    %2833 = vmatprep.subr.mxu0 0.0
    %2834 = vmatpush1.xpose.msra.mxu0 0.0
    %2835 = vmatprep.subr.mxu0 0.0
    %2836 = vmatpush1.xpose.msra.mxu0 0.0
    %2837 = vmatprep.subr.mxu0 0.0
    %2838 = vmatpush1.xpose.msra.mxu0 0.0
    %2839 = vmatprep.subr.mxu0 0.0
    %2840 = vmatpush1.xpose.msra.mxu0 0.0
    %2841 = vmatprep.subr.mxu0 0.0
    %2842 = vmatpush1.xpose.msra.mxu0 0.0
    %2843 = vmatprep.subr.mxu0 0.0
    %2844 = vmatpush1.xpose.msra.mxu0 0.0
    %2845 = vmatprep.subr.mxu0 0.0
    %2846 = vmatpush1.xpose.msra.mxu0 0.0
    %2847 = vmatprep.subr.mxu0 0.0
    %2848 = vmatpush1.xpose.msra.mxu0 0.0
    %2849 = vmatprep.subr.mxu0 0.0
    %2850 = vmatpush1.xpose.msra.mxu0 0.0
    %2851 = vmatprep.subr.mxu0 0.0
    %2852 = vmatpush1.xpose.msra.mxu0 0.0
    %2853 = vmatprep.subr.mxu0 0.0
    %2854 = vmatpush1.xpose.msra.mxu0 0.0
    %2855 = vmatprep.subr.mxu0 0.0
    %2856 = vmatpush1.xpose.msra.mxu0 0.0
    %2857 = vmatprep.subr.mxu0 0.0
    %2858 = vmatpush1.xpose.msra.mxu0 0.0
    %2859 = vmatprep.subr.mxu0 0.0
    %2860 = vmatpush1.xpose.msra.mxu0 0.0
    %2861 = vmatprep.subr.mxu0 0.0
    %2862 = vmatpush1.xpose.msra.mxu0 0.0
    %2863 = vmatprep.subr.mxu0 0.0
    %2864 = vmatpush1.xpose.msra.mxu0 0.0
    %2865 = vmatprep.subr.mxu0 0.0
    %2866 = vmatpush1.xpose.msra.mxu0 0.0
    %2867 = vmatprep.subr.mxu0 0.0
    %2868 = vmatpush1.xpose.msra.mxu0 0.0
    %2869 = vmatprep.subr.mxu0 0.0
    %2870 = vmatpush1.xpose.msra.mxu0 0.0
    %2871 = vmatprep.subr.mxu0 0.0
    %2872 = vmatpush1.xpose.msra.mxu0 0.0
    %2873 = vmatprep.subr.mxu0 0.0
    %2874 = vmatpush1.xpose.msra.mxu0 0.0
    %2875 = vmatprep.subr.mxu0 0.0
    %2876 = vmatpush1.xpose.msra.mxu0 0.0
    %2877 = vmatprep.subr.mxu0 0.0
    %2878 = vmatpush1.xpose.msra.mxu0 0.0
    %2879 = vmatprep.subr.mxu0 0.0
    %2880 = vmatpush1.xpose.msra.mxu0 0.0
    %2881 = vmatprep.subr.mxu0 0.0
    %2882 = vmatpush1.xpose.msra.mxu0 0.0
    %2883 = vmatprep.subr.mxu0 0.0
    %2884 = vmatpush1.xpose.msra.mxu0 0.0
    %2885 = vmatprep.subr.mxu0 0.0
    %2886 = vmatpush1.xpose.msra.mxu0 0.0
    %2887 = vmatprep.subr.mxu0 0.0
    %2888 = vmatpush1.xpose.msra.mxu0 0.0
    %2889 = vmatprep.subr.mxu0 0.0
    %2890 = vmatpush1.xpose.msra.mxu0 0.0
    %2891 = vmatprep.mubr.f32.mxu0 0.0
    %2892 = vmatmul.mubr.f32.gmra.mrb[0].mxu0 %v2823
    %v2893 = vpop.f32.mrb[0].mxu0
    %v2894 = vadd.f32 0.0, %v2893
    %v2895 = vpop.f32.mrb[0].mxu0
    %2896 = vdwg.mxu0
    %v2897 = vlaneseq
    %v2898 = vshrl.u32 %v2897, 7
    %v2899 = vsub.s32 0, %v2898
    %v2900 = vrot.slane %v1520, %v2899
    %2901 = vrot.lane.b32.xlu0 %v2900, 96
    %v2902 = vpop.permute.xlu0 %2901
    %2903 = vrot.lane.b32.xlu0 %v1319, 96
    %v2904 = vpop.permute.xlu0 %2903
    %v2905 = vsel %vm1532, %v2902, 0
    %v2907 = vsel %vm1532, %v2904, 0
    %2909 = vmatprep.subr.mxu0 0.0
    %2910 = vmatpush1.xpose.msra.mxu0 %v2907
    %2911 = vmatprep.subr.mxu0 0.0
    %2912 = vmatpush1.xpose.msra.mxu0 0.0
    %2913 = vmatprep.subr.mxu0 0.0
    %2914 = vmatpush1.xpose.msra.mxu0 0.0
    %2915 = vmatprep.subr.mxu0 0.0
    %2916 = vmatpush1.xpose.msra.mxu0 0.0
    %2917 = vmatprep.subr.mxu0 0.0
    %2918 = vmatpush1.xpose.msra.mxu0 0.0
    %2919 = vmatprep.subr.mxu0 0.0
    %2920 = vmatpush1.xpose.msra.mxu0 0.0
    %2921 = vmatprep.subr.mxu0 0.0
    %2922 = vmatpush1.xpose.msra.mxu0 0.0
    %2923 = vmatprep.subr.mxu0 0.0
    %2924 = vmatpush1.xpose.msra.mxu0 0.0
    %2925 = vmatprep.subr.mxu0 0.0
    %2926 = vmatpush1.xpose.msra.mxu0 0.0
    %2927 = vmatprep.subr.mxu0 0.0
    %2928 = vmatpush1.xpose.msra.mxu0 0.0
    %2929 = vmatprep.subr.mxu0 0.0
    %2930 = vmatpush1.xpose.msra.mxu0 0.0
    %2931 = vmatprep.subr.mxu0 0.0
    %2932 = vmatpush1.xpose.msra.mxu0 0.0
    %2933 = vmatprep.subr.mxu0 0.0
    %2934 = vmatpush1.xpose.msra.mxu0 0.0
    %2935 = vmatprep.subr.mxu0 0.0
    %2936 = vmatpush1.xpose.msra.mxu0 0.0
    %2937 = vmatprep.subr.mxu0 0.0
    %2938 = vmatpush1.xpose.msra.mxu0 0.0
    %2939 = vmatprep.subr.mxu0 0.0
    %2940 = vmatpush1.xpose.msra.mxu0 0.0
    %2941 = vmatprep.subr.mxu0 0.0
    %2942 = vmatpush1.xpose.msra.mxu0 0.0
    %2943 = vmatprep.subr.mxu0 0.0
    %2944 = vmatpush1.xpose.msra.mxu0 0.0
    %2945 = vmatprep.subr.mxu0 0.0
    %2946 = vmatpush1.xpose.msra.mxu0 0.0
    %2947 = vmatprep.subr.mxu0 0.0
    %2948 = vmatpush1.xpose.msra.mxu0 0.0
    %2949 = vmatprep.subr.mxu0 0.0
    %2950 = vmatpush1.xpose.msra.mxu0 0.0
    %2951 = vmatprep.subr.mxu0 0.0
    %2952 = vmatpush1.xpose.msra.mxu0 0.0
    %2953 = vmatprep.subr.mxu0 0.0
    %2954 = vmatpush1.xpose.msra.mxu0 0.0
    %2955 = vmatprep.subr.mxu0 0.0
    %2956 = vmatpush1.xpose.msra.mxu0 0.0
    %2957 = vmatprep.subr.mxu0 0.0
    %2958 = vmatpush1.xpose.msra.mxu0 0.0
    %2959 = vmatprep.subr.mxu0 0.0
    %2960 = vmatpush1.xpose.msra.mxu0 0.0
    %2961 = vmatprep.subr.mxu0 0.0
    %2962 = vmatpush1.xpose.msra.mxu0 0.0
    %2963 = vmatprep.subr.mxu0 0.0
    %2964 = vmatpush1.xpose.msra.mxu0 0.0
    %2965 = vmatprep.subr.mxu0 0.0
    %2966 = vmatpush1.xpose.msra.mxu0 0.0
    %2967 = vmatprep.subr.mxu0 0.0
    %2968 = vmatpush1.xpose.msra.mxu0 0.0
    %2969 = vmatprep.subr.mxu0 0.0
    %2970 = vmatpush1.xpose.msra.mxu0 0.0
    %2971 = vmatprep.subr.mxu0 0.0
    %2972 = vmatpush1.xpose.msra.mxu0 0.0
    %2973 = vmatprep.mubr.f32.mxu0 0.0
    %2974 = vmatmul.mubr.f32.gmra.mrb[0].mxu0 %v2905
    %v2975 = vpop.f32.mrb[0].mxu0
    %v2976 = vadd.f32 0.0, %v2975
    %v2977 = vpop.f32.mrb[0].mxu0
    %2978 = vdwg.mxu0
    %v2979 = vlaneseq
    %v2980 = vshrl.u32 %v2979, 7
    %v2981 = vsub.s32 0, %v2980
    %v2982 = vrot.slane %v1528, %v2981
    %2983 = vrot.lane.b32.xlu0 %v2982, 96
    %v2984 = vpop.permute.xlu0 %2983
    %2985 = vrot.lane.b32.xlu0 %v1324, 96
    %v2986 = vpop.permute.xlu0 %2985
    %v2987 = vsel %vm1532, %v2984, 0
    %v2989 = vsel %vm1532, %v2986, 0
    %2991 = vmatprep.subr.mxu0 0.0
    %2992 = vmatpush1.xpose.msra.mxu0 %v2989
    %2993 = vmatprep.subr.mxu0 0.0
    %2994 = vmatpush1.xpose.msra.mxu0 0.0
    %2995 = vmatprep.subr.mxu0 0.0
    %2996 = vmatpush1.xpose.msra.mxu0 0.0
    %2997 = vmatprep.subr.mxu0 0.0
    %2998 = vmatpush1.xpose.msra.mxu0 0.0
    %2999 = vmatprep.subr.mxu0 0.0
    %3000 = vmatpush1.xpose.msra.mxu0 0.0
    %3001 = vmatprep.subr.mxu0 0.0
    %3002 = vmatpush1.xpose.msra.mxu0 0.0
    %3003 = vmatprep.subr.mxu0 0.0
    %3004 = vmatpush1.xpose.msra.mxu0 0.0
    %3005 = vmatprep.subr.mxu0 0.0
    %3006 = vmatpush1.xpose.msra.mxu0 0.0
    %3007 = vmatprep.subr.mxu0 0.0
    %3008 = vmatpush1.xpose.msra.mxu0 0.0
    %3009 = vmatprep.subr.mxu0 0.0
    %3010 = vmatpush1.xpose.msra.mxu0 0.0
    %3011 = vmatprep.subr.mxu0 0.0
    %3012 = vmatpush1.xpose.msra.mxu0 0.0
    %3013 = vmatprep.subr.mxu0 0.0
    %3014 = vmatpush1.xpose.msra.mxu0 0.0
    %3015 = vmatprep.subr.mxu0 0.0
    %3016 = vmatpush1.xpose.msra.mxu0 0.0
    %3017 = vmatprep.subr.mxu0 0.0
    %3018 = vmatpush1.xpose.msra.mxu0 0.0
    %3019 = vmatprep.subr.mxu0 0.0
    %3020 = vmatpush1.xpose.msra.mxu0 0.0
    %3021 = vmatprep.subr.mxu0 0.0
    %3022 = vmatpush1.xpose.msra.mxu0 0.0
    %3023 = vmatprep.subr.mxu0 0.0
    %3024 = vmatpush1.xpose.msra.mxu0 0.0
    %3025 = vmatprep.subr.mxu0 0.0
    %3026 = vmatpush1.xpose.msra.mxu0 0.0
    %3027 = vmatprep.subr.mxu0 0.0
    %3028 = vmatpush1.xpose.msra.mxu0 0.0
    %3029 = vmatprep.subr.mxu0 0.0
    %3030 = vmatpush1.xpose.msra.mxu0 0.0
    %3031 = vmatprep.subr.mxu0 0.0
    %3032 = vmatpush1.xpose.msra.mxu0 0.0
    %3033 = vmatprep.subr.mxu0 0.0
    %3034 = vmatpush1.xpose.msra.mxu0 0.0
    %3035 = vmatprep.subr.mxu0 0.0
    %3036 = vmatpush1.xpose.msra.mxu0 0.0
    %3037 = vmatprep.subr.mxu0 0.0
    %3038 = vmatpush1.xpose.msra.mxu0 0.0
    %3039 = vmatprep.subr.mxu0 0.0
    %3040 = vmatpush1.xpose.msra.mxu0 0.0
    %3041 = vmatprep.subr.mxu0 0.0
    %3042 = vmatpush1.xpose.msra.mxu0 0.0
    %3043 = vmatprep.subr.mxu0 0.0
    %3044 = vmatpush1.xpose.msra.mxu0 0.0
    %3045 = vmatprep.subr.mxu0 0.0
    %3046 = vmatpush1.xpose.msra.mxu0 0.0
    %3047 = vmatprep.subr.mxu0 0.0
    %3048 = vmatpush1.xpose.msra.mxu0 0.0
    %3049 = vmatprep.subr.mxu0 0.0
    %3050 = vmatpush1.xpose.msra.mxu0 0.0
    %3051 = vmatprep.subr.mxu0 0.0
    %3052 = vmatpush1.xpose.msra.mxu0 0.0
    %3053 = vmatprep.subr.mxu0 0.0
    %3054 = vmatpush1.xpose.msra.mxu0 0.0
    %3055 = vmatprep.mubr.f32.mxu0 0.0
    %3056 = vmatmul.mubr.f32.gmra.mrb[0].mxu0 %v2987
    %v3057 = vpop.f32.mrb[0].mxu0
    %v3058 = vadd.f32 0.0, %v3057
    %v3059 = vpop.f32.mrb[0].mxu0
    %3060 = vdwg.mxu0
    %v3061 = vlaneseq
    %v3062 = vshrl.u32 %v3061, 7
    %v3063 = vsub.s32 0, %v3062
    %v3064 = vrot.slane %v1530, %v3063
    %3065 = vrot.lane.b32.xlu0 %v3064, 96
    %v3066 = vpop.permute.xlu0 %3065
    %3067 = vrot.lane.b32.xlu0 %v1327, 96
    %v3068 = vpop.permute.xlu0 %3067
    %v3069 = vsel %vm1532, %v3066, 0
    %v3071 = vsel %vm1532, %v3068, 0
    %3073 = vmatprep.subr.mxu0 0.0
    %3074 = vmatpush1.xpose.msra.mxu0 %v3071
    %3075 = vmatprep.subr.mxu0 0.0
    %3076 = vmatpush1.xpose.msra.mxu0 0.0
    %3077 = vmatprep.subr.mxu0 0.0
    %3078 = vmatpush1.xpose.msra.mxu0 0.0
    %3079 = vmatprep.subr.mxu0 0.0
    %3080 = vmatpush1.xpose.msra.mxu0 0.0
    %3081 = vmatprep.subr.mxu0 0.0
    %3082 = vmatpush1.xpose.msra.mxu0 0.0
    %3083 = vmatprep.subr.mxu0 0.0
    %3084 = vmatpush1.xpose.msra.mxu0 0.0
    %3085 = vmatprep.subr.mxu0 0.0
    %3086 = vmatpush1.xpose.msra.mxu0 0.0
    %3087 = vmatprep.subr.mxu0 0.0
    %3088 = vmatpush1.xpose.msra.mxu0 0.0
    %3089 = vmatprep.subr.mxu0 0.0
    %3090 = vmatpush1.xpose.msra.mxu0 0.0
    %3091 = vmatprep.subr.mxu0 0.0
    %3092 = vmatpush1.xpose.msra.mxu0 0.0
    %3093 = vmatprep.subr.mxu0 0.0
    %3094 = vmatpush1.xpose.msra.mxu0 0.0
    %3095 = vmatprep.subr.mxu0 0.0
    %3096 = vmatpush1.xpose.msra.mxu0 0.0
    %3097 = vmatprep.subr.mxu0 0.0
    %3098 = vmatpush1.xpose.msra.mxu0 0.0
    %3099 = vmatprep.subr.mxu0 0.0
    %3100 = vmatpush1.xpose.msra.mxu0 0.0
    %3101 = vmatprep.subr.mxu0 0.0
    %3102 = vmatpush1.xpose.msra.mxu0 0.0
    %3103 = vmatprep.subr.mxu0 0.0
    %3104 = vmatpush1.xpose.msra.mxu0 0.0
    %3105 = vmatprep.subr.mxu0 0.0
    %3106 = vmatpush1.xpose.msra.mxu0 0.0
    %3107 = vmatprep.subr.mxu0 0.0
    %3108 = vmatpush1.xpose.msra.mxu0 0.0
    %3109 = vmatprep.subr.mxu0 0.0
    %3110 = vmatpush1.xpose.msra.mxu0 0.0
    %3111 = vmatprep.subr.mxu0 0.0
    %3112 = vmatpush1.xpose.msra.mxu0 0.0
    %3113 = vmatprep.subr.mxu0 0.0
    %3114 = vmatpush1.xpose.msra.mxu0 0.0
    %3115 = vmatprep.subr.mxu0 0.0
    %3116 = vmatpush1.xpose.msra.mxu0 0.0
    %3117 = vmatprep.subr.mxu0 0.0
    %3118 = vmatpush1.xpose.msra.mxu0 0.0
    %3119 = vmatprep.subr.mxu0 0.0
    %3120 = vmatpush1.xpose.msra.mxu0 0.0
    %3121 = vmatprep.subr.mxu0 0.0
    %3122 = vmatpush1.xpose.msra.mxu0 0.0
    %3123 = vmatprep.subr.mxu0 0.0
    %3124 = vmatpush1.xpose.msra.mxu0 0.0
    %3125 = vmatprep.subr.mxu0 0.0
    %3126 = vmatpush1.xpose.msra.mxu0 0.0
    %3127 = vmatprep.subr.mxu0 0.0
    %3128 = vmatpush1.xpose.msra.mxu0 0.0
    %3129 = vmatprep.subr.mxu0 0.0
    %3130 = vmatpush1.xpose.msra.mxu0 0.0
    %3131 = vmatprep.subr.mxu0 0.0
    %3132 = vmatpush1.xpose.msra.mxu0 0.0
    %3133 = vmatprep.subr.mxu0 0.0
    %3134 = vmatpush1.xpose.msra.mxu0 0.0
    %3135 = vmatprep.subr.mxu0 0.0
    %3136 = vmatpush1.xpose.msra.mxu0 0.0
    %3137 = vmatprep.mubr.f32.mxu0 0.0
    %3138 = vmatmul.mubr.f32.gmra.mrb[0].mxu0 %v3069
    %v3139 = vpop.f32.mrb[0].mxu0
    %v3140 = vadd.f32 0.0, %v3139
    %v3141 = vpop.f32.mrb[0].mxu0
    %3142 = vdwg.mxu0
    %v3143 = vlaneseq
    %v3144 = vshrl.u32 %v3143, 7
    %v3145 = vsub.s32 0, %v3144
    %v3146 = vrot.slane %v1513, %v3145
    %3147 = vrot.lane.b32.xlu0 %v3146, 96
    %v3148 = vpop.permute.xlu0 %3147
    %3149 = vrot.lane.b32.xlu0 %v1332, 96
    %v3150 = vpop.permute.xlu0 %3149
    %v3151 = vsel %vm1532, %v3148, 0
    %v3153 = vsel %vm1532, %v3150, 0
    %3155 = vmatprep.subr.mxu0 0.0
    %3156 = vmatpush1.xpose.msra.mxu0 %v3153
    %3157 = vmatprep.subr.mxu0 0.0
    %3158 = vmatpush1.xpose.msra.mxu0 0.0
    %3159 = vmatprep.subr.mxu0 0.0
    %3160 = vmatpush1.xpose.msra.mxu0 0.0
    %3161 = vmatprep.subr.mxu0 0.0
    %3162 = vmatpush1.xpose.msra.mxu0 0.0
    %3163 = vmatprep.subr.mxu0 0.0
    %3164 = vmatpush1.xpose.msra.mxu0 0.0
    %3165 = vmatprep.subr.mxu0 0.0
    %3166 = vmatpush1.xpose.msra.mxu0 0.0
    %3167 = vmatprep.subr.mxu0 0.0
    %3168 = vmatpush1.xpose.msra.mxu0 0.0
    %3169 = vmatprep.subr.mxu0 0.0
    %3170 = vmatpush1.xpose.msra.mxu0 0.0
    %3171 = vmatprep.subr.mxu0 0.0
    %3172 = vmatpush1.xpose.msra.mxu0 0.0
    %3173 = vmatprep.subr.mxu0 0.0
    %3174 = vmatpush1.xpose.msra.mxu0 0.0
    %3175 = vmatprep.subr.mxu0 0.0
    %3176 = vmatpush1.xpose.msra.mxu0 0.0
    %3177 = vmatprep.subr.mxu0 0.0
    %3178 = vmatpush1.xpose.msra.mxu0 0.0
    %3179 = vmatprep.subr.mxu0 0.0
    %3180 = vmatpush1.xpose.msra.mxu0 0.0
    %3181 = vmatprep.subr.mxu0 0.0
    %3182 = vmatpush1.xpose.msra.mxu0 0.0
    %3183 = vmatprep.subr.mxu0 0.0
    %3184 = vmatpush1.xpose.msra.mxu0 0.0
    %3185 = vmatprep.subr.mxu0 0.0
    %3186 = vmatpush1.xpose.msra.mxu0 0.0
    %3187 = vmatprep.subr.mxu0 0.0
    %3188 = vmatpush1.xpose.msra.mxu0 0.0
    %3189 = vmatprep.subr.mxu0 0.0
    %3190 = vmatpush1.xpose.msra.mxu0 0.0
    %3191 = vmatprep.subr.mxu0 0.0
    %3192 = vmatpush1.xpose.msra.mxu0 0.0
    %3193 = vmatprep.subr.mxu0 0.0
    %3194 = vmatpush1.xpose.msra.mxu0 0.0
    %3195 = vmatprep.subr.mxu0 0.0
    %3196 = vmatpush1.xpose.msra.mxu0 0.0
    %3197 = vmatprep.subr.mxu0 0.0
    %3198 = vmatpush1.xpose.msra.mxu0 0.0
    %3199 = vmatprep.subr.mxu0 0.0
    %3200 = vmatpush1.xpose.msra.mxu0 0.0
    %3201 = vmatprep.subr.mxu0 0.0
    %3202 = vmatpush1.xpose.msra.mxu0 0.0
    %3203 = vmatprep.subr.mxu0 0.0
    %3204 = vmatpush1.xpose.msra.mxu0 0.0
    %3205 = vmatprep.subr.mxu0 0.0
    %3206 = vmatpush1.xpose.msra.mxu0 0.0
    %3207 = vmatprep.subr.mxu0 0.0
    %3208 = vmatpush1.xpose.msra.mxu0 0.0
    %3209 = vmatprep.subr.mxu0 0.0
    %3210 = vmatpush1.xpose.msra.mxu0 0.0
    %3211 = vmatprep.subr.mxu0 0.0
    %3212 = vmatpush1.xpose.msra.mxu0 0.0
    %3213 = vmatprep.subr.mxu0 0.0
    %3214 = vmatpush1.xpose.msra.mxu0 0.0
    %3215 = vmatprep.subr.mxu0 0.0
    %3216 = vmatpush1.xpose.msra.mxu0 0.0
    %3217 = vmatprep.subr.mxu0 0.0
    %3218 = vmatpush1.xpose.msra.mxu0 0.0
    %3219 = vmatprep.mubr.f32.mxu0 0.0
    %3220 = vmatmul.mubr.f32.gmra.mrb[0].mxu0 %v3151
    %v3221 = vpop.f32.mrb[0].mxu0
    %v3222 = vadd.f32 0.0, %v3221
    %v3223 = vpop.f32.mrb[0].mxu0
    %3224 = vdwg.mxu0
    %v3225 = vlaneseq
    %v3226 = vshrl.u32 %v3225, 7
    %v3227 = vsub.s32 0, %v3226
    %v3228 = vrot.slane %v1527, %v3227
    %3229 = vrot.lane.b32.xlu0 %v3228, 96
    %v3230 = vpop.permute.xlu0 %3229
    %3231 = vrot.lane.b32.xlu0 %v1335, 96
    %v3232 = vpop.permute.xlu0 %3231
    %v3233 = vsel %vm1532, %v3230, 0
    %v3235 = vsel %vm1532, %v3232, 0
    %3237 = vmatprep.subr.mxu0 0.0
    %3238 = vmatpush1.xpose.msra.mxu0 %v3235
    %3239 = vmatprep.subr.mxu0 0.0
    %3240 = vmatpush1.xpose.msra.mxu0 0.0
    %3241 = vmatprep.subr.mxu0 0.0
    %3242 = vmatpush1.xpose.msra.mxu0 0.0
    %3243 = vmatprep.subr.mxu0 0.0
    %3244 = vmatpush1.xpose.msra.mxu0 0.0
    %3245 = vmatprep.subr.mxu0 0.0
    %3246 = vmatpush1.xpose.msra.mxu0 0.0
    %3247 = vmatprep.subr.mxu0 0.0
    %3248 = vmatpush1.xpose.msra.mxu0 0.0
    %3249 = vmatprep.subr.mxu0 0.0
    %3250 = vmatpush1.xpose.msra.mxu0 0.0
    %3251 = vmatprep.subr.mxu0 0.0
    %3252 = vmatpush1.xpose.msra.mxu0 0.0
    %3253 = vmatprep.subr.mxu0 0.0
    %3254 = vmatpush1.xpose.msra.mxu0 0.0
    %3255 = vmatprep.subr.mxu0 0.0
    %3256 = vmatpush1.xpose.msra.mxu0 0.0
    %3257 = vmatprep.subr.mxu0 0.0
    %3258 = vmatpush1.xpose.msra.mxu0 0.0
    %3259 = vmatprep.subr.mxu0 0.0
    %3260 = vmatpush1.xpose.msra.mxu0 0.0
    %3261 = vmatprep.subr.mxu0 0.0
    %3262 = vmatpush1.xpose.msra.mxu0 0.0
    %3263 = vmatprep.subr.mxu0 0.0
    %3264 = vmatpush1.xpose.msra.mxu0 0.0
    %3265 = vmatprep.subr.mxu0 0.0
    %3266 = vmatpush1.xpose.msra.mxu0 0.0
    %3267 = vmatprep.subr.mxu0 0.0
    %3268 = vmatpush1.xpose.msra.mxu0 0.0
    %3269 = vmatprep.subr.mxu0 0.0
    %3270 = vmatpush1.xpose.msra.mxu0 0.0
    %3271 = vmatprep.subr.mxu0 0.0
    %3272 = vmatpush1.xpose.msra.mxu0 0.0
    %3273 = vmatprep.subr.mxu0 0.0
    %3274 = vmatpush1.xpose.msra.mxu0 0.0
    %3275 = vmatprep.subr.mxu0 0.0
    %3276 = vmatpush1.xpose.msra.mxu0 0.0
    %3277 = vmatprep.subr.mxu0 0.0
    %3278 = vmatpush1.xpose.msra.mxu0 0.0
    %3279 = vmatprep.subr.mxu0 0.0
    %3280 = vmatpush1.xpose.msra.mxu0 0.0
    %3281 = vmatprep.subr.mxu0 0.0
    %3282 = vmatpush1.xpose.msra.mxu0 0.0
    %3283 = vmatprep.subr.mxu0 0.0
    %3284 = vmatpush1.xpose.msra.mxu0 0.0
    %3285 = vmatprep.subr.mxu0 0.0
    %3286 = vmatpush1.xpose.msra.mxu0 0.0
    %3287 = vmatprep.subr.mxu0 0.0
    %3288 = vmatpush1.xpose.msra.mxu0 0.0
    %3289 = vmatprep.subr.mxu0 0.0
    %3290 = vmatpush1.xpose.msra.mxu0 0.0
    %3291 = vmatprep.subr.mxu0 0.0
    %3292 = vmatpush1.xpose.msra.mxu0 0.0
    %3293 = vmatprep.subr.mxu0 0.0
    %3294 = vmatpush1.xpose.msra.mxu0 0.0
    %3295 = vmatprep.subr.mxu0 0.0
    %3296 = vmatpush1.xpose.msra.mxu0 0.0
    %3297 = vmatprep.subr.mxu0 0.0
    %3298 = vmatpush1.xpose.msra.mxu0 0.0
    %3299 = vmatprep.subr.mxu0 0.0
    %3300 = vmatpush1.xpose.msra.mxu0 0.0
    %3301 = vmatprep.mubr.f32.mxu0 0.0
    %3302 = vmatmul.mubr.f32.gmra.mrb[0].mxu0 %v3233
    %v3303 = vpop.f32.mrb[0].mxu0
    %v3304 = vadd.f32 0.0, %v3303
    %v3305 = vpop.f32.mrb[0].mxu0
    %3306 = vdwg.mxu0
    %v3307 = vlaneseq
    %v3308 = vshrl.u32 %v3307, 7
    %v3309 = vsub.s32 0, %v3308
    %v3310 = vrot.slane %v1529, %v3309
    %3311 = vrot.lane.b32.xlu0 %v3310, 96
    %v3312 = vpop.permute.xlu0 %3311
    %3313 = vrot.lane.b32.xlu0 %v1340, 96
    %v3314 = vpop.permute.xlu0 %3313
    %v3315 = vsel %vm1532, %v3312, 0
    %v3317 = vsel %vm1532, %v3314, 0
    %3319 = vmatprep.subr.mxu0 0.0
    %3320 = vmatpush1.xpose.msra.mxu0 %v3317
    %3321 = vmatprep.subr.mxu0 0.0
    %3322 = vmatpush1.xpose.msra.mxu0 0.0
    %3323 = vmatprep.subr.mxu0 0.0
    %3324 = vmatpush1.xpose.msra.mxu0 0.0
    %3325 = vmatprep.subr.mxu0 0.0
    %3326 = vmatpush1.xpose.msra.mxu0 0.0
    %3327 = vmatprep.subr.mxu0 0.0
    %3328 = vmatpush1.xpose.msra.mxu0 0.0
    %3329 = vmatprep.subr.mxu0 0.0
    %3330 = vmatpush1.xpose.msra.mxu0 0.0
    %3331 = vmatprep.subr.mxu0 0.0
    %3332 = vmatpush1.xpose.msra.mxu0 0.0
    %3333 = vmatprep.subr.mxu0 0.0
    %3334 = vmatpush1.xpose.msra.mxu0 0.0
    %3335 = vmatprep.subr.mxu0 0.0
    %3336 = vmatpush1.xpose.msra.mxu0 0.0
    %3337 = vmatprep.subr.mxu0 0.0
    %3338 = vmatpush1.xpose.msra.mxu0 0.0
    %3339 = vmatprep.subr.mxu0 0.0
    %3340 = vmatpush1.xpose.msra.mxu0 0.0
    %3341 = vmatprep.subr.mxu0 0.0
    %3342 = vmatpush1.xpose.msra.mxu0 0.0
    %3343 = vmatprep.subr.mxu0 0.0
    %3344 = vmatpush1.xpose.msra.mxu0 0.0
    %3345 = vmatprep.subr.mxu0 0.0
    %3346 = vmatpush1.xpose.msra.mxu0 0.0
    %3347 = vmatprep.subr.mxu0 0.0
    %3348 = vmatpush1.xpose.msra.mxu0 0.0
    %3349 = vmatprep.subr.mxu0 0.0
    %3350 = vmatpush1.xpose.msra.mxu0 0.0
    %3351 = vmatprep.subr.mxu0 0.0
    %3352 = vmatpush1.xpose.msra.mxu0 0.0
    %3353 = vmatprep.subr.mxu0 0.0
    %3354 = vmatpush1.xpose.msra.mxu0 0.0
    %3355 = vmatprep.subr.mxu0 0.0
    %3356 = vmatpush1.xpose.msra.mxu0 0.0
    %3357 = vmatprep.subr.mxu0 0.0
    %3358 = vmatpush1.xpose.msra.mxu0 0.0
    %3359 = vmatprep.subr.mxu0 0.0
    %3360 = vmatpush1.xpose.msra.mxu0 0.0
    %3361 = vmatprep.subr.mxu0 0.0
    %3362 = vmatpush1.xpose.msra.mxu0 0.0
    %3363 = vmatprep.subr.mxu0 0.0
    %3364 = vmatpush1.xpose.msra.mxu0 0.0
    %3365 = vmatprep.subr.mxu0 0.0
    %3366 = vmatpush1.xpose.msra.mxu0 0.0
    %3367 = vmatprep.subr.mxu0 0.0
    %3368 = vmatpush1.xpose.msra.mxu0 0.0
    %3369 = vmatprep.subr.mxu0 0.0
    %3370 = vmatpush1.xpose.msra.mxu0 0.0
    %3371 = vmatprep.subr.mxu0 0.0
    %3372 = vmatpush1.xpose.msra.mxu0 0.0
    %3373 = vmatprep.subr.mxu0 0.0
    %3374 = vmatpush1.xpose.msra.mxu0 0.0
    %3375 = vmatprep.subr.mxu0 0.0
    %3376 = vmatpush1.xpose.msra.mxu0 0.0
    %3377 = vmatprep.subr.mxu0 0.0
    %3378 = vmatpush1.xpose.msra.mxu0 0.0
    %3379 = vmatprep.subr.mxu0 0.0
    %3380 = vmatpush1.xpose.msra.mxu0 0.0
    %3381 = vmatprep.subr.mxu0 0.0
    %3382 = vmatpush1.xpose.msra.mxu0 0.0
    %3383 = vmatprep.mubr.f32.mxu0 0.0
    %3384 = vmatmul.mubr.f32.gmra.mrb[0].mxu0 %v3315
    %v3385 = vpop.f32.mrb[0].mxu0
    %v3386 = vadd.f32 0.0, %v3385
    %v3387 = vpop.f32.mrb[0].mxu0
    %3388 = vdwg.mxu0
    %v3389 = vlaneseq
    %v3390 = vshrl.u32 %v3389, 7
    %v3391 = vsub.s32 0, %v3390
    %v3392 = vrot.slane %v1531, %v3391
    %3393 = vrot.lane.b32.xlu0 %v3392, 96
    %v3394 = vpop.permute.xlu0 %3393
    %3395 = vrot.lane.b32.xlu0 %v1343, 96
    %v3396 = vpop.permute.xlu0 %3395
    %v3397 = vsel %vm1532, %v3394, 0
    %v3399 = vsel %vm1532, %v3396, 0
    %3401 = vmatprep.subr.mxu0 0.0
    %3402 = vmatpush1.xpose.msra.mxu0 %v3399
    %3403 = vmatprep.subr.mxu0 0.0
    %3404 = vmatpush1.xpose.msra.mxu0 0.0
    %3405 = vmatprep.subr.mxu0 0.0
    %3406 = vmatpush1.xpose.msra.mxu0 0.0
    %3407 = vmatprep.subr.mxu0 0.0
    %3408 = vmatpush1.xpose.msra.mxu0 0.0
    %3409 = vmatprep.subr.mxu0 0.0
    %3410 = vmatpush1.xpose.msra.mxu0 0.0
    %3411 = vmatprep.subr.mxu0 0.0
    %3412 = vmatpush1.xpose.msra.mxu0 0.0
    %3413 = vmatprep.subr.mxu0 0.0
    %3414 = vmatpush1.xpose.msra.mxu0 0.0
    %3415 = vmatprep.subr.mxu0 0.0
    %3416 = vmatpush1.xpose.msra.mxu0 0.0
    %3417 = vmatprep.subr.mxu0 0.0
    %3418 = vmatpush1.xpose.msra.mxu0 0.0
    %3419 = vmatprep.subr.mxu0 0.0
    %3420 = vmatpush1.xpose.msra.mxu0 0.0
    %3421 = vmatprep.subr.mxu0 0.0
    %3422 = vmatpush1.xpose.msra.mxu0 0.0
    %3423 = vmatprep.subr.mxu0 0.0
    %3424 = vmatpush1.xpose.msra.mxu0 0.0
    %3425 = vmatprep.subr.mxu0 0.0
    %3426 = vmatpush1.xpose.msra.mxu0 0.0
    %3427 = vmatprep.subr.mxu0 0.0
    %3428 = vmatpush1.xpose.msra.mxu0 0.0
    %3429 = vmatprep.subr.mxu0 0.0
    %3430 = vmatpush1.xpose.msra.mxu0 0.0
    %3431 = vmatprep.subr.mxu0 0.0
    %3432 = vmatpush1.xpose.msra.mxu0 0.0
    %3433 = vmatprep.subr.mxu0 0.0
    %3434 = vmatpush1.xpose.msra.mxu0 0.0
    %3435 = vmatprep.subr.mxu0 0.0
    %3436 = vmatpush1.xpose.msra.mxu0 0.0
    %3437 = vmatprep.subr.mxu0 0.0
    %3438 = vmatpush1.xpose.msra.mxu0 0.0
    %3439 = vmatprep.subr.mxu0 0.0
    %3440 = vmatpush1.xpose.msra.mxu0 0.0
    %3441 = vmatprep.subr.mxu0 0.0
    %3442 = vmatpush1.xpose.msra.mxu0 0.0
    %3443 = vmatprep.subr.mxu0 0.0
    %3444 = vmatpush1.xpose.msra.mxu0 0.0
    %3445 = vmatprep.subr.mxu0 0.0
    %3446 = vmatpush1.xpose.msra.mxu0 0.0
    %3447 = vmatprep.subr.mxu0 0.0
    %3448 = vmatpush1.xpose.msra.mxu0 0.0
    %3449 = vmatprep.subr.mxu0 0.0
    %3450 = vmatpush1.xpose.msra.mxu0 0.0
    %3451 = vmatprep.subr.mxu0 0.0
    %3452 = vmatpush1.xpose.msra.mxu0 0.0
    %3453 = vmatprep.subr.mxu0 0.0
    %3454 = vmatpush1.xpose.msra.mxu0 0.0
    %3455 = vmatprep.subr.mxu0 0.0
    %3456 = vmatpush1.xpose.msra.mxu0 0.0
    %3457 = vmatprep.subr.mxu0 0.0
    %3458 = vmatpush1.xpose.msra.mxu0 0.0
    %3459 = vmatprep.subr.mxu0 0.0
    %3460 = vmatpush1.xpose.msra.mxu0 0.0
    %3461 = vmatprep.subr.mxu0 0.0
    %3462 = vmatpush1.xpose.msra.mxu0 0.0
    %3463 = vmatprep.subr.mxu0 0.0
    %3464 = vmatpush1.xpose.msra.mxu0 0.0
    %3465 = vmatprep.mubr.f32.mxu0 0.0
    %3466 = vmatmul.mubr.f32.gmra.mrb[0].mxu0 %v3397
    %v3467 = vpop.f32.mrb[0].mxu0
    %v3468 = vadd.f32 0.0, %v3467
    %v3469 = vpop.f32.mrb[0].mxu0
    %3470 = vdwg.mxu0
    %v3471 = vsel %vm2133, %v2894, -inf
    %3472 = vmax.xlane.f32.xlu0 %v3471
    %v3473 = vpop.xlane.xlu0 %3472
    %v3474 = vsel %vm2133, %v2976, -inf
    %3475 = vmax.xlane.f32.xlu0 %v3474
    %v3476 = vpop.xlane.xlu0 %3475
    %v3477 = vsel %vm2133, %v3058, -inf
    %3478 = vmax.xlane.f32.xlu0 %v3477
    %v3479 = vpop.xlane.xlu0 %3478
    %v3480 = vsel %vm2133, %v3140, -inf
    %3481 = vmax.xlane.f32.xlu0 %v3480
    %v3482 = vpop.xlane.xlu0 %3481
    %v3483 = vsel %vm2133, %v3222, -inf
    %3484 = vmax.xlane.f32.xlu0 %v3483
    %v3485 = vpop.xlane.xlu0 %3484
    %v3486 = vsel %vm2133, %v3304, -inf
    %3487 = vmax.xlane.f32.xlu0 %v3486
    %v3488 = vpop.xlane.xlu0 %3487
    %v3489 = vsel %vm2133, %v3386, -inf
    %3490 = vmax.xlane.f32.xlu0 %v3489
    %v3491 = vpop.xlane.xlu0 %3490
    %v3492 = vsel %vm2133, %v3468, -inf
    %3493 = vmax.xlane.f32.xlu0 %v3492
    %v3494 = vpop.xlane.xlu0 %3493
    %v3495 = vsub.f32 %v2894, %v3473
    %v3496 = vsub.f32 %v2976, %v3476
    %v3497 = vsub.f32 %v3058, %v3479
    %v3498 = vsub.f32 %v3140, %v3482
    %v3499 = vsub.f32 %v3222, %v3485
    %v3500 = vsub.f32 %v3304, %v3488
    %v3501 = vsub.f32 %v3386, %v3491
    %v3502 = vsub.f32 %v3468, %v3494
    %v3503 = vmul.f32 %v3495, 1.442695
    %v3504 = vpow.pop %v3503
    %v3505 = vmul.f32 %v3496, 1.442695
    %v3506 = vpow.pop %v3505
    %v3507 = vmul.f32 %v3497, 1.442695
    %v3508 = vpow.pop %v3507
    %v3509 = vmul.f32 %v3498, 1.442695
    %v3510 = vpow.pop %v3509
    %v3511 = vmul.f32 %v3499, 1.442695
    %v3512 = vpow.pop %v3511
    %v3513 = vmul.f32 %v3500, 1.442695
    %v3514 = vpow.pop %v3513
    %v3515 = vmul.f32 %v3501, 1.442695
    %v3516 = vpow.pop %v3515
    %v3517 = vmul.f32 %v3502, 1.442695
    %v3518 = vpow.pop %v3517
    %v3519 = vsel %vm2133, %v3504, 0.0
    %3520 = vadd.xlane.f32.xlu0 %v3519
    %v3521 = vpop.xlane.xlu0 %3520
    %v3522 = vsel %vm2133, %v3506, 0.0
    %3523 = vadd.xlane.f32.xlu0 %v3522
    %v3524 = vpop.xlane.xlu0 %3523
    %v3525 = vsel %vm2133, %v3508, 0.0
    %3526 = vadd.xlane.f32.xlu0 %v3525
    %v3527 = vpop.xlane.xlu0 %3526
    %v3528 = vsel %vm2133, %v3510, 0.0
    %3529 = vadd.xlane.f32.xlu0 %v3528
    %v3530 = vpop.xlane.xlu0 %3529
    %v3531 = vsel %vm2133, %v3512, 0.0
    %3532 = vadd.xlane.f32.xlu0 %v3531
    %v3533 = vpop.xlane.xlu0 %3532
    %v3534 = vsel %vm2133, %v3514, 0.0
    %3535 = vadd.xlane.f32.xlu0 %v3534
    %v3536 = vpop.xlane.xlu0 %3535
    %v3537 = vsel %vm2133, %v3516, 0.0
    %3538 = vadd.xlane.f32.xlu0 %v3537
    %v3539 = vpop.xlane.xlu0 %3538
    %v3540 = vsel %vm2133, %v3518, 0.0
    %3541 = vadd.xlane.f32.xlu0 %v3540
    %v3542 = vpop.xlane.xlu0 %3541
    %v3543 = vrcp.pop %v3521
    %v3544 = vrcp.pop %v3524
    %v3545 = vrcp.pop %v3527
    %v3546 = vrcp.pop %v3530
    %v3547 = vrcp.pop %v3533
    %v3548 = vrcp.pop %v3536
    %v3549 = vrcp.pop %v3539
    %v3550 = vrcp.pop %v3542
    %v3551 = vmul.f32 %v3504, %v3543
    %v3552 = vmul.f32 %v3506, %v3544
    %v3553 = vmul.f32 %v3508, %v3545
    %v3554 = vmul.f32 %v3510, %v3546
    %v3555 = vmul.f32 %v3512, %v3547
    %v3556 = vmul.f32 %v3514, %v3548
    %v3557 = vmul.f32 %v3516, %v3549
    %v3558 = vmul.f32 %v3518, %v3550
    %3560 = vrot.lane.b32.xlu0 %v1452, 96
    %v3561 = vpop.permute.xlu0 %3560
    %v3564 = vsel %vm2222, %v3551, 0
    %3566 = vmatprep.subr.mxu0 0.0
    %3567 = vmatpush1.msra.mxu0 %v3561
    %3568 = vmatprep.subr.mxu0 0.0
    %3569 = vmatpush1.msra.mxu0 0.0
    %3570 = vmatprep.subr.mxu0 0.0
    %3571 = vmatpush1.msra.mxu0 0.0
    %3572 = vmatprep.subr.mxu0 0.0
    %3573 = vmatpush1.msra.mxu0 0.0
    %3574 = vmatprep.subr.mxu0 0.0
    %3575 = vmatpush1.msra.mxu0 0.0
    %3576 = vmatprep.subr.mxu0 0.0
    %3577 = vmatpush1.msra.mxu0 0.0
    %3578 = vmatprep.subr.mxu0 0.0
    %3579 = vmatpush1.msra.mxu0 0.0
    %3580 = vmatprep.subr.mxu0 0.0
    %3581 = vmatpush1.msra.mxu0 0.0
    %3582 = vmatprep.subr.mxu0 0.0
    %3583 = vmatpush1.msra.mxu0 0.0
    %3584 = vmatprep.subr.mxu0 0.0
    %3585 = vmatpush1.msra.mxu0 0.0
    %3586 = vmatprep.subr.mxu0 0.0
    %3587 = vmatpush1.msra.mxu0 0.0
    %3588 = vmatprep.subr.mxu0 0.0
    %3589 = vmatpush1.msra.mxu0 0.0
    %3590 = vmatprep.subr.mxu0 0.0
    %3591 = vmatpush1.msra.mxu0 0.0
    %3592 = vmatprep.subr.mxu0 0.0
    %3593 = vmatpush1.msra.mxu0 0.0
    %3594 = vmatprep.subr.mxu0 0.0
    %3595 = vmatpush1.msra.mxu0 0.0
    %3596 = vmatprep.subr.mxu0 0.0
    %3597 = vmatpush1.msra.mxu0 0.0
    %3598 = vmatprep.subr.mxu0 0.0
    %3599 = vmatpush1.msra.mxu0 0.0
    %3600 = vmatprep.subr.mxu0 0.0
    %3601 = vmatpush1.msra.mxu0 0.0
    %3602 = vmatprep.subr.mxu0 0.0
    %3603 = vmatpush1.msra.mxu0 0.0
    %3604 = vmatprep.subr.mxu0 0.0
    %3605 = vmatpush1.msra.mxu0 0.0
    %3606 = vmatprep.subr.mxu0 0.0
    %3607 = vmatpush1.msra.mxu0 0.0
    %3608 = vmatprep.subr.mxu0 0.0
    %3609 = vmatpush1.msra.mxu0 0.0
    %3610 = vmatprep.subr.mxu0 0.0
    %3611 = vmatpush1.msra.mxu0 0.0
    %3612 = vmatprep.subr.mxu0 0.0
    %3613 = vmatpush1.msra.mxu0 0.0
    %3614 = vmatprep.subr.mxu0 0.0
    %3615 = vmatpush1.msra.mxu0 0.0
    %3616 = vmatprep.subr.mxu0 0.0
    %3617 = vmatpush1.msra.mxu0 0.0
    %3618 = vmatprep.subr.mxu0 0.0
    %3619 = vmatpush1.msra.mxu0 0.0
    %3620 = vmatprep.subr.mxu0 0.0
    %3621 = vmatpush1.msra.mxu0 0.0
    %3622 = vmatprep.subr.mxu0 0.0
    %3623 = vmatpush1.msra.mxu0 0.0
    %3624 = vmatprep.subr.mxu0 0.0
    %3625 = vmatpush1.msra.mxu0 0.0
    %3626 = vmatprep.subr.mxu0 0.0
    %3627 = vmatpush1.msra.mxu0 0.0
    %3628 = vmatprep.subr.mxu0 0.0
    %3629 = vmatpush1.msra.mxu0 0.0
    %3630 = vmatprep.mubr.f32.mxu0 0.0
    %3631 = vmatmul.mubr.f32.gmra.mrb[0].mxu0 %v3564
    %v3632 = vpop.f32.mrb[0].mxu0
    %v3633 = vadd.f32 0.0, %v3632
    %v3634 = vpop.f32.mrb[0].mxu0
    %3635 = vdwg.mxu0
    %3637 = vrot.lane.b32.xlu0 %v1455, 96
    %v3638 = vpop.permute.xlu0 %3637
    %v3641 = vsel %vm2222, %v3552, 0
    %3643 = vmatprep.subr.mxu0 0.0
    %3644 = vmatpush1.msra.mxu0 %v3638
    %3645 = vmatprep.subr.mxu0 0.0
    %3646 = vmatpush1.msra.mxu0 0.0
    %3647 = vmatprep.subr.mxu0 0.0
    %3648 = vmatpush1.msra.mxu0 0.0
    %3649 = vmatprep.subr.mxu0 0.0
    %3650 = vmatpush1.msra.mxu0 0.0
    %3651 = vmatprep.subr.mxu0 0.0
    %3652 = vmatpush1.msra.mxu0 0.0
    %3653 = vmatprep.subr.mxu0 0.0
    %3654 = vmatpush1.msra.mxu0 0.0
    %3655 = vmatprep.subr.mxu0 0.0
    %3656 = vmatpush1.msra.mxu0 0.0
    %3657 = vmatprep.subr.mxu0 0.0
    %3658 = vmatpush1.msra.mxu0 0.0
    %3659 = vmatprep.subr.mxu0 0.0
    %3660 = vmatpush1.msra.mxu0 0.0
    %3661 = vmatprep.subr.mxu0 0.0
    %3662 = vmatpush1.msra.mxu0 0.0
    %3663 = vmatprep.subr.mxu0 0.0
    %3664 = vmatpush1.msra.mxu0 0.0
    %3665 = vmatprep.subr.mxu0 0.0
    %3666 = vmatpush1.msra.mxu0 0.0
    %3667 = vmatprep.subr.mxu0 0.0
    %3668 = vmatpush1.msra.mxu0 0.0
    %3669 = vmatprep.subr.mxu0 0.0
    %3670 = vmatpush1.msra.mxu0 0.0
    %3671 = vmatprep.subr.mxu0 0.0
    %3672 = vmatpush1.msra.mxu0 0.0
    %3673 = vmatprep.subr.mxu0 0.0
    %3674 = vmatpush1.msra.mxu0 0.0
    %3675 = vmatprep.subr.mxu0 0.0
    %3676 = vmatpush1.msra.mxu0 0.0
    %3677 = vmatprep.subr.mxu0 0.0
    %3678 = vmatpush1.msra.mxu0 0.0
    %3679 = vmatprep.subr.mxu0 0.0
    %3680 = vmatpush1.msra.mxu0 0.0
    %3681 = vmatprep.subr.mxu0 0.0
    %3682 = vmatpush1.msra.mxu0 0.0
    %3683 = vmatprep.subr.mxu0 0.0
    %3684 = vmatpush1.msra.mxu0 0.0
    %3685 = vmatprep.subr.mxu0 0.0
    %3686 = vmatpush1.msra.mxu0 0.0
    %3687 = vmatprep.subr.mxu0 0.0
    %3688 = vmatpush1.msra.mxu0 0.0
    %3689 = vmatprep.subr.mxu0 0.0
    %3690 = vmatpush1.msra.mxu0 0.0
    %3691 = vmatprep.subr.mxu0 0.0
    %3692 = vmatpush1.msra.mxu0 0.0
    %3693 = vmatprep.subr.mxu0 0.0
    %3694 = vmatpush1.msra.mxu0 0.0
    %3695 = vmatprep.subr.mxu0 0.0
    %3696 = vmatpush1.msra.mxu0 0.0
    %3697 = vmatprep.subr.mxu0 0.0
    %3698 = vmatpush1.msra.mxu0 0.0
    %3699 = vmatprep.subr.mxu0 0.0
    %3700 = vmatpush1.msra.mxu0 0.0
    %3701 = vmatprep.subr.mxu0 0.0
    %3702 = vmatpush1.msra.mxu0 0.0
    %3703 = vmatprep.subr.mxu0 0.0
    %3704 = vmatpush1.msra.mxu0 0.0
    %3705 = vmatprep.subr.mxu0 0.0
    %3706 = vmatpush1.msra.mxu0 0.0
    %3707 = vmatprep.mubr.f32.mxu0 0.0
    %3708 = vmatmul.mubr.f32.gmra.mrb[0].mxu0 %v3641
    %v3709 = vpop.f32.mrb[0].mxu0
    %v3710 = vadd.f32 0.0, %v3709
    %v3711 = vpop.f32.mrb[0].mxu0
    %3712 = vdwg.mxu0
    %3714 = vrot.lane.b32.xlu0 %v1460, 96
    %v3715 = vpop.permute.xlu0 %3714
    %v3718 = vsel %vm2222, %v3553, 0
    %3720 = vmatprep.subr.mxu0 0.0
    %3721 = vmatpush1.msra.mxu0 %v3715
    %3722 = vmatprep.subr.mxu0 0.0
    %3723 = vmatpush1.msra.mxu0 0.0
    %3724 = vmatprep.subr.mxu0 0.0
    %3725 = vmatpush1.msra.mxu0 0.0
    %3726 = vmatprep.subr.mxu0 0.0
    %3727 = vmatpush1.msra.mxu0 0.0
    %3728 = vmatprep.subr.mxu0 0.0
    %3729 = vmatpush1.msra.mxu0 0.0
    %3730 = vmatprep.subr.mxu0 0.0
    %3731 = vmatpush1.msra.mxu0 0.0
    %3732 = vmatprep.subr.mxu0 0.0
    %3733 = vmatpush1.msra.mxu0 0.0
    %3734 = vmatprep.subr.mxu0 0.0
    %3735 = vmatpush1.msra.mxu0 0.0
    %3736 = vmatprep.subr.mxu0 0.0
    %3737 = vmatpush1.msra.mxu0 0.0
    %3738 = vmatprep.subr.mxu0 0.0
    %3739 = vmatpush1.msra.mxu0 0.0
    %3740 = vmatprep.subr.mxu0 0.0
    %3741 = vmatpush1.msra.mxu0 0.0
    %3742 = vmatprep.subr.mxu0 0.0
    %3743 = vmatpush1.msra.mxu0 0.0
    %3744 = vmatprep.subr.mxu0 0.0
    %3745 = vmatpush1.msra.mxu0 0.0
    %3746 = vmatprep.subr.mxu0 0.0
    %3747 = vmatpush1.msra.mxu0 0.0
    %3748 = vmatprep.subr.mxu0 0.0
    %3749 = vmatpush1.msra.mxu0 0.0
    %3750 = vmatprep.subr.mxu0 0.0
    %3751 = vmatpush1.msra.mxu0 0.0
    %3752 = vmatprep.subr.mxu0 0.0
    %3753 = vmatpush1.msra.mxu0 0.0
    %3754 = vmatprep.subr.mxu0 0.0
    %3755 = vmatpush1.msra.mxu0 0.0
    %3756 = vmatprep.subr.mxu0 0.0
    %3757 = vmatpush1.msra.mxu0 0.0
    %3758 = vmatprep.subr.mxu0 0.0
    %3759 = vmatpush1.msra.mxu0 0.0
    %3760 = vmatprep.subr.mxu0 0.0
    %3761 = vmatpush1.msra.mxu0 0.0
    %3762 = vmatprep.subr.mxu0 0.0
    %3763 = vmatpush1.msra.mxu0 0.0
    %3764 = vmatprep.subr.mxu0 0.0
    %3765 = vmatpush1.msra.mxu0 0.0
    %3766 = vmatprep.subr.mxu0 0.0
    %3767 = vmatpush1.msra.mxu0 0.0
    %3768 = vmatprep.subr.mxu0 0.0
    %3769 = vmatpush1.msra.mxu0 0.0
    %3770 = vmatprep.subr.mxu0 0.0
    %3771 = vmatpush1.msra.mxu0 0.0
    %3772 = vmatprep.subr.mxu0 0.0
    %3773 = vmatpush1.msra.mxu0 0.0
    %3774 = vmatprep.subr.mxu0 0.0
    %3775 = vmatpush1.msra.mxu0 0.0
    %3776 = vmatprep.subr.mxu0 0.0
    %3777 = vmatpush1.msra.mxu0 0.0
    %3778 = vmatprep.subr.mxu0 0.0
    %3779 = vmatpush1.msra.mxu0 0.0
    %3780 = vmatprep.subr.mxu0 0.0
    %3781 = vmatpush1.msra.mxu0 0.0
    %3782 = vmatprep.subr.mxu0 0.0
    %3783 = vmatpush1.msra.mxu0 0.0
    %3784 = vmatprep.mubr.f32.mxu0 0.0
    %3785 = vmatmul.mubr.f32.gmra.mrb[0].mxu0 %v3718
    %v3786 = vpop.f32.mrb[0].mxu0
    %v3787 = vadd.f32 0.0, %v3786
    %v3788 = vpop.f32.mrb[0].mxu0
    %3789 = vdwg.mxu0
    %3791 = vrot.lane.b32.xlu0 %v1463, 96
    %v3792 = vpop.permute.xlu0 %3791
    %v3795 = vsel %vm2222, %v3554, 0
    %3797 = vmatprep.subr.mxu0 0.0
    %3798 = vmatpush1.msra.mxu0 %v3792
    %3799 = vmatprep.subr.mxu0 0.0
    %3800 = vmatpush1.msra.mxu0 0.0
    %3801 = vmatprep.subr.mxu0 0.0
    %3802 = vmatpush1.msra.mxu0 0.0
    %3803 = vmatprep.subr.mxu0 0.0
    %3804 = vmatpush1.msra.mxu0 0.0
    %3805 = vmatprep.subr.mxu0 0.0
    %3806 = vmatpush1.msra.mxu0 0.0
    %3807 = vmatprep.subr.mxu0 0.0
    %3808 = vmatpush1.msra.mxu0 0.0
    %3809 = vmatprep.subr.mxu0 0.0
    %3810 = vmatpush1.msra.mxu0 0.0
    %3811 = vmatprep.subr.mxu0 0.0
    %3812 = vmatpush1.msra.mxu0 0.0
    %3813 = vmatprep.subr.mxu0 0.0
    %3814 = vmatpush1.msra.mxu0 0.0
    %3815 = vmatprep.subr.mxu0 0.0
    %3816 = vmatpush1.msra.mxu0 0.0
    %3817 = vmatprep.subr.mxu0 0.0
    %3818 = vmatpush1.msra.mxu0 0.0
    %3819 = vmatprep.subr.mxu0 0.0
    %3820 = vmatpush1.msra.mxu0 0.0
    %3821 = vmatprep.subr.mxu0 0.0
    %3822 = vmatpush1.msra.mxu0 0.0
    %3823 = vmatprep.subr.mxu0 0.0
    %3824 = vmatpush1.msra.mxu0 0.0
    %3825 = vmatprep.subr.mxu0 0.0
    %3826 = vmatpush1.msra.mxu0 0.0
    %3827 = vmatprep.subr.mxu0 0.0
    %3828 = vmatpush1.msra.mxu0 0.0
    %3829 = vmatprep.subr.mxu0 0.0
    %3830 = vmatpush1.msra.mxu0 0.0
    %3831 = vmatprep.subr.mxu0 0.0
    %3832 = vmatpush1.msra.mxu0 0.0
    %3833 = vmatprep.subr.mxu0 0.0
    %3834 = vmatpush1.msra.mxu0 0.0
    %3835 = vmatprep.subr.mxu0 0.0
    %3836 = vmatpush1.msra.mxu0 0.0
    %3837 = vmatprep.subr.mxu0 0.0
    %3838 = vmatpush1.msra.mxu0 0.0
    %3839 = vmatprep.subr.mxu0 0.0
    %3840 = vmatpush1.msra.mxu0 0.0
    %3841 = vmatprep.subr.mxu0 0.0
    %3842 = vmatpush1.msra.mxu0 0.0
    %3843 = vmatprep.subr.mxu0 0.0
    %3844 = vmatpush1.msra.mxu0 0.0
    %3845 = vmatprep.subr.mxu0 0.0
    %3846 = vmatpush1.msra.mxu0 0.0
    %3847 = vmatprep.subr.mxu0 0.0
    %3848 = vmatpush1.msra.mxu0 0.0
    %3849 = vmatprep.subr.mxu0 0.0
    %3850 = vmatpush1.msra.mxu0 0.0
    %3851 = vmatprep.subr.mxu0 0.0
    %3852 = vmatpush1.msra.mxu0 0.0
    %3853 = vmatprep.subr.mxu0 0.0
    %3854 = vmatpush1.msra.mxu0 0.0
    %3855 = vmatprep.subr.mxu0 0.0
    %3856 = vmatpush1.msra.mxu0 0.0
    %3857 = vmatprep.subr.mxu0 0.0
    %3858 = vmatpush1.msra.mxu0 0.0
    %3859 = vmatprep.subr.mxu0 0.0
    %3860 = vmatpush1.msra.mxu0 0.0
    %3861 = vmatprep.mubr.f32.mxu0 0.0
    %3862 = vmatmul.mubr.f32.gmra.mrb[0].mxu0 %v3795
    %v3863 = vpop.f32.mrb[0].mxu0
    %v3864 = vadd.f32 0.0, %v3863
    %v3865 = vpop.f32.mrb[0].mxu0
    %3866 = vdwg.mxu0
    %3868 = vrot.lane.b32.xlu0 %v1468, 96
    %v3869 = vpop.permute.xlu0 %3868
    %v3872 = vsel %vm2222, %v3555, 0
    %3874 = vmatprep.subr.mxu0 0.0
    %3875 = vmatpush1.msra.mxu0 %v3869
    %3876 = vmatprep.subr.mxu0 0.0
    %3877 = vmatpush1.msra.mxu0 0.0
    %3878 = vmatprep.subr.mxu0 0.0
    %3879 = vmatpush1.msra.mxu0 0.0
    %3880 = vmatprep.subr.mxu0 0.0
    %3881 = vmatpush1.msra.mxu0 0.0
    %3882 = vmatprep.subr.mxu0 0.0
    %3883 = vmatpush1.msra.mxu0 0.0
    %3884 = vmatprep.subr.mxu0 0.0
    %3885 = vmatpush1.msra.mxu0 0.0
    %3886 = vmatprep.subr.mxu0 0.0
    %3887 = vmatpush1.msra.mxu0 0.0
    %3888 = vmatprep.subr.mxu0 0.0
    %3889 = vmatpush1.msra.mxu0 0.0
    %3890 = vmatprep.subr.mxu0 0.0
    %3891 = vmatpush1.msra.mxu0 0.0
    %3892 = vmatprep.subr.mxu0 0.0
    %3893 = vmatpush1.msra.mxu0 0.0
    %3894 = vmatprep.subr.mxu0 0.0
    %3895 = vmatpush1.msra.mxu0 0.0
    %3896 = vmatprep.subr.mxu0 0.0
    %3897 = vmatpush1.msra.mxu0 0.0
    %3898 = vmatprep.subr.mxu0 0.0
    %3899 = vmatpush1.msra.mxu0 0.0
    %3900 = vmatprep.subr.mxu0 0.0
    %3901 = vmatpush1.msra.mxu0 0.0
    %3902 = vmatprep.subr.mxu0 0.0
    %3903 = vmatpush1.msra.mxu0 0.0
    %3904 = vmatprep.subr.mxu0 0.0
    %3905 = vmatpush1.msra.mxu0 0.0
    %3906 = vmatprep.subr.mxu0 0.0
    %3907 = vmatpush1.msra.mxu0 0.0
    %3908 = vmatprep.subr.mxu0 0.0
    %3909 = vmatpush1.msra.mxu0 0.0
    %3910 = vmatprep.subr.mxu0 0.0
    %3911 = vmatpush1.msra.mxu0 0.0
    %3912 = vmatprep.subr.mxu0 0.0
    %3913 = vmatpush1.msra.mxu0 0.0
    %3914 = vmatprep.subr.mxu0 0.0
    %3915 = vmatpush1.msra.mxu0 0.0
    %3916 = vmatprep.subr.mxu0 0.0
    %3917 = vmatpush1.msra.mxu0 0.0
    %3918 = vmatprep.subr.mxu0 0.0
    %3919 = vmatpush1.msra.mxu0 0.0
    %3920 = vmatprep.subr.mxu0 0.0
    %3921 = vmatpush1.msra.mxu0 0.0
    %3922 = vmatprep.subr.mxu0 0.0
    %3923 = vmatpush1.msra.mxu0 0.0
    %3924 = vmatprep.subr.mxu0 0.0
    %3925 = vmatpush1.msra.mxu0 0.0
    %3926 = vmatprep.subr.mxu0 0.0
    %3927 = vmatpush1.msra.mxu0 0.0
    %3928 = vmatprep.subr.mxu0 0.0
    %3929 = vmatpush1.msra.mxu0 0.0
    %3930 = vmatprep.subr.mxu0 0.0
    %3931 = vmatpush1.msra.mxu0 0.0
    %3932 = vmatprep.subr.mxu0 0.0
    %3933 = vmatpush1.msra.mxu0 0.0
    %3934 = vmatprep.subr.mxu0 0.0
    %3935 = vmatpush1.msra.mxu0 0.0
    %3936 = vmatprep.subr.mxu0 0.0
    %3937 = vmatpush1.msra.mxu0 0.0
    %3938 = vmatprep.mubr.f32.mxu0 0.0
    %3939 = vmatmul.mubr.f32.gmra.mrb[0].mxu0 %v3872
    %v3940 = vpop.f32.mrb[0].mxu0
    %v3941 = vadd.f32 0.0, %v3940
    %v3942 = vpop.f32.mrb[0].mxu0
    %3943 = vdwg.mxu0
    %3945 = vrot.lane.b32.xlu0 %v1471, 96
    %v3946 = vpop.permute.xlu0 %3945
    %v3949 = vsel %vm2222, %v3556, 0
    %3951 = vmatprep.subr.mxu0 0.0
    %3952 = vmatpush1.msra.mxu0 %v3946
    %3953 = vmatprep.subr.mxu0 0.0
    %3954 = vmatpush1.msra.mxu0 0.0
    %3955 = vmatprep.subr.mxu0 0.0
    %3956 = vmatpush1.msra.mxu0 0.0
    %3957 = vmatprep.subr.mxu0 0.0
    %3958 = vmatpush1.msra.mxu0 0.0
    %3959 = vmatprep.subr.mxu0 0.0
    %3960 = vmatpush1.msra.mxu0 0.0
    %3961 = vmatprep.subr.mxu0 0.0
    %3962 = vmatpush1.msra.mxu0 0.0
    %3963 = vmatprep.subr.mxu0 0.0
    %3964 = vmatpush1.msra.mxu0 0.0
    %3965 = vmatprep.subr.mxu0 0.0
    %3966 = vmatpush1.msra.mxu0 0.0
    %3967 = vmatprep.subr.mxu0 0.0
    %3968 = vmatpush1.msra.mxu0 0.0
    %3969 = vmatprep.subr.mxu0 0.0
    %3970 = vmatpush1.msra.mxu0 0.0
    %3971 = vmatprep.subr.mxu0 0.0
    %3972 = vmatpush1.msra.mxu0 0.0
    %3973 = vmatprep.subr.mxu0 0.0
    %3974 = vmatpush1.msra.mxu0 0.0
    %3975 = vmatprep.subr.mxu0 0.0
    %3976 = vmatpush1.msra.mxu0 0.0
    %3977 = vmatprep.subr.mxu0 0.0
    %3978 = vmatpush1.msra.mxu0 0.0
    %3979 = vmatprep.subr.mxu0 0.0
    %3980 = vmatpush1.msra.mxu0 0.0
    %3981 = vmatprep.subr.mxu0 0.0
    %3982 = vmatpush1.msra.mxu0 0.0
    %3983 = vmatprep.subr.mxu0 0.0
    %3984 = vmatpush1.msra.mxu0 0.0
    %3985 = vmatprep.subr.mxu0 0.0
    %3986 = vmatpush1.msra.mxu0 0.0
    %3987 = vmatprep.subr.mxu0 0.0
    %3988 = vmatpush1.msra.mxu0 0.0
    %3989 = vmatprep.subr.mxu0 0.0
    %3990 = vmatpush1.msra.mxu0 0.0
    %3991 = vmatprep.subr.mxu0 0.0
    %3992 = vmatpush1.msra.mxu0 0.0
    %3993 = vmatprep.subr.mxu0 0.0
    %3994 = vmatpush1.msra.mxu0 0.0
    %3995 = vmatprep.subr.mxu0 0.0
    %3996 = vmatpush1.msra.mxu0 0.0
    %3997 = vmatprep.subr.mxu0 0.0
    %3998 = vmatpush1.msra.mxu0 0.0
    %3999 = vmatprep.subr.mxu0 0.0
    %4000 = vmatpush1.msra.mxu0 0.0
    %4001 = vmatprep.subr.mxu0 0.0
    %4002 = vmatpush1.msra.mxu0 0.0
    %4003 = vmatprep.subr.mxu0 0.0
    %4004 = vmatpush1.msra.mxu0 0.0
    %4005 = vmatprep.subr.mxu0 0.0
    %4006 = vmatpush1.msra.mxu0 0.0
    %4007 = vmatprep.subr.mxu0 0.0
    %4008 = vmatpush1.msra.mxu0 0.0
    %4009 = vmatprep.subr.mxu0 0.0
    %4010 = vmatpush1.msra.mxu0 0.0
    %4011 = vmatprep.subr.mxu0 0.0
    %4012 = vmatpush1.msra.mxu0 0.0
    %4013 = vmatprep.subr.mxu0 0.0
    %4014 = vmatpush1.msra.mxu0 0.0
    %4015 = vmatprep.mubr.f32.mxu0 0.0
    %4016 = vmatmul.mubr.f32.gmra.mrb[0].mxu0 %v3949
    %v4017 = vpop.f32.mrb[0].mxu0
    %v4018 = vadd.f32 0.0, %v4017
    %v4019 = vpop.f32.mrb[0].mxu0
    %4020 = vdwg.mxu0
    %4022 = vrot.lane.b32.xlu0 %v1476, 96
    %v4023 = vpop.permute.xlu0 %4022
    %v4026 = vsel %vm2222, %v3557, 0
    %4028 = vmatprep.subr.mxu0 0.0
    %4029 = vmatpush1.msra.mxu0 %v4023
    %4030 = vmatprep.subr.mxu0 0.0
    %4031 = vmatpush1.msra.mxu0 0.0
    %4032 = vmatprep.subr.mxu0 0.0
    %4033 = vmatpush1.msra.mxu0 0.0
    %4034 = vmatprep.subr.mxu0 0.0
    %4035 = vmatpush1.msra.mxu0 0.0
    %4036 = vmatprep.subr.mxu0 0.0
    %4037 = vmatpush1.msra.mxu0 0.0
    %4038 = vmatprep.subr.mxu0 0.0
    %4039 = vmatpush1.msra.mxu0 0.0
    %4040 = vmatprep.subr.mxu0 0.0
    %4041 = vmatpush1.msra.mxu0 0.0
    %4042 = vmatprep.subr.mxu0 0.0
    %4043 = vmatpush1.msra.mxu0 0.0
    %4044 = vmatprep.subr.mxu0 0.0
    %4045 = vmatpush1.msra.mxu0 0.0
    %4046 = vmatprep.subr.mxu0 0.0
    %4047 = vmatpush1.msra.mxu0 0.0
    %4048 = vmatprep.subr.mxu0 0.0
    %4049 = vmatpush1.msra.mxu0 0.0
    %4050 = vmatprep.subr.mxu0 0.0
    %4051 = vmatpush1.msra.mxu0 0.0
    %4052 = vmatprep.subr.mxu0 0.0
    %4053 = vmatpush1.msra.mxu0 0.0
    %4054 = vmatprep.subr.mxu0 0.0
    %4055 = vmatpush1.msra.mxu0 0.0
    %4056 = vmatprep.subr.mxu0 0.0
    %4057 = vmatpush1.msra.mxu0 0.0
    %4058 = vmatprep.subr.mxu0 0.0
    %4059 = vmatpush1.msra.mxu0 0.0
    %4060 = vmatprep.subr.mxu0 0.0
    %4061 = vmatpush1.msra.mxu0 0.0
    %4062 = vmatprep.subr.mxu0 0.0
    %4063 = vmatpush1.msra.mxu0 0.0
    %4064 = vmatprep.subr.mxu0 0.0
    %4065 = vmatpush1.msra.mxu0 0.0
    %4066 = vmatprep.subr.mxu0 0.0
    %4067 = vmatpush1.msra.mxu0 0.0
    %4068 = vmatprep.subr.mxu0 0.0
    %4069 = vmatpush1.msra.mxu0 0.0
    %4070 = vmatprep.subr.mxu0 0.0
    %4071 = vmatpush1.msra.mxu0 0.0
    %4072 = vmatprep.subr.mxu0 0.0
    %4073 = vmatpush1.msra.mxu0 0.0
    %4074 = vmatprep.subr.mxu0 0.0
    %4075 = vmatpush1.msra.mxu0 0.0
    %4076 = vmatprep.subr.mxu0 0.0
    %4077 = vmatpush1.msra.mxu0 0.0
    %4078 = vmatprep.subr.mxu0 0.0
    %4079 = vmatpush1.msra.mxu0 0.0
    %4080 = vmatprep.subr.mxu0 0.0
    %4081 = vmatpush1.msra.mxu0 0.0
    %4082 = vmatprep.subr.mxu0 0.0
    %4083 = vmatpush1.msra.mxu0 0.0
    %4084 = vmatprep.subr.mxu0 0.0
    %4085 = vmatpush1.msra.mxu0 0.0
    %4086 = vmatprep.subr.mxu0 0.0
    %4087 = vmatpush1.msra.mxu0 0.0
    %4088 = vmatprep.subr.mxu0 0.0
    %4089 = vmatpush1.msra.mxu0 0.0
    %4090 = vmatprep.subr.mxu0 0.0
    %4091 = vmatpush1.msra.mxu0 0.0
    %4092 = vmatprep.mubr.f32.mxu0 0.0
    %4093 = vmatmul.mubr.f32.gmra.mrb[0].mxu0 %v4026
    %v4094 = vpop.f32.mrb[0].mxu0
    %v4095 = vadd.f32 0.0, %v4094
    %v4096 = vpop.f32.mrb[0].mxu0
    %4097 = vdwg.mxu0
    %4099 = vrot.lane.b32.xlu0 %v1479, 96
    %v4100 = vpop.permute.xlu0 %4099
    %v4103 = vsel %vm2222, %v3558, 0
    %4105 = vmatprep.subr.mxu0 0.0
    %4106 = vmatpush1.msra.mxu0 %v4100
    %4107 = vmatprep.subr.mxu0 0.0
    %4108 = vmatpush1.msra.mxu0 0.0
    %4109 = vmatprep.subr.mxu0 0.0
    %4110 = vmatpush1.msra.mxu0 0.0
    %4111 = vmatprep.subr.mxu0 0.0
    %4112 = vmatpush1.msra.mxu0 0.0
    %4113 = vmatprep.subr.mxu0 0.0
    %4114 = vmatpush1.msra.mxu0 0.0
    %4115 = vmatprep.subr.mxu0 0.0
    %4116 = vmatpush1.msra.mxu0 0.0
    %4117 = vmatprep.subr.mxu0 0.0
    %4118 = vmatpush1.msra.mxu0 0.0
    %4119 = vmatprep.subr.mxu0 0.0
    %4120 = vmatpush1.msra.mxu0 0.0
    %4121 = vmatprep.subr.mxu0 0.0
    %4122 = vmatpush1.msra.mxu0 0.0
    %4123 = vmatprep.subr.mxu0 0.0
    %4124 = vmatpush1.msra.mxu0 0.0
    %4125 = vmatprep.subr.mxu0 0.0
    %4126 = vmatpush1.msra.mxu0 0.0
    %4127 = vmatprep.subr.mxu0 0.0
    %4128 = vmatpush1.msra.mxu0 0.0
    %4129 = vmatprep.subr.mxu0 0.0
    %4130 = vmatpush1.msra.mxu0 0.0
    %4131 = vmatprep.subr.mxu0 0.0
    %4132 = vmatpush1.msra.mxu0 0.0
    %4133 = vmatprep.subr.mxu0 0.0
    %4134 = vmatpush1.msra.mxu0 0.0
    %4135 = vmatprep.subr.mxu0 0.0
    %4136 = vmatpush1.msra.mxu0 0.0
    %4137 = vmatprep.subr.mxu0 0.0
    %4138 = vmatpush1.msra.mxu0 0.0
    %4139 = vmatprep.subr.mxu0 0.0
    %4140 = vmatpush1.msra.mxu0 0.0
    %4141 = vmatprep.subr.mxu0 0.0
    %4142 = vmatpush1.msra.mxu0 0.0
    %4143 = vmatprep.subr.mxu0 0.0
    %4144 = vmatpush1.msra.mxu0 0.0
    %4145 = vmatprep.subr.mxu0 0.0
    %4146 = vmatpush1.msra.mxu0 0.0
    %4147 = vmatprep.subr.mxu0 0.0
    %4148 = vmatpush1.msra.mxu0 0.0
    %4149 = vmatprep.subr.mxu0 0.0
    %4150 = vmatpush1.msra.mxu0 0.0
    %4151 = vmatprep.subr.mxu0 0.0
    %4152 = vmatpush1.msra.mxu0 0.0
    %4153 = vmatprep.subr.mxu0 0.0
    %4154 = vmatpush1.msra.mxu0 0.0
    %4155 = vmatprep.subr.mxu0 0.0
    %4156 = vmatpush1.msra.mxu0 0.0
    %4157 = vmatprep.subr.mxu0 0.0
    %4158 = vmatpush1.msra.mxu0 0.0
    %4159 = vmatprep.subr.mxu0 0.0
    %4160 = vmatpush1.msra.mxu0 0.0
    %4161 = vmatprep.subr.mxu0 0.0
    %4162 = vmatpush1.msra.mxu0 0.0
    %4163 = vmatprep.subr.mxu0 0.0
    %4164 = vmatpush1.msra.mxu0 0.0
    %4165 = vmatprep.subr.mxu0 0.0
    %4166 = vmatpush1.msra.mxu0 0.0
    %4167 = vmatprep.subr.mxu0 0.0
    %4168 = vmatpush1.msra.mxu0 0.0
    %4169 = vmatprep.mubr.f32.mxu0 0.0
    %4170 = vmatmul.mubr.f32.gmra.mrb[0].mxu0 %v4103
    %v4171 = vpop.f32.mrb[0].mxu0
    %v4172 = vadd.f32 0.0, %v4171
    %v4173 = vpop.f32.mrb[0].mxu0
    %4174 = vdwg.mxu0
    %v4175 = vadd.f32 %v2807, %v3551
    %v4176 = vadd.f32 %v2808, %v3552
    %v4177 = vadd.f32 %v2809, %v3553
    %v4178 = vadd.f32 %v2810, %v3554
    %v4179 = vadd.f32 %v2811, %v3555
    %v4180 = vadd.f32 %v2812, %v3556
    %v4181 = vadd.f32 %v2813, %v3557
    %v4182 = vadd.f32 %v2814, %v3558
    %4183 = vrot.lane.b32.xlu0 %v2818, 64
    %v4184 = vpop.permute.xlu0 %4183
    %4185 = vrot.lane.b32.xlu0 %v1316, 64
    %v4186 = vpop.permute.xlu0 %4185
    %v4187 = vsel %vm1532, %v4184, 0
    %v4189 = vsel %vm1532, %v4186, 0
    %4191 = vmatprep.subr.mxu0 0.0
    %4192 = vmatpush1.xpose.msra.mxu0 %v4189
    %4193 = vmatprep.subr.mxu0 0.0
    %4194 = vmatpush1.xpose.msra.mxu0 0.0
    %4195 = vmatprep.subr.mxu0 0.0
    %4196 = vmatpush1.xpose.msra.mxu0 0.0
    %4197 = vmatprep.subr.mxu0 0.0
    %4198 = vmatpush1.xpose.msra.mxu0 0.0
    %4199 = vmatprep.subr.mxu0 0.0
    %4200 = vmatpush1.xpose.msra.mxu0 0.0
    %4201 = vmatprep.subr.mxu0 0.0
    %4202 = vmatpush1.xpose.msra.mxu0 0.0
    %4203 = vmatprep.subr.mxu0 0.0
    %4204 = vmatpush1.xpose.msra.mxu0 0.0
    %4205 = vmatprep.subr.mxu0 0.0
    %4206 = vmatpush1.xpose.msra.mxu0 0.0
    %4207 = vmatprep.subr.mxu0 0.0
    %4208 = vmatpush1.xpose.msra.mxu0 0.0
    %4209 = vmatprep.subr.mxu0 0.0
    %4210 = vmatpush1.xpose.msra.mxu0 0.0
    %4211 = vmatprep.subr.mxu0 0.0
    %4212 = vmatpush1.xpose.msra.mxu0 0.0
    %4213 = vmatprep.subr.mxu0 0.0
    %4214 = vmatpush1.xpose.msra.mxu0 0.0
    %4215 = vmatprep.subr.mxu0 0.0
    %4216 = vmatpush1.xpose.msra.mxu0 0.0
    %4217 = vmatprep.subr.mxu0 0.0
    %4218 = vmatpush1.xpose.msra.mxu0 0.0
    %4219 = vmatprep.subr.mxu0 0.0
    %4220 = vmatpush1.xpose.msra.mxu0 0.0
    %4221 = vmatprep.subr.mxu0 0.0
    %4222 = vmatpush1.xpose.msra.mxu0 0.0
    %4223 = vmatprep.subr.mxu0 0.0
    %4224 = vmatpush1.xpose.msra.mxu0 0.0
    %4225 = vmatprep.subr.mxu0 0.0
    %4226 = vmatpush1.xpose.msra.mxu0 0.0
    %4227 = vmatprep.subr.mxu0 0.0
    %4228 = vmatpush1.xpose.msra.mxu0 0.0
    %4229 = vmatprep.subr.mxu0 0.0
    %4230 = vmatpush1.xpose.msra.mxu0 0.0
    %4231 = vmatprep.subr.mxu0 0.0
    %4232 = vmatpush1.xpose.msra.mxu0 0.0
    %4233 = vmatprep.subr.mxu0 0.0
    %4234 = vmatpush1.xpose.msra.mxu0 0.0
    %4235 = vmatprep.subr.mxu0 0.0
    %4236 = vmatpush1.xpose.msra.mxu0 0.0
    %4237 = vmatprep.subr.mxu0 0.0
    %4238 = vmatpush1.xpose.msra.mxu0 0.0
    %4239 = vmatprep.subr.mxu0 0.0
    %4240 = vmatpush1.xpose.msra.mxu0 0.0
    %4241 = vmatprep.subr.mxu0 0.0
    %4242 = vmatpush1.xpose.msra.mxu0 0.0
    %4243 = vmatprep.subr.mxu0 0.0
    %4244 = vmatpush1.xpose.msra.mxu0 0.0
    %4245 = vmatprep.subr.mxu0 0.0
    %4246 = vmatpush1.xpose.msra.mxu0 0.0
    %4247 = vmatprep.subr.mxu0 0.0
    %4248 = vmatpush1.xpose.msra.mxu0 0.0
    %4249 = vmatprep.subr.mxu0 0.0
    %4250 = vmatpush1.xpose.msra.mxu0 0.0
    %4251 = vmatprep.subr.mxu0 0.0
    %4252 = vmatpush1.xpose.msra.mxu0 0.0
    %4253 = vmatprep.subr.mxu0 0.0
    %4254 = vmatpush1.xpose.msra.mxu0 0.0
    %4255 = vmatprep.mubr.f32.mxu0 0.0
    %4256 = vmatmul.mubr.f32.gmra.mrb[0].mxu0 %v4187
    %v4257 = vpop.f32.mrb[0].mxu0
    %v4258 = vadd.f32 0.0, %v4257
    %v4259 = vpop.f32.mrb[0].mxu0
    %4260 = vdwg.mxu0
    %4261 = vrot.lane.b32.xlu0 %v2900, 64
    %v4262 = vpop.permute.xlu0 %4261
    %4263 = vrot.lane.b32.xlu0 %v1319, 64
    %v4264 = vpop.permute.xlu0 %4263
    %v4265 = vsel %vm1532, %v4262, 0
    %v4267 = vsel %vm1532, %v4264, 0
    %4269 = vmatprep.subr.mxu0 0.0
    %4270 = vmatpush1.xpose.msra.mxu0 %v4267
    %4271 = vmatprep.subr.mxu0 0.0
    %4272 = vmatpush1.xpose.msra.mxu0 0.0
    %4273 = vmatprep.subr.mxu0 0.0
    %4274 = vmatpush1.xpose.msra.mxu0 0.0
    %4275 = vmatprep.subr.mxu0 0.0
    %4276 = vmatpush1.xpose.msra.mxu0 0.0
    %4277 = vmatprep.subr.mxu0 0.0
    %4278 = vmatpush1.xpose.msra.mxu0 0.0
    %4279 = vmatprep.subr.mxu0 0.0
    %4280 = vmatpush1.xpose.msra.mxu0 0.0
    %4281 = vmatprep.subr.mxu0 0.0
    %4282 = vmatpush1.xpose.msra.mxu0 0.0
    %4283 = vmatprep.subr.mxu0 0.0
    %4284 = vmatpush1.xpose.msra.mxu0 0.0
    %4285 = vmatprep.subr.mxu0 0.0
    %4286 = vmatpush1.xpose.msra.mxu0 0.0
    %4287 = vmatprep.subr.mxu0 0.0
    %4288 = vmatpush1.xpose.msra.mxu0 0.0
    %4289 = vmatprep.subr.mxu0 0.0
    %4290 = vmatpush1.xpose.msra.mxu0 0.0
    %4291 = vmatprep.subr.mxu0 0.0
    %4292 = vmatpush1.xpose.msra.mxu0 0.0
    %4293 = vmatprep.subr.mxu0 0.0
    %4294 = vmatpush1.xpose.msra.mxu0 0.0
    %4295 = vmatprep.subr.mxu0 0.0
    %4296 = vmatpush1.xpose.msra.mxu0 0.0
    %4297 = vmatprep.subr.mxu0 0.0
    %4298 = vmatpush1.xpose.msra.mxu0 0.0
    %4299 = vmatprep.subr.mxu0 0.0
    %4300 = vmatpush1.xpose.msra.mxu0 0.0
    %4301 = vmatprep.subr.mxu0 0.0
    %4302 = vmatpush1.xpose.msra.mxu0 0.0
    %4303 = vmatprep.subr.mxu0 0.0
    %4304 = vmatpush1.xpose.msra.mxu0 0.0
    %4305 = vmatprep.subr.mxu0 0.0
    %4306 = vmatpush1.xpose.msra.mxu0 0.0
    %4307 = vmatprep.subr.mxu0 0.0
    %4308 = vmatpush1.xpose.msra.mxu0 0.0
    %4309 = vmatprep.subr.mxu0 0.0
    %4310 = vmatpush1.xpose.msra.mxu0 0.0
    %4311 = vmatprep.subr.mxu0 0.0
    %4312 = vmatpush1.xpose.msra.mxu0 0.0
    %4313 = vmatprep.subr.mxu0 0.0
    %4314 = vmatpush1.xpose.msra.mxu0 0.0
    %4315 = vmatprep.subr.mxu0 0.0
    %4316 = vmatpush1.xpose.msra.mxu0 0.0
    %4317 = vmatprep.subr.mxu0 0.0
    %4318 = vmatpush1.xpose.msra.mxu0 0.0
    %4319 = vmatprep.subr.mxu0 0.0
    %4320 = vmatpush1.xpose.msra.mxu0 0.0
    %4321 = vmatprep.subr.mxu0 0.0
    %4322 = vmatpush1.xpose.msra.mxu0 0.0
    %4323 = vmatprep.subr.mxu0 0.0
    %4324 = vmatpush1.xpose.msra.mxu0 0.0
    %4325 = vmatprep.subr.mxu0 0.0
    %4326 = vmatpush1.xpose.msra.mxu0 0.0
    %4327 = vmatprep.subr.mxu0 0.0
    %4328 = vmatpush1.xpose.msra.mxu0 0.0
    %4329 = vmatprep.subr.mxu0 0.0
    %4330 = vmatpush1.xpose.msra.mxu0 0.0
    %4331 = vmatprep.subr.mxu0 0.0
    %4332 = vmatpush1.xpose.msra.mxu0 0.0
    %4333 = vmatprep.mubr.f32.mxu0 0.0
    %4334 = vmatmul.mubr.f32.gmra.mrb[0].mxu0 %v4265
    %v4335 = vpop.f32.mrb[0].mxu0
    %v4336 = vadd.f32 0.0, %v4335
    %v4337 = vpop.f32.mrb[0].mxu0
    %4338 = vdwg.mxu0
    %4339 = vrot.lane.b32.xlu0 %v2982, 64
    %v4340 = vpop.permute.xlu0 %4339
    %4341 = vrot.lane.b32.xlu0 %v1324, 64
    %v4342 = vpop.permute.xlu0 %4341
    %v4343 = vsel %vm1532, %v4340, 0
    %v4345 = vsel %vm1532, %v4342, 0
    %4347 = vmatprep.subr.mxu0 0.0
    %4348 = vmatpush1.xpose.msra.mxu0 %v4345
    %4349 = vmatprep.subr.mxu0 0.0
    %4350 = vmatpush1.xpose.msra.mxu0 0.0
    %4351 = vmatprep.subr.mxu0 0.0
    %4352 = vmatpush1.xpose.msra.mxu0 0.0
    %4353 = vmatprep.subr.mxu0 0.0
    %4354 = vmatpush1.xpose.msra.mxu0 0.0
    %4355 = vmatprep.subr.mxu0 0.0
    %4356 = vmatpush1.xpose.msra.mxu0 0.0
    %4357 = vmatprep.subr.mxu0 0.0
    %4358 = vmatpush1.xpose.msra.mxu0 0.0
    %4359 = vmatprep.subr.mxu0 0.0
    %4360 = vmatpush1.xpose.msra.mxu0 0.0
    %4361 = vmatprep.subr.mxu0 0.0
    %4362 = vmatpush1.xpose.msra.mxu0 0.0
    %4363 = vmatprep.subr.mxu0 0.0
    %4364 = vmatpush1.xpose.msra.mxu0 0.0
    %4365 = vmatprep.subr.mxu0 0.0
    %4366 = vmatpush1.xpose.msra.mxu0 0.0
    %4367 = vmatprep.subr.mxu0 0.0
    %4368 = vmatpush1.xpose.msra.mxu0 0.0
    %4369 = vmatprep.subr.mxu0 0.0
    %4370 = vmatpush1.xpose.msra.mxu0 0.0
    %4371 = vmatprep.subr.mxu0 0.0
    %4372 = vmatpush1.xpose.msra.mxu0 0.0
    %4373 = vmatprep.subr.mxu0 0.0
    %4374 = vmatpush1.xpose.msra.mxu0 0.0
    %4375 = vmatprep.subr.mxu0 0.0
    %4376 = vmatpush1.xpose.msra.mxu0 0.0
    %4377 = vmatprep.subr.mxu0 0.0
    %4378 = vmatpush1.xpose.msra.mxu0 0.0
    %4379 = vmatprep.subr.mxu0 0.0
    %4380 = vmatpush1.xpose.msra.mxu0 0.0
    %4381 = vmatprep.subr.mxu0 0.0
    %4382 = vmatpush1.xpose.msra.mxu0 0.0
    %4383 = vmatprep.subr.mxu0 0.0
    %4384 = vmatpush1.xpose.msra.mxu0 0.0
    %4385 = vmatprep.subr.mxu0 0.0
    %4386 = vmatpush1.xpose.msra.mxu0 0.0
    %4387 = vmatprep.subr.mxu0 0.0
    %4388 = vmatpush1.xpose.msra.mxu0 0.0
    %4389 = vmatprep.subr.mxu0 0.0
    %4390 = vmatpush1.xpose.msra.mxu0 0.0
    %4391 = vmatprep.subr.mxu0 0.0
    %4392 = vmatpush1.xpose.msra.mxu0 0.0
    %4393 = vmatprep.subr.mxu0 0.0
    %4394 = vmatpush1.xpose.msra.mxu0 0.0
    %4395 = vmatprep.subr.mxu0 0.0
    %4396 = vmatpush1.xpose.msra.mxu0 0.0
    %4397 = vmatprep.subr.mxu0 0.0
    %4398 = vmatpush1.xpose.msra.mxu0 0.0
    %4399 = vmatprep.subr.mxu0 0.0
    %4400 = vmatpush1.xpose.msra.mxu0 0.0
    %4401 = vmatprep.subr.mxu0 0.0
    %4402 = vmatpush1.xpose.msra.mxu0 0.0
    %4403 = vmatprep.subr.mxu0 0.0
    %4404 = vmatpush1.xpose.msra.mxu0 0.0
    %4405 = vmatprep.subr.mxu0 0.0
    %4406 = vmatpush1.xpose.msra.mxu0 0.0
    %4407 = vmatprep.subr.mxu0 0.0
    %4408 = vmatpush1.xpose.msra.mxu0 0.0
    %4409 = vmatprep.subr.mxu0 0.0
    %4410 = vmatpush1.xpose.msra.mxu0 0.0
    %4411 = vmatprep.mubr.f32.mxu0 0.0
    %4412 = vmatmul.mubr.f32.gmra.mrb[0].mxu0 %v4343
    %v4413 = vpop.f32.mrb[0].mxu0
    %v4414 = vadd.f32 0.0, %v4413
    %v4415 = vpop.f32.mrb[0].mxu0
    %4416 = vdwg.mxu0
    %4417 = vrot.lane.b32.xlu0 %v3064, 64
    %v4418 = vpop.permute.xlu0 %4417
    %4419 = vrot.lane.b32.xlu0 %v1327, 64
    %v4420 = vpop.permute.xlu0 %4419
    %v4421 = vsel %vm1532, %v4418, 0
    %v4423 = vsel %vm1532, %v4420, 0
    %4425 = vmatprep.subr.mxu0 0.0
    %4426 = vmatpush1.xpose.msra.mxu0 %v4423
    %4427 = vmatprep.subr.mxu0 0.0
    %4428 = vmatpush1.xpose.msra.mxu0 0.0
    %4429 = vmatprep.subr.mxu0 0.0
    %4430 = vmatpush1.xpose.msra.mxu0 0.0
    %4431 = vmatprep.subr.mxu0 0.0
    %4432 = vmatpush1.xpose.msra.mxu0 0.0
    %4433 = vmatprep.subr.mxu0 0.0
    %4434 = vmatpush1.xpose.msra.mxu0 0.0
    %4435 = vmatprep.subr.mxu0 0.0
    %4436 = vmatpush1.xpose.msra.mxu0 0.0
    %4437 = vmatprep.subr.mxu0 0.0
    %4438 = vmatpush1.xpose.msra.mxu0 0.0
    %4439 = vmatprep.subr.mxu0 0.0
    %4440 = vmatpush1.xpose.msra.mxu0 0.0
    %4441 = vmatprep.subr.mxu0 0.0
    %4442 = vmatpush1.xpose.msra.mxu0 0.0
    %4443 = vmatprep.subr.mxu0 0.0
    %4444 = vmatpush1.xpose.msra.mxu0 0.0
    %4445 = vmatprep.subr.mxu0 0.0
    %4446 = vmatpush1.xpose.msra.mxu0 0.0
    %4447 = vmatprep.subr.mxu0 0.0
    %4448 = vmatpush1.xpose.msra.mxu0 0.0
    %4449 = vmatprep.subr.mxu0 0.0
    %4450 = vmatpush1.xpose.msra.mxu0 0.0
    %4451 = vmatprep.subr.mxu0 0.0
    %4452 = vmatpush1.xpose.msra.mxu0 0.0
    %4453 = vmatprep.subr.mxu0 0.0
    %4454 = vmatpush1.xpose.msra.mxu0 0.0
    %4455 = vmatprep.subr.mxu0 0.0
    %4456 = vmatpush1.xpose.msra.mxu0 0.0
    %4457 = vmatprep.subr.mxu0 0.0
    %4458 = vmatpush1.xpose.msra.mxu0 0.0
    %4459 = vmatprep.subr.mxu0 0.0
    %4460 = vmatpush1.xpose.msra.mxu0 0.0
    %4461 = vmatprep.subr.mxu0 0.0
    %4462 = vmatpush1.xpose.msra.mxu0 0.0
    %4463 = vmatprep.subr.mxu0 0.0
    %4464 = vmatpush1.xpose.msra.mxu0 0.0
    %4465 = vmatprep.subr.mxu0 0.0
    %4466 = vmatpush1.xpose.msra.mxu0 0.0
    %4467 = vmatprep.subr.mxu0 0.0
    %4468 = vmatpush1.xpose.msra.mxu0 0.0
    %4469 = vmatprep.subr.mxu0 0.0
    %4470 = vmatpush1.xpose.msra.mxu0 0.0
    %4471 = vmatprep.subr.mxu0 0.0
    %4472 = vmatpush1.xpose.msra.mxu0 0.0
    %4473 = vmatprep.subr.mxu0 0.0
    %4474 = vmatpush1.xpose.msra.mxu0 0.0
    %4475 = vmatprep.subr.mxu0 0.0
    %4476 = vmatpush1.xpose.msra.mxu0 0.0
    %4477 = vmatprep.subr.mxu0 0.0
    %4478 = vmatpush1.xpose.msra.mxu0 0.0
    %4479 = vmatprep.subr.mxu0 0.0
    %4480 = vmatpush1.xpose.msra.mxu0 0.0
    %4481 = vmatprep.subr.mxu0 0.0
    %4482 = vmatpush1.xpose.msra.mxu0 0.0
    %4483 = vmatprep.subr.mxu0 0.0
    %4484 = vmatpush1.xpose.msra.mxu0 0.0
    %4485 = vmatprep.subr.mxu0 0.0
    %4486 = vmatpush1.xpose.msra.mxu0 0.0
    %4487 = vmatprep.subr.mxu0 0.0
    %4488 = vmatpush1.xpose.msra.mxu0 0.0
    %4489 = vmatprep.mubr.f32.mxu0 0.0
    %4490 = vmatmul.mubr.f32.gmra.mrb[0].mxu0 %v4421
    %v4491 = vpop.f32.mrb[0].mxu0
    %v4492 = vadd.f32 0.0, %v4491
    %v4493 = vpop.f32.mrb[0].mxu0
    %4494 = vdwg.mxu0
    %4495 = vrot.lane.b32.xlu0 %v3146, 64
    %v4496 = vpop.permute.xlu0 %4495
    %4497 = vrot.lane.b32.xlu0 %v1332, 64
    %v4498 = vpop.permute.xlu0 %4497
    %v4499 = vsel %vm1532, %v4496, 0
    %v4501 = vsel %vm1532, %v4498, 0
    %4503 = vmatprep.subr.mxu0 0.0
    %4504 = vmatpush1.xpose.msra.mxu0 %v4501
    %4505 = vmatprep.subr.mxu0 0.0
    %4506 = vmatpush1.xpose.msra.mxu0 0.0
    %4507 = vmatprep.subr.mxu0 0.0
    %4508 = vmatpush1.xpose.msra.mxu0 0.0
    %4509 = vmatprep.subr.mxu0 0.0
    %4510 = vmatpush1.xpose.msra.mxu0 0.0
    %4511 = vmatprep.subr.mxu0 0.0
    %4512 = vmatpush1.xpose.msra.mxu0 0.0
    %4513 = vmatprep.subr.mxu0 0.0
    %4514 = vmatpush1.xpose.msra.mxu0 0.0
    %4515 = vmatprep.subr.mxu0 0.0
    %4516 = vmatpush1.xpose.msra.mxu0 0.0
    %4517 = vmatprep.subr.mxu0 0.0
    %4518 = vmatpush1.xpose.msra.mxu0 0.0
    %4519 = vmatprep.subr.mxu0 0.0
    %4520 = vmatpush1.xpose.msra.mxu0 0.0
    %4521 = vmatprep.subr.mxu0 0.0
    %4522 = vmatpush1.xpose.msra.mxu0 0.0
    %4523 = vmatprep.subr.mxu0 0.0
    %4524 = vmatpush1.xpose.msra.mxu0 0.0
    %4525 = vmatprep.subr.mxu0 0.0
    %4526 = vmatpush1.xpose.msra.mxu0 0.0
    %4527 = vmatprep.subr.mxu0 0.0
    %4528 = vmatpush1.xpose.msra.mxu0 0.0
    %4529 = vmatprep.subr.mxu0 0.0
    %4530 = vmatpush1.xpose.msra.mxu0 0.0
    %4531 = vmatprep.subr.mxu0 0.0
    %4532 = vmatpush1.xpose.msra.mxu0 0.0
    %4533 = vmatprep.subr.mxu0 0.0
    %4534 = vmatpush1.xpose.msra.mxu0 0.0
    %4535 = vmatprep.subr.mxu0 0.0
    %4536 = vmatpush1.xpose.msra.mxu0 0.0
    %4537 = vmatprep.subr.mxu0 0.0
    %4538 = vmatpush1.xpose.msra.mxu0 0.0
    %4539 = vmatprep.subr.mxu0 0.0
    %4540 = vmatpush1.xpose.msra.mxu0 0.0
    %4541 = vmatprep.subr.mxu0 0.0
    %4542 = vmatpush1.xpose.msra.mxu0 0.0
    %4543 = vmatprep.subr.mxu0 0.0
    %4544 = vmatpush1.xpose.msra.mxu0 0.0
    %4545 = vmatprep.subr.mxu0 0.0
    %4546 = vmatpush1.xpose.msra.mxu0 0.0
    %4547 = vmatprep.subr.mxu0 0.0
    %4548 = vmatpush1.xpose.msra.mxu0 0.0
    %4549 = vmatprep.subr.mxu0 0.0
    %4550 = vmatpush1.xpose.msra.mxu0 0.0
    %4551 = vmatprep.subr.mxu0 0.0
    %4552 = vmatpush1.xpose.msra.mxu0 0.0
    %4553 = vmatprep.subr.mxu0 0.0
    %4554 = vmatpush1.xpose.msra.mxu0 0.0
    %4555 = vmatprep.subr.mxu0 0.0
    %4556 = vmatpush1.xpose.msra.mxu0 0.0
    %4557 = vmatprep.subr.mxu0 0.0
    %4558 = vmatpush1.xpose.msra.mxu0 0.0
    %4559 = vmatprep.subr.mxu0 0.0
    %4560 = vmatpush1.xpose.msra.mxu0 0.0
    %4561 = vmatprep.subr.mxu0 0.0
    %4562 = vmatpush1.xpose.msra.mxu0 0.0
    %4563 = vmatprep.subr.mxu0 0.0
    %4564 = vmatpush1.xpose.msra.mxu0 0.0
    %4565 = vmatprep.subr.mxu0 0.0
    %4566 = vmatpush1.xpose.msra.mxu0 0.0
    %4567 = vmatprep.mubr.f32.mxu0 0.0
    %4568 = vmatmul.mubr.f32.gmra.mrb[0].mxu0 %v4499
    %v4569 = vpop.f32.mrb[0].mxu0
    %v4570 = vadd.f32 0.0, %v4569
    %v4571 = vpop.f32.mrb[0].mxu0
    %4572 = vdwg.mxu0
    %4573 = vrot.lane.b32.xlu0 %v3228, 64
    %v4574 = vpop.permute.xlu0 %4573
    %4575 = vrot.lane.b32.xlu0 %v1335, 64
    %v4576 = vpop.permute.xlu0 %4575
    %v4577 = vsel %vm1532, %v4574, 0
    %v4579 = vsel %vm1532, %v4576, 0
    %4581 = vmatprep.subr.mxu0 0.0
    %4582 = vmatpush1.xpose.msra.mxu0 %v4579
    %4583 = vmatprep.subr.mxu0 0.0
    %4584 = vmatpush1.xpose.msra.mxu0 0.0
    %4585 = vmatprep.subr.mxu0 0.0
    %4586 = vmatpush1.xpose.msra.mxu0 0.0
    %4587 = vmatprep.subr.mxu0 0.0
    %4588 = vmatpush1.xpose.msra.mxu0 0.0
    %4589 = vmatprep.subr.mxu0 0.0
    %4590 = vmatpush1.xpose.msra.mxu0 0.0
    %4591 = vmatprep.subr.mxu0 0.0
    %4592 = vmatpush1.xpose.msra.mxu0 0.0
    %4593 = vmatprep.subr.mxu0 0.0
    %4594 = vmatpush1.xpose.msra.mxu0 0.0
    %4595 = vmatprep.subr.mxu0 0.0
    %4596 = vmatpush1.xpose.msra.mxu0 0.0
    %4597 = vmatprep.subr.mxu0 0.0
    %4598 = vmatpush1.xpose.msra.mxu0 0.0
    %4599 = vmatprep.subr.mxu0 0.0
    %4600 = vmatpush1.xpose.msra.mxu0 0.0
    %4601 = vmatprep.subr.mxu0 0.0
    %4602 = vmatpush1.xpose.msra.mxu0 0.0
    %4603 = vmatprep.subr.mxu0 0.0
    %4604 = vmatpush1.xpose.msra.mxu0 0.0
    %4605 = vmatprep.subr.mxu0 0.0
    %4606 = vmatpush1.xpose.msra.mxu0 0.0
    %4607 = vmatprep.subr.mxu0 0.0
    %4608 = vmatpush1.xpose.msra.mxu0 0.0
    %4609 = vmatprep.subr.mxu0 0.0
    %4610 = vmatpush1.xpose.msra.mxu0 0.0
    %4611 = vmatprep.subr.mxu0 0.0
    %4612 = vmatpush1.xpose.msra.mxu0 0.0
    %4613 = vmatprep.subr.mxu0 0.0
    %4614 = vmatpush1.xpose.msra.mxu0 0.0
    %4615 = vmatprep.subr.mxu0 0.0
    %4616 = vmatpush1.xpose.msra.mxu0 0.0
    %4617 = vmatprep.subr.mxu0 0.0
    %4618 = vmatpush1.xpose.msra.mxu0 0.0
    %4619 = vmatprep.subr.mxu0 0.0
    %4620 = vmatpush1.xpose.msra.mxu0 0.0
    %4621 = vmatprep.subr.mxu0 0.0
    %4622 = vmatpush1.xpose.msra.mxu0 0.0
    %4623 = vmatprep.subr.mxu0 0.0
    %4624 = vmatpush1.xpose.msra.mxu0 0.0
    %4625 = vmatprep.subr.mxu0 0.0
    %4626 = vmatpush1.xpose.msra.mxu0 0.0
    %4627 = vmatprep.subr.mxu0 0.0
    %4628 = vmatpush1.xpose.msra.mxu0 0.0
    %4629 = vmatprep.subr.mxu0 0.0
    %4630 = vmatpush1.xpose.msra.mxu0 0.0
    %4631 = vmatprep.subr.mxu0 0.0
    %4632 = vmatpush1.xpose.msra.mxu0 0.0
    %4633 = vmatprep.subr.mxu0 0.0
    %4634 = vmatpush1.xpose.msra.mxu0 0.0
    %4635 = vmatprep.subr.mxu0 0.0
    %4636 = vmatpush1.xpose.msra.mxu0 0.0
    %4637 = vmatprep.subr.mxu0 0.0
    %4638 = vmatpush1.xpose.msra.mxu0 0.0
    %4639 = vmatprep.subr.mxu0 0.0
    %4640 = vmatpush1.xpose.msra.mxu0 0.0
    %4641 = vmatprep.subr.mxu0 0.0
    %4642 = vmatpush1.xpose.msra.mxu0 0.0
    %4643 = vmatprep.subr.mxu0 0.0
    %4644 = vmatpush1.xpose.msra.mxu0 0.0
    %4645 = vmatprep.mubr.f32.mxu0 0.0
    %4646 = vmatmul.mubr.f32.gmra.mrb[0].mxu0 %v4577
    %v4647 = vpop.f32.mrb[0].mxu0
    %v4648 = vadd.f32 0.0, %v4647
    %v4649 = vpop.f32.mrb[0].mxu0
    %4650 = vdwg.mxu0
    %4651 = vrot.lane.b32.xlu0 %v3310, 64
    %v4652 = vpop.permute.xlu0 %4651
    %4653 = vrot.lane.b32.xlu0 %v1340, 64
    %v4654 = vpop.permute.xlu0 %4653
    %v4655 = vsel %vm1532, %v4652, 0
    %v4657 = vsel %vm1532, %v4654, 0
    %4659 = vmatprep.subr.mxu0 0.0
    %4660 = vmatpush1.xpose.msra.mxu0 %v4657
    %4661 = vmatprep.subr.mxu0 0.0
    %4662 = vmatpush1.xpose.msra.mxu0 0.0
    %4663 = vmatprep.subr.mxu0 0.0
    %4664 = vmatpush1.xpose.msra.mxu0 0.0
    %4665 = vmatprep.subr.mxu0 0.0
    %4666 = vmatpush1.xpose.msra.mxu0 0.0
    %4667 = vmatprep.subr.mxu0 0.0
    %4668 = vmatpush1.xpose.msra.mxu0 0.0
    %4669 = vmatprep.subr.mxu0 0.0
    %4670 = vmatpush1.xpose.msra.mxu0 0.0
    %4671 = vmatprep.subr.mxu0 0.0
    %4672 = vmatpush1.xpose.msra.mxu0 0.0
    %4673 = vmatprep.subr.mxu0 0.0
    %4674 = vmatpush1.xpose.msra.mxu0 0.0
    %4675 = vmatprep.subr.mxu0 0.0
    %4676 = vmatpush1.xpose.msra.mxu0 0.0
    %4677 = vmatprep.subr.mxu0 0.0
    %4678 = vmatpush1.xpose.msra.mxu0 0.0
    %4679 = vmatprep.subr.mxu0 0.0
    %4680 = vmatpush1.xpose.msra.mxu0 0.0
    %4681 = vmatprep.subr.mxu0 0.0
    %4682 = vmatpush1.xpose.msra.mxu0 0.0
    %4683 = vmatprep.subr.mxu0 0.0
    %4684 = vmatpush1.xpose.msra.mxu0 0.0
    %4685 = vmatprep.subr.mxu0 0.0
    %4686 = vmatpush1.xpose.msra.mxu0 0.0
    %4687 = vmatprep.subr.mxu0 0.0
    %4688 = vmatpush1.xpose.msra.mxu0 0.0
    %4689 = vmatprep.subr.mxu0 0.0
    %4690 = vmatpush1.xpose.msra.mxu0 0.0
    %4691 = vmatprep.subr.mxu0 0.0
    %4692 = vmatpush1.xpose.msra.mxu0 0.0
    %4693 = vmatprep.subr.mxu0 0.0
    %4694 = vmatpush1.xpose.msra.mxu0 0.0
    %4695 = vmatprep.subr.mxu0 0.0
    %4696 = vmatpush1.xpose.msra.mxu0 0.0
    %4697 = vmatprep.subr.mxu0 0.0
    %4698 = vmatpush1.xpose.msra.mxu0 0.0
    %4699 = vmatprep.subr.mxu0 0.0
    %4700 = vmatpush1.xpose.msra.mxu0 0.0
    %4701 = vmatprep.subr.mxu0 0.0
    %4702 = vmatpush1.xpose.msra.mxu0 0.0
    %4703 = vmatprep.subr.mxu0 0.0
    %4704 = vmatpush1.xpose.msra.mxu0 0.0
    %4705 = vmatprep.subr.mxu0 0.0
    %4706 = vmatpush1.xpose.msra.mxu0 0.0
    %4707 = vmatprep.subr.mxu0 0.0
    %4708 = vmatpush1.xpose.msra.mxu0 0.0
    %4709 = vmatprep.subr.mxu0 0.0
    %4710 = vmatpush1.xpose.msra.mxu0 0.0
    %4711 = vmatprep.subr.mxu0 0.0
    %4712 = vmatpush1.xpose.msra.mxu0 0.0
    %4713 = vmatprep.subr.mxu0 0.0
    %4714 = vmatpush1.xpose.msra.mxu0 0.0
    %4715 = vmatprep.subr.mxu0 0.0
    %4716 = vmatpush1.xpose.msra.mxu0 0.0
    %4717 = vmatprep.subr.mxu0 0.0
    %4718 = vmatpush1.xpose.msra.mxu0 0.0
    %4719 = vmatprep.subr.mxu0 0.0
    %4720 = vmatpush1.xpose.msra.mxu0 0.0
    %4721 = vmatprep.subr.mxu0 0.0
    %4722 = vmatpush1.xpose.msra.mxu0 0.0
    %4723 = vmatprep.mubr.f32.mxu0 0.0
    %4724 = vmatmul.mubr.f32.gmra.mrb[0].mxu0 %v4655
    %v4725 = vpop.f32.mrb[0].mxu0
    %v4726 = vadd.f32 0.0, %v4725
    %v4727 = vpop.f32.mrb[0].mxu0
    %4728 = vdwg.mxu0
    %4729 = vrot.lane.b32.xlu0 %v3392, 64
    %v4730 = vpop.permute.xlu0 %4729
    %4731 = vrot.lane.b32.xlu0 %v1343, 64
    %v4732 = vpop.permute.xlu0 %4731
    %v4733 = vsel %vm1532, %v4730, 0
    %v4735 = vsel %vm1532, %v4732, 0
    %4737 = vmatprep.subr.mxu0 0.0
    %4738 = vmatpush1.xpose.msra.mxu0 %v4735
    %4739 = vmatprep.subr.mxu0 0.0
    %4740 = vmatpush1.xpose.msra.mxu0 0.0
    %4741 = vmatprep.subr.mxu0 0.0
    %4742 = vmatpush1.xpose.msra.mxu0 0.0
    %4743 = vmatprep.subr.mxu0 0.0
    %4744 = vmatpush1.xpose.msra.mxu0 0.0
    %4745 = vmatprep.subr.mxu0 0.0
    %4746 = vmatpush1.xpose.msra.mxu0 0.0
    %4747 = vmatprep.subr.mxu0 0.0
    %4748 = vmatpush1.xpose.msra.mxu0 0.0
    %4749 = vmatprep.subr.mxu0 0.0
    %4750 = vmatpush1.xpose.msra.mxu0 0.0
    %4751 = vmatprep.subr.mxu0 0.0
    %4752 = vmatpush1.xpose.msra.mxu0 0.0
    %4753 = vmatprep.subr.mxu0 0.0
    %4754 = vmatpush1.xpose.msra.mxu0 0.0
    %4755 = vmatprep.subr.mxu0 0.0
    %4756 = vmatpush1.xpose.msra.mxu0 0.0
    %4757 = vmatprep.subr.mxu0 0.0
    %4758 = vmatpush1.xpose.msra.mxu0 0.0
    %4759 = vmatprep.subr.mxu0 0.0
    %4760 = vmatpush1.xpose.msra.mxu0 0.0
    %4761 = vmatprep.subr.mxu0 0.0
    %4762 = vmatpush1.xpose.msra.mxu0 0.0
    %4763 = vmatprep.subr.mxu0 0.0
    %4764 = vmatpush1.xpose.msra.mxu0 0.0
    %4765 = vmatprep.subr.mxu0 0.0
    %4766 = vmatpush1.xpose.msra.mxu0 0.0
    %4767 = vmatprep.subr.mxu0 0.0
    %4768 = vmatpush1.xpose.msra.mxu0 0.0
    %4769 = vmatprep.subr.mxu0 0.0
    %4770 = vmatpush1.xpose.msra.mxu0 0.0
    %4771 = vmatprep.subr.mxu0 0.0
    %4772 = vmatpush1.xpose.msra.mxu0 0.0
    %4773 = vmatprep.subr.mxu0 0.0
    %4774 = vmatpush1.xpose.msra.mxu0 0.0
    %4775 = vmatprep.subr.mxu0 0.0
    %4776 = vmatpush1.xpose.msra.mxu0 0.0
    %4777 = vmatprep.subr.mxu0 0.0
    %4778 = vmatpush1.xpose.msra.mxu0 0.0
    %4779 = vmatprep.subr.mxu0 0.0
    %4780 = vmatpush1.xpose.msra.mxu0 0.0
    %4781 = vmatprep.subr.mxu0 0.0
    %4782 = vmatpush1.xpose.msra.mxu0 0.0
    %4783 = vmatprep.subr.mxu0 0.0
    %4784 = vmatpush1.xpose.msra.mxu0 0.0
    %4785 = vmatprep.subr.mxu0 0.0
    %4786 = vmatpush1.xpose.msra.mxu0 0.0
    %4787 = vmatprep.subr.mxu0 0.0
    %4788 = vmatpush1.xpose.msra.mxu0 0.0
    %4789 = vmatprep.subr.mxu0 0.0
    %4790 = vmatpush1.xpose.msra.mxu0 0.0
    %4791 = vmatprep.subr.mxu0 0.0
    %4792 = vmatpush1.xpose.msra.mxu0 0.0
    %4793 = vmatprep.subr.mxu0 0.0
    %4794 = vmatpush1.xpose.msra.mxu0 0.0
    %4795 = vmatprep.subr.mxu0 0.0
    %4796 = vmatpush1.xpose.msra.mxu0 0.0
    %4797 = vmatprep.subr.mxu0 0.0
    %4798 = vmatpush1.xpose.msra.mxu0 0.0
    %4799 = vmatprep.subr.mxu0 0.0
    %4800 = vmatpush1.xpose.msra.mxu0 0.0
    %4801 = vmatprep.mubr.f32.mxu0 0.0
    %4802 = vmatmul.mubr.f32.gmra.mrb[0].mxu0 %v4733
    %v4803 = vpop.f32.mrb[0].mxu0
    %v4804 = vadd.f32 0.0, %v4803
    %v4805 = vpop.f32.mrb[0].mxu0
    %4806 = vdwg.mxu0
    %v4807 = vsel %vm2133, %v4258, -inf
    %4808 = vmax.xlane.f32.xlu0 %v4807
    %v4809 = vpop.xlane.xlu0 %4808
    %v4810 = vsel %vm2133, %v4336, -inf
    %4811 = vmax.xlane.f32.xlu0 %v4810
    %v4812 = vpop.xlane.xlu0 %4811
    %v4813 = vsel %vm2133, %v4414, -inf
    %4814 = vmax.xlane.f32.xlu0 %v4813
    %v4815 = vpop.xlane.xlu0 %4814
    %v4816 = vsel %vm2133, %v4492, -inf
    %4817 = vmax.xlane.f32.xlu0 %v4816
    %v4818 = vpop.xlane.xlu0 %4817
    %v4819 = vsel %vm2133, %v4570, -inf
    %4820 = vmax.xlane.f32.xlu0 %v4819
    %v4821 = vpop.xlane.xlu0 %4820
    %v4822 = vsel %vm2133, %v4648, -inf
    %4823 = vmax.xlane.f32.xlu0 %v4822
    %v4824 = vpop.xlane.xlu0 %4823
    %v4825 = vsel %vm2133, %v4726, -inf
    %4826 = vmax.xlane.f32.xlu0 %v4825
    %v4827 = vpop.xlane.xlu0 %4826
    %v4828 = vsel %vm2133, %v4804, -inf
    %4829 = vmax.xlane.f32.xlu0 %v4828
    %v4830 = vpop.xlane.xlu0 %4829
    %v4831 = vsub.f32 %v4258, %v4809
    %v4832 = vsub.f32 %v4336, %v4812
    %v4833 = vsub.f32 %v4414, %v4815
    %v4834 = vsub.f32 %v4492, %v4818
    %v4835 = vsub.f32 %v4570, %v4821
    %v4836 = vsub.f32 %v4648, %v4824
    %v4837 = vsub.f32 %v4726, %v4827
    %v4838 = vsub.f32 %v4804, %v4830
    %v4839 = vmul.f32 %v4831, 1.442695
    %v4840 = vpow.pop %v4839
    %v4841 = vmul.f32 %v4832, 1.442695
    %v4842 = vpow.pop %v4841
    %v4843 = vmul.f32 %v4833, 1.442695
    %v4844 = vpow.pop %v4843
    %v4845 = vmul.f32 %v4834, 1.442695
    %v4846 = vpow.pop %v4845
    %v4847 = vmul.f32 %v4835, 1.442695
    %v4848 = vpow.pop %v4847
    %v4849 = vmul.f32 %v4836, 1.442695
    %v4850 = vpow.pop %v4849
    %v4851 = vmul.f32 %v4837, 1.442695
    %v4852 = vpow.pop %v4851
    %v4853 = vmul.f32 %v4838, 1.442695
    %v4854 = vpow.pop %v4853
    %v4855 = vsel %vm2133, %v4840, 0.0
    %4856 = vadd.xlane.f32.xlu0 %v4855
    %v4857 = vpop.xlane.xlu0 %4856
    %v4858 = vsel %vm2133, %v4842, 0.0
    %4859 = vadd.xlane.f32.xlu0 %v4858
    %v4860 = vpop.xlane.xlu0 %4859
    %v4861 = vsel %vm2133, %v4844, 0.0
    %4862 = vadd.xlane.f32.xlu0 %v4861
    %v4863 = vpop.xlane.xlu0 %4862
    %v4864 = vsel %vm2133, %v4846, 0.0
    %4865 = vadd.xlane.f32.xlu0 %v4864
    %v4866 = vpop.xlane.xlu0 %4865
    %v4867 = vsel %vm2133, %v4848, 0.0
    %4868 = vadd.xlane.f32.xlu0 %v4867
    %v4869 = vpop.xlane.xlu0 %4868
    %v4870 = vsel %vm2133, %v4850, 0.0
    %4871 = vadd.xlane.f32.xlu0 %v4870
    %v4872 = vpop.xlane.xlu0 %4871
    %v4873 = vsel %vm2133, %v4852, 0.0
    %4874 = vadd.xlane.f32.xlu0 %v4873
    %v4875 = vpop.xlane.xlu0 %4874
    %v4876 = vsel %vm2133, %v4854, 0.0
    %4877 = vadd.xlane.f32.xlu0 %v4876
    %v4878 = vpop.xlane.xlu0 %4877
    %v4879 = vrcp.pop %v4857
    %v4880 = vrcp.pop %v4860
    %v4881 = vrcp.pop %v4863
    %v4882 = vrcp.pop %v4866
    %v4883 = vrcp.pop %v4869
    %v4884 = vrcp.pop %v4872
    %v4885 = vrcp.pop %v4875
    %v4886 = vrcp.pop %v4878
    %v4887 = vmul.f32 %v4840, %v4879
    %v4888 = vmul.f32 %v4842, %v4880
    %v4889 = vmul.f32 %v4844, %v4881
    %v4890 = vmul.f32 %v4846, %v4882
    %v4891 = vmul.f32 %v4848, %v4883
    %v4892 = vmul.f32 %v4850, %v4884
    %v4893 = vmul.f32 %v4852, %v4885
    %v4894 = vmul.f32 %v4854, %v4886
    %4895 = vrot.lane.b32.xlu0 %v1452, 64
    %v4896 = vpop.permute.xlu0 %4895
    %v4899 = vsel %vm2222, %v4887, 0
    %4901 = vmatprep.subr.mxu0 0.0
    %4902 = vmatpush1.msra.mxu0 %v4896
    %4903 = vmatprep.subr.mxu0 0.0
    %4904 = vmatpush1.msra.mxu0 0.0
    %4905 = vmatprep.subr.mxu0 0.0
    %4906 = vmatpush1.msra.mxu0 0.0
    %4907 = vmatprep.subr.mxu0 0.0
    %4908 = vmatpush1.msra.mxu0 0.0
    %4909 = vmatprep.subr.mxu0 0.0
    %4910 = vmatpush1.msra.mxu0 0.0
    %4911 = vmatprep.subr.mxu0 0.0
    %4912 = vmatpush1.msra.mxu0 0.0
    %4913 = vmatprep.subr.mxu0 0.0
    %4914 = vmatpush1.msra.mxu0 0.0
    %4915 = vmatprep.subr.mxu0 0.0
    %4916 = vmatpush1.msra.mxu0 0.0
    %4917 = vmatprep.subr.mxu0 0.0
    %4918 = vmatpush1.msra.mxu0 0.0
    %4919 = vmatprep.subr.mxu0 0.0
    %4920 = vmatpush1.msra.mxu0 0.0
    %4921 = vmatprep.subr.mxu0 0.0
    %4922 = vmatpush1.msra.mxu0 0.0
    %4923 = vmatprep.subr.mxu0 0.0
    %4924 = vmatpush1.msra.mxu0 0.0
    %4925 = vmatprep.subr.mxu0 0.0
    %4926 = vmatpush1.msra.mxu0 0.0
    %4927 = vmatprep.subr.mxu0 0.0
    %4928 = vmatpush1.msra.mxu0 0.0
    %4929 = vmatprep.subr.mxu0 0.0
    %4930 = vmatpush1.msra.mxu0 0.0
    %4931 = vmatprep.subr.mxu0 0.0
    %4932 = vmatpush1.msra.mxu0 0.0
    %4933 = vmatprep.subr.mxu0 0.0
    %4934 = vmatpush1.msra.mxu0 0.0
    %4935 = vmatprep.subr.mxu0 0.0
    %4936 = vmatpush1.msra.mxu0 0.0
    %4937 = vmatprep.subr.mxu0 0.0
    %4938 = vmatpush1.msra.mxu0 0.0
    %4939 = vmatprep.subr.mxu0 0.0
    %4940 = vmatpush1.msra.mxu0 0.0
    %4941 = vmatprep.subr.mxu0 0.0
    %4942 = vmatpush1.msra.mxu0 0.0
    %4943 = vmatprep.subr.mxu0 0.0
    %4944 = vmatpush1.msra.mxu0 0.0
    %4945 = vmatprep.subr.mxu0 0.0
    %4946 = vmatpush1.msra.mxu0 0.0
    %4947 = vmatprep.subr.mxu0 0.0
    %4948 = vmatpush1.msra.mxu0 0.0
    %4949 = vmatprep.subr.mxu0 0.0
    %4950 = vmatpush1.msra.mxu0 0.0
    %4951 = vmatprep.subr.mxu0 0.0
    %4952 = vmatpush1.msra.mxu0 0.0
    %4953 = vmatprep.subr.mxu0 0.0
    %4954 = vmatpush1.msra.mxu0 0.0
    %4955 = vmatprep.subr.mxu0 0.0
    %4956 = vmatpush1.msra.mxu0 0.0
    %4957 = vmatprep.subr.mxu0 0.0
    %4958 = vmatpush1.msra.mxu0 0.0
    %4959 = vmatprep.subr.mxu0 0.0
    %4960 = vmatpush1.msra.mxu0 0.0
    %4961 = vmatprep.subr.mxu0 0.0
    %4962 = vmatpush1.msra.mxu0 0.0
    %4963 = vmatprep.subr.mxu0 0.0
    %4964 = vmatpush1.msra.mxu0 0.0
    %4965 = vmatprep.mubr.f32.mxu0 0.0
    %4966 = vmatmul.mubr.f32.gmra.mrb[0].mxu0 %v4899
    %v4967 = vpop.f32.mrb[0].mxu0
    %v4968 = vadd.f32 0.0, %v4967
    %v4969 = vpop.f32.mrb[0].mxu0
    %4970 = vdwg.mxu0
    %4971 = vrot.lane.b32.xlu0 %v1455, 64
    %v4972 = vpop.permute.xlu0 %4971
    %v4975 = vsel %vm2222, %v4888, 0
    %4977 = vmatprep.subr.mxu0 0.0
    %4978 = vmatpush1.msra.mxu0 %v4972
    %4979 = vmatprep.subr.mxu0 0.0
    %4980 = vmatpush1.msra.mxu0 0.0
    %4981 = vmatprep.subr.mxu0 0.0
    %4982 = vmatpush1.msra.mxu0 0.0
    %4983 = vmatprep.subr.mxu0 0.0
    %4984 = vmatpush1.msra.mxu0 0.0
    %4985 = vmatprep.subr.mxu0 0.0
    %4986 = vmatpush1.msra.mxu0 0.0
    %4987 = vmatprep.subr.mxu0 0.0
    %4988 = vmatpush1.msra.mxu0 0.0
    %4989 = vmatprep.subr.mxu0 0.0
    %4990 = vmatpush1.msra.mxu0 0.0
    %4991 = vmatprep.subr.mxu0 0.0
    %4992 = vmatpush1.msra.mxu0 0.0
    %4993 = vmatprep.subr.mxu0 0.0
    %4994 = vmatpush1.msra.mxu0 0.0
    %4995 = vmatprep.subr.mxu0 0.0
    %4996 = vmatpush1.msra.mxu0 0.0
    %4997 = vmatprep.subr.mxu0 0.0
    %4998 = vmatpush1.msra.mxu0 0.0
    %4999 = vmatprep.subr.mxu0 0.0
    %5000 = vmatpush1.msra.mxu0 0.0
    %5001 = vmatprep.subr.mxu0 0.0
    %5002 = vmatpush1.msra.mxu0 0.0
    %5003 = vmatprep.subr.mxu0 0.0
    %5004 = vmatpush1.msra.mxu0 0.0
    %5005 = vmatprep.subr.mxu0 0.0
    %5006 = vmatpush1.msra.mxu0 0.0
    %5007 = vmatprep.subr.mxu0 0.0
    %5008 = vmatpush1.msra.mxu0 0.0
    %5009 = vmatprep.subr.mxu0 0.0
    %5010 = vmatpush1.msra.mxu0 0.0
    %5011 = vmatprep.subr.mxu0 0.0
    %5012 = vmatpush1.msra.mxu0 0.0
    %5013 = vmatprep.subr.mxu0 0.0
    %5014 = vmatpush1.msra.mxu0 0.0
    %5015 = vmatprep.subr.mxu0 0.0
    %5016 = vmatpush1.msra.mxu0 0.0
    %5017 = vmatprep.subr.mxu0 0.0
    %5018 = vmatpush1.msra.mxu0 0.0
    %5019 = vmatprep.subr.mxu0 0.0
    %5020 = vmatpush1.msra.mxu0 0.0
    %5021 = vmatprep.subr.mxu0 0.0
    %5022 = vmatpush1.msra.mxu0 0.0
    %5023 = vmatprep.subr.mxu0 0.0
    %5024 = vmatpush1.msra.mxu0 0.0
    %5025 = vmatprep.subr.mxu0 0.0
    %5026 = vmatpush1.msra.mxu0 0.0
    %5027 = vmatprep.subr.mxu0 0.0
    %5028 = vmatpush1.msra.mxu0 0.0
    %5029 = vmatprep.subr.mxu0 0.0
    %5030 = vmatpush1.msra.mxu0 0.0
    %5031 = vmatprep.subr.mxu0 0.0
    %5032 = vmatpush1.msra.mxu0 0.0
    %5033 = vmatprep.subr.mxu0 0.0
    %5034 = vmatpush1.msra.mxu0 0.0
    %5035 = vmatprep.subr.mxu0 0.0
    %5036 = vmatpush1.msra.mxu0 0.0
    %5037 = vmatprep.subr.mxu0 0.0
    %5038 = vmatpush1.msra.mxu0 0.0
    %5039 = vmatprep.subr.mxu0 0.0
    %5040 = vmatpush1.msra.mxu0 0.0
    %5041 = vmatprep.mubr.f32.mxu0 0.0
    %5042 = vmatmul.mubr.f32.gmra.mrb[0].mxu0 %v4975
    %v5043 = vpop.f32.mrb[0].mxu0
    %v5044 = vadd.f32 0.0, %v5043
    %v5045 = vpop.f32.mrb[0].mxu0
    %5046 = vdwg.mxu0
    %5047 = vrot.lane.b32.xlu0 %v1460, 64
    %v5048 = vpop.permute.xlu0 %5047
    %v5051 = vsel %vm2222, %v4889, 0
    %5053 = vmatprep.subr.mxu0 0.0
    %5054 = vmatpush1.msra.mxu0 %v5048
    %5055 = vmatprep.subr.mxu0 0.0
    %5056 = vmatpush1.msra.mxu0 0.0
    %5057 = vmatprep.subr.mxu0 0.0
    %5058 = vmatpush1.msra.mxu0 0.0
    %5059 = vmatprep.subr.mxu0 0.0
    %5060 = vmatpush1.msra.mxu0 0.0
    %5061 = vmatprep.subr.mxu0 0.0
    %5062 = vmatpush1.msra.mxu0 0.0
    %5063 = vmatprep.subr.mxu0 0.0
    %5064 = vmatpush1.msra.mxu0 0.0
    %5065 = vmatprep.subr.mxu0 0.0
    %5066 = vmatpush1.msra.mxu0 0.0
    %5067 = vmatprep.subr.mxu0 0.0
    %5068 = vmatpush1.msra.mxu0 0.0
    %5069 = vmatprep.subr.mxu0 0.0
    %5070 = vmatpush1.msra.mxu0 0.0
    %5071 = vmatprep.subr.mxu0 0.0
    %5072 = vmatpush1.msra.mxu0 0.0
    %5073 = vmatprep.subr.mxu0 0.0
    %5074 = vmatpush1.msra.mxu0 0.0
    %5075 = vmatprep.subr.mxu0 0.0
    %5076 = vmatpush1.msra.mxu0 0.0
    %5077 = vmatprep.subr.mxu0 0.0
    %5078 = vmatpush1.msra.mxu0 0.0
    %5079 = vmatprep.subr.mxu0 0.0
    %5080 = vmatpush1.msra.mxu0 0.0
    %5081 = vmatprep.subr.mxu0 0.0
    %5082 = vmatpush1.msra.mxu0 0.0
    %5083 = vmatprep.subr.mxu0 0.0
    %5084 = vmatpush1.msra.mxu0 0.0
    %5085 = vmatprep.subr.mxu0 0.0
    %5086 = vmatpush1.msra.mxu0 0.0
    %5087 = vmatprep.subr.mxu0 0.0
    %5088 = vmatpush1.msra.mxu0 0.0
    %5089 = vmatprep.subr.mxu0 0.0
    %5090 = vmatpush1.msra.mxu0 0.0
    %5091 = vmatprep.subr.mxu0 0.0
    %5092 = vmatpush1.msra.mxu0 0.0
    %5093 = vmatprep.subr.mxu0 0.0
    %5094 = vmatpush1.msra.mxu0 0.0
    %5095 = vmatprep.subr.mxu0 0.0
    %5096 = vmatpush1.msra.mxu0 0.0
    %5097 = vmatprep.subr.mxu0 0.0
    %5098 = vmatpush1.msra.mxu0 0.0
    %5099 = vmatprep.subr.mxu0 0.0
    %5100 = vmatpush1.msra.mxu0 0.0
    %5101 = vmatprep.subr.mxu0 0.0
    %5102 = vmatpush1.msra.mxu0 0.0
    %5103 = vmatprep.subr.mxu0 0.0
    %5104 = vmatpush1.msra.mxu0 0.0
    %5105 = vmatprep.subr.mxu0 0.0
    %5106 = vmatpush1.msra.mxu0 0.0
    %5107 = vmatprep.subr.mxu0 0.0
    %5108 = vmatpush1.msra.mxu0 0.0
    %5109 = vmatprep.subr.mxu0 0.0
    %5110 = vmatpush1.msra.mxu0 0.0
    %5111 = vmatprep.subr.mxu0 0.0
    %5112 = vmatpush1.msra.mxu0 0.0
    %5113 = vmatprep.subr.mxu0 0.0
    %5114 = vmatpush1.msra.mxu0 0.0
    %5115 = vmatprep.subr.mxu0 0.0
    %5116 = vmatpush1.msra.mxu0 0.0
    %5117 = vmatprep.mubr.f32.mxu0 0.0
    %5118 = vmatmul.mubr.f32.gmra.mrb[0].mxu0 %v5051
    %v5119 = vpop.f32.mrb[0].mxu0
    %v5120 = vadd.f32 0.0, %v5119
    %v5121 = vpop.f32.mrb[0].mxu0
    %5122 = vdwg.mxu0
    %5123 = vrot.lane.b32.xlu0 %v1463, 64
    %v5124 = vpop.permute.xlu0 %5123
    %v5127 = vsel %vm2222, %v4890, 0
    %5129 = vmatprep.subr.mxu0 0.0
    %5130 = vmatpush1.msra.mxu0 %v5124
    %5131 = vmatprep.subr.mxu0 0.0
    %5132 = vmatpush1.msra.mxu0 0.0
    %5133 = vmatprep.subr.mxu0 0.0
    %5134 = vmatpush1.msra.mxu0 0.0
    %5135 = vmatprep.subr.mxu0 0.0
    %5136 = vmatpush1.msra.mxu0 0.0
    %5137 = vmatprep.subr.mxu0 0.0
    %5138 = vmatpush1.msra.mxu0 0.0
    %5139 = vmatprep.subr.mxu0 0.0
    %5140 = vmatpush1.msra.mxu0 0.0
    %5141 = vmatprep.subr.mxu0 0.0
    %5142 = vmatpush1.msra.mxu0 0.0
    %5143 = vmatprep.subr.mxu0 0.0
    %5144 = vmatpush1.msra.mxu0 0.0
    %5145 = vmatprep.subr.mxu0 0.0
    %5146 = vmatpush1.msra.mxu0 0.0
    %5147 = vmatprep.subr.mxu0 0.0
    %5148 = vmatpush1.msra.mxu0 0.0
    %5149 = vmatprep.subr.mxu0 0.0
    %5150 = vmatpush1.msra.mxu0 0.0
    %5151 = vmatprep.subr.mxu0 0.0
    %5152 = vmatpush1.msra.mxu0 0.0
    %5153 = vmatprep.subr.mxu0 0.0
    %5154 = vmatpush1.msra.mxu0 0.0
    %5155 = vmatprep.subr.mxu0 0.0
    %5156 = vmatpush1.msra.mxu0 0.0
    %5157 = vmatprep.subr.mxu0 0.0
    %5158 = vmatpush1.msra.mxu0 0.0
    %5159 = vmatprep.subr.mxu0 0.0
    %5160 = vmatpush1.msra.mxu0 0.0
    %5161 = vmatprep.subr.mxu0 0.0
    %5162 = vmatpush1.msra.mxu0 0.0
    %5163 = vmatprep.subr.mxu0 0.0
    %5164 = vmatpush1.msra.mxu0 0.0
    %5165 = vmatprep.subr.mxu0 0.0
    %5166 = vmatpush1.msra.mxu0 0.0
    %5167 = vmatprep.subr.mxu0 0.0
    %5168 = vmatpush1.msra.mxu0 0.0
    %5169 = vmatprep.subr.mxu0 0.0
    %5170 = vmatpush1.msra.mxu0 0.0
    %5171 = vmatprep.subr.mxu0 0.0
    %5172 = vmatpush1.msra.mxu0 0.0
    %5173 = vmatprep.subr.mxu0 0.0
    %5174 = vmatpush1.msra.mxu0 0.0
    %5175 = vmatprep.subr.mxu0 0.0
    %5176 = vmatpush1.msra.mxu0 0.0
    %5177 = vmatprep.subr.mxu0 0.0
    %5178 = vmatpush1.msra.mxu0 0.0
    %5179 = vmatprep.subr.mxu0 0.0
    %5180 = vmatpush1.msra.mxu0 0.0
    %5181 = vmatprep.subr.mxu0 0.0
    %5182 = vmatpush1.msra.mxu0 0.0
    %5183 = vmatprep.subr.mxu0 0.0
    %5184 = vmatpush1.msra.mxu0 0.0
    %5185 = vmatprep.subr.mxu0 0.0
    %5186 = vmatpush1.msra.mxu0 0.0
    %5187 = vmatprep.subr.mxu0 0.0
    %5188 = vmatpush1.msra.mxu0 0.0
    %5189 = vmatprep.subr.mxu0 0.0
    %5190 = vmatpush1.msra.mxu0 0.0
    %5191 = vmatprep.subr.mxu0 0.0
    %5192 = vmatpush1.msra.mxu0 0.0
    %5193 = vmatprep.mubr.f32.mxu0 0.0
    %5194 = vmatmul.mubr.f32.gmra.mrb[0].mxu0 %v5127
    %v5195 = vpop.f32.mrb[0].mxu0
    %v5196 = vadd.f32 0.0, %v5195
    %v5197 = vpop.f32.mrb[0].mxu0
    %5198 = vdwg.mxu0
    %5199 = vrot.lane.b32.xlu0 %v1468, 64
    %v5200 = vpop.permute.xlu0 %5199
    %v5203 = vsel %vm2222, %v4891, 0
    %5205 = vmatprep.subr.mxu0 0.0
    %5206 = vmatpush1.msra.mxu0 %v5200
    %5207 = vmatprep.subr.mxu0 0.0
    %5208 = vmatpush1.msra.mxu0 0.0
    %5209 = vmatprep.subr.mxu0 0.0
    %5210 = vmatpush1.msra.mxu0 0.0
    %5211 = vmatprep.subr.mxu0 0.0
    %5212 = vmatpush1.msra.mxu0 0.0
    %5213 = vmatprep.subr.mxu0 0.0
    %5214 = vmatpush1.msra.mxu0 0.0
    %5215 = vmatprep.subr.mxu0 0.0
    %5216 = vmatpush1.msra.mxu0 0.0
    %5217 = vmatprep.subr.mxu0 0.0
    %5218 = vmatpush1.msra.mxu0 0.0
    %5219 = vmatprep.subr.mxu0 0.0
    %5220 = vmatpush1.msra.mxu0 0.0
    %5221 = vmatprep.subr.mxu0 0.0
    %5222 = vmatpush1.msra.mxu0 0.0
    %5223 = vmatprep.subr.mxu0 0.0
    %5224 = vmatpush1.msra.mxu0 0.0
    %5225 = vmatprep.subr.mxu0 0.0
    %5226 = vmatpush1.msra.mxu0 0.0
    %5227 = vmatprep.subr.mxu0 0.0
    %5228 = vmatpush1.msra.mxu0 0.0
    %5229 = vmatprep.subr.mxu0 0.0
    %5230 = vmatpush1.msra.mxu0 0.0
    %5231 = vmatprep.subr.mxu0 0.0
    %5232 = vmatpush1.msra.mxu0 0.0
    %5233 = vmatprep.subr.mxu0 0.0
    %5234 = vmatpush1.msra.mxu0 0.0
    %5235 = vmatprep.subr.mxu0 0.0
    %5236 = vmatpush1.msra.mxu0 0.0
    %5237 = vmatprep.subr.mxu0 0.0
    %5238 = vmatpush1.msra.mxu0 0.0
    %5239 = vmatprep.subr.mxu0 0.0
    %5240 = vmatpush1.msra.mxu0 0.0
    %5241 = vmatprep.subr.mxu0 0.0
    %5242 = vmatpush1.msra.mxu0 0.0
    %5243 = vmatprep.subr.mxu0 0.0
    %5244 = vmatpush1.msra.mxu0 0.0
    %5245 = vmatprep.subr.mxu0 0.0
    %5246 = vmatpush1.msra.mxu0 0.0
    %5247 = vmatprep.subr.mxu0 0.0
    %5248 = vmatpush1.msra.mxu0 0.0
    %5249 = vmatprep.subr.mxu0 0.0
    %5250 = vmatpush1.msra.mxu0 0.0
    %5251 = vmatprep.subr.mxu0 0.0
    %5252 = vmatpush1.msra.mxu0 0.0
    %5253 = vmatprep.subr.mxu0 0.0
    %5254 = vmatpush1.msra.mxu0 0.0
    %5255 = vmatprep.subr.mxu0 0.0
    %5256 = vmatpush1.msra.mxu0 0.0
    %5257 = vmatprep.subr.mxu0 0.0
    %5258 = vmatpush1.msra.mxu0 0.0
    %5259 = vmatprep.subr.mxu0 0.0
    %5260 = vmatpush1.msra.mxu0 0.0
    %5261 = vmatprep.subr.mxu0 0.0
    %5262 = vmatpush1.msra.mxu0 0.0
    %5263 = vmatprep.subr.mxu0 0.0
    %5264 = vmatpush1.msra.mxu0 0.0
    %5265 = vmatprep.subr.mxu0 0.0
    %5266 = vmatpush1.msra.mxu0 0.0
    %5267 = vmatprep.subr.mxu0 0.0
    %5268 = vmatpush1.msra.mxu0 0.0
    %5269 = vmatprep.mubr.f32.mxu0 0.0
    %5270 = vmatmul.mubr.f32.gmra.mrb[0].mxu0 %v5203
    %v5271 = vpop.f32.mrb[0].mxu0
    %v5272 = vadd.f32 0.0, %v5271
    %v5273 = vpop.f32.mrb[0].mxu0
    %5274 = vdwg.mxu0
    %5275 = vrot.lane.b32.xlu0 %v1471, 64
    %v5276 = vpop.permute.xlu0 %5275
    %v5279 = vsel %vm2222, %v4892, 0
    %5281 = vmatprep.subr.mxu0 0.0
    %5282 = vmatpush1.msra.mxu0 %v5276
    %5283 = vmatprep.subr.mxu0 0.0
    %5284 = vmatpush1.msra.mxu0 0.0
    %5285 = vmatprep.subr.mxu0 0.0
    %5286 = vmatpush1.msra.mxu0 0.0
    %5287 = vmatprep.subr.mxu0 0.0
    %5288 = vmatpush1.msra.mxu0 0.0
    %5289 = vmatprep.subr.mxu0 0.0
    %5290 = vmatpush1.msra.mxu0 0.0
    %5291 = vmatprep.subr.mxu0 0.0
    %5292 = vmatpush1.msra.mxu0 0.0
    %5293 = vmatprep.subr.mxu0 0.0
    %5294 = vmatpush1.msra.mxu0 0.0
    %5295 = vmatprep.subr.mxu0 0.0
    %5296 = vmatpush1.msra.mxu0 0.0
    %5297 = vmatprep.subr.mxu0 0.0
    %5298 = vmatpush1.msra.mxu0 0.0
    %5299 = vmatprep.subr.mxu0 0.0
    %5300 = vmatpush1.msra.mxu0 0.0
    %5301 = vmatprep.subr.mxu0 0.0
    %5302 = vmatpush1.msra.mxu0 0.0
    %5303 = vmatprep.subr.mxu0 0.0
    %5304 = vmatpush1.msra.mxu0 0.0
    %5305 = vmatprep.subr.mxu0 0.0
    %5306 = vmatpush1.msra.mxu0 0.0
    %5307 = vmatprep.subr.mxu0 0.0
    %5308 = vmatpush1.msra.mxu0 0.0
    %5309 = vmatprep.subr.mxu0 0.0
    %5310 = vmatpush1.msra.mxu0 0.0
    %5311 = vmatprep.subr.mxu0 0.0
    %5312 = vmatpush1.msra.mxu0 0.0
    %5313 = vmatprep.subr.mxu0 0.0
    %5314 = vmatpush1.msra.mxu0 0.0
    %5315 = vmatprep.subr.mxu0 0.0
    %5316 = vmatpush1.msra.mxu0 0.0
    %5317 = vmatprep.subr.mxu0 0.0
    %5318 = vmatpush1.msra.mxu0 0.0
    %5319 = vmatprep.subr.mxu0 0.0
    %5320 = vmatpush1.msra.mxu0 0.0
    %5321 = vmatprep.subr.mxu0 0.0
    %5322 = vmatpush1.msra.mxu0 0.0
    %5323 = vmatprep.subr.mxu0 0.0
    %5324 = vmatpush1.msra.mxu0 0.0
    %5325 = vmatprep.subr.mxu0 0.0
    %5326 = vmatpush1.msra.mxu0 0.0
    %5327 = vmatprep.subr.mxu0 0.0
    %5328 = vmatpush1.msra.mxu0 0.0
    %5329 = vmatprep.subr.mxu0 0.0
    %5330 = vmatpush1.msra.mxu0 0.0
    %5331 = vmatprep.subr.mxu0 0.0
    %5332 = vmatpush1.msra.mxu0 0.0
    %5333 = vmatprep.subr.mxu0 0.0
    %5334 = vmatpush1.msra.mxu0 0.0
    %5335 = vmatprep.subr.mxu0 0.0
    %5336 = vmatpush1.msra.mxu0 0.0
    %5337 = vmatprep.subr.mxu0 0.0
    %5338 = vmatpush1.msra.mxu0 0.0
    %5339 = vmatprep.subr.mxu0 0.0
    %5340 = vmatpush1.msra.mxu0 0.0
    %5341 = vmatprep.subr.mxu0 0.0
    %5342 = vmatpush1.msra.mxu0 0.0
    %5343 = vmatprep.subr.mxu0 0.0
    %5344 = vmatpush1.msra.mxu0 0.0
    %5345 = vmatprep.mubr.f32.mxu0 0.0
    %5346 = vmatmul.mubr.f32.gmra.mrb[0].mxu0 %v5279
    %v5347 = vpop.f32.mrb[0].mxu0
    %v5348 = vadd.f32 0.0, %v5347
    %v5349 = vpop.f32.mrb[0].mxu0
    %5350 = vdwg.mxu0
    %5351 = vrot.lane.b32.xlu0 %v1476, 64
    %v5352 = vpop.permute.xlu0 %5351
    %v5355 = vsel %vm2222, %v4893, 0
    %5357 = vmatprep.subr.mxu0 0.0
    %5358 = vmatpush1.msra.mxu0 %v5352
    %5359 = vmatprep.subr.mxu0 0.0
    %5360 = vmatpush1.msra.mxu0 0.0
    %5361 = vmatprep.subr.mxu0 0.0
    %5362 = vmatpush1.msra.mxu0 0.0
    %5363 = vmatprep.subr.mxu0 0.0
    %5364 = vmatpush1.msra.mxu0 0.0
    %5365 = vmatprep.subr.mxu0 0.0
    %5366 = vmatpush1.msra.mxu0 0.0
    %5367 = vmatprep.subr.mxu0 0.0
    %5368 = vmatpush1.msra.mxu0 0.0
    %5369 = vmatprep.subr.mxu0 0.0
    %5370 = vmatpush1.msra.mxu0 0.0
    %5371 = vmatprep.subr.mxu0 0.0
    %5372 = vmatpush1.msra.mxu0 0.0
    %5373 = vmatprep.subr.mxu0 0.0
    %5374 = vmatpush1.msra.mxu0 0.0
    %5375 = vmatprep.subr.mxu0 0.0
    %5376 = vmatpush1.msra.mxu0 0.0
    %5377 = vmatprep.subr.mxu0 0.0
    %5378 = vmatpush1.msra.mxu0 0.0
    %5379 = vmatprep.subr.mxu0 0.0
    %5380 = vmatpush1.msra.mxu0 0.0
    %5381 = vmatprep.subr.mxu0 0.0
    %5382 = vmatpush1.msra.mxu0 0.0
    %5383 = vmatprep.subr.mxu0 0.0
    %5384 = vmatpush1.msra.mxu0 0.0
    %5385 = vmatprep.subr.mxu0 0.0
    %5386 = vmatpush1.msra.mxu0 0.0
    %5387 = vmatprep.subr.mxu0 0.0
    %5388 = vmatpush1.msra.mxu0 0.0
    %5389 = vmatprep.subr.mxu0 0.0
    %5390 = vmatpush1.msra.mxu0 0.0
    %5391 = vmatprep.subr.mxu0 0.0
    %5392 = vmatpush1.msra.mxu0 0.0
    %5393 = vmatprep.subr.mxu0 0.0
    %5394 = vmatpush1.msra.mxu0 0.0
    %5395 = vmatprep.subr.mxu0 0.0
    %5396 = vmatpush1.msra.mxu0 0.0
    %5397 = vmatprep.subr.mxu0 0.0
    %5398 = vmatpush1.msra.mxu0 0.0
    %5399 = vmatprep.subr.mxu0 0.0
    %5400 = vmatpush1.msra.mxu0 0.0
    %5401 = vmatprep.subr.mxu0 0.0
    %5402 = vmatpush1.msra.mxu0 0.0
    %5403 = vmatprep.subr.mxu0 0.0
    %5404 = vmatpush1.msra.mxu0 0.0
    %5405 = vmatprep.subr.mxu0 0.0
    %5406 = vmatpush1.msra.mxu0 0.0
    %5407 = vmatprep.subr.mxu0 0.0
    %5408 = vmatpush1.msra.mxu0 0.0
    %5409 = vmatprep.subr.mxu0 0.0
    %5410 = vmatpush1.msra.mxu0 0.0
    %5411 = vmatprep.subr.mxu0 0.0
    %5412 = vmatpush1.msra.mxu0 0.0
    %5413 = vmatprep.subr.mxu0 0.0
    %5414 = vmatpush1.msra.mxu0 0.0
    %5415 = vmatprep.subr.mxu0 0.0
    %5416 = vmatpush1.msra.mxu0 0.0
    %5417 = vmatprep.subr.mxu0 0.0
    %5418 = vmatpush1.msra.mxu0 0.0
    %5419 = vmatprep.subr.mxu0 0.0
    %5420 = vmatpush1.msra.mxu0 0.0
    %5421 = vmatprep.mubr.f32.mxu0 0.0
    %5422 = vmatmul.mubr.f32.gmra.mrb[0].mxu0 %v5355
    %v5423 = vpop.f32.mrb[0].mxu0
    %v5424 = vadd.f32 0.0, %v5423
    %v5425 = vpop.f32.mrb[0].mxu0
    %5426 = vdwg.mxu0
    %5427 = vrot.lane.b32.xlu0 %v1479, 64
    %v5428 = vpop.permute.xlu0 %5427
    %v5431 = vsel %vm2222, %v4894, 0
    %5433 = vmatprep.subr.mxu0 0.0
    %5434 = vmatpush1.msra.mxu0 %v5428
    %5435 = vmatprep.subr.mxu0 0.0
    %5436 = vmatpush1.msra.mxu0 0.0
    %5437 = vmatprep.subr.mxu0 0.0
    %5438 = vmatpush1.msra.mxu0 0.0
    %5439 = vmatprep.subr.mxu0 0.0
    %5440 = vmatpush1.msra.mxu0 0.0
    %5441 = vmatprep.subr.mxu0 0.0
    %5442 = vmatpush1.msra.mxu0 0.0
    %5443 = vmatprep.subr.mxu0 0.0
    %5444 = vmatpush1.msra.mxu0 0.0
    %5445 = vmatprep.subr.mxu0 0.0
    %5446 = vmatpush1.msra.mxu0 0.0
    %5447 = vmatprep.subr.mxu0 0.0
    %5448 = vmatpush1.msra.mxu0 0.0
    %5449 = vmatprep.subr.mxu0 0.0
    %5450 = vmatpush1.msra.mxu0 0.0
    %5451 = vmatprep.subr.mxu0 0.0
    %5452 = vmatpush1.msra.mxu0 0.0
    %5453 = vmatprep.subr.mxu0 0.0
    %5454 = vmatpush1.msra.mxu0 0.0
    %5455 = vmatprep.subr.mxu0 0.0
    %5456 = vmatpush1.msra.mxu0 0.0
    %5457 = vmatprep.subr.mxu0 0.0
    %5458 = vmatpush1.msra.mxu0 0.0
    %5459 = vmatprep.subr.mxu0 0.0
    %5460 = vmatpush1.msra.mxu0 0.0
    %5461 = vmatprep.subr.mxu0 0.0
    %5462 = vmatpush1.msra.mxu0 0.0
    %5463 = vmatprep.subr.mxu0 0.0
    %5464 = vmatpush1.msra.mxu0 0.0
    %5465 = vmatprep.subr.mxu0 0.0
    %5466 = vmatpush1.msra.mxu0 0.0
    %5467 = vmatprep.subr.mxu0 0.0
    %5468 = vmatpush1.msra.mxu0 0.0
    %5469 = vmatprep.subr.mxu0 0.0
    %5470 = vmatpush1.msra.mxu0 0.0
    %5471 = vmatprep.subr.mxu0 0.0
    %5472 = vmatpush1.msra.mxu0 0.0
    %5473 = vmatprep.subr.mxu0 0.0
    %5474 = vmatpush1.msra.mxu0 0.0
    %5475 = vmatprep.subr.mxu0 0.0
    %5476 = vmatpush1.msra.mxu0 0.0
    %5477 = vmatprep.subr.mxu0 0.0
    %5478 = vmatpush1.msra.mxu0 0.0
    %5479 = vmatprep.subr.mxu0 0.0
    %5480 = vmatpush1.msra.mxu0 0.0
    %5481 = vmatprep.subr.mxu0 0.0
    %5482 = vmatpush1.msra.mxu0 0.0
    %5483 = vmatprep.subr.mxu0 0.0
    %5484 = vmatpush1.msra.mxu0 0.0
    %5485 = vmatprep.subr.mxu0 0.0
    %5486 = vmatpush1.msra.mxu0 0.0
    %5487 = vmatprep.subr.mxu0 0.0
    %5488 = vmatpush1.msra.mxu0 0.0
    %5489 = vmatprep.subr.mxu0 0.0
    %5490 = vmatpush1.msra.mxu0 0.0
    %5491 = vmatprep.subr.mxu0 0.0
    %5492 = vmatpush1.msra.mxu0 0.0
    %5493 = vmatprep.subr.mxu0 0.0
    %5494 = vmatpush1.msra.mxu0 0.0
    %5495 = vmatprep.subr.mxu0 0.0
    %5496 = vmatpush1.msra.mxu0 0.0
    %5497 = vmatprep.mubr.f32.mxu0 0.0
    %5498 = vmatmul.mubr.f32.gmra.mrb[0].mxu0 %v5431
    %v5499 = vpop.f32.mrb[0].mxu0
    %v5500 = vadd.f32 0.0, %v5499
    %v5501 = vpop.f32.mrb[0].mxu0
    %5502 = vdwg.mxu0
    %v5503 = vadd.f32 %v4175, %v4887
    %v5504 = vadd.f32 %v4176, %v4888
    %v5505 = vadd.f32 %v4177, %v4889
    %v5506 = vadd.f32 %v4178, %v4890
    %v5507 = vadd.f32 %v4179, %v4891
    %v5508 = vadd.f32 %v4180, %v4892
    %v5509 = vadd.f32 %v4181, %v4893
    %v5510 = vadd.f32 %v4182, %v4894
    %5511 = vrot.lane.b32.xlu0 %v2818, 32
    %v5512 = vpop.permute.xlu0 %5511
    %5513 = vrot.lane.b32.xlu0 %v1316, 32
    %v5514 = vpop.permute.xlu0 %5513
    %v5515 = vsel %vm1532, %v5512, 0
    %v5517 = vsel %vm1532, %v5514, 0
    %5519 = vmatprep.subr.mxu0 0.0
    %5520 = vmatpush1.xpose.msra.mxu0 %v5517
    %5521 = vmatprep.subr.mxu0 0.0
    %5522 = vmatpush1.xpose.msra.mxu0 0.0
    %5523 = vmatprep.subr.mxu0 0.0
    %5524 = vmatpush1.xpose.msra.mxu0 0.0
    %5525 = vmatprep.subr.mxu0 0.0
    %5526 = vmatpush1.xpose.msra.mxu0 0.0
    %5527 = vmatprep.subr.mxu0 0.0
    %5528 = vmatpush1.xpose.msra.mxu0 0.0
    %5529 = vmatprep.subr.mxu0 0.0
    %5530 = vmatpush1.xpose.msra.mxu0 0.0
    %5531 = vmatprep.subr.mxu0 0.0
    %5532 = vmatpush1.xpose.msra.mxu0 0.0
    %5533 = vmatprep.subr.mxu0 0.0
    %5534 = vmatpush1.xpose.msra.mxu0 0.0
    %5535 = vmatprep.subr.mxu0 0.0
    %5536 = vmatpush1.xpose.msra.mxu0 0.0
    %5537 = vmatprep.subr.mxu0 0.0
    %5538 = vmatpush1.xpose.msra.mxu0 0.0
    %5539 = vmatprep.subr.mxu0 0.0
    %5540 = vmatpush1.xpose.msra.mxu0 0.0
    %5541 = vmatprep.subr.mxu0 0.0
    %5542 = vmatpush1.xpose.msra.mxu0 0.0
    %5543 = vmatprep.subr.mxu0 0.0
    %5544 = vmatpush1.xpose.msra.mxu0 0.0
    %5545 = vmatprep.subr.mxu0 0.0
    %5546 = vmatpush1.xpose.msra.mxu0 0.0
    %5547 = vmatprep.subr.mxu0 0.0
    %5548 = vmatpush1.xpose.msra.mxu0 0.0
    %5549 = vmatprep.subr.mxu0 0.0
    %5550 = vmatpush1.xpose.msra.mxu0 0.0
    %5551 = vmatprep.subr.mxu0 0.0
    %5552 = vmatpush1.xpose.msra.mxu0 0.0
    %5553 = vmatprep.subr.mxu0 0.0
    %5554 = vmatpush1.xpose.msra.mxu0 0.0
    %5555 = vmatprep.subr.mxu0 0.0
    %5556 = vmatpush1.xpose.msra.mxu0 0.0
    %5557 = vmatprep.subr.mxu0 0.0
    %5558 = vmatpush1.xpose.msra.mxu0 0.0
    %5559 = vmatprep.subr.mxu0 0.0
    %5560 = vmatpush1.xpose.msra.mxu0 0.0
    %5561 = vmatprep.subr.mxu0 0.0
    %5562 = vmatpush1.xpose.msra.mxu0 0.0
    %5563 = vmatprep.subr.mxu0 0.0
    %5564 = vmatpush1.xpose.msra.mxu0 0.0
    %5565 = vmatprep.subr.mxu0 0.0
    %5566 = vmatpush1.xpose.msra.mxu0 0.0
    %5567 = vmatprep.subr.mxu0 0.0
    %5568 = vmatpush1.xpose.msra.mxu0 0.0
    %5569 = vmatprep.subr.mxu0 0.0
    %5570 = vmatpush1.xpose.msra.mxu0 0.0
    %5571 = vmatprep.subr.mxu0 0.0
    %5572 = vmatpush1.xpose.msra.mxu0 0.0
    %5573 = vmatprep.subr.mxu0 0.0
    %5574 = vmatpush1.xpose.msra.mxu0 0.0
    %5575 = vmatprep.subr.mxu0 0.0
    %5576 = vmatpush1.xpose.msra.mxu0 0.0
    %5577 = vmatprep.subr.mxu0 0.0
    %5578 = vmatpush1.xpose.msra.mxu0 0.0
    %5579 = vmatprep.subr.mxu0 0.0
    %5580 = vmatpush1.xpose.msra.mxu0 0.0
    %5581 = vmatprep.subr.mxu0 0.0
    %5582 = vmatpush1.xpose.msra.mxu0 0.0
    %5583 = vmatprep.mubr.f32.mxu0 0.0
    %5584 = vmatmul.mubr.f32.gmra.mrb[0].mxu0 %v5515
    %v5585 = vpop.f32.mrb[0].mxu0
    %v5586 = vadd.f32 0.0, %v5585
    %v5587 = vpop.f32.mrb[0].mxu0
    %5588 = vdwg.mxu0
    %5589 = vrot.lane.b32.xlu0 %v2900, 32
    %v5590 = vpop.permute.xlu0 %5589
    %5591 = vrot.lane.b32.xlu0 %v1319, 32
    %v5592 = vpop.permute.xlu0 %5591
    %v5593 = vsel %vm1532, %v5590, 0
    %v5595 = vsel %vm1532, %v5592, 0
    %5597 = vmatprep.subr.mxu0 0.0
    %5598 = vmatpush1.xpose.msra.mxu0 %v5595
    %5599 = vmatprep.subr.mxu0 0.0
    %5600 = vmatpush1.xpose.msra.mxu0 0.0
    %5601 = vmatprep.subr.mxu0 0.0
    %5602 = vmatpush1.xpose.msra.mxu0 0.0
    %5603 = vmatprep.subr.mxu0 0.0
    %5604 = vmatpush1.xpose.msra.mxu0 0.0
    %5605 = vmatprep.subr.mxu0 0.0
    %5606 = vmatpush1.xpose.msra.mxu0 0.0
    %5607 = vmatprep.subr.mxu0 0.0
    %5608 = vmatpush1.xpose.msra.mxu0 0.0
    %5609 = vmatprep.subr.mxu0 0.0
    %5610 = vmatpush1.xpose.msra.mxu0 0.0
    %5611 = vmatprep.subr.mxu0 0.0
    %5612 = vmatpush1.xpose.msra.mxu0 0.0
    %5613 = vmatprep.subr.mxu0 0.0
    %5614 = vmatpush1.xpose.msra.mxu0 0.0
    %5615 = vmatprep.subr.mxu0 0.0
    %5616 = vmatpush1.xpose.msra.mxu0 0.0
    %5617 = vmatprep.subr.mxu0 0.0
    %5618 = vmatpush1.xpose.msra.mxu0 0.0
    %5619 = vmatprep.subr.mxu0 0.0
    %5620 = vmatpush1.xpose.msra.mxu0 0.0
    %5621 = vmatprep.subr.mxu0 0.0
    %5622 = vmatpush1.xpose.msra.mxu0 0.0
    %5623 = vmatprep.subr.mxu0 0.0
    %5624 = vmatpush1.xpose.msra.mxu0 0.0
    %5625 = vmatprep.subr.mxu0 0.0
    %5626 = vmatpush1.xpose.msra.mxu0 0.0
    %5627 = vmatprep.subr.mxu0 0.0
    %5628 = vmatpush1.xpose.msra.mxu0 0.0
    %5629 = vmatprep.subr.mxu0 0.0
    %5630 = vmatpush1.xpose.msra.mxu0 0.0
    %5631 = vmatprep.subr.mxu0 0.0
    %5632 = vmatpush1.xpose.msra.mxu0 0.0
    %5633 = vmatprep.subr.mxu0 0.0
    %5634 = vmatpush1.xpose.msra.mxu0 0.0
    %5635 = vmatprep.subr.mxu0 0.0
    %5636 = vmatpush1.xpose.msra.mxu0 0.0
    %5637 = vmatprep.subr.mxu0 0.0
    %5638 = vmatpush1.xpose.msra.mxu0 0.0
    %5639 = vmatprep.subr.mxu0 0.0
    %5640 = vmatpush1.xpose.msra.mxu0 0.0
    %5641 = vmatprep.subr.mxu0 0.0
    %5642 = vmatpush1.xpose.msra.mxu0 0.0
    %5643 = vmatprep.subr.mxu0 0.0
    %5644 = vmatpush1.xpose.msra.mxu0 0.0
    %5645 = vmatprep.subr.mxu0 0.0
    %5646 = vmatpush1.xpose.msra.mxu0 0.0
    %5647 = vmatprep.subr.mxu0 0.0
    %5648 = vmatpush1.xpose.msra.mxu0 0.0
    %5649 = vmatprep.subr.mxu0 0.0
    %5650 = vmatpush1.xpose.msra.mxu0 0.0
    %5651 = vmatprep.subr.mxu0 0.0
    %5652 = vmatpush1.xpose.msra.mxu0 0.0
    %5653 = vmatprep.subr.mxu0 0.0
    %5654 = vmatpush1.xpose.msra.mxu0 0.0
    %5655 = vmatprep.subr.mxu0 0.0
    %5656 = vmatpush1.xpose.msra.mxu0 0.0
    %5657 = vmatprep.subr.mxu0 0.0
    %5658 = vmatpush1.xpose.msra.mxu0 0.0
    %5659 = vmatprep.subr.mxu0 0.0
    %5660 = vmatpush1.xpose.msra.mxu0 0.0
    %5661 = vmatprep.mubr.f32.mxu0 0.0
    %5662 = vmatmul.mubr.f32.gmra.mrb[0].mxu0 %v5593
    %v5663 = vpop.f32.mrb[0].mxu0
    %v5664 = vadd.f32 0.0, %v5663
    %v5665 = vpop.f32.mrb[0].mxu0
    %5666 = vdwg.mxu0
    %5667 = vrot.lane.b32.xlu0 %v2982, 32
    %v5668 = vpop.permute.xlu0 %5667
    %5669 = vrot.lane.b32.xlu0 %v1324, 32
    %v5670 = vpop.permute.xlu0 %5669
    %v5671 = vsel %vm1532, %v5668, 0
    %v5673 = vsel %vm1532, %v5670, 0
    %5675 = vmatprep.subr.mxu0 0.0
    %5676 = vmatpush1.xpose.msra.mxu0 %v5673
    %5677 = vmatprep.subr.mxu0 0.0
    %5678 = vmatpush1.xpose.msra.mxu0 0.0
    %5679 = vmatprep.subr.mxu0 0.0
    %5680 = vmatpush1.xpose.msra.mxu0 0.0
    %5681 = vmatprep.subr.mxu0 0.0
    %5682 = vmatpush1.xpose.msra.mxu0 0.0
    %5683 = vmatprep.subr.mxu0 0.0
    %5684 = vmatpush1.xpose.msra.mxu0 0.0
    %5685 = vmatprep.subr.mxu0 0.0
    %5686 = vmatpush1.xpose.msra.mxu0 0.0
    %5687 = vmatprep.subr.mxu0 0.0
    %5688 = vmatpush1.xpose.msra.mxu0 0.0
    %5689 = vmatprep.subr.mxu0 0.0
    %5690 = vmatpush1.xpose.msra.mxu0 0.0
    %5691 = vmatprep.subr.mxu0 0.0
    %5692 = vmatpush1.xpose.msra.mxu0 0.0
    %5693 = vmatprep.subr.mxu0 0.0
    %5694 = vmatpush1.xpose.msra.mxu0 0.0
    %5695 = vmatprep.subr.mxu0 0.0
    %5696 = vmatpush1.xpose.msra.mxu0 0.0
    %5697 = vmatprep.subr.mxu0 0.0
    %5698 = vmatpush1.xpose.msra.mxu0 0.0
    %5699 = vmatprep.subr.mxu0 0.0
    %5700 = vmatpush1.xpose.msra.mxu0 0.0
    %5701 = vmatprep.subr.mxu0 0.0
    %5702 = vmatpush1.xpose.msra.mxu0 0.0
    %5703 = vmatprep.subr.mxu0 0.0
    %5704 = vmatpush1.xpose.msra.mxu0 0.0
    %5705 = vmatprep.subr.mxu0 0.0
    %5706 = vmatpush1.xpose.msra.mxu0 0.0
    %5707 = vmatprep.subr.mxu0 0.0
    %5708 = vmatpush1.xpose.msra.mxu0 0.0
    %5709 = vmatprep.subr.mxu0 0.0
    %5710 = vmatpush1.xpose.msra.mxu0 0.0
    %5711 = vmatprep.subr.mxu0 0.0
    %5712 = vmatpush1.xpose.msra.mxu0 0.0
    %5713 = vmatprep.subr.mxu0 0.0
    %5714 = vmatpush1.xpose.msra.mxu0 0.0
    %5715 = vmatprep.subr.mxu0 0.0
    %5716 = vmatpush1.xpose.msra.mxu0 0.0
    %5717 = vmatprep.subr.mxu0 0.0
    %5718 = vmatpush1.xpose.msra.mxu0 0.0
    %5719 = vmatprep.subr.mxu0 0.0
    %5720 = vmatpush1.xpose.msra.mxu0 0.0
    %5721 = vmatprep.subr.mxu0 0.0
    %5722 = vmatpush1.xpose.msra.mxu0 0.0
    %5723 = vmatprep.subr.mxu0 0.0
    %5724 = vmatpush1.xpose.msra.mxu0 0.0
    %5725 = vmatprep.subr.mxu0 0.0
    %5726 = vmatpush1.xpose.msra.mxu0 0.0
    %5727 = vmatprep.subr.mxu0 0.0
    %5728 = vmatpush1.xpose.msra.mxu0 0.0
    %5729 = vmatprep.subr.mxu0 0.0
    %5730 = vmatpush1.xpose.msra.mxu0 0.0
    %5731 = vmatprep.subr.mxu0 0.0
    %5732 = vmatpush1.xpose.msra.mxu0 0.0
    %5733 = vmatprep.subr.mxu0 0.0
    %5734 = vmatpush1.xpose.msra.mxu0 0.0
    %5735 = vmatprep.subr.mxu0 0.0
    %5736 = vmatpush1.xpose.msra.mxu0 0.0
    %5737 = vmatprep.subr.mxu0 0.0
    %5738 = vmatpush1.xpose.msra.mxu0 0.0
    %5739 = vmatprep.mubr.f32.mxu0 0.0
    %5740 = vmatmul.mubr.f32.gmra.mrb[0].mxu0 %v5671
    %v5741 = vpop.f32.mrb[0].mxu0
    %v5742 = vadd.f32 0.0, %v5741
    %v5743 = vpop.f32.mrb[0].mxu0
    %5744 = vdwg.mxu0
    %5745 = vrot.lane.b32.xlu0 %v3064, 32
    %v5746 = vpop.permute.xlu0 %5745
    %5747 = vrot.lane.b32.xlu0 %v1327, 32
    %v5748 = vpop.permute.xlu0 %5747
    %v5749 = vsel %vm1532, %v5746, 0
    %v5751 = vsel %vm1532, %v5748, 0
    %5753 = vmatprep.subr.mxu0 0.0
    %5754 = vmatpush1.xpose.msra.mxu0 %v5751
    %5755 = vmatprep.subr.mxu0 0.0
    %5756 = vmatpush1.xpose.msra.mxu0 0.0
    %5757 = vmatprep.subr.mxu0 0.0
    %5758 = vmatpush1.xpose.msra.mxu0 0.0
    %5759 = vmatprep.subr.mxu0 0.0
    %5760 = vmatpush1.xpose.msra.mxu0 0.0
    %5761 = vmatprep.subr.mxu0 0.0
    %5762 = vmatpush1.xpose.msra.mxu0 0.0
    %5763 = vmatprep.subr.mxu0 0.0
    %5764 = vmatpush1.xpose.msra.mxu0 0.0
    %5765 = vmatprep.subr.mxu0 0.0
    %5766 = vmatpush1.xpose.msra.mxu0 0.0
    %5767 = vmatprep.subr.mxu0 0.0
    %5768 = vmatpush1.xpose.msra.mxu0 0.0
    %5769 = vmatprep.subr.mxu0 0.0
    %5770 = vmatpush1.xpose.msra.mxu0 0.0
    %5771 = vmatprep.subr.mxu0 0.0
    %5772 = vmatpush1.xpose.msra.mxu0 0.0
    %5773 = vmatprep.subr.mxu0 0.0
    %5774 = vmatpush1.xpose.msra.mxu0 0.0
    %5775 = vmatprep.subr.mxu0 0.0
    %5776 = vmatpush1.xpose.msra.mxu0 0.0
    %5777 = vmatprep.subr.mxu0 0.0
    %5778 = vmatpush1.xpose.msra.mxu0 0.0
    %5779 = vmatprep.subr.mxu0 0.0
    %5780 = vmatpush1.xpose.msra.mxu0 0.0
    %5781 = vmatprep.subr.mxu0 0.0
    %5782 = vmatpush1.xpose.msra.mxu0 0.0
    %5783 = vmatprep.subr.mxu0 0.0
    %5784 = vmatpush1.xpose.msra.mxu0 0.0
    %5785 = vmatprep.subr.mxu0 0.0
    %5786 = vmatpush1.xpose.msra.mxu0 0.0
    %5787 = vmatprep.subr.mxu0 0.0
    %5788 = vmatpush1.xpose.msra.mxu0 0.0
    %5789 = vmatprep.subr.mxu0 0.0
    %5790 = vmatpush1.xpose.msra.mxu0 0.0
    %5791 = vmatprep.subr.mxu0 0.0
    %5792 = vmatpush1.xpose.msra.mxu0 0.0
    %5793 = vmatprep.subr.mxu0 0.0
    %5794 = vmatpush1.xpose.msra.mxu0 0.0
    %5795 = vmatprep.subr.mxu0 0.0
    %5796 = vmatpush1.xpose.msra.mxu0 0.0
    %5797 = vmatprep.subr.mxu0 0.0
    %5798 = vmatpush1.xpose.msra.mxu0 0.0
    %5799 = vmatprep.subr.mxu0 0.0
    %5800 = vmatpush1.xpose.msra.mxu0 0.0
    %5801 = vmatprep.subr.mxu0 0.0
    %5802 = vmatpush1.xpose.msra.mxu0 0.0
    %5803 = vmatprep.subr.mxu0 0.0
    %5804 = vmatpush1.xpose.msra.mxu0 0.0
    %5805 = vmatprep.subr.mxu0 0.0
    %5806 = vmatpush1.xpose.msra.mxu0 0.0
    %5807 = vmatprep.subr.mxu0 0.0
    %5808 = vmatpush1.xpose.msra.mxu0 0.0
    %5809 = vmatprep.subr.mxu0 0.0
    %5810 = vmatpush1.xpose.msra.mxu0 0.0
    %5811 = vmatprep.subr.mxu0 0.0
    %5812 = vmatpush1.xpose.msra.mxu0 0.0
    %5813 = vmatprep.subr.mxu0 0.0
    %5814 = vmatpush1.xpose.msra.mxu0 0.0
    %5815 = vmatprep.subr.mxu0 0.0
    %5816 = vmatpush1.xpose.msra.mxu0 0.0
    %5817 = vmatprep.mubr.f32.mxu0 0.0
    %5818 = vmatmul.mubr.f32.gmra.mrb[0].mxu0 %v5749
    %v5819 = vpop.f32.mrb[0].mxu0
    %v5820 = vadd.f32 0.0, %v5819
    %v5821 = vpop.f32.mrb[0].mxu0
    %5822 = vdwg.mxu0
    %5823 = vrot.lane.b32.xlu0 %v3146, 32
    %v5824 = vpop.permute.xlu0 %5823
    %5825 = vrot.lane.b32.xlu0 %v1332, 32
    %v5826 = vpop.permute.xlu0 %5825
    %v5827 = vsel %vm1532, %v5824, 0
    %v5829 = vsel %vm1532, %v5826, 0
    %5831 = vmatprep.subr.mxu0 0.0
    %5832 = vmatpush1.xpose.msra.mxu0 %v5829
    %5833 = vmatprep.subr.mxu0 0.0
    %5834 = vmatpush1.xpose.msra.mxu0 0.0
    %5835 = vmatprep.subr.mxu0 0.0
    %5836 = vmatpush1.xpose.msra.mxu0 0.0
    %5837 = vmatprep.subr.mxu0 0.0
    %5838 = vmatpush1.xpose.msra.mxu0 0.0
    %5839 = vmatprep.subr.mxu0 0.0
    %5840 = vmatpush1.xpose.msra.mxu0 0.0
    %5841 = vmatprep.subr.mxu0 0.0
    %5842 = vmatpush1.xpose.msra.mxu0 0.0
    %5843 = vmatprep.subr.mxu0 0.0
    %5844 = vmatpush1.xpose.msra.mxu0 0.0
    %5845 = vmatprep.subr.mxu0 0.0
    %5846 = vmatpush1.xpose.msra.mxu0 0.0
    %5847 = vmatprep.subr.mxu0 0.0
    %5848 = vmatpush1.xpose.msra.mxu0 0.0
    %5849 = vmatprep.subr.mxu0 0.0
    %5850 = vmatpush1.xpose.msra.mxu0 0.0
    %5851 = vmatprep.subr.mxu0 0.0
    %5852 = vmatpush1.xpose.msra.mxu0 0.0
    %5853 = vmatprep.subr.mxu0 0.0
    %5854 = vmatpush1.xpose.msra.mxu0 0.0
    %5855 = vmatprep.subr.mxu0 0.0
    %5856 = vmatpush1.xpose.msra.mxu0 0.0
    %5857 = vmatprep.subr.mxu0 0.0
    %5858 = vmatpush1.xpose.msra.mxu0 0.0
    %5859 = vmatprep.subr.mxu0 0.0
    %5860 = vmatpush1.xpose.msra.mxu0 0.0
    %5861 = vmatprep.subr.mxu0 0.0
    %5862 = vmatpush1.xpose.msra.mxu0 0.0
    %5863 = vmatprep.subr.mxu0 0.0
    %5864 = vmatpush1.xpose.msra.mxu0 0.0
    %5865 = vmatprep.subr.mxu0 0.0
    %5866 = vmatpush1.xpose.msra.mxu0 0.0
    %5867 = vmatprep.subr.mxu0 0.0
    %5868 = vmatpush1.xpose.msra.mxu0 0.0
    %5869 = vmatprep.subr.mxu0 0.0
    %5870 = vmatpush1.xpose.msra.mxu0 0.0
    %5871 = vmatprep.subr.mxu0 0.0
    %5872 = vmatpush1.xpose.msra.mxu0 0.0
    %5873 = vmatprep.subr.mxu0 0.0
    %5874 = vmatpush1.xpose.msra.mxu0 0.0
    %5875 = vmatprep.subr.mxu0 0.0
    %5876 = vmatpush1.xpose.msra.mxu0 0.0
    %5877 = vmatprep.subr.mxu0 0.0
    %5878 = vmatpush1.xpose.msra.mxu0 0.0
    %5879 = vmatprep.subr.mxu0 0.0
    %5880 = vmatpush1.xpose.msra.mxu0 0.0
    %5881 = vmatprep.subr.mxu0 0.0
    %5882 = vmatpush1.xpose.msra.mxu0 0.0
    %5883 = vmatprep.subr.mxu0 0.0
    %5884 = vmatpush1.xpose.msra.mxu0 0.0
    %5885 = vmatprep.subr.mxu0 0.0
    %5886 = vmatpush1.xpose.msra.mxu0 0.0
    %5887 = vmatprep.subr.mxu0 0.0
    %5888 = vmatpush1.xpose.msra.mxu0 0.0
    %5889 = vmatprep.subr.mxu0 0.0
    %5890 = vmatpush1.xpose.msra.mxu0 0.0
    %5891 = vmatprep.subr.mxu0 0.0
    %5892 = vmatpush1.xpose.msra.mxu0 0.0
    %5893 = vmatprep.subr.mxu0 0.0
    %5894 = vmatpush1.xpose.msra.mxu0 0.0
    %5895 = vmatprep.mubr.f32.mxu0 0.0
    %5896 = vmatmul.mubr.f32.gmra.mrb[0].mxu0 %v5827
    %v5897 = vpop.f32.mrb[0].mxu0
    %v5898 = vadd.f32 0.0, %v5897
    %v5899 = vpop.f32.mrb[0].mxu0
    %5900 = vdwg.mxu0
    %5901 = vrot.lane.b32.xlu0 %v3228, 32
    %v5902 = vpop.permute.xlu0 %5901
    %5903 = vrot.lane.b32.xlu0 %v1335, 32
    %v5904 = vpop.permute.xlu0 %5903
    %v5905 = vsel %vm1532, %v5902, 0
    %v5907 = vsel %vm1532, %v5904, 0
    %5909 = vmatprep.subr.mxu0 0.0
    %5910 = vmatpush1.xpose.msra.mxu0 %v5907
    %5911 = vmatprep.subr.mxu0 0.0
    %5912 = vmatpush1.xpose.msra.mxu0 0.0
    %5913 = vmatprep.subr.mxu0 0.0
    %5914 = vmatpush1.xpose.msra.mxu0 0.0
    %5915 = vmatprep.subr.mxu0 0.0
    %5916 = vmatpush1.xpose.msra.mxu0 0.0
    %5917 = vmatprep.subr.mxu0 0.0
    %5918 = vmatpush1.xpose.msra.mxu0 0.0
    %5919 = vmatprep.subr.mxu0 0.0
    %5920 = vmatpush1.xpose.msra.mxu0 0.0
    %5921 = vmatprep.subr.mxu0 0.0
    %5922 = vmatpush1.xpose.msra.mxu0 0.0
    %5923 = vmatprep.subr.mxu0 0.0
    %5924 = vmatpush1.xpose.msra.mxu0 0.0
    %5925 = vmatprep.subr.mxu0 0.0
    %5926 = vmatpush1.xpose.msra.mxu0 0.0
    %5927 = vmatprep.subr.mxu0 0.0
    %5928 = vmatpush1.xpose.msra.mxu0 0.0
    %5929 = vmatprep.subr.mxu0 0.0
    %5930 = vmatpush1.xpose.msra.mxu0 0.0
    %5931 = vmatprep.subr.mxu0 0.0
    %5932 = vmatpush1.xpose.msra.mxu0 0.0
    %5933 = vmatprep.subr.mxu0 0.0
    %5934 = vmatpush1.xpose.msra.mxu0 0.0
    %5935 = vmatprep.subr.mxu0 0.0
    %5936 = vmatpush1.xpose.msra.mxu0 0.0
    %5937 = vmatprep.subr.mxu0 0.0
    %5938 = vmatpush1.xpose.msra.mxu0 0.0
    %5939 = vmatprep.subr.mxu0 0.0
    %5940 = vmatpush1.xpose.msra.mxu0 0.0
    %5941 = vmatprep.subr.mxu0 0.0
    %5942 = vmatpush1.xpose.msra.mxu0 0.0
    %5943 = vmatprep.subr.mxu0 0.0
    %5944 = vmatpush1.xpose.msra.mxu0 0.0
    %5945 = vmatprep.subr.mxu0 0.0
    %5946 = vmatpush1.xpose.msra.mxu0 0.0
    %5947 = vmatprep.subr.mxu0 0.0
    %5948 = vmatpush1.xpose.msra.mxu0 0.0
    %5949 = vmatprep.subr.mxu0 0.0
    %5950 = vmatpush1.xpose.msra.mxu0 0.0
    %5951 = vmatprep.subr.mxu0 0.0
    %5952 = vmatpush1.xpose.msra.mxu0 0.0
    %5953 = vmatprep.subr.mxu0 0.0
    %5954 = vmatpush1.xpose.msra.mxu0 0.0
    %5955 = vmatprep.subr.mxu0 0.0
    %5956 = vmatpush1.xpose.msra.mxu0 0.0
    %5957 = vmatprep.subr.mxu0 0.0
    %5958 = vmatpush1.xpose.msra.mxu0 0.0
    %5959 = vmatprep.subr.mxu0 0.0
    %5960 = vmatpush1.xpose.msra.mxu0 0.0
    %5961 = vmatprep.subr.mxu0 0.0
    %5962 = vmatpush1.xpose.msra.mxu0 0.0
    %5963 = vmatprep.subr.mxu0 0.0
    %5964 = vmatpush1.xpose.msra.mxu0 0.0
    %5965 = vmatprep.subr.mxu0 0.0
    %5966 = vmatpush1.xpose.msra.mxu0 0.0
    %5967 = vmatprep.subr.mxu0 0.0
    %5968 = vmatpush1.xpose.msra.mxu0 0.0
    %5969 = vmatprep.subr.mxu0 0.0
    %5970 = vmatpush1.xpose.msra.mxu0 0.0
    %5971 = vmatprep.subr.mxu0 0.0
    %5972 = vmatpush1.xpose.msra.mxu0 0.0
    %5973 = vmatprep.mubr.f32.mxu0 0.0
    %5974 = vmatmul.mubr.f32.gmra.mrb[0].mxu0 %v5905
    %v5975 = vpop.f32.mrb[0].mxu0
    %v5976 = vadd.f32 0.0, %v5975
    %v5977 = vpop.f32.mrb[0].mxu0
    %5978 = vdwg.mxu0
    %5979 = vrot.lane.b32.xlu0 %v3310, 32
    %v5980 = vpop.permute.xlu0 %5979
    %5981 = vrot.lane.b32.xlu0 %v1340, 32
    %v5982 = vpop.permute.xlu0 %5981
    %v5983 = vsel %vm1532, %v5980, 0
    %v5985 = vsel %vm1532, %v5982, 0
    %5987 = vmatprep.subr.mxu0 0.0
    %5988 = vmatpush1.xpose.msra.mxu0 %v5985
    %5989 = vmatprep.subr.mxu0 0.0
    %5990 = vmatpush1.xpose.msra.mxu0 0.0
    %5991 = vmatprep.subr.mxu0 0.0
    %5992 = vmatpush1.xpose.msra.mxu0 0.0
    %5993 = vmatprep.subr.mxu0 0.0
    %5994 = vmatpush1.xpose.msra.mxu0 0.0
    %5995 = vmatprep.subr.mxu0 0.0
    %5996 = vmatpush1.xpose.msra.mxu0 0.0
    %5997 = vmatprep.subr.mxu0 0.0
    %5998 = vmatpush1.xpose.msra.mxu0 0.0
    %5999 = vmatprep.subr.mxu0 0.0
    %6000 = vmatpush1.xpose.msra.mxu0 0.0
    %6001 = vmatprep.subr.mxu0 0.0
    %6002 = vmatpush1.xpose.msra.mxu0 0.0
    %6003 = vmatprep.subr.mxu0 0.0
    %6004 = vmatpush1.xpose.msra.mxu0 0.0
    %6005 = vmatprep.subr.mxu0 0.0
    %6006 = vmatpush1.xpose.msra.mxu0 0.0
    %6007 = vmatprep.subr.mxu0 0.0
    %6008 = vmatpush1.xpose.msra.mxu0 0.0
    %6009 = vmatprep.subr.mxu0 0.0
    %6010 = vmatpush1.xpose.msra.mxu0 0.0
    %6011 = vmatprep.subr.mxu0 0.0
    %6012 = vmatpush1.xpose.msra.mxu0 0.0
    %6013 = vmatprep.subr.mxu0 0.0
    %6014 = vmatpush1.xpose.msra.mxu0 0.0
    %6015 = vmatprep.subr.mxu0 0.0
    %6016 = vmatpush1.xpose.msra.mxu0 0.0
    %6017 = vmatprep.subr.mxu0 0.0
    %6018 = vmatpush1.xpose.msra.mxu0 0.0
    %6019 = vmatprep.subr.mxu0 0.0
    %6020 = vmatpush1.xpose.msra.mxu0 0.0
    %6021 = vmatprep.subr.mxu0 0.0
    %6022 = vmatpush1.xpose.msra.mxu0 0.0
    %6023 = vmatprep.subr.mxu0 0.0
    %6024 = vmatpush1.xpose.msra.mxu0 0.0
    %6025 = vmatprep.subr.mxu0 0.0
    %6026 = vmatpush1.xpose.msra.mxu0 0.0
    %6027 = vmatprep.subr.mxu0 0.0
    %6028 = vmatpush1.xpose.msra.mxu0 0.0
    %6029 = vmatprep.subr.mxu0 0.0
    %6030 = vmatpush1.xpose.msra.mxu0 0.0
    %6031 = vmatprep.subr.mxu0 0.0
    %6032 = vmatpush1.xpose.msra.mxu0 0.0
    %6033 = vmatprep.subr.mxu0 0.0
    %6034 = vmatpush1.xpose.msra.mxu0 0.0
    %6035 = vmatprep.subr.mxu0 0.0
    %6036 = vmatpush1.xpose.msra.mxu0 0.0
    %6037 = vmatprep.subr.mxu0 0.0
    %6038 = vmatpush1.xpose.msra.mxu0 0.0
    %6039 = vmatprep.subr.mxu0 0.0
    %6040 = vmatpush1.xpose.msra.mxu0 0.0
    %6041 = vmatprep.subr.mxu0 0.0
    %6042 = vmatpush1.xpose.msra.mxu0 0.0
    %6043 = vmatprep.subr.mxu0 0.0
    %6044 = vmatpush1.xpose.msra.mxu0 0.0
    %6045 = vmatprep.subr.mxu0 0.0
    %6046 = vmatpush1.xpose.msra.mxu0 0.0
    %6047 = vmatprep.subr.mxu0 0.0
    %6048 = vmatpush1.xpose.msra.mxu0 0.0
    %6049 = vmatprep.subr.mxu0 0.0
    %6050 = vmatpush1.xpose.msra.mxu0 0.0
    %6051 = vmatprep.mubr.f32.mxu0 0.0
    %6052 = vmatmul.mubr.f32.gmra.mrb[0].mxu0 %v5983
    %v6053 = vpop.f32.mrb[0].mxu0
    %v6054 = vadd.f32 0.0, %v6053
    %v6055 = vpop.f32.mrb[0].mxu0
    %6056 = vdwg.mxu0
    %6057 = vrot.lane.b32.xlu0 %v3392, 32
    %v6058 = vpop.permute.xlu0 %6057
    %6059 = vrot.lane.b32.xlu0 %v1343, 32
    %v6060 = vpop.permute.xlu0 %6059
    %v6061 = vsel %vm1532, %v6058, 0
    %v6063 = vsel %vm1532, %v6060, 0
    %6065 = vmatprep.subr.mxu0 0.0
    %6066 = vmatpush1.xpose.msra.mxu0 %v6063
    %6067 = vmatprep.subr.mxu0 0.0
    %6068 = vmatpush1.xpose.msra.mxu0 0.0
    %6069 = vmatprep.subr.mxu0 0.0
    %6070 = vmatpush1.xpose.msra.mxu0 0.0
    %6071 = vmatprep.subr.mxu0 0.0
    %6072 = vmatpush1.xpose.msra.mxu0 0.0
    %6073 = vmatprep.subr.mxu0 0.0
    %6074 = vmatpush1.xpose.msra.mxu0 0.0
    %6075 = vmatprep.subr.mxu0 0.0
    %6076 = vmatpush1.xpose.msra.mxu0 0.0
    %6077 = vmatprep.subr.mxu0 0.0
    %6078 = vmatpush1.xpose.msra.mxu0 0.0
    %6079 = vmatprep.subr.mxu0 0.0
    %6080 = vmatpush1.xpose.msra.mxu0 0.0
    %6081 = vmatprep.subr.mxu0 0.0
    %6082 = vmatpush1.xpose.msra.mxu0 0.0
    %6083 = vmatprep.subr.mxu0 0.0
    %6084 = vmatpush1.xpose.msra.mxu0 0.0
    %6085 = vmatprep.subr.mxu0 0.0
    %6086 = vmatpush1.xpose.msra.mxu0 0.0
    %6087 = vmatprep.subr.mxu0 0.0
    %6088 = vmatpush1.xpose.msra.mxu0 0.0
    %6089 = vmatprep.subr.mxu0 0.0
    %6090 = vmatpush1.xpose.msra.mxu0 0.0
    %6091 = vmatprep.subr.mxu0 0.0
    %6092 = vmatpush1.xpose.msra.mxu0 0.0
    %6093 = vmatprep.subr.mxu0 0.0
    %6094 = vmatpush1.xpose.msra.mxu0 0.0
    %6095 = vmatprep.subr.mxu0 0.0
    %6096 = vmatpush1.xpose.msra.mxu0 0.0
    %6097 = vmatprep.subr.mxu0 0.0
    %6098 = vmatpush1.xpose.msra.mxu0 0.0
    %6099 = vmatprep.subr.mxu0 0.0
    %6100 = vmatpush1.xpose.msra.mxu0 0.0
    %6101 = vmatprep.subr.mxu0 0.0
    %6102 = vmatpush1.xpose.msra.mxu0 0.0
    %6103 = vmatprep.subr.mxu0 0.0
    %6104 = vmatpush1.xpose.msra.mxu0 0.0
    %6105 = vmatprep.subr.mxu0 0.0
    %6106 = vmatpush1.xpose.msra.mxu0 0.0
    %6107 = vmatprep.subr.mxu0 0.0
    %6108 = vmatpush1.xpose.msra.mxu0 0.0
    %6109 = vmatprep.subr.mxu0 0.0
    %6110 = vmatpush1.xpose.msra.mxu0 0.0
    %6111 = vmatprep.subr.mxu0 0.0
    %6112 = vmatpush1.xpose.msra.mxu0 0.0
    %6113 = vmatprep.subr.mxu0 0.0
    %6114 = vmatpush1.xpose.msra.mxu0 0.0
    %6115 = vmatprep.subr.mxu0 0.0
    %6116 = vmatpush1.xpose.msra.mxu0 0.0
    %6117 = vmatprep.subr.mxu0 0.0
    %6118 = vmatpush1.xpose.msra.mxu0 0.0
    %6119 = vmatprep.subr.mxu0 0.0
    %6120 = vmatpush1.xpose.msra.mxu0 0.0
    %6121 = vmatprep.subr.mxu0 0.0
    %6122 = vmatpush1.xpose.msra.mxu0 0.0
    %6123 = vmatprep.subr.mxu0 0.0
    %6124 = vmatpush1.xpose.msra.mxu0 0.0
    %6125 = vmatprep.subr.mxu0 0.0
    %6126 = vmatpush1.xpose.msra.mxu0 0.0
    %6127 = vmatprep.subr.mxu0 0.0
    %6128 = vmatpush1.xpose.msra.mxu0 0.0
    %6129 = vmatprep.mubr.f32.mxu0 0.0
    %6130 = vmatmul.mubr.f32.gmra.mrb[0].mxu0 %v6061
    %v6131 = vpop.f32.mrb[0].mxu0
    %v6132 = vadd.f32 0.0, %v6131
    %v6133 = vpop.f32.mrb[0].mxu0
    %6134 = vdwg.mxu0
    %v6135 = vsel %vm2133, %v5586, -inf
    %6136 = vmax.xlane.f32.xlu0 %v6135
    %v6137 = vpop.xlane.xlu0 %6136
    %v6138 = vsel %vm2133, %v5664, -inf
    %6139 = vmax.xlane.f32.xlu0 %v6138
    %v6140 = vpop.xlane.xlu0 %6139
    %v6141 = vsel %vm2133, %v5742, -inf
    %6142 = vmax.xlane.f32.xlu0 %v6141
    %v6143 = vpop.xlane.xlu0 %6142
    %v6144 = vsel %vm2133, %v5820, -inf
    %6145 = vmax.xlane.f32.xlu0 %v6144
    %v6146 = vpop.xlane.xlu0 %6145
    %v6147 = vsel %vm2133, %v5898, -inf
    %6148 = vmax.xlane.f32.xlu0 %v6147
    %v6149 = vpop.xlane.xlu0 %6148
    %v6150 = vsel %vm2133, %v5976, -inf
    %6151 = vmax.xlane.f32.xlu0 %v6150
    %v6152 = vpop.xlane.xlu0 %6151
    %v6153 = vsel %vm2133, %v6054, -inf
    %6154 = vmax.xlane.f32.xlu0 %v6153
    %v6155 = vpop.xlane.xlu0 %6154
    %v6156 = vsel %vm2133, %v6132, -inf
    %6157 = vmax.xlane.f32.xlu0 %v6156
    %v6158 = vpop.xlane.xlu0 %6157
    %v6159 = vsub.f32 %v5586, %v6137
    %v6160 = vsub.f32 %v5664, %v6140
    %v6161 = vsub.f32 %v5742, %v6143
    %v6162 = vsub.f32 %v5820, %v6146
    %v6163 = vsub.f32 %v5898, %v6149
    %v6164 = vsub.f32 %v5976, %v6152
    %v6165 = vsub.f32 %v6054, %v6155
    %v6166 = vsub.f32 %v6132, %v6158
    %v6167 = vmul.f32 %v6159, 1.442695
    %v6168 = vpow.pop %v6167
    %v6169 = vmul.f32 %v6160, 1.442695
    %v6170 = vpow.pop %v6169
    %v6171 = vmul.f32 %v6161, 1.442695
    %v6172 = vpow.pop %v6171
    %v6173 = vmul.f32 %v6162, 1.442695
    %v6174 = vpow.pop %v6173
    %v6175 = vmul.f32 %v6163, 1.442695
    %v6176 = vpow.pop %v6175
    %v6177 = vmul.f32 %v6164, 1.442695
    %v6178 = vpow.pop %v6177
    %v6179 = vmul.f32 %v6165, 1.442695
    %v6180 = vpow.pop %v6179
    %v6181 = vmul.f32 %v6166, 1.442695
    %v6182 = vpow.pop %v6181
    %v6183 = vsel %vm2133, %v6168, 0.0
    %6184 = vadd.xlane.f32.xlu0 %v6183
    %v6185 = vpop.xlane.xlu0 %6184
    %v6186 = vsel %vm2133, %v6170, 0.0
    %6187 = vadd.xlane.f32.xlu0 %v6186
    %v6188 = vpop.xlane.xlu0 %6187
    %v6189 = vsel %vm2133, %v6172, 0.0
    %6190 = vadd.xlane.f32.xlu0 %v6189
    %v6191 = vpop.xlane.xlu0 %6190
    %v6192 = vsel %vm2133, %v6174, 0.0
    %6193 = vadd.xlane.f32.xlu0 %v6192
    %v6194 = vpop.xlane.xlu0 %6193
    %v6195 = vsel %vm2133, %v6176, 0.0
    %6196 = vadd.xlane.f32.xlu0 %v6195
    %v6197 = vpop.xlane.xlu0 %6196
    %v6198 = vsel %vm2133, %v6178, 0.0
    %6199 = vadd.xlane.f32.xlu0 %v6198
    %v6200 = vpop.xlane.xlu0 %6199
    %v6201 = vsel %vm2133, %v6180, 0.0
    %6202 = vadd.xlane.f32.xlu0 %v6201
    %v6203 = vpop.xlane.xlu0 %6202
    %v6204 = vsel %vm2133, %v6182, 0.0
    %6205 = vadd.xlane.f32.xlu0 %v6204
    %v6206 = vpop.xlane.xlu0 %6205
    %v6207 = vrcp.pop %v6185
    %v6208 = vrcp.pop %v6188
    %v6209 = vrcp.pop %v6191
    %v6210 = vrcp.pop %v6194
    %v6211 = vrcp.pop %v6197
    %v6212 = vrcp.pop %v6200
    %v6213 = vrcp.pop %v6203
    %v6214 = vrcp.pop %v6206
    %v6215 = vmul.f32 %v6168, %v6207
    %v6216 = vmul.f32 %v6170, %v6208
    %v6217 = vmul.f32 %v6172, %v6209
    %v6218 = vmul.f32 %v6174, %v6210
    %v6219 = vmul.f32 %v6176, %v6211
    %v6220 = vmul.f32 %v6178, %v6212
    %v6221 = vmul.f32 %v6180, %v6213
    %v6222 = vmul.f32 %v6182, %v6214
    %6223 = vrot.lane.b32.xlu0 %v1452, 32
    %v6224 = vpop.permute.xlu0 %6223
    %v6227 = vsel %vm2222, %v6215, 0
    %6229 = vmatprep.subr.mxu0 0.0
    %6230 = vmatpush1.msra.mxu0 %v6224
    %6231 = vmatprep.subr.mxu0 0.0
    %6232 = vmatpush1.msra.mxu0 0.0
    %6233 = vmatprep.subr.mxu0 0.0
    %6234 = vmatpush1.msra.mxu0 0.0
    %6235 = vmatprep.subr.mxu0 0.0
    %6236 = vmatpush1.msra.mxu0 0.0
    %6237 = vmatprep.subr.mxu0 0.0
    %6238 = vmatpush1.msra.mxu0 0.0
    %6239 = vmatprep.subr.mxu0 0.0
    %6240 = vmatpush1.msra.mxu0 0.0
    %6241 = vmatprep.subr.mxu0 0.0
    %6242 = vmatpush1.msra.mxu0 0.0
    %6243 = vmatprep.subr.mxu0 0.0
    %6244 = vmatpush1.msra.mxu0 0.0
    %6245 = vmatprep.subr.mxu0 0.0
    %6246 = vmatpush1.msra.mxu0 0.0
    %6247 = vmatprep.subr.mxu0 0.0
    %6248 = vmatpush1.msra.mxu0 0.0
    %6249 = vmatprep.subr.mxu0 0.0
    %6250 = vmatpush1.msra.mxu0 0.0
    %6251 = vmatprep.subr.mxu0 0.0
    %6252 = vmatpush1.msra.mxu0 0.0
    %6253 = vmatprep.subr.mxu0 0.0
    %6254 = vmatpush1.msra.mxu0 0.0
    %6255 = vmatprep.subr.mxu0 0.0
    %6256 = vmatpush1.msra.mxu0 0.0
    %6257 = vmatprep.subr.mxu0 0.0
    %6258 = vmatpush1.msra.mxu0 0.0
    %6259 = vmatprep.subr.mxu0 0.0
    %6260 = vmatpush1.msra.mxu0 0.0
    %6261 = vmatprep.subr.mxu0 0.0
    %6262 = vmatpush1.msra.mxu0 0.0
    %6263 = vmatprep.subr.mxu0 0.0
    %6264 = vmatpush1.msra.mxu0 0.0
    %6265 = vmatprep.subr.mxu0 0.0
    %6266 = vmatpush1.msra.mxu0 0.0
    %6267 = vmatprep.subr.mxu0 0.0
    %6268 = vmatpush1.msra.mxu0 0.0
    %6269 = vmatprep.subr.mxu0 0.0
    %6270 = vmatpush1.msra.mxu0 0.0
    %6271 = vmatprep.subr.mxu0 0.0
    %6272 = vmatpush1.msra.mxu0 0.0
    %6273 = vmatprep.subr.mxu0 0.0
    %6274 = vmatpush1.msra.mxu0 0.0
    %6275 = vmatprep.subr.mxu0 0.0
    %6276 = vmatpush1.msra.mxu0 0.0
    %6277 = vmatprep.subr.mxu0 0.0
    %6278 = vmatpush1.msra.mxu0 0.0
    %6279 = vmatprep.subr.mxu0 0.0
    %6280 = vmatpush1.msra.mxu0 0.0
    %6281 = vmatprep.subr.mxu0 0.0
    %6282 = vmatpush1.msra.mxu0 0.0
    %6283 = vmatprep.subr.mxu0 0.0
    %6284 = vmatpush1.msra.mxu0 0.0
    %6285 = vmatprep.subr.mxu0 0.0
    %6286 = vmatpush1.msra.mxu0 0.0
    %6287 = vmatprep.subr.mxu0 0.0
    %6288 = vmatpush1.msra.mxu0 0.0
    %6289 = vmatprep.subr.mxu0 0.0
    %6290 = vmatpush1.msra.mxu0 0.0
    %6291 = vmatprep.subr.mxu0 0.0
    %6292 = vmatpush1.msra.mxu0 0.0
    %6293 = vmatprep.mubr.f32.mxu0 0.0
    %6294 = vmatmul.mubr.f32.gmra.mrb[0].mxu0 %v6227
    %v6295 = vpop.f32.mrb[0].mxu0
    %v6296 = vadd.f32 0.0, %v6295
    %v6297 = vpop.f32.mrb[0].mxu0
    %6298 = vdwg.mxu0
    %6299 = vrot.lane.b32.xlu0 %v1455, 32
    %v6300 = vpop.permute.xlu0 %6299
    %v6303 = vsel %vm2222, %v6216, 0
    %6305 = vmatprep.subr.mxu0 0.0
    %6306 = vmatpush1.msra.mxu0 %v6300
    %6307 = vmatprep.subr.mxu0 0.0
    %6308 = vmatpush1.msra.mxu0 0.0
    %6309 = vmatprep.subr.mxu0 0.0
    %6310 = vmatpush1.msra.mxu0 0.0
    %6311 = vmatprep.subr.mxu0 0.0
    %6312 = vmatpush1.msra.mxu0 0.0
    %6313 = vmatprep.subr.mxu0 0.0
    %6314 = vmatpush1.msra.mxu0 0.0
    %6315 = vmatprep.subr.mxu0 0.0
    %6316 = vmatpush1.msra.mxu0 0.0
    %6317 = vmatprep.subr.mxu0 0.0
    %6318 = vmatpush1.msra.mxu0 0.0
    %6319 = vmatprep.subr.mxu0 0.0
    %6320 = vmatpush1.msra.mxu0 0.0
    %6321 = vmatprep.subr.mxu0 0.0
    %6322 = vmatpush1.msra.mxu0 0.0
    %6323 = vmatprep.subr.mxu0 0.0
    %6324 = vmatpush1.msra.mxu0 0.0
    %6325 = vmatprep.subr.mxu0 0.0
    %6326 = vmatpush1.msra.mxu0 0.0
    %6327 = vmatprep.subr.mxu0 0.0
    %6328 = vmatpush1.msra.mxu0 0.0
    %6329 = vmatprep.subr.mxu0 0.0
    %6330 = vmatpush1.msra.mxu0 0.0
    %6331 = vmatprep.subr.mxu0 0.0
    %6332 = vmatpush1.msra.mxu0 0.0
    %6333 = vmatprep.subr.mxu0 0.0
    %6334 = vmatpush1.msra.mxu0 0.0
    %6335 = vmatprep.subr.mxu0 0.0
    %6336 = vmatpush1.msra.mxu0 0.0
    %6337 = vmatprep.subr.mxu0 0.0
    %6338 = vmatpush1.msra.mxu0 0.0
    %6339 = vmatprep.subr.mxu0 0.0
    %6340 = vmatpush1.msra.mxu0 0.0
    %6341 = vmatprep.subr.mxu0 0.0
    %6342 = vmatpush1.msra.mxu0 0.0
    %6343 = vmatprep.subr.mxu0 0.0
    %6344 = vmatpush1.msra.mxu0 0.0
    %6345 = vmatprep.subr.mxu0 0.0
    %6346 = vmatpush1.msra.mxu0 0.0
    %6347 = vmatprep.subr.mxu0 0.0
    %6348 = vmatpush1.msra.mxu0 0.0
    %6349 = vmatprep.subr.mxu0 0.0
    %6350 = vmatpush1.msra.mxu0 0.0
    %6351 = vmatprep.subr.mxu0 0.0
    %6352 = vmatpush1.msra.mxu0 0.0
    %6353 = vmatprep.subr.mxu0 0.0
    %6354 = vmatpush1.msra.mxu0 0.0
    %6355 = vmatprep.subr.mxu0 0.0
    %6356 = vmatpush1.msra.mxu0 0.0
    %6357 = vmatprep.subr.mxu0 0.0
    %6358 = vmatpush1.msra.mxu0 0.0
    %6359 = vmatprep.subr.mxu0 0.0
    %6360 = vmatpush1.msra.mxu0 0.0
    %6361 = vmatprep.subr.mxu0 0.0
    %6362 = vmatpush1.msra.mxu0 0.0
    %6363 = vmatprep.subr.mxu0 0.0
    %6364 = vmatpush1.msra.mxu0 0.0
    %6365 = vmatprep.subr.mxu0 0.0
    %6366 = vmatpush1.msra.mxu0 0.0
    %6367 = vmatprep.subr.mxu0 0.0
    %6368 = vmatpush1.msra.mxu0 0.0
    %6369 = vmatprep.mubr.f32.mxu0 0.0
    %6370 = vmatmul.mubr.f32.gmra.mrb[0].mxu0 %v6303
    %v6371 = vpop.f32.mrb[0].mxu0
    %v6372 = vadd.f32 0.0, %v6371
    %v6373 = vpop.f32.mrb[0].mxu0
    %6374 = vdwg.mxu0
    %6375 = vrot.lane.b32.xlu0 %v1460, 32
    %v6376 = vpop.permute.xlu0 %6375
    %v6379 = vsel %vm2222, %v6217, 0
    %6381 = vmatprep.subr.mxu0 0.0
    %6382 = vmatpush1.msra.mxu0 %v6376
    %6383 = vmatprep.subr.mxu0 0.0
    %6384 = vmatpush1.msra.mxu0 0.0
    %6385 = vmatprep.subr.mxu0 0.0
    %6386 = vmatpush1.msra.mxu0 0.0
    %6387 = vmatprep.subr.mxu0 0.0
    %6388 = vmatpush1.msra.mxu0 0.0
    %6389 = vmatprep.subr.mxu0 0.0
    %6390 = vmatpush1.msra.mxu0 0.0
    %6391 = vmatprep.subr.mxu0 0.0
    %6392 = vmatpush1.msra.mxu0 0.0
    %6393 = vmatprep.subr.mxu0 0.0
    %6394 = vmatpush1.msra.mxu0 0.0
    %6395 = vmatprep.subr.mxu0 0.0
    %6396 = vmatpush1.msra.mxu0 0.0
    %6397 = vmatprep.subr.mxu0 0.0
    %6398 = vmatpush1.msra.mxu0 0.0
    %6399 = vmatprep.subr.mxu0 0.0
    %6400 = vmatpush1.msra.mxu0 0.0
    %6401 = vmatprep.subr.mxu0 0.0
    %6402 = vmatpush1.msra.mxu0 0.0
    %6403 = vmatprep.subr.mxu0 0.0
    %6404 = vmatpush1.msra.mxu0 0.0
    %6405 = vmatprep.subr.mxu0 0.0
    %6406 = vmatpush1.msra.mxu0 0.0
    %6407 = vmatprep.subr.mxu0 0.0
    %6408 = vmatpush1.msra.mxu0 0.0
    %6409 = vmatprep.subr.mxu0 0.0
    %6410 = vmatpush1.msra.mxu0 0.0
    %6411 = vmatprep.subr.mxu0 0.0
    %6412 = vmatpush1.msra.mxu0 0.0
    %6413 = vmatprep.subr.mxu0 0.0
    %6414 = vmatpush1.msra.mxu0 0.0
    %6415 = vmatprep.subr.mxu0 0.0
    %6416 = vmatpush1.msra.mxu0 0.0
    %6417 = vmatprep.subr.mxu0 0.0
    %6418 = vmatpush1.msra.mxu0 0.0
    %6419 = vmatprep.subr.mxu0 0.0
    %6420 = vmatpush1.msra.mxu0 0.0
    %6421 = vmatprep.subr.mxu0 0.0
    %6422 = vmatpush1.msra.mxu0 0.0
    %6423 = vmatprep.subr.mxu0 0.0
    %6424 = vmatpush1.msra.mxu0 0.0
    %6425 = vmatprep.subr.mxu0 0.0
    %6426 = vmatpush1.msra.mxu0 0.0
    %6427 = vmatprep.subr.mxu0 0.0
    %6428 = vmatpush1.msra.mxu0 0.0
    %6429 = vmatprep.subr.mxu0 0.0
    %6430 = vmatpush1.msra.mxu0 0.0
    %6431 = vmatprep.subr.mxu0 0.0
    %6432 = vmatpush1.msra.mxu0 0.0
    %6433 = vmatprep.subr.mxu0 0.0
    %6434 = vmatpush1.msra.mxu0 0.0
    %6435 = vmatprep.subr.mxu0 0.0
    %6436 = vmatpush1.msra.mxu0 0.0
    %6437 = vmatprep.subr.mxu0 0.0
    %6438 = vmatpush1.msra.mxu0 0.0
    %6439 = vmatprep.subr.mxu0 0.0
    %6440 = vmatpush1.msra.mxu0 0.0
    %6441 = vmatprep.subr.mxu0 0.0
    %6442 = vmatpush1.msra.mxu0 0.0
    %6443 = vmatprep.subr.mxu0 0.0
    %6444 = vmatpush1.msra.mxu0 0.0
    %6445 = vmatprep.mubr.f32.mxu0 0.0
    %6446 = vmatmul.mubr.f32.gmra.mrb[0].mxu0 %v6379
    %v6447 = vpop.f32.mrb[0].mxu0
    %v6448 = vadd.f32 0.0, %v6447
    %v6449 = vpop.f32.mrb[0].mxu0
    %6450 = vdwg.mxu0
    %6451 = vrot.lane.b32.xlu0 %v1463, 32
    %v6452 = vpop.permute.xlu0 %6451
    %v6455 = vsel %vm2222, %v6218, 0
    %6457 = vmatprep.subr.mxu0 0.0
    %6458 = vmatpush1.msra.mxu0 %v6452
    %6459 = vmatprep.subr.mxu0 0.0
    %6460 = vmatpush1.msra.mxu0 0.0
    %6461 = vmatprep.subr.mxu0 0.0
    %6462 = vmatpush1.msra.mxu0 0.0
    %6463 = vmatprep.subr.mxu0 0.0
    %6464 = vmatpush1.msra.mxu0 0.0
    %6465 = vmatprep.subr.mxu0 0.0
    %6466 = vmatpush1.msra.mxu0 0.0
    %6467 = vmatprep.subr.mxu0 0.0
    %6468 = vmatpush1.msra.mxu0 0.0
    %6469 = vmatprep.subr.mxu0 0.0
    %6470 = vmatpush1.msra.mxu0 0.0
    %6471 = vmatprep.subr.mxu0 0.0
    %6472 = vmatpush1.msra.mxu0 0.0
    %6473 = vmatprep.subr.mxu0 0.0
    %6474 = vmatpush1.msra.mxu0 0.0
    %6475 = vmatprep.subr.mxu0 0.0
    %6476 = vmatpush1.msra.mxu0 0.0
    %6477 = vmatprep.subr.mxu0 0.0
    %6478 = vmatpush1.msra.mxu0 0.0
    %6479 = vmatprep.subr.mxu0 0.0
    %6480 = vmatpush1.msra.mxu0 0.0
    %6481 = vmatprep.subr.mxu0 0.0
    %6482 = vmatpush1.msra.mxu0 0.0
    %6483 = vmatprep.subr.mxu0 0.0
    %6484 = vmatpush1.msra.mxu0 0.0
    %6485 = vmatprep.subr.mxu0 0.0
    %6486 = vmatpush1.msra.mxu0 0.0
    %6487 = vmatprep.subr.mxu0 0.0
    %6488 = vmatpush1.msra.mxu0 0.0
    %6489 = vmatprep.subr.mxu0 0.0
    %6490 = vmatpush1.msra.mxu0 0.0
    %6491 = vmatprep.subr.mxu0 0.0
    %6492 = vmatpush1.msra.mxu0 0.0
    %6493 = vmatprep.subr.mxu0 0.0
    %6494 = vmatpush1.msra.mxu0 0.0
    %6495 = vmatprep.subr.mxu0 0.0
    %6496 = vmatpush1.msra.mxu0 0.0
    %6497 = vmatprep.subr.mxu0 0.0
    %6498 = vmatpush1.msra.mxu0 0.0
    %6499 = vmatprep.subr.mxu0 0.0
    %6500 = vmatpush1.msra.mxu0 0.0
    %6501 = vmatprep.subr.mxu0 0.0
    %6502 = vmatpush1.msra.mxu0 0.0
    %6503 = vmatprep.subr.mxu0 0.0
    %6504 = vmatpush1.msra.mxu0 0.0
    %6505 = vmatprep.subr.mxu0 0.0
    %6506 = vmatpush1.msra.mxu0 0.0
    %6507 = vmatprep.subr.mxu0 0.0
    %6508 = vmatpush1.msra.mxu0 0.0
    %6509 = vmatprep.subr.mxu0 0.0
    %6510 = vmatpush1.msra.mxu0 0.0
    %6511 = vmatprep.subr.mxu0 0.0
    %6512 = vmatpush1.msra.mxu0 0.0
    %6513 = vmatprep.subr.mxu0 0.0
    %6514 = vmatpush1.msra.mxu0 0.0
    %6515 = vmatprep.subr.mxu0 0.0
    %6516 = vmatpush1.msra.mxu0 0.0
    %6517 = vmatprep.subr.mxu0 0.0
    %6518 = vmatpush1.msra.mxu0 0.0
    %6519 = vmatprep.subr.mxu0 0.0
    %6520 = vmatpush1.msra.mxu0 0.0
    %6521 = vmatprep.mubr.f32.mxu0 0.0
    %6522 = vmatmul.mubr.f32.gmra.mrb[0].mxu0 %v6455
    %v6523 = vpop.f32.mrb[0].mxu0
    %v6524 = vadd.f32 0.0, %v6523
    %v6525 = vpop.f32.mrb[0].mxu0
    %6526 = vdwg.mxu0
    %6527 = vrot.lane.b32.xlu0 %v1468, 32
    %v6528 = vpop.permute.xlu0 %6527
    %v6531 = vsel %vm2222, %v6219, 0
    %6533 = vmatprep.subr.mxu0 0.0
    %6534 = vmatpush1.msra.mxu0 %v6528
    %6535 = vmatprep.subr.mxu0 0.0
    %6536 = vmatpush1.msra.mxu0 0.0
    %6537 = vmatprep.subr.mxu0 0.0
    %6538 = vmatpush1.msra.mxu0 0.0
    %6539 = vmatprep.subr.mxu0 0.0
    %6540 = vmatpush1.msra.mxu0 0.0
    %6541 = vmatprep.subr.mxu0 0.0
    %6542 = vmatpush1.msra.mxu0 0.0
    %6543 = vmatprep.subr.mxu0 0.0
    %6544 = vmatpush1.msra.mxu0 0.0
    %6545 = vmatprep.subr.mxu0 0.0
    %6546 = vmatpush1.msra.mxu0 0.0
    %6547 = vmatprep.subr.mxu0 0.0
    %6548 = vmatpush1.msra.mxu0 0.0
    %6549 = vmatprep.subr.mxu0 0.0
    %6550 = vmatpush1.msra.mxu0 0.0
    %6551 = vmatprep.subr.mxu0 0.0
    %6552 = vmatpush1.msra.mxu0 0.0
    %6553 = vmatprep.subr.mxu0 0.0
    %6554 = vmatpush1.msra.mxu0 0.0
    %6555 = vmatprep.subr.mxu0 0.0
    %6556 = vmatpush1.msra.mxu0 0.0
    %6557 = vmatprep.subr.mxu0 0.0
    %6558 = vmatpush1.msra.mxu0 0.0
    %6559 = vmatprep.subr.mxu0 0.0
    %6560 = vmatpush1.msra.mxu0 0.0
    %6561 = vmatprep.subr.mxu0 0.0
    %6562 = vmatpush1.msra.mxu0 0.0
    %6563 = vmatprep.subr.mxu0 0.0
    %6564 = vmatpush1.msra.mxu0 0.0
    %6565 = vmatprep.subr.mxu0 0.0
    %6566 = vmatpush1.msra.mxu0 0.0
    %6567 = vmatprep.subr.mxu0 0.0
    %6568 = vmatpush1.msra.mxu0 0.0
    %6569 = vmatprep.subr.mxu0 0.0
    %6570 = vmatpush1.msra.mxu0 0.0
    %6571 = vmatprep.subr.mxu0 0.0
    %6572 = vmatpush1.msra.mxu0 0.0
    %6573 = vmatprep.subr.mxu0 0.0
    %6574 = vmatpush1.msra.mxu0 0.0
    %6575 = vmatprep.subr.mxu0 0.0
    %6576 = vmatpush1.msra.mxu0 0.0
    %6577 = vmatprep.subr.mxu0 0.0
    %6578 = vmatpush1.msra.mxu0 0.0
    %6579 = vmatprep.subr.mxu0 0.0
    %6580 = vmatpush1.msra.mxu0 0.0
    %6581 = vmatprep.subr.mxu0 0.0
    %6582 = vmatpush1.msra.mxu0 0.0
    %6583 = vmatprep.subr.mxu0 0.0
    %6584 = vmatpush1.msra.mxu0 0.0
    %6585 = vmatprep.subr.mxu0 0.0
    %6586 = vmatpush1.msra.mxu0 0.0
    %6587 = vmatprep.subr.mxu0 0.0
    %6588 = vmatpush1.msra.mxu0 0.0
    %6589 = vmatprep.subr.mxu0 0.0
    %6590 = vmatpush1.msra.mxu0 0.0
    %6591 = vmatprep.subr.mxu0 0.0
    %6592 = vmatpush1.msra.mxu0 0.0
    %6593 = vmatprep.subr.mxu0 0.0
    %6594 = vmatpush1.msra.mxu0 0.0
    %6595 = vmatprep.subr.mxu0 0.0
    %6596 = vmatpush1.msra.mxu0 0.0
    %6597 = vmatprep.mubr.f32.mxu0 0.0
    %6598 = vmatmul.mubr.f32.gmra.mrb[0].mxu0 %v6531
    %v6599 = vpop.f32.mrb[0].mxu0
    %v6600 = vadd.f32 0.0, %v6599
    %v6601 = vpop.f32.mrb[0].mxu0
    %6602 = vdwg.mxu0
    %6603 = vrot.lane.b32.xlu0 %v1471, 32
    %v6604 = vpop.permute.xlu0 %6603
    %v6607 = vsel %vm2222, %v6220, 0
    %6609 = vmatprep.subr.mxu0 0.0
    %6610 = vmatpush1.msra.mxu0 %v6604
    %6611 = vmatprep.subr.mxu0 0.0
    %6612 = vmatpush1.msra.mxu0 0.0
    %6613 = vmatprep.subr.mxu0 0.0
    %6614 = vmatpush1.msra.mxu0 0.0
    %6615 = vmatprep.subr.mxu0 0.0
    %6616 = vmatpush1.msra.mxu0 0.0
    %6617 = vmatprep.subr.mxu0 0.0
    %6618 = vmatpush1.msra.mxu0 0.0
    %6619 = vmatprep.subr.mxu0 0.0
    %6620 = vmatpush1.msra.mxu0 0.0
    %6621 = vmatprep.subr.mxu0 0.0
    %6622 = vmatpush1.msra.mxu0 0.0
    %6623 = vmatprep.subr.mxu0 0.0
    %6624 = vmatpush1.msra.mxu0 0.0
    %6625 = vmatprep.subr.mxu0 0.0
    %6626 = vmatpush1.msra.mxu0 0.0
    %6627 = vmatprep.subr.mxu0 0.0
    %6628 = vmatpush1.msra.mxu0 0.0
    %6629 = vmatprep.subr.mxu0 0.0
    %6630 = vmatpush1.msra.mxu0 0.0
    %6631 = vmatprep.subr.mxu0 0.0
    %6632 = vmatpush1.msra.mxu0 0.0
    %6633 = vmatprep.subr.mxu0 0.0
    %6634 = vmatpush1.msra.mxu0 0.0
    %6635 = vmatprep.subr.mxu0 0.0
    %6636 = vmatpush1.msra.mxu0 0.0
    %6637 = vmatprep.subr.mxu0 0.0
    %6638 = vmatpush1.msra.mxu0 0.0
    %6639 = vmatprep.subr.mxu0 0.0
    %6640 = vmatpush1.msra.mxu0 0.0
    %6641 = vmatprep.subr.mxu0 0.0
    %6642 = vmatpush1.msra.mxu0 0.0
    %6643 = vmatprep.subr.mxu0 0.0
    %6644 = vmatpush1.msra.mxu0 0.0
    %6645 = vmatprep.subr.mxu0 0.0
    %6646 = vmatpush1.msra.mxu0 0.0
    %6647 = vmatprep.subr.mxu0 0.0
    %6648 = vmatpush1.msra.mxu0 0.0
    %6649 = vmatprep.subr.mxu0 0.0
    %6650 = vmatpush1.msra.mxu0 0.0
    %6651 = vmatprep.subr.mxu0 0.0
    %6652 = vmatpush1.msra.mxu0 0.0
    %6653 = vmatprep.subr.mxu0 0.0
    %6654 = vmatpush1.msra.mxu0 0.0
    %6655 = vmatprep.subr.mxu0 0.0
    %6656 = vmatpush1.msra.mxu0 0.0
    %6657 = vmatprep.subr.mxu0 0.0
    %6658 = vmatpush1.msra.mxu0 0.0
    %6659 = vmatprep.subr.mxu0 0.0
    %6660 = vmatpush1.msra.mxu0 0.0
    %6661 = vmatprep.subr.mxu0 0.0
    %6662 = vmatpush1.msra.mxu0 0.0
    %6663 = vmatprep.subr.mxu0 0.0
    %6664 = vmatpush1.msra.mxu0 0.0
    %6665 = vmatprep.subr.mxu0 0.0
    %6666 = vmatpush1.msra.mxu0 0.0
    %6667 = vmatprep.subr.mxu0 0.0
    %6668 = vmatpush1.msra.mxu0 0.0
    %6669 = vmatprep.subr.mxu0 0.0
    %6670 = vmatpush1.msra.mxu0 0.0
    %6671 = vmatprep.subr.mxu0 0.0
    %6672 = vmatpush1.msra.mxu0 0.0
    %6673 = vmatprep.mubr.f32.mxu0 0.0
    %6674 = vmatmul.mubr.f32.gmra.mrb[0].mxu0 %v6607
    %v6675 = vpop.f32.mrb[0].mxu0
    %v6676 = vadd.f32 0.0, %v6675
    %v6677 = vpop.f32.mrb[0].mxu0
    %6678 = vdwg.mxu0
    %6679 = vrot.lane.b32.xlu0 %v1476, 32
    %v6680 = vpop.permute.xlu0 %6679
    %v6683 = vsel %vm2222, %v6221, 0
    %6685 = vmatprep.subr.mxu0 0.0
    %6686 = vmatpush1.msra.mxu0 %v6680
    %6687 = vmatprep.subr.mxu0 0.0
    %6688 = vmatpush1.msra.mxu0 0.0
    %6689 = vmatprep.subr.mxu0 0.0
    %6690 = vmatpush1.msra.mxu0 0.0
    %6691 = vmatprep.subr.mxu0 0.0
    %6692 = vmatpush1.msra.mxu0 0.0
    %6693 = vmatprep.subr.mxu0 0.0
    %6694 = vmatpush1.msra.mxu0 0.0
    %6695 = vmatprep.subr.mxu0 0.0
    %6696 = vmatpush1.msra.mxu0 0.0
    %6697 = vmatprep.subr.mxu0 0.0
    %6698 = vmatpush1.msra.mxu0 0.0
    %6699 = vmatprep.subr.mxu0 0.0
    %6700 = vmatpush1.msra.mxu0 0.0
    %6701 = vmatprep.subr.mxu0 0.0
    %6702 = vmatpush1.msra.mxu0 0.0
    %6703 = vmatprep.subr.mxu0 0.0
    %6704 = vmatpush1.msra.mxu0 0.0
    %6705 = vmatprep.subr.mxu0 0.0
    %6706 = vmatpush1.msra.mxu0 0.0
    %6707 = vmatprep.subr.mxu0 0.0
    %6708 = vmatpush1.msra.mxu0 0.0
    %6709 = vmatprep.subr.mxu0 0.0
    %6710 = vmatpush1.msra.mxu0 0.0
    %6711 = vmatprep.subr.mxu0 0.0
    %6712 = vmatpush1.msra.mxu0 0.0
    %6713 = vmatprep.subr.mxu0 0.0
    %6714 = vmatpush1.msra.mxu0 0.0
    %6715 = vmatprep.subr.mxu0 0.0
    %6716 = vmatpush1.msra.mxu0 0.0
    %6717 = vmatprep.subr.mxu0 0.0
    %6718 = vmatpush1.msra.mxu0 0.0
    %6719 = vmatprep.subr.mxu0 0.0
    %6720 = vmatpush1.msra.mxu0 0.0
    %6721 = vmatprep.subr.mxu0 0.0
    %6722 = vmatpush1.msra.mxu0 0.0
    %6723 = vmatprep.subr.mxu0 0.0
    %6724 = vmatpush1.msra.mxu0 0.0
    %6725 = vmatprep.subr.mxu0 0.0
    %6726 = vmatpush1.msra.mxu0 0.0
    %6727 = vmatprep.subr.mxu0 0.0
    %6728 = vmatpush1.msra.mxu0 0.0
    %6729 = vmatprep.subr.mxu0 0.0
    %6730 = vmatpush1.msra.mxu0 0.0
    %6731 = vmatprep.subr.mxu0 0.0
    %6732 = vmatpush1.msra.mxu0 0.0
    %6733 = vmatprep.subr.mxu0 0.0
    %6734 = vmatpush1.msra.mxu0 0.0
    %6735 = vmatprep.subr.mxu0 0.0
    %6736 = vmatpush1.msra.mxu0 0.0
    %6737 = vmatprep.subr.mxu0 0.0
    %6738 = vmatpush1.msra.mxu0 0.0
    %6739 = vmatprep.subr.mxu0 0.0
    %6740 = vmatpush1.msra.mxu0 0.0
    %6741 = vmatprep.subr.mxu0 0.0
    %6742 = vmatpush1.msra.mxu0 0.0
    %6743 = vmatprep.subr.mxu0 0.0
    %6744 = vmatpush1.msra.mxu0 0.0
    %6745 = vmatprep.subr.mxu0 0.0
    %6746 = vmatpush1.msra.mxu0 0.0
    %6747 = vmatprep.subr.mxu0 0.0
    %6748 = vmatpush1.msra.mxu0 0.0
    %6749 = vmatprep.mubr.f32.mxu0 0.0
    %6750 = vmatmul.mubr.f32.gmra.mrb[0].mxu0 %v6683
    %v6751 = vpop.f32.mrb[0].mxu0
    %v6752 = vadd.f32 0.0, %v6751
    %v6753 = vpop.f32.mrb[0].mxu0
    %6754 = vdwg.mxu0
    %6755 = vrot.lane.b32.xlu0 %v1479, 32
    %v6756 = vpop.permute.xlu0 %6755
    %v6759 = vsel %vm2222, %v6222, 0
    %6761 = vmatprep.subr.mxu0 0.0
    %6762 = vmatpush1.msra.mxu0 %v6756
    %6763 = vmatprep.subr.mxu0 0.0
    %6764 = vmatpush1.msra.mxu0 0.0
    %6765 = vmatprep.subr.mxu0 0.0
    %6766 = vmatpush1.msra.mxu0 0.0
    %6767 = vmatprep.subr.mxu0 0.0
    %6768 = vmatpush1.msra.mxu0 0.0
    %6769 = vmatprep.subr.mxu0 0.0
    %6770 = vmatpush1.msra.mxu0 0.0
    %6771 = vmatprep.subr.mxu0 0.0
    %6772 = vmatpush1.msra.mxu0 0.0
    %6773 = vmatprep.subr.mxu0 0.0
    %6774 = vmatpush1.msra.mxu0 0.0
    %6775 = vmatprep.subr.mxu0 0.0
    %6776 = vmatpush1.msra.mxu0 0.0
    %6777 = vmatprep.subr.mxu0 0.0
    %6778 = vmatpush1.msra.mxu0 0.0
    %6779 = vmatprep.subr.mxu0 0.0
    %6780 = vmatpush1.msra.mxu0 0.0
    %6781 = vmatprep.subr.mxu0 0.0
    %6782 = vmatpush1.msra.mxu0 0.0
    %6783 = vmatprep.subr.mxu0 0.0
    %6784 = vmatpush1.msra.mxu0 0.0
    %6785 = vmatprep.subr.mxu0 0.0
    %6786 = vmatpush1.msra.mxu0 0.0
    %6787 = vmatprep.subr.mxu0 0.0
    %6788 = vmatpush1.msra.mxu0 0.0
    %6789 = vmatprep.subr.mxu0 0.0
    %6790 = vmatpush1.msra.mxu0 0.0
    %6791 = vmatprep.subr.mxu0 0.0
    %6792 = vmatpush1.msra.mxu0 0.0
    %6793 = vmatprep.subr.mxu0 0.0
    %6794 = vmatpush1.msra.mxu0 0.0
    %6795 = vmatprep.subr.mxu0 0.0
    %6796 = vmatpush1.msra.mxu0 0.0
    %6797 = vmatprep.subr.mxu0 0.0
    %6798 = vmatpush1.msra.mxu0 0.0
    %6799 = vmatprep.subr.mxu0 0.0
    %6800 = vmatpush1.msra.mxu0 0.0
    %6801 = vmatprep.subr.mxu0 0.0
    %6802 = vmatpush1.msra.mxu0 0.0
    %6803 = vmatprep.subr.mxu0 0.0
    %6804 = vmatpush1.msra.mxu0 0.0
    %6805 = vmatprep.subr.mxu0 0.0
    %6806 = vmatpush1.msra.mxu0 0.0
    %6807 = vmatprep.subr.mxu0 0.0
    %6808 = vmatpush1.msra.mxu0 0.0
    %6809 = vmatprep.subr.mxu0 0.0
    %6810 = vmatpush1.msra.mxu0 0.0
    %6811 = vmatprep.subr.mxu0 0.0
    %6812 = vmatpush1.msra.mxu0 0.0
    %6813 = vmatprep.subr.mxu0 0.0
    %6814 = vmatpush1.msra.mxu0 0.0
    %6815 = vmatprep.subr.mxu0 0.0
    %6816 = vmatpush1.msra.mxu0 0.0
    %6817 = vmatprep.subr.mxu0 0.0
    %6818 = vmatpush1.msra.mxu0 0.0
    %6819 = vmatprep.subr.mxu0 0.0
    %6820 = vmatpush1.msra.mxu0 0.0
    %6821 = vmatprep.subr.mxu0 0.0
    %6822 = vmatpush1.msra.mxu0 0.0
    %6823 = vmatprep.subr.mxu0 0.0
    %6824 = vmatpush1.msra.mxu0 0.0
    %6825 = vmatprep.mubr.f32.mxu0 0.0
    %6826 = vmatmul.mubr.f32.gmra.mrb[0].mxu0 %v6759
    %v6827 = vpop.f32.mrb[0].mxu0
    %v6828 = vadd.f32 0.0, %v6827
    %v6829 = vpop.f32.mrb[0].mxu0
    %6830 = vdwg.mxu0
    %v6831 = vadd.f32 %v5503, %v6215
    %v6832 = vadd.f32 %v5504, %v6216
    %v6833 = vadd.f32 %v5505, %v6217
    %v6834 = vadd.f32 %v5506, %v6218
    %v6835 = vadd.f32 %v5507, %v6219
    %v6836 = vadd.f32 %v5508, %v6220
    %v6837 = vadd.f32 %v5509, %v6221
    %v6838 = vadd.f32 %v5510, %v6222
    %6847 = vrot.lane.b32.xlu0 %v3633, 32
    %v6848 = vpop.permute.xlu0 %6847
    %6849 = vrot.lane.b32.xlu0 %v3710, 32
    %v6850 = vpop.permute.xlu0 %6849
    %6851 = vrot.lane.b32.xlu0 %v3787, 32
    %v6852 = vpop.permute.xlu0 %6851
    %6853 = vrot.lane.b32.xlu0 %v3864, 32
    %v6854 = vpop.permute.xlu0 %6853
    %6855 = vrot.lane.b32.xlu0 %v3941, 32
    %v6856 = vpop.permute.xlu0 %6855
    %6857 = vrot.lane.b32.xlu0 %v4018, 32
    %v6858 = vpop.permute.xlu0 %6857
    %6859 = vrot.lane.b32.xlu0 %v4095, 32
    %v6860 = vpop.permute.xlu0 %6859
    %6861 = vrot.lane.b32.xlu0 %v4172, 32
    %v6862 = vpop.permute.xlu0 %6861
    %6879 = vrot.lane.b32.xlu0 %v4968, 64
    %v6880 = vpop.permute.xlu0 %6879
    %6881 = vrot.lane.b32.xlu0 %v5044, 64
    %v6882 = vpop.permute.xlu0 %6881
    %6883 = vrot.lane.b32.xlu0 %v5120, 64
    %v6884 = vpop.permute.xlu0 %6883
    %6885 = vrot.lane.b32.xlu0 %v5196, 64
    %v6886 = vpop.permute.xlu0 %6885
    %6887 = vrot.lane.b32.xlu0 %v5272, 64
    %v6888 = vpop.permute.xlu0 %6887
    %6889 = vrot.lane.b32.xlu0 %v5348, 64
    %v6890 = vpop.permute.xlu0 %6889
    %6891 = vrot.lane.b32.xlu0 %v5424, 64
    %v6892 = vpop.permute.xlu0 %6891
    %6893 = vrot.lane.b32.xlu0 %v5500, 64
    %v6894 = vpop.permute.xlu0 %6893
    %6911 = vrot.lane.b32.xlu0 %v6296, 96
    %v6912 = vpop.permute.xlu0 %6911
    %6913 = vrot.lane.b32.xlu0 %v6372, 96
    %v6914 = vpop.permute.xlu0 %6913
    %6915 = vrot.lane.b32.xlu0 %v6448, 96
    %v6916 = vpop.permute.xlu0 %6915
    %6917 = vrot.lane.b32.xlu0 %v6524, 96
    %v6918 = vpop.permute.xlu0 %6917
    %6919 = vrot.lane.b32.xlu0 %v6600, 96
    %v6920 = vpop.permute.xlu0 %6919
    %6921 = vrot.lane.b32.xlu0 %v6676, 96
    %v6922 = vpop.permute.xlu0 %6921
    %6923 = vrot.lane.b32.xlu0 %v6752, 96
    %v6924 = vpop.permute.xlu0 %6923
    %6925 = vrot.lane.b32.xlu0 %v6828, 96
    %v6926 = vpop.permute.xlu0 %6925
    %v6935 = vsel %vm1532, %v2293, %v6848
    %v6936 = vsel %vm1532, %v2366, %v6850
    %v6937 = vsel %vm1532, %v2439, %v6852
    %v6938 = vsel %vm1532, %v2512, %v6854
    %v6939 = vsel %vm1532, %v2585, %v6856
    %v6940 = vsel %vm1532, %v2658, %v6858
    %v6941 = vsel %vm1532, %v2731, %v6860
    %v6942 = vsel %vm1532, %v2804, %v6862
    %vm6943 = vcmask 523264
    %v6944 = vsel %vm6943, %v6935, %v6880
    %v6945 = vsel %vm6943, %v6936, %v6882
    %v6946 = vsel %vm6943, %v6937, %v6884
    %v6947 = vsel %vm6943, %v6938, %v6886
    %v6948 = vsel %vm6943, %v6939, %v6888
    %v6949 = vsel %vm6943, %v6940, %v6890
    %v6950 = vsel %vm6943, %v6941, %v6892
    %v6951 = vsel %vm6943, %v6942, %v6894
    %vm6952 = vcmask 785408
    %v6953 = vsel %vm6952, %v6944, %v6912
    %v6954 = vsel %vm6952, %v6945, %v6914
    %v6955 = vsel %vm6952, %v6946, %v6916
    %v6956 = vsel %vm6952, %v6947, %v6918
    %v6957 = vsel %vm6952, %v6948, %v6920
    %v6958 = vsel %vm6952, %v6949, %v6922
    %v6959 = vsel %vm6952, %v6950, %v6924
    %v6960 = vsel %vm6952, %v6951, %v6926
    %v6961 = vpack.c.bf16 %v6953, %v6953
    %v6962 = vpack.c.bf16 %v6954, %v6954
    %v6963 = vpack.c.bf16 %v6955, %v6955
    %v6964 = vpack.c.bf16 %v6956, %v6956
    %v6965 = vpack.c.bf16 %v6957, %v6957
    %v6966 = vpack.c.bf16 %v6958, %v6958
    %v6967 = vpack.c.bf16 %v6959, %v6959
    %v6968 = vpack.c.bf16 %v6960, %v6960
    %v6969 = vld [vmem:[#allocation29] sm:$0xf]
    %v6970 = vld [vmem:[#allocation29 + $0x4] sm:$0xf]
    %v6971 = vld [vmem:[#allocation29 + $0x8] sm:$0xf]
    %v6972 = vld [vmem:[#allocation29 + $0xc] sm:$0xf]
    %v6973 = vld [vmem:[#allocation29 + $0x10] sm:$0xf]
    %v6974 = vld [vmem:[#allocation29 + $0x14] sm:$0xf]
    %v6975 = vld [vmem:[#allocation29 + $0x18] sm:$0xf]
    %v6976 = vld [vmem:[#allocation29 + $0x1c] sm:$0xf]
    %v6977 = vld [vmem:[#allocation29 + $0x20] sm:$0xf]
    %v6978 = vld [vmem:[#allocation29 + $0x24] sm:$0xf]
    %v6979 = vld [vmem:[#allocation29 + $0x28] sm:$0xf]
    %v6980 = vld [vmem:[#allocation29 + $0x2c] sm:$0xf]
    %v6981 = vld [vmem:[#allocation29 + $0x30] sm:$0xf]
    %v6982 = vld [vmem:[#allocation29 + $0x34] sm:$0xf]
    %v6983 = vld [vmem:[#allocation29 + $0x38] sm:$0xf]
    %v6984 = vld [vmem:[#allocation29 + $0x3c] sm:$0xf]
    %v6985 = vld [vmem:[#allocation30] sm:$0x1]
    %v6987 = vlaneseq
    %v6988 = vshrl.u32 %v6987, 7
    %v6989 = vsub.s32 0, %v6988
    %v6990 = vrot.slane %v6985, %v6989
    %v7000 = vunpack.c.l.b16 %v6961
    %v7001 = vunpack.c.l.b16 %v6962
    %v7002 = vunpack.c.l.b16 %v6963
    %v7003 = vunpack.c.l.b16 %v6964
    %v7004 = vunpack.c.l.b16 %v6965
    %v7005 = vunpack.c.l.b16 %v6966
    %v7006 = vunpack.c.l.b16 %v6967
    %v7007 = vunpack.c.l.b16 %v6968
    %v7008 = vrot.slane %v7001, 7
    %vm7009 = vcmask 1041409
    %v7010 = vsel %vm7009, %v7008, %v7000
    %v7011 = vrot.slane %v7002, 6
    %vm7012 = vcmask 1042434
    %v7013 = vsel %vm7012, %v7011, %v7010
    %v7014 = vrot.slane %v7003, 5
    %vm7015 = vcmask 1043459
    %v7016 = vsel %vm7015, %v7014, %v7013
    %v7017 = vrot.slane %v7004, 4
    %vm7018 = vcmask 1044484
    %v7019 = vsel %vm7018, %v7017, %v7016
    %v7020 = vrot.slane %v7005, 3
    %vm7021 = vcmask 1045509
    %v7022 = vsel %vm7021, %v7020, %v7019
    %v7023 = vrot.slane %v7006, 2
    %vm7024 = vcmask 1046534
    %v7025 = vsel %vm7024, %v7023, %v7022
    %v7026 = vrot.slane %v7007, 1
    %vm7027 = vcmask 1047559
    %v7028 = vsel %vm7027, %v7026, %v7025
    %v7029 = vpack.c.b16 %v7028, %v7028
    %v7047 = vunpack.c.l.b16 %v6969
    %v7048 = vunpack.c.l.b16 %v6970
    %v7049 = vunpack.c.l.b16 %v6971
    %v7050 = vunpack.c.l.b16 %v6972
    %v7051 = vunpack.c.l.b16 %v6973
    %v7052 = vunpack.c.l.b16 %v6974
    %v7053 = vunpack.c.l.b16 %v6975
    %v7054 = vunpack.c.l.b16 %v6976
    %v7055 = vunpack.c.l.b16 %v6977
    %v7056 = vunpack.c.l.b16 %v6978
    %v7057 = vunpack.c.l.b16 %v6979
    %v7058 = vunpack.c.l.b16 %v6980
    %v7059 = vunpack.c.l.b16 %v6981
    %v7060 = vunpack.c.l.b16 %v6982
    %v7061 = vunpack.c.l.b16 %v6983
    %v7062 = vunpack.c.l.b16 %v6984
    %v7063 = vpack.c.b16 %v7048, %v7047
    %v7064 = vpack.c.b16 %v7050, %v7049
    %v7065 = vpack.c.b16 %v7052, %v7051
    %v7066 = vpack.c.b16 %v7054, %v7053
    %v7067 = vpack.c.b16 %v7056, %v7055
    %v7068 = vpack.c.b16 %v7058, %v7057
    %v7069 = vpack.c.b16 %v7060, %v7059
    %v7070 = vpack.c.b16 %v7062, %v7061
    %7079 = vmatprep.subr.bf16.mxu0 0
    %7080 = vmatpush1.bf16.msra.mxu0 %v7063
    %7081 = vmatprep.subr.bf16.mxu0 0
    %7082 = vmatpush1.bf16.msra.mxu0 %v7064
    %7083 = vmatprep.subr.bf16.mxu0 0
    %7084 = vmatpush1.bf16.msra.mxu0 %v7065
    %7085 = vmatprep.subr.bf16.mxu0 0
    %7086 = vmatpush1.bf16.msra.mxu0 %v7066
    %7087 = vmatprep.subr.bf16.mxu0 0
    %7088 = vmatpush1.bf16.msra.mxu0 %v7067
    %7089 = vmatprep.subr.bf16.mxu0 0
    %7090 = vmatpush1.bf16.msra.mxu0 %v7068
    %7091 = vmatprep.subr.bf16.mxu0 0
    %7092 = vmatpush1.bf16.msra.mxu0 %v7069
    %7093 = vmatprep.subr.bf16.mxu0 0
    %7094 = vmatpush1.bf16.msra.mxu0 %v7070
    %7095 = vmatprep.subr.bf16.mxu0 0
    %7096 = vmatpush1.bf16.msra.mxu0 0
    %7097 = vmatprep.subr.bf16.mxu0 0
    %7098 = vmatpush1.bf16.msra.mxu0 0
    %7099 = vmatprep.subr.bf16.mxu0 0
    %7100 = vmatpush1.bf16.msra.mxu0 0
    %7101 = vmatprep.subr.bf16.mxu0 0
    %7102 = vmatpush1.bf16.msra.mxu0 0
    %7103 = vmatprep.subr.bf16.mxu0 0
    %7104 = vmatpush1.bf16.msra.mxu0 0
    %7105 = vmatprep.subr.bf16.mxu0 0
    %7106 = vmatpush1.bf16.msra.mxu0 0
    %7107 = vmatprep.subr.bf16.mxu0 0
    %7108 = vmatpush1.bf16.msra.mxu0 0
    %7109 = vmatprep.subr.bf16.mxu0 0
    %7110 = vmatpush1.bf16.msra.mxu0 0
    %7111 = vmatprep.mubr.bf16.mxu0 0
    %7112 = vmatmul.mubr.bf16.gmra.mrb[0].mxu0 %v7029
    %v7113 = vpop.f32.mrb[0].mxu0
    %v7114 = vadd.f32 %v6990, %v7113
    %v7115 = vpop.f32.mrb[0].mxu0
    %v7116 = vpop.f32.mrb[0].mxu0
    %v7117 = vpop.f32.mrb[0].mxu0
    %7118 = vdwg.mxu0
    %v7119 = vmul.f32 %v6831, 0.25
    %v7120 = vmul.f32 %v6832, 0.25
    %v7121 = vmul.f32 %v6833, 0.25
    %v7122 = vmul.f32 %v6834, 0.25
    %v7123 = vmul.f32 %v6835, 0.25
    %v7124 = vmul.f32 %v6836, 0.25
    %v7125 = vmul.f32 %v6837, 0.25
    %v7126 = vmul.f32 %v6838, 0.25
    %7127 = vst.msk [vmem:[#allocation36] sm:$0x1] %vm2133, %v7119
    %7128 = vst.msk [vmem:[#allocation36 + $0x1] sm:$0x1] %vm2133, %v7120
    %7129 = vst.msk [vmem:[#allocation36 + $0x2] sm:$0x1] %vm2133, %v7121
    %7130 = vst.msk [vmem:[#allocation36 + $0x3] sm:$0x1] %vm2133, %v7122
    %7131 = vst.msk [vmem:[#allocation36 + $0x4] sm:$0x1] %vm2133, %v7123
    %7132 = vst.msk [vmem:[#allocation36 + $0x5] sm:$0x1] %vm2133, %v7124
    %7133 = vst.msk [vmem:[#allocation36 + $0x6] sm:$0x1] %vm2133, %v7125
    %7134 = vst.msk [vmem:[#allocation36 + $0x7] sm:$0x1] %vm2133, %v7126
    %s7135 = smul.u32 4, 32
    %s7136 = smul.u32 %s7135, 1
    %s7137 = sshll.u32 %s7136, 4
    %7138 = dma.done [#allocation5], %s7137
    %s7139 = smul.u32 4, 16
    %s7140 = smul.u32 %s7139, 3
    %s7141 = sshll.u32 %s7140, 4
    %7142 = dma.done %s341, %s7141
    %s7143 = sshll.u32 %s7140, 4
    %7144 = dma.done %s377, %s7143
    %s7145 = scalar_lea.hbm %s35, 2048
    %s7146 = scalar_lea.vmem [#allocation2], 128
    %s7147 = scalar_lea.sflag [#allocation5], 3
    // Predicated region
    $region170: #{tpu_custom_call.1} parent=1 // pred_check
      _
    $region171: #{tpu_custom_call.1} parent=1 // pred_check_branch
      %7149 = sbr.rel target = $region173
    $region172: #{tpu_custom_call.1} parent=1 // pred_region
      %7150 = sst [smem:[#allocation39]] [#allocation46]
      %7151 = sst [smem:[#allocation40]] [#allocation45]
    $region173: #{tpu_custom_call.1} parent=1 // pred_fallthru
      _
    %7153 = shalt.err (0)
    %s7155 = sshll.u32 %s7146, 4
    %s7156 = int_to_ptr.vmem [resolvable:$true] %s7155
    %7158 = dma.hbm_to_vmem [thread:$0]  %s7145, 2048, %s7156, %s7147
    %s7159 = scalar_lea.hbm %s39, 3072
    %s7160 = scalar_lea.vmem [#allocation3], 192
    %s7161 = scalar_lea.sflag [#allocation5], 4
    %s7163 = sshll.u32 1, 14
    %s7164 = sxor.u32 4294967295, %s7163
    %s7166 = sadd.s32 2, %s346
    %s7168 = sshll.u32 7, 26
    %s7169 = sxor.u32 4294967295, %s7168
    %s7170 = sand.u32 0, %s7169
    %s7171 = sshll.u32 %s7166, 26
    %s7172 = sor.u32 %s7170, %s7171
    %s7173 = sshll.u32 %s7160, 4
    %s7174 = int_to_ptr.vmem [resolvable:$true] %s7173
    %7177 = sst [smem:[#allocation48]] 384
    %s7178 = scalar_lea.smem [#allocation48], 1
    %7179 = sst [smem:[%s7178]] 384
    %s7180 = scalar_lea.smem [#allocation48], 2
    %7181 = sst [smem:[%s7180]] 3
    %s7182 = scalar_lea.smem [#allocation48], 3
    %7183 = sst [smem:[%s7182]] 64
    %s7184 = scalar_lea.smem [#allocation48], 4
    %7185 = sst [smem:[%s7184]] 128
    %s7186 = scalar_lea.smem [#allocation48], 5
    %7187 = sst [smem:[%s7186]] 2
    %s7188 = scalar_lea.smem [#allocation48], 6
    %7189 = sst [smem:[%s7188]] 192
    %s7190 = scalar_lea.smem [#allocation48], 7
    %7191 = sst [smem:[%s7190]] 64
    %s7192 = scalar_lea.smem [#allocation48], 8
    %7193 = sst [smem:[%s7192]] 4
    %7195 = dma.general %s7159, 3072, %s7174, %s7161, [#allocation47], [#allocation48], %s7172, 0
    %s7196 = scalar_lea.hbm %s41, 3072
    %s7197 = scalar_lea.vmem [#allocation4], 192
    %s7198 = scalar_lea.sflag [#allocation5], 5
    %s7200 = sshll.u32 1, 14
    %s7201 = sxor.u32 4294967295, %s7200
    %s7203 = sadd.s32 2, %s346
    %s7205 = sshll.u32 7, 26
    %s7206 = sxor.u32 4294967295, %s7205
    %s7207 = sand.u32 0, %s7206
    %s7208 = sshll.u32 %s7203, 26
    %s7209 = sor.u32 %s7207, %s7208
    %s7210 = sshll.u32 %s7197, 4
    %s7211 = int_to_ptr.vmem [resolvable:$true] %s7210
    %7214 = sst [smem:[#allocation50]] 384
    %s7215 = scalar_lea.smem [#allocation50], 1
    %7216 = sst [smem:[%s7215]] 384
    %s7217 = scalar_lea.smem [#allocation50], 2
    %7218 = sst [smem:[%s7217]] 3
    %s7219 = scalar_lea.smem [#allocation50], 3
    %7220 = sst [smem:[%s7219]] 64
    %s7221 = scalar_lea.smem [#allocation50], 4
    %7222 = sst [smem:[%s7221]] 128
    %s7223 = scalar_lea.smem [#allocation50], 5
    %7224 = sst [smem:[%s7223]] 2
    %s7225 = scalar_lea.smem [#allocation50], 6
    %7226 = sst [smem:[%s7225]] 192
    %s7227 = scalar_lea.smem [#allocation50], 7
    %7228 = sst [smem:[%s7227]] 64
    %s7229 = scalar_lea.smem [#allocation50], 8
    %7230 = sst [smem:[%s7229]] 4
    %7232 = dma.general %s7196, 3072, %s7211, %s7198, [#allocation49], [#allocation50], %s7209, 0
    %v7233 = vpack.c.bf16 %v7114, %v7114
    %v7234 = vld [vmem:[#allocation2] sm:$0xff]
    %v7235 = vld [vmem:[#allocation2 + $0x8] sm:$0xff]
    %v7236 = vld [vmem:[#allocation2 + $0x10] sm:$0xff]
    %v7237 = vld [vmem:[#allocation2 + $0x18] sm:$0xff]
    %v7238 = vld [vmem:[#allocation2 + $0x20] sm:$0xff]
    %v7239 = vld [vmem:[#allocation2 + $0x28] sm:$0xff]
    %v7240 = vld [vmem:[#allocation2 + $0x30] sm:$0xff]
    %v7241 = vld [vmem:[#allocation2 + $0x38] sm:$0xff]
    %v7242 = vld [vmem:[#allocation2 + $0x40] sm:$0xff]
    %v7243 = vld [vmem:[#allocation2 + $0x48] sm:$0xff]
    %v7244 = vld [vmem:[#allocation2 + $0x50] sm:$0xff]
    %v7245 = vld [vmem:[#allocation2 + $0x58] sm:$0xff]
    %v7246 = vld [vmem:[#allocation2 + $0x60] sm:$0xff]
    %v7247 = vld [vmem:[#allocation2 + $0x68] sm:$0xff]
    %v7248 = vld [vmem:[#allocation2 + $0x70] sm:$0xff]
    %v7249 = vld [vmem:[#allocation2 + $0x78] sm:$0xff]
    %v7250 = vld [vmem:[%s37] sm:$0x1]
    %v7252 = vlaneseq
    %v7253 = vshrl.u32 %v7252, 7
    %v7254 = vsub.s32 0, %v7253
    %v7255 = vrot.slane %v7250, %v7254
    %7257 = vmatprep.subr.bf16.mxu0 0
    %7258 = vmatpush1.bf16.msra.mxu0 %v7234
    %7259 = vmatprep.subr.bf16.mxu0 0
    %7260 = vmatpush1.bf16.msra.mxu0 %v7235
    %7261 = vmatprep.subr.bf16.mxu0 0
    %7262 = vmatpush1.bf16.msra.mxu0 %v7236
    %7263 = vmatprep.subr.bf16.mxu0 0
    %7264 = vmatpush1.bf16.msra.mxu0 %v7237
    %7265 = vmatprep.subr.bf16.mxu0 0
    %7266 = vmatpush1.bf16.msra.mxu0 %v7238
    %7267 = vmatprep.subr.bf16.mxu0 0
    %7268 = vmatpush1.bf16.msra.mxu0 %v7239
    %7269 = vmatprep.subr.bf16.mxu0 0
    %7270 = vmatpush1.bf16.msra.mxu0 %v7240
    %7271 = vmatprep.subr.bf16.mxu0 0
    %7272 = vmatpush1.bf16.msra.mxu0 %v7241
    %7273 = vmatprep.subr.bf16.mxu0 0
    %7274 = vmatpush1.bf16.msra.mxu0 %v7242
    %7275 = vmatprep.subr.bf16.mxu0 0
    %7276 = vmatpush1.bf16.msra.mxu0 %v7243
    %7277 = vmatprep.subr.bf16.mxu0 0
    %7278 = vmatpush1.bf16.msra.mxu0 %v7244
    %7279 = vmatprep.subr.bf16.mxu0 0
    %7280 = vmatpush1.bf16.msra.mxu0 %v7245
    %7281 = vmatprep.subr.bf16.mxu0 0
    %7282 = vmatpush1.bf16.msra.mxu0 %v7246
    %7283 = vmatprep.subr.bf16.mxu0 0
    %7284 = vmatpush1.bf16.msra.mxu0 %v7247
    %7285 = vmatprep.subr.bf16.mxu0 0
    %7286 = vmatpush1.bf16.msra.mxu0 %v7248
    %7287 = vmatprep.subr.bf16.mxu0 0
    %7288 = vmatpush1.bf16.msra.mxu0 %v7249
    %7289 = vmatprep.mubr.bf16.mxu0 %v7233
    %7290 = vmatmul.mubr.bf16.gmra.mrb[0].mxu0 %v1065
    %v7291 = vpop.f32.mrb[0].mxu0
    %v7292 = vadd.f32 %v7255, %v7291
    %v7293 = vpop.f32.mrb[0].mxu0
    %v7294 = vpop.f32.mrb[0].mxu0
    %v7295 = vpop.f32.mrb[0].mxu0
    %7296 = vdwg.mxu0
    %s7297 = scalar_lea.vmem [#allocation12], 8
    %v7298 = vld [vmem:[%s7297] sm:$0xff]
    %v7299 = vld [vmem:[#allocation3] sm:$0xff]
    %v7300 = vld [vmem:[#allocation3 + $0x8] sm:$0xff]
    %v7301 = vld [vmem:[#allocation3 + $0x10] sm:$0xff]
    %v7302 = vld [vmem:[#allocation3 + $0x18] sm:$0xff]
    %v7303 = vld [vmem:[#allocation3 + $0x20] sm:$0xff]
    %v7304 = vld [vmem:[#allocation3 + $0x28] sm:$0xff]
    %v7305 = vld [vmem:[#allocation3 + $0x30] sm:$0xff]
    %v7306 = vld [vmem:[#allocation3 + $0x38] sm:$0xff]
    %v7307 = vld [vmem:[#allocation3 + $0x40] sm:$0xff]
    %v7308 = vld [vmem:[#allocation3 + $0x48] sm:$0xff]
    %v7309 = vld [vmem:[#allocation3 + $0x50] sm:$0xff]
    %v7310 = vld [vmem:[#allocation3 + $0x58] sm:$0xff]
    %v7311 = vld [vmem:[#allocation3 + $0x60] sm:$0xff]
    %v7312 = vld [vmem:[#allocation3 + $0x68] sm:$0xff]
    %v7313 = vld [vmem:[#allocation3 + $0x70] sm:$0xff]
    %v7314 = vld [vmem:[#allocation3 + $0x78] sm:$0xff]
    %v7315 = vld [vmem:[#allocation3 + $0x80] sm:$0xff]
    %v7316 = vld [vmem:[#allocation3 + $0x88] sm:$0xff]
    %v7317 = vld [vmem:[#allocation3 + $0x90] sm:$0xff]
    %v7318 = vld [vmem:[#allocation3 + $0x98] sm:$0xff]
    %v7319 = vld [vmem:[#allocation3 + $0xa0] sm:$0xff]
    %v7320 = vld [vmem:[#allocation3 + $0xa8] sm:$0xff]
    %v7321 = vld [vmem:[#allocation3 + $0xb0] sm:$0xff]
    %v7322 = vld [vmem:[#allocation3 + $0xb8] sm:$0xff]
    %v7323 = vld [vmem:[#allocation4] sm:$0xff]
    %v7324 = vld [vmem:[#allocation4 + $0x8] sm:$0xff]
    %v7325 = vld [vmem:[#allocation4 + $0x10] sm:$0xff]
    %v7326 = vld [vmem:[#allocation4 + $0x18] sm:$0xff]
    %v7327 = vld [vmem:[#allocation4 + $0x20] sm:$0xff]
    %v7328 = vld [vmem:[#allocation4 + $0x28] sm:$0xff]
    %v7329 = vld [vmem:[#allocation4 + $0x30] sm:$0xff]
    %v7330 = vld [vmem:[#allocation4 + $0x38] sm:$0xff]
    %v7331 = vld [vmem:[#allocation4 + $0x40] sm:$0xff]
    %v7332 = vld [vmem:[#allocation4 + $0x48] sm:$0xff]
    %v7333 = vld [vmem:[#allocation4 + $0x50] sm:$0xff]
    %v7334 = vld [vmem:[#allocation4 + $0x58] sm:$0xff]
    %v7335 = vld [vmem:[#allocation4 + $0x60] sm:$0xff]
    %v7336 = vld [vmem:[#allocation4 + $0x68] sm:$0xff]
    %v7337 = vld [vmem:[#allocation4 + $0x70] sm:$0xff]
    %v7338 = vld [vmem:[#allocation4 + $0x78] sm:$0xff]
    %v7339 = vld [vmem:[#allocation4 + $0x80] sm:$0xff]
    %v7340 = vld [vmem:[#allocation4 + $0x88] sm:$0xff]
    %v7341 = vld [vmem:[#allocation4 + $0x90] sm:$0xff]
    %v7342 = vld [vmem:[#allocation4 + $0x98] sm:$0xff]
    %v7343 = vld [vmem:[#allocation4 + $0xa0] sm:$0xff]
    %v7344 = vld [vmem:[#allocation4 + $0xa8] sm:$0xff]
    %v7345 = vld [vmem:[#allocation4 + $0xb0] sm:$0xff]
    %v7346 = vld [vmem:[#allocation4 + $0xb8] sm:$0xff]
    %v7347 = vld [vmem:[%s43] sm:$0x7]
    %v7348 = vld [vmem:[%s45] sm:$0x7]
    %v7349 = vpack.c.bf16 %v7292, %v7292
    %v7351 = vlaneseq
    %v7352 = vshrl.u32 %v7351, 7
    %v7353 = vsub.s32 0, %v7352
    %v7354 = vrot.slane %v7347, %v7353
    %v7355 = vlaneseq
    %v7356 = vshrl.u32 %v7355, 7
    %v7357 = vsub.s32 1, %v7356
    %v7358 = vrot.slane %v7347, %v7357
    %v7359 = vlaneseq
    %v7360 = vshrl.u32 %v7359, 7
    %v7361 = vsub.s32 2, %v7360
    %v7362 = vrot.slane %v7347, %v7361
    %7366 = vmatprep.subr.bf16.mxu0 %v7300
    %7367 = vmatpush1.bf16.msra.mxu0 %v7299
    %7368 = vmatprep.subr.bf16.mxu0 %v7303
    %7369 = vmatpush1.bf16.msra.mxu0 %v7302
    %7370 = vmatprep.subr.bf16.mxu0 %v7306
    %7371 = vmatpush1.bf16.msra.mxu0 %v7305
    %7372 = vmatprep.subr.bf16.mxu0 %v7309
    %7373 = vmatpush1.bf16.msra.mxu0 %v7308
    %7374 = vmatprep.subr.bf16.mxu0 %v7312
    %7375 = vmatpush1.bf16.msra.mxu0 %v7311
    %7376 = vmatprep.subr.bf16.mxu0 %v7315
    %7377 = vmatpush1.bf16.msra.mxu0 %v7314
    %7378 = vmatprep.subr.bf16.mxu0 %v7318
    %7379 = vmatpush1.bf16.msra.mxu0 %v7317
    %7380 = vmatprep.subr.bf16.mxu0 %v7321
    %7381 = vmatpush1.bf16.msra.mxu0 %v7320
    %7382 = vmatprep.subr.bf16.mxu0 0
    %7383 = vmatpush1.bf16.msra.mxu0 0
    %7384 = vmatprep.subr.bf16.mxu0 0
    %7385 = vmatpush1.bf16.msra.mxu0 0
    %7386 = vmatprep.subr.bf16.mxu0 0
    %7387 = vmatpush1.bf16.msra.mxu0 0
    %7388 = vmatprep.subr.bf16.mxu0 0
    %7389 = vmatpush1.bf16.msra.mxu0 0
    %7390 = vmatprep.subr.bf16.mxu0 0
    %7391 = vmatpush1.bf16.msra.mxu0 0
    %7392 = vmatprep.subr.bf16.mxu0 0
    %7393 = vmatpush1.bf16.msra.mxu0 0
    %7394 = vmatprep.subr.bf16.mxu0 0
    %7395 = vmatpush1.bf16.msra.mxu0 0
    %7396 = vmatprep.subr.bf16.mxu0 0
    %7397 = vmatpush1.bf16.msra.mxu0 0
    %7398 = vmatprep.mubr.bf16.mxu0 0
    %7399 = vmatmul.mubr.bf16.gmra.mrb[0].mxu0 %v7349
    %v7400 = vpop.f32.mrb[0].mxu0
    %v7401 = vadd.f32 %v7354, %v7400
    %v7402 = vpop.f32.mrb[0].mxu0
    %v7403 = vadd.f32 %v7358, %v7402
    %v7404 = vpop.f32.mrb[0].mxu0
    %v7405 = vpop.f32.mrb[0].mxu0
    %7406 = vdwg.mxu0
    %7407 = vmatprep.subr.bf16.mxu0 0
    %7408 = vmatpush1.bf16.msra.mxu0 %v7301
    %7409 = vmatprep.subr.bf16.mxu0 0
    %7410 = vmatpush1.bf16.msra.mxu0 %v7304
    %7411 = vmatprep.subr.bf16.mxu0 0
    %7412 = vmatpush1.bf16.msra.mxu0 %v7307
    %7413 = vmatprep.subr.bf16.mxu0 0
    %7414 = vmatpush1.bf16.msra.mxu0 %v7310
    %7415 = vmatprep.subr.bf16.mxu0 0
    %7416 = vmatpush1.bf16.msra.mxu0 %v7313
    %7417 = vmatprep.subr.bf16.mxu0 0
    %7418 = vmatpush1.bf16.msra.mxu0 %v7316
    %7419 = vmatprep.subr.bf16.mxu0 0
    %7420 = vmatpush1.bf16.msra.mxu0 %v7319
    %7421 = vmatprep.subr.bf16.mxu0 0
    %7422 = vmatpush1.bf16.msra.mxu0 %v7322
    %7423 = vmatprep.subr.bf16.mxu0 0
    %7424 = vmatpush1.bf16.msra.mxu0 0
    %7425 = vmatprep.subr.bf16.mxu0 0
    %7426 = vmatpush1.bf16.msra.mxu0 0
    %7427 = vmatprep.subr.bf16.mxu0 0
    %7428 = vmatpush1.bf16.msra.mxu0 0
    %7429 = vmatprep.subr.bf16.mxu0 0
    %7430 = vmatpush1.bf16.msra.mxu0 0
    %7431 = vmatprep.subr.bf16.mxu0 0
    %7432 = vmatpush1.bf16.msra.mxu0 0
    %7433 = vmatprep.subr.bf16.mxu0 0
    %7434 = vmatpush1.bf16.msra.mxu0 0
    %7435 = vmatprep.subr.bf16.mxu0 0
    %7436 = vmatpush1.bf16.msra.mxu0 0
    %7437 = vmatprep.subr.bf16.mxu0 0
    %7438 = vmatpush1.bf16.msra.mxu0 0
    %7439 = vmatprep.mubr.bf16.mxu0 0
    %7440 = vmatmul.mubr.bf16.gmra.mrb[0].mxu0 %v7349
    %v7441 = vpop.f32.mrb[0].mxu0
    %v7442 = vadd.f32 %v7362, %v7441
    %v7443 = vpop.f32.mrb[0].mxu0
    %v7444 = vpop.f32.mrb[0].mxu0
    %v7445 = vpop.f32.mrb[0].mxu0
    %7446 = vdwg.mxu0
    %v7447 = vpack.c.bf16 %v7298, %v7298
    %v7449 = vlaneseq
    %v7450 = vshrl.u32 %v7449, 7
    %v7451 = vsub.s32 0, %v7450
    %v7452 = vrot.slane %v7348, %v7451
    %v7453 = vlaneseq
    %v7454 = vshrl.u32 %v7453, 7
    %v7455 = vsub.s32 1, %v7454
    %v7456 = vrot.slane %v7348, %v7455
    %v7457 = vlaneseq
    %v7458 = vshrl.u32 %v7457, 7
    %v7459 = vsub.s32 2, %v7458
    %v7460 = vrot.slane %v7348, %v7459
    %7464 = vmatprep.subr.bf16.mxu0 %v7324
    %7465 = vmatpush1.bf16.msra.mxu0 %v7323
    %7466 = vmatprep.subr.bf16.mxu0 %v7327
    %7467 = vmatpush1.bf16.msra.mxu0 %v7326
    %7468 = vmatprep.subr.bf16.mxu0 %v7330
    %7469 = vmatpush1.bf16.msra.mxu0 %v7329
    %7470 = vmatprep.subr.bf16.mxu0 %v7333
    %7471 = vmatpush1.bf16.msra.mxu0 %v7332
    %7472 = vmatprep.subr.bf16.mxu0 %v7336
    %7473 = vmatpush1.bf16.msra.mxu0 %v7335
    %7474 = vmatprep.subr.bf16.mxu0 %v7339
    %7475 = vmatpush1.bf16.msra.mxu0 %v7338
    %7476 = vmatprep.subr.bf16.mxu0 %v7342
    %7477 = vmatpush1.bf16.msra.mxu0 %v7341
    %7478 = vmatprep.subr.bf16.mxu0 %v7345
    %7479 = vmatpush1.bf16.msra.mxu0 %v7344
    %7480 = vmatprep.subr.bf16.mxu0 0
    %7481 = vmatpush1.bf16.msra.mxu0 0
    %7482 = vmatprep.subr.bf16.mxu0 0
    %7483 = vmatpush1.bf16.msra.mxu0 0
    %7484 = vmatprep.subr.bf16.mxu0 0
    %7485 = vmatpush1.bf16.msra.mxu0 0
    %7486 = vmatprep.subr.bf16.mxu0 0
    %7487 = vmatpush1.bf16.msra.mxu0 0
    %7488 = vmatprep.subr.bf16.mxu0 0
    %7489 = vmatpush1.bf16.msra.mxu0 0
    %7490 = vmatprep.subr.bf16.mxu0 0
    %7491 = vmatpush1.bf16.msra.mxu0 0
    %7492 = vmatprep.subr.bf16.mxu0 0
    %7493 = vmatpush1.bf16.msra.mxu0 0
    %7494 = vmatprep.subr.bf16.mxu0 0
    %7495 = vmatpush1.bf16.msra.mxu0 0
    %7496 = vmatprep.mubr.bf16.mxu0 0
    %7497 = vmatmul.mubr.bf16.gmra.mrb[0].mxu0 %v7447
    %v7498 = vpop.f32.mrb[0].mxu0
    %v7499 = vadd.f32 %v7452, %v7498
    %v7500 = vpop.f32.mrb[0].mxu0
    %v7501 = vadd.f32 %v7456, %v7500
    %v7502 = vpop.f32.mrb[0].mxu0
    %v7503 = vpop.f32.mrb[0].mxu0
    %7504 = vdwg.mxu0
    %7505 = vmatprep.subr.bf16.mxu0 0
    %7506 = vmatpush1.bf16.msra.mxu0 %v7325
    %7507 = vmatprep.subr.bf16.mxu0 0
    %7508 = vmatpush1.bf16.msra.mxu0 %v7328
    %7509 = vmatprep.subr.bf16.mxu0 0
    %7510 = vmatpush1.bf16.msra.mxu0 %v7331
    %7511 = vmatprep.subr.bf16.mxu0 0
    %7512 = vmatpush1.bf16.msra.mxu0 %v7334
    %7513 = vmatprep.subr.bf16.mxu0 0
    %7514 = vmatpush1.bf16.msra.mxu0 %v7337
    %7515 = vmatprep.subr.bf16.mxu0 0
    %7516 = vmatpush1.bf16.msra.mxu0 %v7340
    %7517 = vmatprep.subr.bf16.mxu0 0
    %7518 = vmatpush1.bf16.msra.mxu0 %v7343
    %7519 = vmatprep.subr.bf16.mxu0 0
    %7520 = vmatpush1.bf16.msra.mxu0 %v7346
    %7521 = vmatprep.subr.bf16.mxu0 0
    %7522 = vmatpush1.bf16.msra.mxu0 0
    %7523 = vmatprep.subr.bf16.mxu0 0
    %7524 = vmatpush1.bf16.msra.mxu0 0
    %7525 = vmatprep.subr.bf16.mxu0 0
    %7526 = vmatpush1.bf16.msra.mxu0 0
    %7527 = vmatprep.subr.bf16.mxu0 0
    %7528 = vmatpush1.bf16.msra.mxu0 0
    %7529 = vmatprep.subr.bf16.mxu0 0
    %7530 = vmatpush1.bf16.msra.mxu0 0
    %7531 = vmatprep.subr.bf16.mxu0 0
    %7532 = vmatpush1.bf16.msra.mxu0 0
    %7533 = vmatprep.subr.bf16.mxu0 0
    %7534 = vmatpush1.bf16.msra.mxu0 0
    %7535 = vmatprep.subr.bf16.mxu0 0
    %7536 = vmatpush1.bf16.msra.mxu0 0
    %7537 = vmatprep.mubr.bf16.mxu0 0
    %7538 = vmatmul.mubr.bf16.gmra.mrb[0].mxu0 %v7447
    %v7539 = vpop.f32.mrb[0].mxu0
    %v7540 = vadd.f32 %v7460, %v7539
    %v7541 = vpop.f32.mrb[0].mxu0
    %v7542 = vpop.f32.mrb[0].mxu0
    %v7543 = vpop.f32.mrb[0].mxu0
    %7544 = vdwg.mxu0
    %v7545 = vadd.f32 %v7401, %v7499
    %v7546 = vxor.u32 %v7545, 2147483648
    %v7547 = vmul.f32 %v7546, 1.442695
    %v7548 = vpow.pop %v7547
    %v7549 = vadd.f32 %v7548, 1.0
    %v7550 = vrcp.pop %v7549
    %v7551 = vmul.f32 1.0, %v7550
    %v7552 = vadd.f32 %v7403, %v7501
    %v7553 = vxor.u32 %v7552, 2147483648
    %v7554 = vmul.f32 %v7553, 1.442695
    %v7555 = vpow.pop %v7554
    %v7556 = vadd.f32 %v7555, 1.0
    %v7557 = vrcp.pop %v7556
    %v7558 = vmul.f32 1.0, %v7557
    %v7559 = vmul.f32 %v7551, %v7540
    %v7560 = vadd.f32 %v7442, %v7559
    %v7561 = vtanh.pop %v7560
    %v7562 = vsub.f32 1.0, %v7558
    %v7563 = vmul.f32 %v7562, %v7561
    %v7564 = vmul.f32 %v7558, %v7298
    %v7565 = vadd.f32 %v7563, %v7564
    %s7566 = scalar_lea.vmem [#allocation34], 8
    %7567 = vst [vmem:[%s7566] sm:$0xff] %v7565
    %7568 = vadd.xlane.f32.xlu0 %v7565
    %v7569 = vpop.xlane.xlu0 %7568
    %v7570 = vrcp.pop 128.0
    %v7571 = vmul.f32 %v7569, %v7570
    %v7572 = vsub.f32 %v7565, %v7571
    %v7573 = vmul.f32 %v7572, %v7572
    %7574 = vadd.xlane.f32.xlu0 %v7573
    %v7575 = vpop.xlane.xlu0 %7574
    %v7576 = vmul.f32 %v7575, %v7570
    %v7577 = vadd.f32 %v7576, 1e-05
    %v7578 = vrsqrt.pop %v7577
    %v7579 = vmul.f32 %v7572, %v7578
    %v7580 = vld [vmem:[%s47] sm:$0x1]
    %v7582 = vlaneseq
    %v7583 = vshrl.u32 %v7582, 7
    %v7584 = vsub.s32 0, %v7583
    %v7585 = vrot.slane %v7580, %v7584
    %v7587 = vmul.f32 %v7579, %v7585
    %v7588 = vld [vmem:[%s49] sm:$0x1]
    %v7590 = vlaneseq
    %v7591 = vshrl.u32 %v7590, 7
    %v7592 = vsub.s32 0, %v7591
    %v7593 = vrot.slane %v7588, %v7592
    %v7595 = vadd.f32 %v7587, %v7593
    %v7596 = vadd.f32 %v7595, %v1063
    %s7597 = sshll.u32 %s7136, 4
    %7598 = dma.done %s7147, %s7597
    %s7599 = sshll.u32 %s7140, 4
    %7600 = dma.done %s7161, %s7599
    %s7601 = sshll.u32 %s7140, 4
    %7602 = dma.done %s7198, %s7601
    %s7603 = scalar_lea.hbm %s35, 4096
    // Predicated region
    $region174: #{tpu_custom_call.1} parent=1 // pred_check
      _
    $region175: #{tpu_custom_call.1} parent=1 // pred_check_branch
      %7605 = sbr.rel target = $region177
    $region176: #{tpu_custom_call.1} parent=1 // pred_region
      %7606 = sst [smem:[#allocation39]] [#allocation52]
      %7607 = sst [smem:[#allocation40]] [#allocation51]
    $region177: #{tpu_custom_call.1} parent=1 // pred_fallthru
      _
    %7609 = shalt.err (0)
    %s7611 = sshll.u32 [#allocation2], 4
    %s7612 = int_to_ptr.vmem [resolvable:$true] %s7611
    %7614 = dma.hbm_to_vmem [thread:$0]  %s7603, 2048, %s7612, [#allocation5]
    %s7615 = scalar_lea.hbm %s39, 6144
    %s7617 = sshll.u32 1, 14
    %s7618 = sxor.u32 4294967295, %s7617
    %s7620 = sadd.s32 2, %s346
    %s7622 = sshll.u32 7, 26
    %s7623 = sxor.u32 4294967295, %s7622
    %s7624 = sand.u32 0, %s7623
    %s7625 = sshll.u32 %s7620, 26
    %s7626 = sor.u32 %s7624, %s7625
    %s7627 = sshll.u32 [#allocation3], 4
    %s7628 = int_to_ptr.vmem [resolvable:$true] %s7627
    %7631 = sst [smem:[#allocation54]] 384
    %s7632 = scalar_lea.smem [#allocation54], 1
    %7633 = sst [smem:[%s7632]] 384
    %s7634 = scalar_lea.smem [#allocation54], 2
    %7635 = sst [smem:[%s7634]] 3
    %s7636 = scalar_lea.smem [#allocation54], 3
    %7637 = sst [smem:[%s7636]] 64
    %s7638 = scalar_lea.smem [#allocation54], 4
    %7639 = sst [smem:[%s7638]] 128
    %s7640 = scalar_lea.smem [#allocation54], 5
    %7641 = sst [smem:[%s7640]] 2
    %s7642 = scalar_lea.smem [#allocation54], 6
    %7643 = sst [smem:[%s7642]] 192
    %s7644 = scalar_lea.smem [#allocation54], 7
    %7645 = sst [smem:[%s7644]] 64
    %s7646 = scalar_lea.smem [#allocation54], 8
    %7647 = sst [smem:[%s7646]] 4
    %7649 = dma.general %s7615, 3072, %s7628, %s341, [#allocation53], [#allocation54], %s7626, 0
    %s7650 = scalar_lea.hbm %s41, 6144
    %s7652 = sshll.u32 1, 14
    %s7653 = sxor.u32 4294967295, %s7652
    %s7655 = sadd.s32 2, %s346
    %s7657 = sshll.u32 7, 26
    %s7658 = sxor.u32 4294967295, %s7657
    %s7659 = sand.u32 0, %s7658
    %s7660 = sshll.u32 %s7655, 26
    %s7661 = sor.u32 %s7659, %s7660
    %s7662 = sshll.u32 [#allocation4], 4
    %s7663 = int_to_ptr.vmem [resolvable:$true] %s7662
    %7666 = sst [smem:[#allocation56]] 384
    %s7667 = scalar_lea.smem [#allocation56], 1
    %7668 = sst [smem:[%s7667]] 384
    %s7669 = scalar_lea.smem [#allocation56], 2
    %7670 = sst [smem:[%s7669]] 3
    %s7671 = scalar_lea.smem [#allocation56], 3
    %7672 = sst [smem:[%s7671]] 64
    %s7673 = scalar_lea.smem [#allocation56], 4
    %7674 = sst [smem:[%s7673]] 128
    %s7675 = scalar_lea.smem [#allocation56], 5
    %7676 = sst [smem:[%s7675]] 2
    %s7677 = scalar_lea.smem [#allocation56], 6
    %7678 = sst [smem:[%s7677]] 192
    %s7679 = scalar_lea.smem [#allocation56], 7
    %7680 = sst [smem:[%s7679]] 64
    %s7681 = scalar_lea.smem [#allocation56], 8
    %7682 = sst [smem:[%s7681]] 4
    %7684 = dma.general %s7650, 3072, %s7663, %s377, [#allocation55], [#allocation56], %s7661, 0
    %v7685 = vpack.c.bf16 %v7596, %v7596
    %v7686 = vld [vmem:[%s7146] sm:$0xff]
    %v7687 = vld [vmem:[%s7146 + $0x8] sm:$0xff]
    %v7688 = vld [vmem:[%s7146 + $0x10] sm:$0xff]
    %v7689 = vld [vmem:[%s7146 + $0x18] sm:$0xff]
    %v7690 = vld [vmem:[%s7146 + $0x20] sm:$0xff]
    %v7691 = vld [vmem:[%s7146 + $0x28] sm:$0xff]
    %v7692 = vld [vmem:[%s7146 + $0x30] sm:$0xff]
    %v7693 = vld [vmem:[%s7146 + $0x38] sm:$0xff]
    %v7694 = vld [vmem:[%s7146 + $0x40] sm:$0xff]
    %v7695 = vld [vmem:[%s7146 + $0x48] sm:$0xff]
    %v7696 = vld [vmem:[%s7146 + $0x50] sm:$0xff]
    %v7697 = vld [vmem:[%s7146 + $0x58] sm:$0xff]
    %v7698 = vld [vmem:[%s7146 + $0x60] sm:$0xff]
    %v7699 = vld [vmem:[%s7146 + $0x68] sm:$0xff]
    %v7700 = vld [vmem:[%s7146 + $0x70] sm:$0xff]
    %v7701 = vld [vmem:[%s7146 + $0x78] sm:$0xff]
    %s7702 = scalar_lea.vmem %s37, 1
    %v7703 = vld [vmem:[%s7702] sm:$0x1]
    %v7705 = vlaneseq
    %v7706 = vshrl.u32 %v7705, 7
    %v7707 = vsub.s32 0, %v7706
    %v7708 = vrot.slane %v7703, %v7707
    %7710 = vmatprep.subr.bf16.mxu0 0
    %7711 = vmatpush1.bf16.msra.mxu0 %v7686
    %7712 = vmatprep.subr.bf16.mxu0 0
    %7713 = vmatpush1.bf16.msra.mxu0 %v7687
    %7714 = vmatprep.subr.bf16.mxu0 0
    %7715 = vmatpush1.bf16.msra.mxu0 %v7688
    %7716 = vmatprep.subr.bf16.mxu0 0
    %7717 = vmatpush1.bf16.msra.mxu0 %v7689
    %7718 = vmatprep.subr.bf16.mxu0 0
    %7719 = vmatpush1.bf16.msra.mxu0 %v7690
    %7720 = vmatprep.subr.bf16.mxu0 0
    %7721 = vmatpush1.bf16.msra.mxu0 %v7691
    %7722 = vmatprep.subr.bf16.mxu0 0
    %7723 = vmatpush1.bf16.msra.mxu0 %v7692
    %7724 = vmatprep.subr.bf16.mxu0 0
    %7725 = vmatpush1.bf16.msra.mxu0 %v7693
    %7726 = vmatprep.subr.bf16.mxu0 0
    %7727 = vmatpush1.bf16.msra.mxu0 %v7694
    %7728 = vmatprep.subr.bf16.mxu0 0
    %7729 = vmatpush1.bf16.msra.mxu0 %v7695
    %7730 = vmatprep.subr.bf16.mxu0 0
    %7731 = vmatpush1.bf16.msra.mxu0 %v7696
    %7732 = vmatprep.subr.bf16.mxu0 0
    %7733 = vmatpush1.bf16.msra.mxu0 %v7697
    %7734 = vmatprep.subr.bf16.mxu0 0
    %7735 = vmatpush1.bf16.msra.mxu0 %v7698
    %7736 = vmatprep.subr.bf16.mxu0 0
    %7737 = vmatpush1.bf16.msra.mxu0 %v7699
    %7738 = vmatprep.subr.bf16.mxu0 0
    %7739 = vmatpush1.bf16.msra.mxu0 %v7700
    %7740 = vmatprep.subr.bf16.mxu0 0
    %7741 = vmatpush1.bf16.msra.mxu0 %v7701
    %7742 = vmatprep.mubr.bf16.mxu0 %v7233
    %7743 = vmatmul.mubr.bf16.gmra.mrb[0].mxu0 %v7685
    %v7744 = vpop.f32.mrb[0].mxu0
    %v7745 = vadd.f32 %v7708, %v7744
    %v7746 = vpop.f32.mrb[0].mxu0
    %v7747 = vpop.f32.mrb[0].mxu0
    %v7748 = vpop.f32.mrb[0].mxu0
    %7749 = vdwg.mxu0
    %s7750 = scalar_lea.vmem [#allocation12], 16
    %v7751 = vld [vmem:[%s7750] sm:$0xff]
    %v7752 = vld [vmem:[%s7160] sm:$0xff]
    %v7753 = vld [vmem:[%s7160 + $0x8] sm:$0xff]
    %v7754 = vld [vmem:[%s7160 + $0x10] sm:$0xff]
    %v7755 = vld [vmem:[%s7160 + $0x18] sm:$0xff]
    %v7756 = vld [vmem:[%s7160 + $0x20] sm:$0xff]
    %v7757 = vld [vmem:[%s7160 + $0x28] sm:$0xff]
    %v7758 = vld [vmem:[%s7160 + $0x30] sm:$0xff]
    %v7759 = vld [vmem:[%s7160 + $0x38] sm:$0xff]
    %v7760 = vld [vmem:[%s7160 + $0x40] sm:$0xff]
    %v7761 = vld [vmem:[%s7160 + $0x48] sm:$0xff]
    %v7762 = vld [vmem:[%s7160 + $0x50] sm:$0xff]
    %v7763 = vld [vmem:[%s7160 + $0x58] sm:$0xff]
    %v7764 = vld [vmem:[%s7160 + $0x60] sm:$0xff]
    %v7765 = vld [vmem:[%s7160 + $0x68] sm:$0xff]
    %v7766 = vld [vmem:[%s7160 + $0x70] sm:$0xff]
    %v7767 = vld [vmem:[%s7160 + $0x78] sm:$0xff]
    %v7768 = vld [vmem:[%s7160 + $0x80] sm:$0xff]
    %v7769 = vld [vmem:[%s7160 + $0x88] sm:$0xff]
    %v7770 = vld [vmem:[%s7160 + $0x90] sm:$0xff]
    %v7771 = vld [vmem:[%s7160 + $0x98] sm:$0xff]
    %v7772 = vld [vmem:[%s7160 + $0xa0] sm:$0xff]
    %v7773 = vld [vmem:[%s7160 + $0xa8] sm:$0xff]
    %v7774 = vld [vmem:[%s7160 + $0xb0] sm:$0xff]
    %v7775 = vld [vmem:[%s7160 + $0xb8] sm:$0xff]
    %v7776 = vld [vmem:[%s7197] sm:$0xff]
    %v7777 = vld [vmem:[%s7197 + $0x8] sm:$0xff]
    %v7778 = vld [vmem:[%s7197 + $0x10] sm:$0xff]
    %v7779 = vld [vmem:[%s7197 + $0x18] sm:$0xff]
    %v7780 = vld [vmem:[%s7197 + $0x20] sm:$0xff]
    %v7781 = vld [vmem:[%s7197 + $0x28] sm:$0xff]
    %v7782 = vld [vmem:[%s7197 + $0x30] sm:$0xff]
    %v7783 = vld [vmem:[%s7197 + $0x38] sm:$0xff]
    %v7784 = vld [vmem:[%s7197 + $0x40] sm:$0xff]
    %v7785 = vld [vmem:[%s7197 + $0x48] sm:$0xff]
    %v7786 = vld [vmem:[%s7197 + $0x50] sm:$0xff]
    %v7787 = vld [vmem:[%s7197 + $0x58] sm:$0xff]
    %v7788 = vld [vmem:[%s7197 + $0x60] sm:$0xff]
    %v7789 = vld [vmem:[%s7197 + $0x68] sm:$0xff]
    %v7790 = vld [vmem:[%s7197 + $0x70] sm:$0xff]
    %v7791 = vld [vmem:[%s7197 + $0x78] sm:$0xff]
    %v7792 = vld [vmem:[%s7197 + $0x80] sm:$0xff]
    %v7793 = vld [vmem:[%s7197 + $0x88] sm:$0xff]
    %v7794 = vld [vmem:[%s7197 + $0x90] sm:$0xff]
    %v7795 = vld [vmem:[%s7197 + $0x98] sm:$0xff]
    %v7796 = vld [vmem:[%s7197 + $0xa0] sm:$0xff]
    %v7797 = vld [vmem:[%s7197 + $0xa8] sm:$0xff]
    %v7798 = vld [vmem:[%s7197 + $0xb0] sm:$0xff]
    %v7799 = vld [vmem:[%s7197 + $0xb8] sm:$0xff]
    %s7800 = scalar_lea.vmem %s43, 3
    %v7801 = vld [vmem:[%s7800] sm:$0x7]
    %s7802 = scalar_lea.vmem %s45, 3
    %v7803 = vld [vmem:[%s7802] sm:$0x7]
    %v7804 = vpack.c.bf16 %v7745, %v7745
    %v7806 = vlaneseq
    %v7807 = vshrl.u32 %v7806, 7
    %v7808 = vsub.s32 0, %v7807
    %v7809 = vrot.slane %v7801, %v7808
    %v7810 = vlaneseq
    %v7811 = vshrl.u32 %v7810, 7
    %v7812 = vsub.s32 1, %v7811
    %v7813 = vrot.slane %v7801, %v7812
    %v7814 = vlaneseq
    %v7815 = vshrl.u32 %v7814, 7
    %v7816 = vsub.s32 2, %v7815
    %v7817 = vrot.slane %v7801, %v7816
    %7821 = vmatprep.subr.bf16.mxu0 %v7753
    %7822 = vmatpush1.bf16.msra.mxu0 %v7752
    %7823 = vmatprep.subr.bf16.mxu0 %v7756
    %7824 = vmatpush1.bf16.msra.mxu0 %v7755
    %7825 = vmatprep.subr.bf16.mxu0 %v7759
    %7826 = vmatpush1.bf16.msra.mxu0 %v7758
    %7827 = vmatprep.subr.bf16.mxu0 %v7762
    %7828 = vmatpush1.bf16.msra.mxu0 %v7761
    %7829 = vmatprep.subr.bf16.mxu0 %v7765
    %7830 = vmatpush1.bf16.msra.mxu0 %v7764
    %7831 = vmatprep.subr.bf16.mxu0 %v7768
    %7832 = vmatpush1.bf16.msra.mxu0 %v7767
    %7833 = vmatprep.subr.bf16.mxu0 %v7771
    %7834 = vmatpush1.bf16.msra.mxu0 %v7770
    %7835 = vmatprep.subr.bf16.mxu0 %v7774
    %7836 = vmatpush1.bf16.msra.mxu0 %v7773
    %7837 = vmatprep.subr.bf16.mxu0 0
    %7838 = vmatpush1.bf16.msra.mxu0 0
    %7839 = vmatprep.subr.bf16.mxu0 0
    %7840 = vmatpush1.bf16.msra.mxu0 0
    %7841 = vmatprep.subr.bf16.mxu0 0
    %7842 = vmatpush1.bf16.msra.mxu0 0
    %7843 = vmatprep.subr.bf16.mxu0 0
    %7844 = vmatpush1.bf16.msra.mxu0 0
    %7845 = vmatprep.subr.bf16.mxu0 0
    %7846 = vmatpush1.bf16.msra.mxu0 0
    %7847 = vmatprep.subr.bf16.mxu0 0
    %7848 = vmatpush1.bf16.msra.mxu0 0
    %7849 = vmatprep.subr.bf16.mxu0 0
    %7850 = vmatpush1.bf16.msra.mxu0 0
    %7851 = vmatprep.subr.bf16.mxu0 0
    %7852 = vmatpush1.bf16.msra.mxu0 0
    %7853 = vmatprep.mubr.bf16.mxu0 0
    %7854 = vmatmul.mubr.bf16.gmra.mrb[0].mxu0 %v7804
    %v7855 = vpop.f32.mrb[0].mxu0
    %v7856 = vadd.f32 %v7809, %v7855
    %v7857 = vpop.f32.mrb[0].mxu0
    %v7858 = vadd.f32 %v7813, %v7857
    %v7859 = vpop.f32.mrb[0].mxu0
    %v7860 = vpop.f32.mrb[0].mxu0
    %7861 = vdwg.mxu0
    %7862 = vmatprep.subr.bf16.mxu0 0
    %7863 = vmatpush1.bf16.msra.mxu0 %v7754
    %7864 = vmatprep.subr.bf16.mxu0 0
    %7865 = vmatpush1.bf16.msra.mxu0 %v7757
    %7866 = vmatprep.subr.bf16.mxu0 0
    %7867 = vmatpush1.bf16.msra.mxu0 %v7760
    %7868 = vmatprep.subr.bf16.mxu0 0
    %7869 = vmatpush1.bf16.msra.mxu0 %v7763
    %7870 = vmatprep.subr.bf16.mxu0 0
    %7871 = vmatpush1.bf16.msra.mxu0 %v7766
    %7872 = vmatprep.subr.bf16.mxu0 0
    %7873 = vmatpush1.bf16.msra.mxu0 %v7769
    %7874 = vmatprep.subr.bf16.mxu0 0
    %7875 = vmatpush1.bf16.msra.mxu0 %v7772
    %7876 = vmatprep.subr.bf16.mxu0 0
    %7877 = vmatpush1.bf16.msra.mxu0 %v7775
    %7878 = vmatprep.subr.bf16.mxu0 0
    %7879 = vmatpush1.bf16.msra.mxu0 0
    %7880 = vmatprep.subr.bf16.mxu0 0
    %7881 = vmatpush1.bf16.msra.mxu0 0
    %7882 = vmatprep.subr.bf16.mxu0 0
    %7883 = vmatpush1.bf16.msra.mxu0 0
    %7884 = vmatprep.subr.bf16.mxu0 0
    %7885 = vmatpush1.bf16.msra.mxu0 0
    %7886 = vmatprep.subr.bf16.mxu0 0
    %7887 = vmatpush1.bf16.msra.mxu0 0
    %7888 = vmatprep.subr.bf16.mxu0 0
    %7889 = vmatpush1.bf16.msra.mxu0 0
    %7890 = vmatprep.subr.bf16.mxu0 0
    %7891 = vmatpush1.bf16.msra.mxu0 0
    %7892 = vmatprep.subr.bf16.mxu0 0
    %7893 = vmatpush1.bf16.msra.mxu0 0
    %7894 = vmatprep.mubr.bf16.mxu0 0
    %7895 = vmatmul.mubr.bf16.gmra.mrb[0].mxu0 %v7804
    %v7896 = vpop.f32.mrb[0].mxu0
    %v7897 = vadd.f32 %v7817, %v7896
    %v7898 = vpop.f32.mrb[0].mxu0
    %v7899 = vpop.f32.mrb[0].mxu0
    %v7900 = vpop.f32.mrb[0].mxu0
    %7901 = vdwg.mxu0
    %v7902 = vpack.c.bf16 %v7751, %v7751
    %v7904 = vlaneseq
    %v7905 = vshrl.u32 %v7904, 7
    %v7906 = vsub.s32 0, %v7905
    %v7907 = vrot.slane %v7803, %v7906
    %v7908 = vlaneseq
    %v7909 = vshrl.u32 %v7908, 7
    %v7910 = vsub.s32 1, %v7909
    %v7911 = vrot.slane %v7803, %v7910
    %v7912 = vlaneseq
    %v7913 = vshrl.u32 %v7912, 7
    %v7914 = vsub.s32 2, %v7913
    %v7915 = vrot.slane %v7803, %v7914
    %7919 = vmatprep.subr.bf16.mxu0 %v7777
    %7920 = vmatpush1.bf16.msra.mxu0 %v7776
    %7921 = vmatprep.subr.bf16.mxu0 %v7780
    %7922 = vmatpush1.bf16.msra.mxu0 %v7779
    %7923 = vmatprep.subr.bf16.mxu0 %v7783
    %7924 = vmatpush1.bf16.msra.mxu0 %v7782
    %7925 = vmatprep.subr.bf16.mxu0 %v7786
    %7926 = vmatpush1.bf16.msra.mxu0 %v7785
    %7927 = vmatprep.subr.bf16.mxu0 %v7789
    %7928 = vmatpush1.bf16.msra.mxu0 %v7788
    %7929 = vmatprep.subr.bf16.mxu0 %v7792
    %7930 = vmatpush1.bf16.msra.mxu0 %v7791
    %7931 = vmatprep.subr.bf16.mxu0 %v7795
    %7932 = vmatpush1.bf16.msra.mxu0 %v7794
    %7933 = vmatprep.subr.bf16.mxu0 %v7798
    %7934 = vmatpush1.bf16.msra.mxu0 %v7797
    %7935 = vmatprep.subr.bf16.mxu0 0
    %7936 = vmatpush1.bf16.msra.mxu0 0
    %7937 = vmatprep.subr.bf16.mxu0 0
    %7938 = vmatpush1.bf16.msra.mxu0 0
    %7939 = vmatprep.subr.bf16.mxu0 0
    %7940 = vmatpush1.bf16.msra.mxu0 0
    %7941 = vmatprep.subr.bf16.mxu0 0
    %7942 = vmatpush1.bf16.msra.mxu0 0
    %7943 = vmatprep.subr.bf16.mxu0 0
    %7944 = vmatpush1.bf16.msra.mxu0 0
    %7945 = vmatprep.subr.bf16.mxu0 0
    %7946 = vmatpush1.bf16.msra.mxu0 0
    %7947 = vmatprep.subr.bf16.mxu0 0
    %7948 = vmatpush1.bf16.msra.mxu0 0
    %7949 = vmatprep.subr.bf16.mxu0 0
    %7950 = vmatpush1.bf16.msra.mxu0 0
    %7951 = vmatprep.mubr.bf16.mxu0 0
    %7952 = vmatmul.mubr.bf16.gmra.mrb[0].mxu0 %v7902
    %v7953 = vpop.f32.mrb[0].mxu0
    %v7954 = vadd.f32 %v7907, %v7953
    %v7955 = vpop.f32.mrb[0].mxu0
    %v7956 = vadd.f32 %v7911, %v7955
    %v7957 = vpop.f32.mrb[0].mxu0
    %v7958 = vpop.f32.mrb[0].mxu0
    %7959 = vdwg.mxu0
    %7960 = vmatprep.subr.bf16.mxu0 0
    %7961 = vmatpush1.bf16.msra.mxu0 %v7778
    %7962 = vmatprep.subr.bf16.mxu0 0
    %7963 = vmatpush1.bf16.msra.mxu0 %v7781
    %7964 = vmatprep.subr.bf16.mxu0 0
    %7965 = vmatpush1.bf16.msra.mxu0 %v7784
    %7966 = vmatprep.subr.bf16.mxu0 0
    %7967 = vmatpush1.bf16.msra.mxu0 %v7787
    %7968 = vmatprep.subr.bf16.mxu0 0
    %7969 = vmatpush1.bf16.msra.mxu0 %v7790
    %7970 = vmatprep.subr.bf16.mxu0 0
    %7971 = vmatpush1.bf16.msra.mxu0 %v7793
    %7972 = vmatprep.subr.bf16.mxu0 0
    %7973 = vmatpush1.bf16.msra.mxu0 %v7796
    %7974 = vmatprep.subr.bf16.mxu0 0
    %7975 = vmatpush1.bf16.msra.mxu0 %v7799
    %7976 = vmatprep.subr.bf16.mxu0 0
    %7977 = vmatpush1.bf16.msra.mxu0 0
    %7978 = vmatprep.subr.bf16.mxu0 0
    %7979 = vmatpush1.bf16.msra.mxu0 0
    %7980 = vmatprep.subr.bf16.mxu0 0
    %7981 = vmatpush1.bf16.msra.mxu0 0
    %7982 = vmatprep.subr.bf16.mxu0 0
    %7983 = vmatpush1.bf16.msra.mxu0 0
    %7984 = vmatprep.subr.bf16.mxu0 0
    %7985 = vmatpush1.bf16.msra.mxu0 0
    %7986 = vmatprep.subr.bf16.mxu0 0
    %7987 = vmatpush1.bf16.msra.mxu0 0
    %7988 = vmatprep.subr.bf16.mxu0 0
    %7989 = vmatpush1.bf16.msra.mxu0 0
    %7990 = vmatprep.subr.bf16.mxu0 0
    %7991 = vmatpush1.bf16.msra.mxu0 0
    %7992 = vmatprep.mubr.bf16.mxu0 0
    %7993 = vmatmul.mubr.bf16.gmra.mrb[0].mxu0 %v7902
    %v7994 = vpop.f32.mrb[0].mxu0
    %v7995 = vadd.f32 %v7915, %v7994
    %v7996 = vpop.f32.mrb[0].mxu0
    %v7997 = vpop.f32.mrb[0].mxu0
    %v7998 = vpop.f32.mrb[0].mxu0
    %7999 = vdwg.mxu0
    %v8000 = vadd.f32 %v7856, %v7954
    %v8001 = vxor.u32 %v8000, 2147483648
    %v8002 = vmul.f32 %v8001, 1.442695
    %v8003 = vpow.pop %v8002
    %v8004 = vadd.f32 %v8003, 1.0
    %v8005 = vrcp.pop %v8004
    %v8006 = vmul.f32 1.0, %v8005
    %v8007 = vadd.f32 %v7858, %v7956
    %v8008 = vxor.u32 %v8007, 2147483648
    %v8009 = vmul.f32 %v8008, 1.442695
    %v8010 = vpow.pop %v8009
    %v8011 = vadd.f32 %v8010, 1.0
    %v8012 = vrcp.pop %v8011
    %v8013 = vmul.f32 1.0, %v8012
    %v8014 = vmul.f32 %v8006, %v7995
    %v8015 = vadd.f32 %v7897, %v8014
    %v8016 = vtanh.pop %v8015
    %v8017 = vsub.f32 1.0, %v8013
    %v8018 = vmul.f32 %v8017, %v8016
    %v8019 = vmul.f32 %v8013, %v7751
    %v8020 = vadd.f32 %v8018, %v8019
    %s8021 = scalar_lea.vmem [#allocation34], 16
    %8022 = vst [vmem:[%s8021] sm:$0xff] %v8020
    %8023 = vadd.xlane.f32.xlu0 %v8020
    %v8024 = vpop.xlane.xlu0 %8023
    %v8025 = vmul.f32 %v8024, %v7570
    %v8026 = vsub.f32 %v8020, %v8025
    %v8027 = vmul.f32 %v8026, %v8026
    %8028 = vadd.xlane.f32.xlu0 %v8027
    %v8029 = vpop.xlane.xlu0 %8028
    %v8030 = vmul.f32 %v8029, %v7570
    %v8031 = vadd.f32 %v8030, 1e-05
    %v8032 = vrsqrt.pop %v8031
    %v8033 = vmul.f32 %v8026, %v8032
    %s8034 = scalar_lea.vmem %s47, 1
    %v8035 = vld [vmem:[%s8034] sm:$0x1]
    %v8037 = vlaneseq
    %v8038 = vshrl.u32 %v8037, 7
    %v8039 = vsub.s32 0, %v8038
    %v8040 = vrot.slane %v8035, %v8039
    %v8042 = vmul.f32 %v8033, %v8040
    %s8043 = scalar_lea.vmem %s49, 1
    %v8044 = vld [vmem:[%s8043] sm:$0x1]
    %v8046 = vlaneseq
    %v8047 = vshrl.u32 %v8046, 7
    %v8048 = vsub.s32 0, %v8047
    %v8049 = vrot.slane %v8044, %v8048
    %v8051 = vadd.f32 %v8042, %v8049
    %v8052 = vadd.f32 %v8051, %v7596
    %s8053 = sshll.u32 %s7136, 4
    %8054 = dma.done [#allocation5], %s8053
    %s8055 = sshll.u32 %s7140, 4
    %8056 = dma.done %s341, %s8055
    %s8057 = sshll.u32 %s7140, 4
    %8058 = dma.done %s377, %s8057
    %s8059 = scalar_lea.hbm %s35, 6144
    // Predicated region
    $region178: #{tpu_custom_call.1} parent=1 // pred_check
      _
    $region179: #{tpu_custom_call.1} parent=1 // pred_check_branch
      %8061 = sbr.rel target = $region181
    $region180: #{tpu_custom_call.1} parent=1 // pred_region
      %8062 = sst [smem:[#allocation39]] [#allocation58]
      %8063 = sst [smem:[#allocation40]] [#allocation57]
    $region181: #{tpu_custom_call.1} parent=1 // pred_fallthru
      _
    %8065 = shalt.err (0)
    %s8067 = sshll.u32 %s7146, 4
    %s8068 = int_to_ptr.vmem [resolvable:$true] %s8067
    %8070 = dma.hbm_to_vmem [thread:$0]  %s8059, 2048, %s8068, %s7147
    %s8071 = scalar_lea.hbm %s39, 9216
    %s8073 = sshll.u32 1, 14
    %s8074 = sxor.u32 4294967295, %s8073
    %s8076 = sadd.s32 2, %s346
    %s8078 = sshll.u32 7, 26
    %s8079 = sxor.u32 4294967295, %s8078
    %s8080 = sand.u32 0, %s8079
    %s8081 = sshll.u32 %s8076, 26
    %s8082 = sor.u32 %s8080, %s8081
    %s8083 = sshll.u32 %s7160, 4
    %s8084 = int_to_ptr.vmem [resolvable:$true] %s8083
    %8087 = sst [smem:[#allocation60]] 384
    %s8088 = scalar_lea.smem [#allocation60], 1
    %8089 = sst [smem:[%s8088]] 384
    %s8090 = scalar_lea.smem [#allocation60], 2
    %8091 = sst [smem:[%s8090]] 3
    %s8092 = scalar_lea.smem [#allocation60], 3
    %8093 = sst [smem:[%s8092]] 64
    %s8094 = scalar_lea.smem [#allocation60], 4
    %8095 = sst [smem:[%s8094]] 128
    %s8096 = scalar_lea.smem [#allocation60], 5
    %8097 = sst [smem:[%s8096]] 2
    %s8098 = scalar_lea.smem [#allocation60], 6
    %8099 = sst [smem:[%s8098]] 192
    %s8100 = scalar_lea.smem [#allocation60], 7
    %8101 = sst [smem:[%s8100]] 64
    %s8102 = scalar_lea.smem [#allocation60], 8
    %8103 = sst [smem:[%s8102]] 4
    %8105 = dma.general %s8071, 3072, %s8084, %s7161, [#allocation59], [#allocation60], %s8082, 0
    %s8106 = scalar_lea.hbm %s41, 9216
    %s8108 = sshll.u32 1, 14
    %s8109 = sxor.u32 4294967295, %s8108
    %s8111 = sadd.s32 2, %s346
    %s8113 = sshll.u32 7, 26
    %s8114 = sxor.u32 4294967295, %s8113
    %s8115 = sand.u32 0, %s8114
    %s8116 = sshll.u32 %s8111, 26
    %s8117 = sor.u32 %s8115, %s8116
    %s8118 = sshll.u32 %s7197, 4
    %s8119 = int_to_ptr.vmem [resolvable:$true] %s8118
    %8122 = sst [smem:[#allocation62]] 384
    %s8123 = scalar_lea.smem [#allocation62], 1
    %8124 = sst [smem:[%s8123]] 384
    %s8125 = scalar_lea.smem [#allocation62], 2
    %8126 = sst [smem:[%s8125]] 3
    %s8127 = scalar_lea.smem [#allocation62], 3
    %8128 = sst [smem:[%s8127]] 64
    %s8129 = scalar_lea.smem [#allocation62], 4
    %8130 = sst [smem:[%s8129]] 128
    %s8131 = scalar_lea.smem [#allocation62], 5
    %8132 = sst [smem:[%s8131]] 2
    %s8133 = scalar_lea.smem [#allocation62], 6
    %8134 = sst [smem:[%s8133]] 192
    %s8135 = scalar_lea.smem [#allocation62], 7
    %8136 = sst [smem:[%s8135]] 64
    %s8137 = scalar_lea.smem [#allocation62], 8
    %8138 = sst [smem:[%s8137]] 4
    %8140 = dma.general %s8106, 3072, %s8119, %s7198, [#allocation61], [#allocation62], %s8117, 0
    %v8141 = vpack.c.bf16 %v8052, %v8052
    %v8142 = vld [vmem:[#allocation2] sm:$0xff]
    %v8143 = vld [vmem:[#allocation2 + $0x8] sm:$0xff]
    %v8144 = vld [vmem:[#allocation2 + $0x10] sm:$0xff]
    %v8145 = vld [vmem:[#allocation2 + $0x18] sm:$0xff]
    %v8146 = vld [vmem:[#allocation2 + $0x20] sm:$0xff]
    %v8147 = vld [vmem:[#allocation2 + $0x28] sm:$0xff]
    %v8148 = vld [vmem:[#allocation2 + $0x30] sm:$0xff]
    %v8149 = vld [vmem:[#allocation2 + $0x38] sm:$0xff]
    %v8150 = vld [vmem:[#allocation2 + $0x40] sm:$0xff]
    %v8151 = vld [vmem:[#allocation2 + $0x48] sm:$0xff]
    %v8152 = vld [vmem:[#allocation2 + $0x50] sm:$0xff]
    %v8153 = vld [vmem:[#allocation2 + $0x58] sm:$0xff]
    %v8154 = vld [vmem:[#allocation2 + $0x60] sm:$0xff]
    %v8155 = vld [vmem:[#allocation2 + $0x68] sm:$0xff]
    %v8156 = vld [vmem:[#allocation2 + $0x70] sm:$0xff]
    %v8157 = vld [vmem:[#allocation2 + $0x78] sm:$0xff]
    %s8158 = scalar_lea.vmem %s37, 2
    %v8159 = vld [vmem:[%s8158] sm:$0x1]
    %v8161 = vlaneseq
    %v8162 = vshrl.u32 %v8161, 7
    %v8163 = vsub.s32 0, %v8162
    %v8164 = vrot.slane %v8159, %v8163
    %8166 = vmatprep.subr.bf16.mxu0 0
    %8167 = vmatpush1.bf16.msra.mxu0 %v8142
    %8168 = vmatprep.subr.bf16.mxu0 0
    %8169 = vmatpush1.bf16.msra.mxu0 %v8143
    %8170 = vmatprep.subr.bf16.mxu0 0
    %8171 = vmatpush1.bf16.msra.mxu0 %v8144
    %8172 = vmatprep.subr.bf16.mxu0 0
    %8173 = vmatpush1.bf16.msra.mxu0 %v8145
    %8174 = vmatprep.subr.bf16.mxu0 0
    %8175 = vmatpush1.bf16.msra.mxu0 %v8146
    %8176 = vmatprep.subr.bf16.mxu0 0
    %8177 = vmatpush1.bf16.msra.mxu0 %v8147
    %8178 = vmatprep.subr.bf16.mxu0 0
    %8179 = vmatpush1.bf16.msra.mxu0 %v8148
    %8180 = vmatprep.subr.bf16.mxu0 0
    %8181 = vmatpush1.bf16.msra.mxu0 %v8149
    %8182 = vmatprep.subr.bf16.mxu0 0
    %8183 = vmatpush1.bf16.msra.mxu0 %v8150
    %8184 = vmatprep.subr.bf16.mxu0 0
    %8185 = vmatpush1.bf16.msra.mxu0 %v8151
    %8186 = vmatprep.subr.bf16.mxu0 0
    %8187 = vmatpush1.bf16.msra.mxu0 %v8152
    %8188 = vmatprep.subr.bf16.mxu0 0
    %8189 = vmatpush1.bf16.msra.mxu0 %v8153
    %8190 = vmatprep.subr.bf16.mxu0 0
    %8191 = vmatpush1.bf16.msra.mxu0 %v8154
    %8192 = vmatprep.subr.bf16.mxu0 0
    %8193 = vmatpush1.bf16.msra.mxu0 %v8155
    %8194 = vmatprep.subr.bf16.mxu0 0
    %8195 = vmatpush1.bf16.msra.mxu0 %v8156
    %8196 = vmatprep.subr.bf16.mxu0 0
    %8197 = vmatpush1.bf16.msra.mxu0 %v8157
    %8198 = vmatprep.mubr.bf16.mxu0 %v7233
    %8199 = vmatmul.mubr.bf16.gmra.mrb[0].mxu0 %v8141
    %v8200 = vpop.f32.mrb[0].mxu0
    %v8201 = vadd.f32 %v8164, %v8200
    %v8202 = vpop.f32.mrb[0].mxu0
    %v8203 = vpop.f32.mrb[0].mxu0
    %v8204 = vpop.f32.mrb[0].mxu0
    %8205 = vdwg.mxu0
    %s8206 = scalar_lea.vmem [#allocation12], 24
    %v8207 = vld [vmem:[%s8206] sm:$0xff]
    %v8208 = vld [vmem:[#allocation3] sm:$0xff]
    %v8209 = vld [vmem:[#allocation3 + $0x8] sm:$0xff]
    %v8210 = vld [vmem:[#allocation3 + $0x10] sm:$0xff]
    %v8211 = vld [vmem:[#allocation3 + $0x18] sm:$0xff]
    %v8212 = vld [vmem:[#allocation3 + $0x20] sm:$0xff]
    %v8213 = vld [vmem:[#allocation3 + $0x28] sm:$0xff]
    %v8214 = vld [vmem:[#allocation3 + $0x30] sm:$0xff]
    %v8215 = vld [vmem:[#allocation3 + $0x38] sm:$0xff]
    %v8216 = vld [vmem:[#allocation3 + $0x40] sm:$0xff]
    %v8217 = vld [vmem:[#allocation3 + $0x48] sm:$0xff]
    %v8218 = vld [vmem:[#allocation3 + $0x50] sm:$0xff]
    %v8219 = vld [vmem:[#allocation3 + $0x58] sm:$0xff]
    %v8220 = vld [vmem:[#allocation3 + $0x60] sm:$0xff]
    %v8221 = vld [vmem:[#allocation3 + $0x68] sm:$0xff]
    %v8222 = vld [vmem:[#allocation3 + $0x70] sm:$0xff]
    %v8223 = vld [vmem:[#allocation3 + $0x78] sm:$0xff]
    %v8224 = vld [vmem:[#allocation3 + $0x80] sm:$0xff]
    %v8225 = vld [vmem:[#allocation3 + $0x88] sm:$0xff]
    %v8226 = vld [vmem:[#allocation3 + $0x90] sm:$0xff]
    %v8227 = vld [vmem:[#allocation3 + $0x98] sm:$0xff]
    %v8228 = vld [vmem:[#allocation3 + $0xa0] sm:$0xff]
    %v8229 = vld [vmem:[#allocation3 + $0xa8] sm:$0xff]
    %v8230 = vld [vmem:[#allocation3 + $0xb0] sm:$0xff]
    %v8231 = vld [vmem:[#allocation3 + $0xb8] sm:$0xff]
    %v8232 = vld [vmem:[#allocation4] sm:$0xff]
    %v8233 = vld [vmem:[#allocation4 + $0x8] sm:$0xff]
    %v8234 = vld [vmem:[#allocation4 + $0x10] sm:$0xff]
    %v8235 = vld [vmem:[#allocation4 + $0x18] sm:$0xff]
    %v8236 = vld [vmem:[#allocation4 + $0x20] sm:$0xff]
    %v8237 = vld [vmem:[#allocation4 + $0x28] sm:$0xff]
    %v8238 = vld [vmem:[#allocation4 + $0x30] sm:$0xff]
    %v8239 = vld [vmem:[#allocation4 + $0x38] sm:$0xff]
    %v8240 = vld [vmem:[#allocation4 + $0x40] sm:$0xff]
    %v8241 = vld [vmem:[#allocation4 + $0x48] sm:$0xff]
    %v8242 = vld [vmem:[#allocation4 + $0x50] sm:$0xff]
    %v8243 = vld [vmem:[#allocation4 + $0x58] sm:$0xff]
    %v8244 = vld [vmem:[#allocation4 + $0x60] sm:$0xff]
    %v8245 = vld [vmem:[#allocation4 + $0x68] sm:$0xff]
    %v8246 = vld [vmem:[#allocation4 + $0x70] sm:$0xff]
    %v8247 = vld [vmem:[#allocation4 + $0x78] sm:$0xff]
    %v8248 = vld [vmem:[#allocation4 + $0x80] sm:$0xff]
    %v8249 = vld [vmem:[#allocation4 + $0x88] sm:$0xff]
    %v8250 = vld [vmem:[#allocation4 + $0x90] sm:$0xff]
    %v8251 = vld [vmem:[#allocation4 + $0x98] sm:$0xff]
    %v8252 = vld [vmem:[#allocation4 + $0xa0] sm:$0xff]
    %v8253 = vld [vmem:[#allocation4 + $0xa8] sm:$0xff]
    %v8254 = vld [vmem:[#allocation4 + $0xb0] sm:$0xff]
    %v8255 = vld [vmem:[#allocation4 + $0xb8] sm:$0xff]
    %s8256 = scalar_lea.vmem %s43, 6
    %v8257 = vld [vmem:[%s8256] sm:$0x7]
    %s8258 = scalar_lea.vmem %s45, 6
    %v8259 = vld [vmem:[%s8258] sm:$0x7]
    %v8260 = vpack.c.bf16 %v8201, %v8201
    %v8262 = vlaneseq
    %v8263 = vshrl.u32 %v8262, 7
    %v8264 = vsub.s32 0, %v8263
    %v8265 = vrot.slane %v8257, %v8264
    %v8266 = vlaneseq
    %v8267 = vshrl.u32 %v8266, 7
    %v8268 = vsub.s32 1, %v8267
    %v8269 = vrot.slane %v8257, %v8268
    %v8270 = vlaneseq
    %v8271 = vshrl.u32 %v8270, 7
    %v8272 = vsub.s32 2, %v8271
    %v8273 = vrot.slane %v8257, %v8272
    %8277 = vmatprep.subr.bf16.mxu0 %v8209
    %8278 = vmatpush1.bf16.msra.mxu0 %v8208
    %8279 = vmatprep.subr.bf16.mxu0 %v8212
    %8280 = vmatpush1.bf16.msra.mxu0 %v8211
    %8281 = vmatprep.subr.bf16.mxu0 %v8215
    %8282 = vmatpush1.bf16.msra.mxu0 %v8214
    %8283 = vmatprep.subr.bf16.mxu0 %v8218
    %8284 = vmatpush1.bf16.msra.mxu0 %v8217
    %8285 = vmatprep.subr.bf16.mxu0 %v8221
    %8286 = vmatpush1.bf16.msra.mxu0 %v8220
    %8287 = vmatprep.subr.bf16.mxu0 %v8224
    %8288 = vmatpush1.bf16.msra.mxu0 %v8223
    %8289 = vmatprep.subr.bf16.mxu0 %v8227
    %8290 = vmatpush1.bf16.msra.mxu0 %v8226
    %8291 = vmatprep.subr.bf16.mxu0 %v8230
    %8292 = vmatpush1.bf16.msra.mxu0 %v8229
    %8293 = vmatprep.subr.bf16.mxu0 0
    %8294 = vmatpush1.bf16.msra.mxu0 0
    %8295 = vmatprep.subr.bf16.mxu0 0
    %8296 = vmatpush1.bf16.msra.mxu0 0
    %8297 = vmatprep.subr.bf16.mxu0 0
    %8298 = vmatpush1.bf16.msra.mxu0 0
    %8299 = vmatprep.subr.bf16.mxu0 0
    %8300 = vmatpush1.bf16.msra.mxu0 0
    %8301 = vmatprep.subr.bf16.mxu0 0
    %8302 = vmatpush1.bf16.msra.mxu0 0
    %8303 = vmatprep.subr.bf16.mxu0 0
    %8304 = vmatpush1.bf16.msra.mxu0 0
    %8305 = vmatprep.subr.bf16.mxu0 0
    %8306 = vmatpush1.bf16.msra.mxu0 0
    %8307 = vmatprep.subr.bf16.mxu0 0
    %8308 = vmatpush1.bf16.msra.mxu0 0
    %8309 = vmatprep.mubr.bf16.mxu0 0
    %8310 = vmatmul.mubr.bf16.gmra.mrb[0].mxu0 %v8260
    %v8311 = vpop.f32.mrb[0].mxu0
    %v8312 = vadd.f32 %v8265, %v8311
    %v8313 = vpop.f32.mrb[0].mxu0
    %v8314 = vadd.f32 %v8269, %v8313
    %v8315 = vpop.f32.mrb[0].mxu0
    %v8316 = vpop.f32.mrb[0].mxu0
    %8317 = vdwg.mxu0
    %8318 = vmatprep.subr.bf16.mxu0 0
    %8319 = vmatpush1.bf16.msra.mxu0 %v8210
    %8320 = vmatprep.subr.bf16.mxu0 0
    %8321 = vmatpush1.bf16.msra.mxu0 %v8213
    %8322 = vmatprep.subr.bf16.mxu0 0
    %8323 = vmatpush1.bf16.msra.mxu0 %v8216
    %8324 = vmatprep.subr.bf16.mxu0 0
    %8325 = vmatpush1.bf16.msra.mxu0 %v8219
    %8326 = vmatprep.subr.bf16.mxu0 0
    %8327 = vmatpush1.bf16.msra.mxu0 %v8222
    %8328 = vmatprep.subr.bf16.mxu0 0
    %8329 = vmatpush1.bf16.msra.mxu0 %v8225
    %8330 = vmatprep.subr.bf16.mxu0 0
    %8331 = vmatpush1.bf16.msra.mxu0 %v8228
    %8332 = vmatprep.subr.bf16.mxu0 0
    %8333 = vmatpush1.bf16.msra.mxu0 %v8231
    %8334 = vmatprep.subr.bf16.mxu0 0
    %8335 = vmatpush1.bf16.msra.mxu0 0
    %8336 = vmatprep.subr.bf16.mxu0 0
    %8337 = vmatpush1.bf16.msra.mxu0 0
    %8338 = vmatprep.subr.bf16.mxu0 0
    %8339 = vmatpush1.bf16.msra.mxu0 0
    %8340 = vmatprep.subr.bf16.mxu0 0
    %8341 = vmatpush1.bf16.msra.mxu0 0
    %8342 = vmatprep.subr.bf16.mxu0 0
    %8343 = vmatpush1.bf16.msra.mxu0 0
    %8344 = vmatprep.subr.bf16.mxu0 0
    %8345 = vmatpush1.bf16.msra.mxu0 0
    %8346 = vmatprep.subr.bf16.mxu0 0
    %8347 = vmatpush1.bf16.msra.mxu0 0
    %8348 = vmatprep.subr.bf16.mxu0 0
    %8349 = vmatpush1.bf16.msra.mxu0 0
    %8350 = vmatprep.mubr.bf16.mxu0 0
    %8351 = vmatmul.mubr.bf16.gmra.mrb[0].mxu0 %v8260
    %v8352 = vpop.f32.mrb[0].mxu0
    %v8353 = vadd.f32 %v8273, %v8352
    %v8354 = vpop.f32.mrb[0].mxu0
    %v8355 = vpop.f32.mrb[0].mxu0
    %v8356 = vpop.f32.mrb[0].mxu0
    %8357 = vdwg.mxu0
    %v8358 = vpack.c.bf16 %v8207, %v8207
    %v8360 = vlaneseq
    %v8361 = vshrl.u32 %v8360, 7
    %v8362 = vsub.s32 0, %v8361
    %v8363 = vrot.slane %v8259, %v8362
    %v8364 = vlaneseq
    %v8365 = vshrl.u32 %v8364, 7
    %v8366 = vsub.s32 1, %v8365
    %v8367 = vrot.slane %v8259, %v8366
    %v8368 = vlaneseq
    %v8369 = vshrl.u32 %v8368, 7
    %v8370 = vsub.s32 2, %v8369
    %v8371 = vrot.slane %v8259, %v8370
    %8375 = vmatprep.subr.bf16.mxu0 %v8233
    %8376 = vmatpush1.bf16.msra.mxu0 %v8232
    %8377 = vmatprep.subr.bf16.mxu0 %v8236
    %8378 = vmatpush1.bf16.msra.mxu0 %v8235
    %8379 = vmatprep.subr.bf16.mxu0 %v8239
    %8380 = vmatpush1.bf16.msra.mxu0 %v8238
    %8381 = vmatprep.subr.bf16.mxu0 %v8242
    %8382 = vmatpush1.bf16.msra.mxu0 %v8241
    %8383 = vmatprep.subr.bf16.mxu0 %v8245
    %8384 = vmatpush1.bf16.msra.mxu0 %v8244
    %8385 = vmatprep.subr.bf16.mxu0 %v8248
    %8386 = vmatpush1.bf16.msra.mxu0 %v8247
    %8387 = vmatprep.subr.bf16.mxu0 %v8251
    %8388 = vmatpush1.bf16.msra.mxu0 %v8250
    %8389 = vmatprep.subr.bf16.mxu0 %v8254
    %8390 = vmatpush1.bf16.msra.mxu0 %v8253
    %8391 = vmatprep.subr.bf16.mxu0 0
    %8392 = vmatpush1.bf16.msra.mxu0 0
    %8393 = vmatprep.subr.bf16.mxu0 0
    %8394 = vmatpush1.bf16.msra.mxu0 0
    %8395 = vmatprep.subr.bf16.mxu0 0
    %8396 = vmatpush1.bf16.msra.mxu0 0
    %8397 = vmatprep.subr.bf16.mxu0 0
    %8398 = vmatpush1.bf16.msra.mxu0 0
    %8399 = vmatprep.subr.bf16.mxu0 0
    %8400 = vmatpush1.bf16.msra.mxu0 0
    %8401 = vmatprep.subr.bf16.mxu0 0
    %8402 = vmatpush1.bf16.msra.mxu0 0
    %8403 = vmatprep.subr.bf16.mxu0 0
    %8404 = vmatpush1.bf16.msra.mxu0 0
    %8405 = vmatprep.subr.bf16.mxu0 0
    %8406 = vmatpush1.bf16.msra.mxu0 0
    %8407 = vmatprep.mubr.bf16.mxu0 0
    %8408 = vmatmul.mubr.bf16.gmra.mrb[0].mxu0 %v8358
    %v8409 = vpop.f32.mrb[0].mxu0
    %v8410 = vadd.f32 %v8363, %v8409
    %v8411 = vpop.f32.mrb[0].mxu0
    %v8412 = vadd.f32 %v8367, %v8411
    %v8413 = vpop.f32.mrb[0].mxu0
    %v8414 = vpop.f32.mrb[0].mxu0
    %8415 = vdwg.mxu0
    %8416 = vmatprep.subr.bf16.mxu0 0
    %8417 = vmatpush1.bf16.msra.mxu0 %v8234
    %8418 = vmatprep.subr.bf16.mxu0 0
    %8419 = vmatpush1.bf16.msra.mxu0 %v8237
    %8420 = vmatprep.subr.bf16.mxu0 0
    %8421 = vmatpush1.bf16.msra.mxu0 %v8240
    %8422 = vmatprep.subr.bf16.mxu0 0
    %8423 = vmatpush1.bf16.msra.mxu0 %v8243
    %8424 = vmatprep.subr.bf16.mxu0 0
    %8425 = vmatpush1.bf16.msra.mxu0 %v8246
    %8426 = vmatprep.subr.bf16.mxu0 0
    %8427 = vmatpush1.bf16.msra.mxu0 %v8249
    %8428 = vmatprep.subr.bf16.mxu0 0
    %8429 = vmatpush1.bf16.msra.mxu0 %v8252
    %8430 = vmatprep.subr.bf16.mxu0 0
    %8431 = vmatpush1.bf16.msra.mxu0 %v8255
    %8432 = vmatprep.subr.bf16.mxu0 0
    %8433 = vmatpush1.bf16.msra.mxu0 0
    %8434 = vmatprep.subr.bf16.mxu0 0
    %8435 = vmatpush1.bf16.msra.mxu0 0
    %8436 = vmatprep.subr.bf16.mxu0 0
    %8437 = vmatpush1.bf16.msra.mxu0 0
    %8438 = vmatprep.subr.bf16.mxu0 0
    %8439 = vmatpush1.bf16.msra.mxu0 0
    %8440 = vmatprep.subr.bf16.mxu0 0
    %8441 = vmatpush1.bf16.msra.mxu0 0
    %8442 = vmatprep.subr.bf16.mxu0 0
    %8443 = vmatpush1.bf16.msra.mxu0 0
    %8444 = vmatprep.subr.bf16.mxu0 0
    %8445 = vmatpush1.bf16.msra.mxu0 0
    %8446 = vmatprep.subr.bf16.mxu0 0
    %8447 = vmatpush1.bf16.msra.mxu0 0
    %8448 = vmatprep.mubr.bf16.mxu0 0
    %8449 = vmatmul.mubr.bf16.gmra.mrb[0].mxu0 %v8358
    %v8450 = vpop.f32.mrb[0].mxu0
    %v8451 = vadd.f32 %v8371, %v8450
    %v8452 = vpop.f32.mrb[0].mxu0
    %v8453 = vpop.f32.mrb[0].mxu0
    %v8454 = vpop.f32.mrb[0].mxu0
    %8455 = vdwg.mxu0
    %v8456 = vadd.f32 %v8312, %v8410
    %v8457 = vxor.u32 %v8456, 2147483648
    %v8458 = vmul.f32 %v8457, 1.442695
    %v8459 = vpow.pop %v8458
    %v8460 = vadd.f32 %v8459, 1.0
    %v8461 = vrcp.pop %v8460
    %v8462 = vmul.f32 1.0, %v8461
    %v8463 = vadd.f32 %v8314, %v8412
    %v8464 = vxor.u32 %v8463, 2147483648
    %v8465 = vmul.f32 %v8464, 1.442695
    %v8466 = vpow.pop %v8465
    %v8467 = vadd.f32 %v8466, 1.0
    %v8468 = vrcp.pop %v8467
    %v8469 = vmul.f32 1.0, %v8468
    %v8470 = vmul.f32 %v8462, %v8451
    %v8471 = vadd.f32 %v8353, %v8470
    %v8472 = vtanh.pop %v8471
    %v8473 = vsub.f32 1.0, %v8469
    %v8474 = vmul.f32 %v8473, %v8472
    %v8475 = vmul.f32 %v8469, %v8207
    %v8476 = vadd.f32 %v8474, %v8475
    %s8477 = scalar_lea.vmem [#allocation34], 24
    %8478 = vst [vmem:[%s8477] sm:$0xff] %v8476
    %8479 = vadd.xlane.f32.xlu0 %v8476
    %v8480 = vpop.xlane.xlu0 %8479
    %v8481 = vmul.f32 %v8480, %v7570
    %v8482 = vsub.f32 %v8476, %v8481
    %v8483 = vmul.f32 %v8482, %v8482
    %8484 = vadd.xlane.f32.xlu0 %v8483
    %v8485 = vpop.xlane.xlu0 %8484
    %v8486 = vmul.f32 %v8485, %v7570
    %v8487 = vadd.f32 %v8486, 1e-05
    %v8488 = vrsqrt.pop %v8487
    %v8489 = vmul.f32 %v8482, %v8488
    %s8490 = scalar_lea.vmem %s47, 2
    %v8491 = vld [vmem:[%s8490] sm:$0x1]
    %v8493 = vlaneseq
    %v8494 = vshrl.u32 %v8493, 7
    %v8495 = vsub.s32 0, %v8494
    %v8496 = vrot.slane %v8491, %v8495
    %v8498 = vmul.f32 %v8489, %v8496
    %s8499 = scalar_lea.vmem %s49, 2
    %v8500 = vld [vmem:[%s8499] sm:$0x1]
    %v8502 = vlaneseq
    %v8503 = vshrl.u32 %v8502, 7
    %v8504 = vsub.s32 0, %v8503
    %v8505 = vrot.slane %v8500, %v8504
    %v8507 = vadd.f32 %v8498, %v8505
    %v8508 = vadd.f32 %v8507, %v8052
    %s8509 = sshll.u32 %s7136, 4
    %8510 = dma.done %s7147, %s8509
    %s8511 = sshll.u32 %s7140, 4
    %8512 = dma.done %s7161, %s8511
    %s8513 = sshll.u32 %s7140, 4
    %8514 = dma.done %s7198, %s8513
    %v8515 = vpack.c.bf16 %v8508, %v8508
    %v8516 = vld [vmem:[%s7146] sm:$0xff]
    %v8517 = vld [vmem:[%s7146 + $0x8] sm:$0xff]
    %v8518 = vld [vmem:[%s7146 + $0x10] sm:$0xff]
    %v8519 = vld [vmem:[%s7146 + $0x18] sm:$0xff]
    %v8520 = vld [vmem:[%s7146 + $0x20] sm:$0xff]
    %v8521 = vld [vmem:[%s7146 + $0x28] sm:$0xff]
    %v8522 = vld [vmem:[%s7146 + $0x30] sm:$0xff]
    %v8523 = vld [vmem:[%s7146 + $0x38] sm:$0xff]
    %v8524 = vld [vmem:[%s7146 + $0x40] sm:$0xff]
    %v8525 = vld [vmem:[%s7146 + $0x48] sm:$0xff]
    %v8526 = vld [vmem:[%s7146 + $0x50] sm:$0xff]
    %v8527 = vld [vmem:[%s7146 + $0x58] sm:$0xff]
    %v8528 = vld [vmem:[%s7146 + $0x60] sm:$0xff]
    %v8529 = vld [vmem:[%s7146 + $0x68] sm:$0xff]
    %v8530 = vld [vmem:[%s7146 + $0x70] sm:$0xff]
    %v8531 = vld [vmem:[%s7146 + $0x78] sm:$0xff]
    %s8532 = scalar_lea.vmem %s37, 3
    %v8533 = vld [vmem:[%s8532] sm:$0x1]
    %v8535 = vlaneseq
    %v8536 = vshrl.u32 %v8535, 7
    %v8537 = vsub.s32 0, %v8536
    %v8538 = vrot.slane %v8533, %v8537
    %8540 = vmatprep.subr.bf16.mxu0 0
    %8541 = vmatpush1.bf16.msra.mxu0 %v8516
    %8542 = vmatprep.subr.bf16.mxu0 0
    %8543 = vmatpush1.bf16.msra.mxu0 %v8517
    %8544 = vmatprep.subr.bf16.mxu0 0
    %8545 = vmatpush1.bf16.msra.mxu0 %v8518
    %8546 = vmatprep.subr.bf16.mxu0 0
    %8547 = vmatpush1.bf16.msra.mxu0 %v8519
    %8548 = vmatprep.subr.bf16.mxu0 0
    %8549 = vmatpush1.bf16.msra.mxu0 %v8520
    %8550 = vmatprep.subr.bf16.mxu0 0
    %8551 = vmatpush1.bf16.msra.mxu0 %v8521
    %8552 = vmatprep.subr.bf16.mxu0 0
    %8553 = vmatpush1.bf16.msra.mxu0 %v8522
    %8554 = vmatprep.subr.bf16.mxu0 0
    %8555 = vmatpush1.bf16.msra.mxu0 %v8523
    %8556 = vmatprep.subr.bf16.mxu0 0
    %8557 = vmatpush1.bf16.msra.mxu0 %v8524
    %8558 = vmatprep.subr.bf16.mxu0 0
    %8559 = vmatpush1.bf16.msra.mxu0 %v8525
    %8560 = vmatprep.subr.bf16.mxu0 0
    %8561 = vmatpush1.bf16.msra.mxu0 %v8526
    %8562 = vmatprep.subr.bf16.mxu0 0
    %8563 = vmatpush1.bf16.msra.mxu0 %v8527
    %8564 = vmatprep.subr.bf16.mxu0 0
    %8565 = vmatpush1.bf16.msra.mxu0 %v8528
    %8566 = vmatprep.subr.bf16.mxu0 0
    %8567 = vmatpush1.bf16.msra.mxu0 %v8529
    %8568 = vmatprep.subr.bf16.mxu0 0
    %8569 = vmatpush1.bf16.msra.mxu0 %v8530
    %8570 = vmatprep.subr.bf16.mxu0 0
    %8571 = vmatpush1.bf16.msra.mxu0 %v8531
    %8572 = vmatprep.mubr.bf16.mxu0 %v7233
    %8573 = vmatmul.mubr.bf16.gmra.mrb[0].mxu0 %v8515
    %v8574 = vpop.f32.mrb[0].mxu0
    %v8575 = vadd.f32 %v8538, %v8574
    %v8576 = vpop.f32.mrb[0].mxu0
    %v8577 = vpop.f32.mrb[0].mxu0
    %v8578 = vpop.f32.mrb[0].mxu0
    %8579 = vdwg.mxu0
    %s8580 = scalar_lea.vmem [#allocation12], 32
    %v8581 = vld [vmem:[%s8580] sm:$0xff]
    %v8582 = vld [vmem:[%s7160] sm:$0xff]
    %v8583 = vld [vmem:[%s7160 + $0x8] sm:$0xff]
    %v8584 = vld [vmem:[%s7160 + $0x10] sm:$0xff]
    %v8585 = vld [vmem:[%s7160 + $0x18] sm:$0xff]
    %v8586 = vld [vmem:[%s7160 + $0x20] sm:$0xff]
    %v8587 = vld [vmem:[%s7160 + $0x28] sm:$0xff]
    %v8588 = vld [vmem:[%s7160 + $0x30] sm:$0xff]
    %v8589 = vld [vmem:[%s7160 + $0x38] sm:$0xff]
    %v8590 = vld [vmem:[%s7160 + $0x40] sm:$0xff]
    %v8591 = vld [vmem:[%s7160 + $0x48] sm:$0xff]
    %v8592 = vld [vmem:[%s7160 + $0x50] sm:$0xff]
    %v8593 = vld [vmem:[%s7160 + $0x58] sm:$0xff]
    %v8594 = vld [vmem:[%s7160 + $0x60] sm:$0xff]
    %v8595 = vld [vmem:[%s7160 + $0x68] sm:$0xff]
    %v8596 = vld [vmem:[%s7160 + $0x70] sm:$0xff]
    %v8597 = vld [vmem:[%s7160 + $0x78] sm:$0xff]
    %v8598 = vld [vmem:[%s7160 + $0x80] sm:$0xff]
    %v8599 = vld [vmem:[%s7160 + $0x88] sm:$0xff]
    %v8600 = vld [vmem:[%s7160 + $0x90] sm:$0xff]
    %v8601 = vld [vmem:[%s7160 + $0x98] sm:$0xff]
    %v8602 = vld [vmem:[%s7160 + $0xa0] sm:$0xff]
    %v8603 = vld [vmem:[%s7160 + $0xa8] sm:$0xff]
    %v8604 = vld [vmem:[%s7160 + $0xb0] sm:$0xff]
    %v8605 = vld [vmem:[%s7160 + $0xb8] sm:$0xff]
    %v8606 = vld [vmem:[%s7197] sm:$0xff]
    %v8607 = vld [vmem:[%s7197 + $0x8] sm:$0xff]
    %v8608 = vld [vmem:[%s7197 + $0x10] sm:$0xff]
    %v8609 = vld [vmem:[%s7197 + $0x18] sm:$0xff]
    %v8610 = vld [vmem:[%s7197 + $0x20] sm:$0xff]
    %v8611 = vld [vmem:[%s7197 + $0x28] sm:$0xff]
    %v8612 = vld [vmem:[%s7197 + $0x30] sm:$0xff]
    %v8613 = vld [vmem:[%s7197 + $0x38] sm:$0xff]
    %v8614 = vld [vmem:[%s7197 + $0x40] sm:$0xff]
    %v8615 = vld [vmem:[%s7197 + $0x48] sm:$0xff]
    %v8616 = vld [vmem:[%s7197 + $0x50] sm:$0xff]
    %v8617 = vld [vmem:[%s7197 + $0x58] sm:$0xff]
    %v8618 = vld [vmem:[%s7197 + $0x60] sm:$0xff]
    %v8619 = vld [vmem:[%s7197 + $0x68] sm:$0xff]
    %v8620 = vld [vmem:[%s7197 + $0x70] sm:$0xff]
    %v8621 = vld [vmem:[%s7197 + $0x78] sm:$0xff]
    %v8622 = vld [vmem:[%s7197 + $0x80] sm:$0xff]
    %v8623 = vld [vmem:[%s7197 + $0x88] sm:$0xff]
    %v8624 = vld [vmem:[%s7197 + $0x90] sm:$0xff]
    %v8625 = vld [vmem:[%s7197 + $0x98] sm:$0xff]
    %v8626 = vld [vmem:[%s7197 + $0xa0] sm:$0xff]
    %v8627 = vld [vmem:[%s7197 + $0xa8] sm:$0xff]
    %v8628 = vld [vmem:[%s7197 + $0xb0] sm:$0xff]
    %v8629 = vld [vmem:[%s7197 + $0xb8] sm:$0xff]
    %s8630 = scalar_lea.vmem %s43, 9
    %v8631 = vld [vmem:[%s8630] sm:$0x7]
    %s8632 = scalar_lea.vmem %s45, 9
    %v8633 = vld [vmem:[%s8632] sm:$0x7]
    %v8634 = vpack.c.bf16 %v8575, %v8575
    %v8636 = vlaneseq
    %v8637 = vshrl.u32 %v8636, 7
    %v8638 = vsub.s32 0, %v8637
    %v8639 = vrot.slane %v8631, %v8638
    %v8640 = vlaneseq
    %v8641 = vshrl.u32 %v8640, 7
    %v8642 = vsub.s32 1, %v8641
    %v8643 = vrot.slane %v8631, %v8642
    %v8644 = vlaneseq
    %v8645 = vshrl.u32 %v8644, 7
    %v8646 = vsub.s32 2, %v8645
    %v8647 = vrot.slane %v8631, %v8646
    %8651 = vmatprep.subr.bf16.mxu0 %v8583
    %8652 = vmatpush1.bf16.msra.mxu0 %v8582
    %8653 = vmatprep.subr.bf16.mxu0 %v8586
    %8654 = vmatpush1.bf16.msra.mxu0 %v8585
    %8655 = vmatprep.subr.bf16.mxu0 %v8589
    %8656 = vmatpush1.bf16.msra.mxu0 %v8588
    %8657 = vmatprep.subr.bf16.mxu0 %v8592
    %8658 = vmatpush1.bf16.msra.mxu0 %v8591
    %8659 = vmatprep.subr.bf16.mxu0 %v8595
    %8660 = vmatpush1.bf16.msra.mxu0 %v8594
    %8661 = vmatprep.subr.bf16.mxu0 %v8598
    %8662 = vmatpush1.bf16.msra.mxu0 %v8597
    %8663 = vmatprep.subr.bf16.mxu0 %v8601
    %8664 = vmatpush1.bf16.msra.mxu0 %v8600
    %8665 = vmatprep.subr.bf16.mxu0 %v8604
    %8666 = vmatpush1.bf16.msra.mxu0 %v8603
    %8667 = vmatprep.subr.bf16.mxu0 0
    %8668 = vmatpush1.bf16.msra.mxu0 0
    %8669 = vmatprep.subr.bf16.mxu0 0
    %8670 = vmatpush1.bf16.msra.mxu0 0
    %8671 = vmatprep.subr.bf16.mxu0 0
    %8672 = vmatpush1.bf16.msra.mxu0 0
    %8673 = vmatprep.subr.bf16.mxu0 0
    %8674 = vmatpush1.bf16.msra.mxu0 0
    %8675 = vmatprep.subr.bf16.mxu0 0
    %8676 = vmatpush1.bf16.msra.mxu0 0
    %8677 = vmatprep.subr.bf16.mxu0 0
    %8678 = vmatpush1.bf16.msra.mxu0 0
    %8679 = vmatprep.subr.bf16.mxu0 0
    %8680 = vmatpush1.bf16.msra.mxu0 0
    %8681 = vmatprep.subr.bf16.mxu0 0
    %8682 = vmatpush1.bf16.msra.mxu0 0
    %8683 = vmatprep.mubr.bf16.mxu0 0
    %8684 = vmatmul.mubr.bf16.gmra.mrb[0].mxu0 %v8634
    %v8685 = vpop.f32.mrb[0].mxu0
    %v8686 = vadd.f32 %v8639, %v8685
    %v8687 = vpop.f32.mrb[0].mxu0
    %v8688 = vadd.f32 %v8643, %v8687
    %v8689 = vpop.f32.mrb[0].mxu0
    %v8690 = vpop.f32.mrb[0].mxu0
    %8691 = vdwg.mxu0
    %8692 = vmatprep.subr.bf16.mxu0 0
    %8693 = vmatpush1.bf16.msra.mxu0 %v8584
    %8694 = vmatprep.subr.bf16.mxu0 0
    %8695 = vmatpush1.bf16.msra.mxu0 %v8587
    %8696 = vmatprep.subr.bf16.mxu0 0
    %8697 = vmatpush1.bf16.msra.mxu0 %v8590
    %8698 = vmatprep.subr.bf16.mxu0 0
    %8699 = vmatpush1.bf16.msra.mxu0 %v8593
    %8700 = vmatprep.subr.bf16.mxu0 0
    %8701 = vmatpush1.bf16.msra.mxu0 %v8596
    %8702 = vmatprep.subr.bf16.mxu0 0
    %8703 = vmatpush1.bf16.msra.mxu0 %v8599
    %8704 = vmatprep.subr.bf16.mxu0 0
    %8705 = vmatpush1.bf16.msra.mxu0 %v8602
    %8706 = vmatprep.subr.bf16.mxu0 0
    %8707 = vmatpush1.bf16.msra.mxu0 %v8605
    %8708 = vmatprep.subr.bf16.mxu0 0
    %8709 = vmatpush1.bf16.msra.mxu0 0
    %8710 = vmatprep.subr.bf16.mxu0 0
    %8711 = vmatpush1.bf16.msra.mxu0 0
    %8712 = vmatprep.subr.bf16.mxu0 0
    %8713 = vmatpush1.bf16.msra.mxu0 0
    %8714 = vmatprep.subr.bf16.mxu0 0
    %8715 = vmatpush1.bf16.msra.mxu0 0
    %8716 = vmatprep.subr.bf16.mxu0 0
    %8717 = vmatpush1.bf16.msra.mxu0 0
    %8718 = vmatprep.subr.bf16.mxu0 0
    %8719 = vmatpush1.bf16.msra.mxu0 0
    %8720 = vmatprep.subr.bf16.mxu0 0
    %8721 = vmatpush1.bf16.msra.mxu0 0
    %8722 = vmatprep.subr.bf16.mxu0 0
    %8723 = vmatpush1.bf16.msra.mxu0 0
    %8724 = vmatprep.mubr.bf16.mxu0 0
    %8725 = vmatmul.mubr.bf16.gmra.mrb[0].mxu0 %v8634
    %v8726 = vpop.f32.mrb[0].mxu0
    %v8727 = vadd.f32 %v8647, %v8726
    %v8728 = vpop.f32.mrb[0].mxu0
    %v8729 = vpop.f32.mrb[0].mxu0
    %v8730 = vpop.f32.mrb[0].mxu0
    %8731 = vdwg.mxu0
    %v8732 = vpack.c.bf16 %v8581, %v8581
    %v8734 = vlaneseq
    %v8735 = vshrl.u32 %v8734, 7
    %v8736 = vsub.s32 0, %v8735
    %v8737 = vrot.slane %v8633, %v8736
    %v8738 = vlaneseq
    %v8739 = vshrl.u32 %v8738, 7
    %v8740 = vsub.s32 1, %v8739
    %v8741 = vrot.slane %v8633, %v8740
    %v8742 = vlaneseq
    %v8743 = vshrl.u32 %v8742, 7
    %v8744 = vsub.s32 2, %v8743
    %v8745 = vrot.slane %v8633, %v8744
    %8749 = vmatprep.subr.bf16.mxu0 %v8607
    %8750 = vmatpush1.bf16.msra.mxu0 %v8606
    %8751 = vmatprep.subr.bf16.mxu0 %v8610
    %8752 = vmatpush1.bf16.msra.mxu0 %v8609
    %8753 = vmatprep.subr.bf16.mxu0 %v8613
    %8754 = vmatpush1.bf16.msra.mxu0 %v8612
    %8755 = vmatprep.subr.bf16.mxu0 %v8616
    %8756 = vmatpush1.bf16.msra.mxu0 %v8615
    %8757 = vmatprep.subr.bf16.mxu0 %v8619
    %8758 = vmatpush1.bf16.msra.mxu0 %v8618
    %8759 = vmatprep.subr.bf16.mxu0 %v8622
    %8760 = vmatpush1.bf16.msra.mxu0 %v8621
    %8761 = vmatprep.subr.bf16.mxu0 %v8625
    %8762 = vmatpush1.bf16.msra.mxu0 %v8624
    %8763 = vmatprep.subr.bf16.mxu0 %v8628
    %8764 = vmatpush1.bf16.msra.mxu0 %v8627
    %8765 = vmatprep.subr.bf16.mxu0 0
    %8766 = vmatpush1.bf16.msra.mxu0 0
    %8767 = vmatprep.subr.bf16.mxu0 0
    %8768 = vmatpush1.bf16.msra.mxu0 0
    %8769 = vmatprep.subr.bf16.mxu0 0
    %8770 = vmatpush1.bf16.msra.mxu0 0
    %8771 = vmatprep.subr.bf16.mxu0 0
    %8772 = vmatpush1.bf16.msra.mxu0 0
    %8773 = vmatprep.subr.bf16.mxu0 0
    %8774 = vmatpush1.bf16.msra.mxu0 0
    %8775 = vmatprep.subr.bf16.mxu0 0
    %8776 = vmatpush1.bf16.msra.mxu0 0
    %8777 = vmatprep.subr.bf16.mxu0 0
    %8778 = vmatpush1.bf16.msra.mxu0 0
    %8779 = vmatprep.subr.bf16.mxu0 0
    %8780 = vmatpush1.bf16.msra.mxu0 0
    %8781 = vmatprep.mubr.bf16.mxu0 0
    %8782 = vmatmul.mubr.bf16.gmra.mrb[0].mxu0 %v8732
    %v8783 = vpop.f32.mrb[0].mxu0
    %v8784 = vadd.f32 %v8737, %v8783
    %v8785 = vpop.f32.mrb[0].mxu0
    %v8786 = vadd.f32 %v8741, %v8785
    %v8787 = vpop.f32.mrb[0].mxu0
    %v8788 = vpop.f32.mrb[0].mxu0
    %8789 = vdwg.mxu0
    %8790 = vmatprep.subr.bf16.mxu0 0
    %8791 = vmatpush1.bf16.msra.mxu0 %v8608
    %8792 = vmatprep.subr.bf16.mxu0 0
    %8793 = vmatpush1.bf16.msra.mxu0 %v8611
    %8794 = vmatprep.subr.bf16.mxu0 0
    %8795 = vmatpush1.bf16.msra.mxu0 %v8614
    %8796 = vmatprep.subr.bf16.mxu0 0
    %8797 = vmatpush1.bf16.msra.mxu0 %v8617
    %8798 = vmatprep.subr.bf16.mxu0 0
    %8799 = vmatpush1.bf16.msra.mxu0 %v8620
    %8800 = vmatprep.subr.bf16.mxu0 0
    %8801 = vmatpush1.bf16.msra.mxu0 %v8623
    %8802 = vmatprep.subr.bf16.mxu0 0
    %8803 = vmatpush1.bf16.msra.mxu0 %v8626
    %8804 = vmatprep.subr.bf16.mxu0 0
    %8805 = vmatpush1.bf16.msra.mxu0 %v8629
    %8806 = vmatprep.subr.bf16.mxu0 0
    %8807 = vmatpush1.bf16.msra.mxu0 0
    %8808 = vmatprep.subr.bf16.mxu0 0
    %8809 = vmatpush1.bf16.msra.mxu0 0
    %8810 = vmatprep.subr.bf16.mxu0 0
    %8811 = vmatpush1.bf16.msra.mxu0 0
    %8812 = vmatprep.subr.bf16.mxu0 0
    %8813 = vmatpush1.bf16.msra.mxu0 0
    %8814 = vmatprep.subr.bf16.mxu0 0
    %8815 = vmatpush1.bf16.msra.mxu0 0
    %8816 = vmatprep.subr.bf16.mxu0 0
    %8817 = vmatpush1.bf16.msra.mxu0 0
    %8818 = vmatprep.subr.bf16.mxu0 0
    %8819 = vmatpush1.bf16.msra.mxu0 0
    %8820 = vmatprep.subr.bf16.mxu0 0
    %8821 = vmatpush1.bf16.msra.mxu0 0
    %8822 = vmatprep.mubr.bf16.mxu0 0
    %8823 = vmatmul.mubr.bf16.gmra.mrb[0].mxu0 %v8732
    %v8824 = vpop.f32.mrb[0].mxu0
    %v8825 = vadd.f32 %v8745, %v8824
    %v8826 = vpop.f32.mrb[0].mxu0
    %v8827 = vpop.f32.mrb[0].mxu0
    %v8828 = vpop.f32.mrb[0].mxu0
    %8829 = vdwg.mxu0
    %v8830 = vadd.f32 %v8686, %v8784
    %v8831 = vxor.u32 %v8830, 2147483648
    %v8832 = vmul.f32 %v8831, 1.442695
    %v8833 = vpow.pop %v8832
    %v8834 = vadd.f32 %v8833, 1.0
    %v8835 = vrcp.pop %v8834
    %v8836 = vmul.f32 1.0, %v8835
    %v8837 = vadd.f32 %v8688, %v8786
    %v8838 = vxor.u32 %v8837, 2147483648
    %v8839 = vmul.f32 %v8838, 1.442695
    %v8840 = vpow.pop %v8839
    %v8841 = vadd.f32 %v8840, 1.0
    %v8842 = vrcp.pop %v8841
    %v8843 = vmul.f32 1.0, %v8842
    %v8844 = vmul.f32 %v8836, %v8825
    %v8845 = vadd.f32 %v8727, %v8844
    %v8846 = vtanh.pop %v8845
    %v8847 = vsub.f32 1.0, %v8843
    %v8848 = vmul.f32 %v8847, %v8846
    %v8849 = vmul.f32 %v8843, %v8581
    %v8850 = vadd.f32 %v8848, %v8849
    %s8851 = scalar_lea.vmem [#allocation34], 32
    %8852 = vst [vmem:[%s8851] sm:$0xff] %v8850
    %8853 = vadd.xlane.f32.xlu0 %v8850
    %v8854 = vpop.xlane.xlu0 %8853
    %v8855 = vmul.f32 %v8854, %v7570
    %v8856 = vsub.f32 %v8850, %v8855
    %v8857 = vmul.f32 %v8856, %v8856
    %8858 = vadd.xlane.f32.xlu0 %v8857
    %v8859 = vpop.xlane.xlu0 %8858
    %v8860 = vmul.f32 %v8859, %v7570
    %v8861 = vadd.f32 %v8860, 1e-05
    %v8862 = vrsqrt.pop %v8861
    %v8863 = vmul.f32 %v8856, %v8862
    %s8864 = scalar_lea.vmem %s47, 3
    %v8865 = vld [vmem:[%s8864] sm:$0x1]
    %v8867 = vlaneseq
    %v8868 = vshrl.u32 %v8867, 7
    %v8869 = vsub.s32 0, %v8868
    %v8870 = vrot.slane %v8865, %v8869
    %v8872 = vmul.f32 %v8863, %v8870
    %s8873 = scalar_lea.vmem %s49, 3
    %v8874 = vld [vmem:[%s8873] sm:$0x1]
    %v8876 = vlaneseq
    %v8877 = vshrl.u32 %v8876, 7
    %v8878 = vsub.s32 0, %v8877
    %v8879 = vrot.slane %v8874, %v8878
    %v8881 = vadd.f32 %v8872, %v8879
    %v8882 = vadd.f32 %v8881, %v8508
    %v8883 = vpack.c.bf16 %v8882, %v8882
    %v8884 = vld [vmem:[#allocation32] sm:$0xf]
    %v8885 = vld [vmem:[#allocation32 + $0x4] sm:$0xf]
    %v8886 = vld [vmem:[#allocation32 + $0x8] sm:$0xf]
    %v8887 = vld [vmem:[#allocation32 + $0xc] sm:$0xf]
    %v8888 = vld [vmem:[#allocation32 + $0x10] sm:$0xf]
    %v8889 = vld [vmem:[#allocation32 + $0x14] sm:$0xf]
    %v8890 = vld [vmem:[#allocation32 + $0x18] sm:$0xf]
    %v8891 = vld [vmem:[#allocation32 + $0x1c] sm:$0xf]
    %v8892 = vld [vmem:[#allocation32 + $0x20] sm:$0xf]
    %v8893 = vld [vmem:[#allocation32 + $0x24] sm:$0xf]
    %v8894 = vld [vmem:[#allocation32 + $0x28] sm:$0xf]
    %v8895 = vld [vmem:[#allocation32 + $0x2c] sm:$0xf]
    %v8896 = vld [vmem:[#allocation32 + $0x30] sm:$0xf]
    %v8897 = vld [vmem:[#allocation32 + $0x34] sm:$0xf]
    %v8898 = vld [vmem:[#allocation32 + $0x38] sm:$0xf]
    %v8899 = vld [vmem:[#allocation32 + $0x3c] sm:$0xf]
    %v8900 = vld [vmem:[#allocation32 + $0x40] sm:$0xf]
    %v8901 = vld [vmem:[#allocation32 + $0x44] sm:$0xf]
    %v8902 = vld [vmem:[#allocation32 + $0x48] sm:$0xf]
    %v8903 = vld [vmem:[#allocation32 + $0x4c] sm:$0xf]
    %v8904 = vld [vmem:[#allocation32 + $0x50] sm:$0xf]
    %v8905 = vld [vmem:[#allocation32 + $0x54] sm:$0xf]
    %v8906 = vld [vmem:[#allocation32 + $0x58] sm:$0xf]
    %v8907 = vld [vmem:[#allocation32 + $0x5c] sm:$0xf]
    %v8908 = vld [vmem:[#allocation32 + $0x60] sm:$0xf]
    %v8909 = vld [vmem:[#allocation32 + $0x64] sm:$0xf]
    %v8910 = vld [vmem:[#allocation32 + $0x68] sm:$0xf]
    %v8911 = vld [vmem:[#allocation32 + $0x6c] sm:$0xf]
    %v8912 = vld [vmem:[#allocation32 + $0x70] sm:$0xf]
    %v8913 = vld [vmem:[#allocation32 + $0x74] sm:$0xf]
    %v8914 = vld [vmem:[#allocation32 + $0x78] sm:$0xf]
    %v8915 = vld [vmem:[#allocation32 + $0x7c] sm:$0xf]
    %v8916 = vld [vmem:[%s53] sm:$0x1]
    %v8918 = vlaneseq
    %v8919 = vshrl.u32 %v8918, 7
    %v8920 = vsub.s32 0, %v8919
    %v8921 = vrot.slane %v8916, %v8920
    %v8955 = vunpack.c.l.b16 %v8884
    %v8956 = vunpack.c.l.b16 %v8885
    %v8957 = vunpack.c.l.b16 %v8886
    %v8958 = vunpack.c.l.b16 %v8887
    %v8959 = vunpack.c.l.b16 %v8888
    %v8960 = vunpack.c.l.b16 %v8889
    %v8961 = vunpack.c.l.b16 %v8890
    %v8962 = vunpack.c.l.b16 %v8891
    %v8963 = vunpack.c.l.b16 %v8892
    %v8964 = vunpack.c.l.b16 %v8893
    %v8965 = vunpack.c.l.b16 %v8894
    %v8966 = vunpack.c.l.b16 %v8895
    %v8967 = vunpack.c.l.b16 %v8896
    %v8968 = vunpack.c.l.b16 %v8897
    %v8969 = vunpack.c.l.b16 %v8898
    %v8970 = vunpack.c.l.b16 %v8899
    %v8971 = vunpack.c.l.b16 %v8900
    %v8972 = vunpack.c.l.b16 %v8901
    %v8973 = vunpack.c.l.b16 %v8902
    %v8974 = vunpack.c.l.b16 %v8903
    %v8975 = vunpack.c.l.b16 %v8904
    %v8976 = vunpack.c.l.b16 %v8905
    %v8977 = vunpack.c.l.b16 %v8906
    %v8978 = vunpack.c.l.b16 %v8907
    %v8979 = vunpack.c.l.b16 %v8908
    %v8980 = vunpack.c.l.b16 %v8909
    %v8981 = vunpack.c.l.b16 %v8910
    %v8982 = vunpack.c.l.b16 %v8911
    %v8983 = vunpack.c.l.b16 %v8912
    %v8984 = vunpack.c.l.b16 %v8913
    %v8985 = vunpack.c.l.b16 %v8914
    %v8986 = vunpack.c.l.b16 %v8915
    %v8987 = vpack.c.b16 %v8956, %v8955
    %v8988 = vpack.c.b16 %v8958, %v8957
    %v8989 = vpack.c.b16 %v8960, %v8959
    %v8990 = vpack.c.b16 %v8962, %v8961
    %v8991 = vpack.c.b16 %v8964, %v8963
    %v8992 = vpack.c.b16 %v8966, %v8965
    %v8993 = vpack.c.b16 %v8968, %v8967
    %v8994 = vpack.c.b16 %v8970, %v8969
    %v8995 = vpack.c.b16 %v8972, %v8971
    %v8996 = vpack.c.b16 %v8974, %v8973
    %v8997 = vpack.c.b16 %v8976, %v8975
    %v8998 = vpack.c.b16 %v8978, %v8977
    %v8999 = vpack.c.b16 %v8980, %v8979
    %v9000 = vpack.c.b16 %v8982, %v8981
    %v9001 = vpack.c.b16 %v8984, %v8983
    %v9002 = vpack.c.b16 %v8986, %v8985
    %9019 = vmatprep.subr.bf16.mxu0 0
    %9020 = vmatpush1.bf16.msra.mxu0 %v8987
    %9021 = vmatprep.subr.bf16.mxu0 0
    %9022 = vmatpush1.bf16.msra.mxu0 %v8988
    %9023 = vmatprep.subr.bf16.mxu0 0
    %9024 = vmatpush1.bf16.msra.mxu0 %v8989
    %9025 = vmatprep.subr.bf16.mxu0 0
    %9026 = vmatpush1.bf16.msra.mxu0 %v8990
    %9027 = vmatprep.subr.bf16.mxu0 0
    %9028 = vmatpush1.bf16.msra.mxu0 %v8991
    %9029 = vmatprep.subr.bf16.mxu0 0
    %9030 = vmatpush1.bf16.msra.mxu0 %v8992
    %9031 = vmatprep.subr.bf16.mxu0 0
    %9032 = vmatpush1.bf16.msra.mxu0 %v8993
    %9033 = vmatprep.subr.bf16.mxu0 0
    %9034 = vmatpush1.bf16.msra.mxu0 %v8994
    %9035 = vmatprep.subr.bf16.mxu0 0
    %9036 = vmatpush1.bf16.msra.mxu0 %v8995
    %9037 = vmatprep.subr.bf16.mxu0 0
    %9038 = vmatpush1.bf16.msra.mxu0 %v8996
    %9039 = vmatprep.subr.bf16.mxu0 0
    %9040 = vmatpush1.bf16.msra.mxu0 %v8997
    %9041 = vmatprep.subr.bf16.mxu0 0
    %9042 = vmatpush1.bf16.msra.mxu0 %v8998
    %9043 = vmatprep.subr.bf16.mxu0 0
    %9044 = vmatpush1.bf16.msra.mxu0 %v8999
    %9045 = vmatprep.subr.bf16.mxu0 0
    %9046 = vmatpush1.bf16.msra.mxu0 %v9000
    %9047 = vmatprep.subr.bf16.mxu0 0
    %9048 = vmatpush1.bf16.msra.mxu0 %v9001
    %9049 = vmatprep.subr.bf16.mxu0 0
    %9050 = vmatpush1.bf16.msra.mxu0 %v9002
    %9051 = vmatprep.mubr.bf16.mxu0 %v7233
    %9052 = vmatmul.mubr.bf16.gmra.mrb[0].mxu0 %v8883
    %v9053 = vpop.f32.mrb[0].mxu0
    %v9054 = vadd.f32 %v8921, %v9053
    %v9055 = vpop.f32.mrb[0].mxu0
    %v9056 = vpop.f32.mrb[0].mxu0
    %v9057 = vpop.f32.mrb[0].mxu0
    %9058 = vdwg.mxu0
    %9059 = vst [vmem:[#allocation33] sm:$0xff] %v9054
    // Predicated region
    $region182: #{tpu_custom_call.1} parent=1 // pred_check
      _
    $region183: #{tpu_custom_call.1} parent=1 // pred_check_branch
      %9061 = sbr.rel (0) target = $region185
    $region184: #{tpu_custom_call.1} parent=1 // pred_region
      %s9063 = ssub.s32 128, 128
      %9064 = vsyncadd [#allocation8], %s9063
      %s9066 = sshll.u32 [#allocation33], 4
      %s9067 = int_to_ptr.vmem [resolvable:$true] %s9066
      %9069 = dma.vmem_to_hbm [thread:$0]  %s9067, 128, %s55, [#allocation8]
    $region185: #{tpu_custom_call.1} parent=1 // pred_fallthru
      _
    // Predicated region
    $region186: #{tpu_custom_call.1} parent=1 // pred_check
      _
    $region187: #{tpu_custom_call.1} parent=1 // pred_check_branch
      %9071 = sbr.rel (0) target = $region189
    $region188: #{tpu_custom_call.1} parent=1 // pred_region
      %s9073 = ssub.s32 640, 640
      %9074 = vsyncadd [#allocation35], %s9073
      %s9075 = sshll.u32 [#allocation34], 4
      %s9076 = int_to_ptr.vmem [resolvable:$true] %s9075
      %9081 = dma.vmem_to_hbm [thread:$0]  %s9076, 640, %s57, [#allocation35], 128, 128, 8
    $region189: #{tpu_custom_call.1} parent=1 // pred_fallthru
      _
    // Predicated region
    $region190: #{tpu_custom_call.1} parent=1 // pred_check
      _
    $region191: #{tpu_custom_call.1} parent=1 // pred_check_branch
      %9083 = sbr.rel (0) target = $region193
    $region192: #{tpu_custom_call.1} parent=1 // pred_region
      %s9085 = ssub.s32 128, 128
      %9086 = vsyncadd [#allocation35], %s9085
      %s9087 = sshll.u32 [#allocation36], 4
      %s9088 = int_to_ptr.vmem [resolvable:$true] %s9087
      %9093 = dma.vmem_to_hbm [thread:$0]  %s9088, 128, %s59, [#allocation35], 16, 16, 1
    $region193: #{tpu_custom_call.1} parent=1 // pred_fallthru
      _
    // Predicated region
    $region194: #{tpu_custom_call.1} parent=1 // pred_check
      _
    $region195: #{tpu_custom_call.1} parent=1 // pred_check_branch
      %9095 = sbr.rel (0) target = $region197
    $region196: #{tpu_custom_call.1} parent=1 // pred_region
      %9096 = dma.done [#allocation8], 128
    $region197: #{tpu_custom_call.1} parent=1 // pred_fallthru
      _
    // Predicated region
    $region198: #{tpu_custom_call.1} parent=1 // pred_check
      _
    $region199: #{tpu_custom_call.1} parent=1 // pred_check_branch
      %9098 = sbr.rel (0) target = $region201
    $region200: #{tpu_custom_call.1} parent=1 // pred_region
      %9099 = dma.done [#allocation35], 640
    $region201: #{tpu_custom_call.1} parent=1 // pred_fallthru
      _
    // Predicated region
    $region202: #{tpu_custom_call.1} parent=1 // pred_check
      _
    $region203: #{tpu_custom_call.1} parent=1 // pred_check_branch
      %9101 = sbr.rel (0) target = $region205
    $region204: #{tpu_custom_call.1} parent=1 // pred_region
      %9102 = dma.done [#allocation35], 128
    $region205: #{tpu_custom_call.1} parent=1 // pred_fallthru
      _
    %9103 = vsyncpa [#allocation7], 1
    %9104 = vsyncpa [#allocation10], 1
    %9105 = vsyncpa [#allocation13], 1
    %9106 = vsyncpa [#allocation16], 1
    %9107 = vsyncpa [#allocation19], 1
    %9108 = vsyncpa [#allocation22], 1
    %9109 = vsyncpa [#allocation25], 1
    %9110 = vsyncpa [#allocation28], 1
    %9111 = vsyncpa [#allocation31], 1
    %9112 = vsyncpa [#allocation8], 1
    %9113 = vsyncpa [#allocation35], 1
  %9114 = vsyncmov [#allocation5]
  %s9115 = vpop.sfrf %9114
  %p9116 = scmp.eq.s32.totalorder %s9115, 0
  %p9117 = pneg %p9116
  %9119 = shalt.err (%p9117)
  %s9120 = scalar_lea.sflag [#allocation5], 1
  %9121 = vsyncmov %s9120
  %s9122 = vpop.sfrf %9121
  %p9123 = scmp.eq.s32.totalorder %s9122, 0
  %p9124 = pneg %p9123
  %9126 = shalt.err (%p9124)
  %s9127 = scalar_lea.sflag [#allocation5], 2
  %9128 = vsyncmov %s9127
  %s9129 = vpop.sfrf %9128
  %p9130 = scmp.eq.s32.totalorder %s9129, 0
  %p9131 = pneg %p9130
  %9133 = shalt.err (%p9131)
  %s9134 = scalar_lea.sflag [#allocation5], 3
  %9135 = vsyncmov %s9134
  %s9136 = vpop.sfrf %9135
  %p9137 = scmp.eq.s32.totalorder %s9136, 0
  %p9138 = pneg %p9137
  %9140 = shalt.err (%p9138)
  %s9141 = scalar_lea.sflag [#allocation5], 4
  %9142 = vsyncmov %s9141
  %s9143 = vpop.sfrf %9142
  %p9144 = scmp.eq.s32.totalorder %s9143, 0
  %p9145 = pneg %p9144
  %9147 = shalt.err (%p9145)
  %s9148 = scalar_lea.sflag [#allocation5], 5
  %9149 = vsyncmov %s9148
  %s9150 = vpop.sfrf %9149
  %p9151 = scmp.eq.s32.totalorder %s9150, 0
  %p9152 = pneg %p9151
  %9154 = shalt.err (%p9152)

</llo_original>
